<compile_context>
chip_gen: v5e
topology: v5e:2x2
jax: 0.10.0
libtpu: 0.0.40
codegen_flags: <defaults>
</compile_context>

<pallas_src>
import jax
import jax.numpy as jnp
from jax.experimental import pallas as pl
from jax.experimental.pallas import tpu as pltpu

B_BLK = 8  # images per grid step (fits v5e's 16 MiB default scoped VMEM in f32)


# ----------------------------------------------------------------------------
# Pallas kernels
# ----------------------------------------------------------------------------
def conv_pool_relu_kernel(p_ref, w_ref, b_ref, o_ref):
    """p_ref: (B*4*Pp, Kp) im2col patches for B images (4 = 2x2 pool phases),
       w_ref: (Kp, Cout) flattened conv weight (K zero-padded),
       b_ref: (1, Cout) bias,
       o_ref: (B, Pp, Cout) = relu(maxpool2(conv(x)) + bias), channels-last.
       One MXU matmul for the whole block; max over pool phases afterwards."""
    B, PP, C = o_ref.shape
    y = jnp.dot(p_ref[...], w_ref[...], preferred_element_type=jnp.float32)
    y = y.reshape(B, 4, PP, C)          # tile-aligned (PP % 8 == 0) -> free
    y = jnp.max(y, axis=1)              # max over the 4 pool phases
    # max(conv + b) == max(conv) + b since bias is constant per channel
    o_ref[...] = jnp.maximum(y + b_ref[...], 0.0)


def mlp_logsoftmax_kernel(x_ref, w1_ref, b1_ref, w2_ref, b2_ref, o_ref):
    """x_ref: (B, 640) zero-padded features; w1: (640, 50); w2: (50, 10);
       out: (B, 10) log-probs."""
    h = jnp.dot(x_ref[...], w1_ref[...], preferred_element_type=jnp.float32)
    h = jnp.maximum(h + b1_ref[...], 0.0)
    logits = jnp.dot(h, w2_ref[...], preferred_element_type=jnp.float32) + b2_ref[...]
    m = jnp.max(logits, axis=-1, keepdims=True)
    z = logits - m
    lse = jnp.log(jnp.sum(jnp.exp(z), axis=-1, keepdims=True))
    o_ref[...] = z - lse


# ----------------------------------------------------------------------------
# pallas_call wrappers
# ----------------------------------------------------------------------------
def conv_block(patches_flat, w_flat, bias_row, *, n_blocks, p_pad):
    """patches_flat: (Npad*4*p_pad, Kp); w_flat: (Kp, Cout); bias_row: (1, Cout).
       Returns (Npad, p_pad, Cout)."""
    rows_per_blk = patches_flat.shape[0] // n_blocks        # = B_BLK * 4 * p_pad
    kp = patches_flat.shape[1]
    cout = w_flat.shape[1]
    npad = n_blocks * B_BLK
    return pl.pallas_call(
        conv_pool_relu_kernel,
        out_shape=jax.ShapeDtypeStruct((npad, p_pad, cout), jnp.float32),
        grid=(n_blocks,),
        in_specs=[
            pl.BlockSpec((rows_per_blk, kp), lambda n: (n, 0)),
            pl.BlockSpec((kp, cout), lambda n: (0, 0)),
            pl.BlockSpec((1, cout), lambda n: (0, 0)),
        ],
        out_specs=pl.BlockSpec((B_BLK, p_pad, cout), lambda n: (n, 0, 0)),
        compiler_params=pltpu.CompilerParams(
            dimension_semantics=("parallel",)),
    )(patches_flat, w_flat, bias_row)


def mlp_head(x, w1, b1, w2, b2, *, n_blocks):
    """x: (Npad, 640). Returns (Npad, 10) log-softmax, tiled over the batch."""
    npad, k = x.shape
    return pl.pallas_call(
        mlp_logsoftmax_kernel,
        out_shape=jax.ShapeDtypeStruct((npad, 10), jnp.float32),
        grid=(n_blocks,),
        in_specs=[
            pl.BlockSpec((B_BLK, k), lambda n: (n, 0)),
            pl.BlockSpec(w1.shape, lambda n: (0, 0)),
            pl.BlockSpec(b1.shape, lambda n: (0, 0)),
            pl.BlockSpec(w2.shape, lambda n: (0, 0)),
            pl.BlockSpec(b2.shape, lambda n: (0, 0)),
        ],
        out_specs=pl.BlockSpec((B_BLK, 10), lambda n: (n, 0)),
        compiler_params=pltpu.CompilerParams(
            dimension_semantics=("parallel",)),
    )(x, w1, b1, w2, b2)


# ----------------------------------------------------------------------------
# Plain-JAX glue: im2col that folds the 2x2 max-pool phases into an axis,
# zero-padded to (8,128)-friendly shapes and pre-flattened to 2D.
# ----------------------------------------------------------------------------
def im2col_pooled(x_nhwc, ksize, pooled, p_pad, k_pad):
    """x_nhwc: (N, H, W, C).  Returns (N*4*p_pad, k_pad) where row
       (n*4 + 2a+b)*p_pad + (i*pooled+j), column (dy*k+dx)*C + c holds
       x_nhwc[n, 2i + a + dy, 2j + b + dx, c]; padding is zeros."""
    N = x_nhwc.shape[0]
    C = x_nhwc.shape[3]
    phases = []
    for a in range(2):
        for b in range(2):
            feats = []
            for dy in range(ksize):
                for dx in range(ksize):
                    patch = x_nhwc[:, a + dy: a + dy + 2 * pooled: 2,
                                      b + dx: b + dx + 2 * pooled: 2, :]
                    feats.append(patch)  # (N, pooled, pooled, C)
            phases.append(jnp.stack(feats, axis=3))  # (N, pooled, pooled, k*k, C)
    p = jnp.stack(phases, axis=1)                    # (N, 4, pooled, pooled, k*k, C)
    p = p.reshape(N, 4, pooled * pooled, ksize * ksize * C)
    p = jnp.pad(p, ((0, 0), (0, 0),
                    (0, p_pad - pooled * pooled),
                    (0, k_pad - ksize * ksize * C)))
    return p.reshape(N * 4 * p_pad, k_pad)


def flatten_conv_weight(w, k_pad):
    """PyTorch conv weight (O, Cin, kh, kw) -> (k_pad, O) matching im2col order,
       zero-padded along the contraction dim."""
    o, cin, kh, kw = w.shape
    wf = jnp.transpose(w, (2, 3, 1, 0)).reshape(kh * kw * cin, o)
    return jnp.pad(wf, ((0, k_pad - kh * kw * cin), (0, 0)))


# ----------------------------------------------------------------------------
# Full forward pass
# ----------------------------------------------------------------------------
def svhn_classifier_forward(x_nchw, params):
    N = x_nchw.shape[0]
    npad = ((N + B_BLK - 1) // B_BLK) * B_BLK
    n_blocks = npad // B_BLK

    x = jnp.transpose(x_nchw, (0, 2, 3, 1)).astype(jnp.float32)  # NCHW -> NHWC
    if npad != N:
        x = jnp.pad(x, ((0, npad - N), (0, 0), (0, 0), (0, 0)))

    # conv1 (3->10, k=5) + maxpool2 + relu : 32x32 -> 28x28 -> 14x14
    # P = 196 -> 200, K = 75 -> 128
    p1 = im2col_pooled(x, 5, 14, 200, 128)                       # (npad*800, 128)
    h1 = conv_block(p1, flatten_conv_weight(params["conv1_w"], 128),
                    params["conv1_b"].reshape(1, -1),
                    n_blocks=n_blocks, p_pad=200)                # (npad, 200, 10)
    h1 = h1[:, :196, :].reshape(npad, 14, 14, 10)

    # conv2 (10->20, k=5) + dropout2d(identity) + maxpool2 + relu : 14 -> 10 -> 5
    # P = 25 -> 32, K = 250 -> 256
    p2 = im2col_pooled(h1, 5, 5, 32, 256)                        # (npad*128, 256)
    h2 = conv_block(p2, flatten_conv_weight(params["conv2_w"], 256),
                    params["conv2_b"].reshape(1, -1),
                    n_blocks=n_blocks, p_pad=32)                 # (npad, 32, 20)

    # Flatten (p, c)-major including the 7 padded spatial rows -> (npad, 640).
    # fc1's weight is permuted from PyTorch's (c, h, w)-major view(-1, 500)
    # ordering to (p, c)-major and zero-padded over the pad rows, so no
    # transpose and no slice are needed (and K=640 is lane-aligned).
    feat = h2.reshape(npad, 640)
    w1_pcf = params["fc1_w"].T.reshape(20, 25, 50).transpose(1, 0, 2)  # (25,20,50)
    w1_full = jnp.zeros((32, 20, 50), jnp.float32).at[:25].set(w1_pcf)
    w1_full = w1_full.reshape(640, 50)

    # fc1 -> relu -> dropout(identity) -> fc2 -> log_softmax
    out = mlp_head(feat,
                   w1_full, params["fc1_b"].reshape(1, -1),
                   params["fc2_w"].T, params["fc2_b"].reshape(1, -1),
                   n_blocks=n_blocks)
    return out[:N]


# ----------------------------------------------------------------------------
# Pure-JAX reference (eval-mode) for correctness checking
# ----------------------------------------------------------------------------
def reference_forward(x_nchw, params):
    hp = jax.lax.Precision.HIGHEST
    x = x_nchw.astype(jnp.float32)

    def conv(x, w, b):
        y = jax.lax.conv_general_dilated(
            x, w, (1, 1), "VALID",
            dimension_numbers=("NCHW", "OIHW", "NCHW"), precision=hp)
        return y + b.reshape(1, -1, 1, 1)

    def maxpool2(x):
        return jax.lax.reduce_window(x, -jnp.inf, jax.lax.max,
                                     (1, 1, 2, 2), (1, 1, 2, 2), "VALID")

    y = jnp.maximum(maxpool2(conv(x, params["conv1_w"], params["conv1_b"])), 0.0)
    y = jnp.maximum(maxpool2(conv(y, params["conv2_w"], params["conv2_b"])), 0.0)
    y = y.reshape(y.shape[0], -1)                                 # (N, 500), (c,h,w)-major
    y = jnp.maximum(jnp.dot(y, params["fc1_w"].T, precision=hp) + params["fc1_b"], 0.0)
    logits = jnp.dot(y, params["fc2_w"].T, precision=hp) + params["fc2_b"]
    return jax.nn.log_softmax(logits, axis=-1)


# ----------------------------------------------------------------------------
# Deterministic parameter init (PyTorch shapes; uniform(+-1/sqrt(fan_in)))
# ----------------------------------------------------------------------------
def init_params(key):
    def u(key, shape, fan_in):
        bound = 1.0 / jnp.sqrt(jnp.float32(fan_in))
        return jax.random.uniform(key, shape, jnp.float32, -bound, bound)

    ks = jax.random.split(key, 8)
    return {
        "conv1_w": u(ks[0], (10, 3, 5, 5), 3 * 5 * 5),
        "conv1_b": u(ks[1], (10,), 3 * 5 * 5),
        "conv2_w": u(ks[2], (20, 10, 5, 5), 10 * 5 * 5),
        "conv2_b": u(ks[3], (20,), 10 * 5 * 5),
        "fc1_w":   u(ks[4], (50, 500), 500),
        "fc1_b":   u(ks[5], (50,), 500),
        "fc2_w":   u(ks[6], (10, 50), 50),
        "fc2_b":   u(ks[7], (10,), 50),
    }


if __name__ == "__main__":
    key = jax.random.PRNGKey(0)
    k_param, k_x = jax.random.split(key)
    params = init_params(k_param)

    # SVHN-shaped input: the 500-wide flatten in forward() implies 3x32x32.
    x = jax.random.normal(k_x, (2, 3, 32, 32), dtype=jnp.float32)

    out = jax.jit(svhn_classifier_forward)(x, params)
    out = jax.block_until_ready(out)

    assert out.shape == (2, 10), out.shape
    assert bool(jnp.all(jnp.isfinite(out)))
    # log_softmax rows must exponentiate-sum to ~1
    row_sums = jnp.sum(jnp.exp(out), axis=-1)
    assert bool(jnp.all(jnp.abs(row_sums - 1.0) < 1e-3)), row_sums
    # compare against a pure-JAX reference of the PyTorch module
    ref = jax.block_until_ready(jax.jit(reference_forward)(x, params))
    max_err = jnp.max(jnp.abs(out - ref))
    assert bool(max_err < 2e-2), max_err

    print("KERNEL_OK")
</pallas_src>

<mosaic_0001>
module attributes {stable_mosaic.version = 11 : i64} {
  func.func @conv_pool_relu_kernel(%arg0: i32, %arg1: memref<6400x128xf32, #tpu.memory_space<vmem>>, %arg2: memref<128x10xf32, #tpu.memory_space<vmem>>, %arg3: memref<1x10xf32, #tpu.memory_space<vmem>>, %arg4: memref<8x200x10xf32, #tpu.memory_space<vmem>>) attributes {dimension_semantics = [#tpu.dimension_semantics<parallel>], iteration_bounds = array<i64: 1>, scalar_prefetch = 0 : i64, scratch_operands = 0 : i64, tpu.core_type = #tpu.core_type<tc>, window_params = [{transform_indices = @transform_0, window_bounds = array<i64: 6400, 128>}, {pipeline_mode = #tpu.pipeline_mode<synchronous>, transform_indices = @transform_1, window_bounds = array<i64: 128, 10>}, {pipeline_mode = #tpu.pipeline_mode<synchronous>, transform_indices = @transform_2, window_bounds = array<i64: 1, 10>}, {transform_indices = @transform_3, window_bounds = array<i64: 8, 200, 10>}]} {
    %c0 = arith.constant 0 : index
    %c0_0 = arith.constant 0 : index
    %0 = vector.load %arg1[%c0, %c0_0] : memref<6400x128xf32, #tpu.memory_space<vmem>>, vector<6400x128xf32>
    %c0_1 = arith.constant 0 : index
    %c0_2 = arith.constant 0 : index
    %1 = vector.load %arg2[%c0_1, %c0_2] : memref<128x10xf32, #tpu.memory_space<vmem>>, vector<128x10xf32>
    %cst = arith.constant dense<0.000000e+00> : vector<6400x10xf32>
    %2 = tpu.matmul %0, %1, %cst {dimension_numbers = #tpu.dot_dimension_numbers<[1], [0], [0], [1], [0, 0, 1, 1], [], []>} : vector<6400x128xf32>, vector<128x10xf32>, vector<6400x10xf32> -> vector<6400x10xf32>
    %3 = vector.shape_cast %2 : vector<6400x10xf32> to vector<8x4x200x10xf32>
    %cst_3 = arith.constant dense<0xFF800000> : vector<8x200x10xf32>
    %4 = vector.multi_reduction <maximumf>, %3, %cst_3 [1] : vector<8x4x200x10xf32> to vector<8x200x10xf32>
    %c0_4 = arith.constant 0 : index
    %c0_5 = arith.constant 0 : index
    %5 = vector.load %arg3[%c0_4, %c0_5] : memref<1x10xf32, #tpu.memory_space<vmem>>, vector<1x10xf32>
    %6 = vector.shape_cast %5 : vector<1x10xf32> to vector<1x1x10xf32>
    %7 = vector.broadcast %6 : vector<1x1x10xf32> to vector<8x200x10xf32>
    %8 = arith.addf %4, %7 : vector<8x200x10xf32>
    %cst_6 = arith.constant 0.000000e+00 : f32
    %9 = vector.broadcast %cst_6 : f32 to vector<8x200x10xf32>
    %10 = arith.maximumf %8, %9 : vector<8x200x10xf32>
    %c0_7 = arith.constant 0 : index
    %c0_8 = arith.constant 0 : index
    %c0_9 = arith.constant 0 : index
    %11 = vector.load %arg4[%c0_7, %c0_8, %c0_9] : memref<8x200x10xf32, #tpu.memory_space<vmem>>, vector<8x200x10xf32>
    tpu.vector_store %arg4[%c0_7, %c0_8, %c0_9], %10 {strides = array<i32>} : memref<8x200x10xf32, #tpu.memory_space<vmem>>, vector<8x200x10xf32>,
    return
  }
  func.func @transform_0(%arg0: i32) -> (i32, i32) {
    %c0_i32 = arith.constant 0 : i32
    %c0_i32_0 = arith.constant 0 : i32
    return %arg0, %c0_i32 : i32, i32
  }
  func.func @transform_1(%arg0: i32) -> (i32, i32) {
    %c0_i32 = arith.constant 0 : i32
    %c0_i32_0 = arith.constant 0 : i32
    %c0_i32_1 = arith.constant 0 : i32
    return %c0_i32, %c0_i32_0 : i32, i32
  }
  func.func @transform_2(%arg0: i32) -> (i32, i32) {
    %c0_i32 = arith.constant 0 : i32
    %c0_i32_0 = arith.constant 0 : i32
    %c0_i32_1 = arith.constant 0 : i32
    return %c0_i32, %c0_i32_0 : i32, i32
  }
  func.func @transform_3(%arg0: i32) -> (i32, i32, i32) {
    %c0_i32 = arith.constant 0 : i32
    %c0_i32_0 = arith.constant 0 : i32
    %c0_i32_1 = arith.constant 0 : i32
    return %arg0, %c0_i32, %c0_i32_0 : i32, i32, i32
  }
}

module attributes {stable_mosaic.version = 11 : i64} {
  func.func @conv_pool_relu_kernel(%arg0: i32, %arg1: memref<1024x256xf32, #tpu.memory_space<vmem>>, %arg2: memref<256x20xf32, #tpu.memory_space<vmem>>, %arg3: memref<1x20xf32, #tpu.memory_space<vmem>>, %arg4: memref<8x32x20xf32, #tpu.memory_space<vmem>>) attributes {dimension_semantics = [#tpu.dimension_semantics<parallel>], iteration_bounds = array<i64: 1>, scalar_prefetch = 0 : i64, scratch_operands = 0 : i64, tpu.core_type = #tpu.core_type<tc>, window_params = [{transform_indices = @transform_0, window_bounds = array<i64: 1024, 256>}, {pipeline_mode = #tpu.pipeline_mode<synchronous>, transform_indices = @transform_1, window_bounds = array<i64: 256, 20>}, {pipeline_mode = #tpu.pipeline_mode<synchronous>, transform_indices = @transform_2, window_bounds = array<i64: 1, 20>}, {transform_indices = @transform_3, window_bounds = array<i64: 8, 32, 20>}]} {
    %c0 = arith.constant 0 : index
    %c0_0 = arith.constant 0 : index
    %0 = vector.load %arg1[%c0, %c0_0] : memref<1024x256xf32, #tpu.memory_space<vmem>>, vector<1024x256xf32>
    %c0_1 = arith.constant 0 : index
    %c0_2 = arith.constant 0 : index
    %1 = vector.load %arg2[%c0_1, %c0_2] : memref<256x20xf32, #tpu.memory_space<vmem>>, vector<256x20xf32>
    %cst = arith.constant dense<0.000000e+00> : vector<1024x20xf32>
    %2 = tpu.matmul %0, %1, %cst {dimension_numbers = #tpu.dot_dimension_numbers<[1], [0], [0], [1], [0, 0, 1, 1], [], []>} : vector<1024x256xf32>, vector<256x20xf32>, vector<1024x20xf32> -> vector<1024x20xf32>
    %3 = vector.shape_cast %2 : vector<1024x20xf32> to vector<8x4x32x20xf32>
    %cst_3 = arith.constant dense<0xFF800000> : vector<8x32x20xf32>
    %4 = vector.multi_reduction <maximumf>, %3, %cst_3 [1] : vector<8x4x32x20xf32> to vector<8x32x20xf32>
    %c0_4 = arith.constant 0 : index
    %c0_5 = arith.constant 0 : index
    %5 = vector.load %arg3[%c0_4, %c0_5] : memref<1x20xf32, #tpu.memory_space<vmem>>, vector<1x20xf32>
    %6 = vector.shape_cast %5 : vector<1x20xf32> to vector<1x1x20xf32>
    %7 = vector.broadcast %6 : vector<1x1x20xf32> to vector<8x32x20xf32>
    %8 = arith.addf %4, %7 : vector<8x32x20xf32>
    %cst_6 = arith.constant 0.000000e+00 : f32
    %9 = vector.broadcast %cst_6 : f32 to vector<8x32x20xf32>
    %10 = arith.maximumf %8, %9 : vector<8x32x20xf32>
    %c0_7 = arith.constant 0 : index
    %c0_8 = arith.constant 0 : index
    %c0_9 = arith.constant 0 : index
    %11 = vector.load %arg4[%c0_7, %c0_8, %c0_9] : memref<8x32x20xf32, #tpu.memory_space<vmem>>, vector<8x32x20xf32>
    tpu.vector_store %arg4[%c0_7, %c0_8, %c0_9], %10 {strides = array<i32>} : memref<8x32x20xf32, #tpu.memory_space<vmem>>, vector<8x32x20xf32>,
    return
  }
  func.func @transform_0(%arg0: i32) -> (i32, i32) {
    %c0_i32 = arith.constant 0 : i32
    %c0_i32_0 = arith.constant 0 : i32
    return %arg0, %c0_i32 : i32, i32
  }
  func.func @transform_1(%arg0: i32) -> (i32, i32) {
    %c0_i32 = arith.constant 0 : i32
    %c0_i32_0 = arith.constant 0 : i32
    %c0_i32_1 = arith.constant 0 : i32
    return %c0_i32, %c0_i32_0 : i32, i32
  }
  func.func @transform_2(%arg0: i32) -> (i32, i32) {
    %c0_i32 = arith.constant 0 : i32
    %c0_i32_0 = arith.constant 0 : i32
    %c0_i32_1 = arith.constant 0 : i32
    return %c0_i32, %c0_i32_0 : i32, i32
  }
  func.func @transform_3(%arg0: i32) -> (i32, i32, i32) {
    %c0_i32 = arith.constant 0 : i32
    %c0_i32_0 = arith.constant 0 : i32
    %c0_i32_1 = arith.constant 0 : i32
    return %arg0, %c0_i32, %c0_i32_0 : i32, i32, i32
  }
}

module attributes {stable_mosaic.version = 11 : i64} {
  func.func @mlp_logsoftmax_kernel(%arg0: i32, %arg1: memref<8x640xf32, #tpu.memory_space<vmem>>, %arg2: memref<640x50xf32, #tpu.memory_space<vmem>>, %arg3: memref<1x50xf32, #tpu.memory_space<vmem>>, %arg4: memref<50x10xf32, #tpu.memory_space<vmem>>, %arg5: memref<1x10xf32, #tpu.memory_space<vmem>>, %arg6: memref<8x10xf32, #tpu.memory_space<vmem>>) attributes {dimension_semantics = [#tpu.dimension_semantics<parallel>], iteration_bounds = array<i64: 1>, scalar_prefetch = 0 : i64, scratch_operands = 0 : i64, tpu.core_type = #tpu.core_type<tc>, window_params = [{transform_indices = @transform_0, window_bounds = array<i64: 8, 640>}, {pipeline_mode = #tpu.pipeline_mode<synchronous>, transform_indices = @transform_1, window_bounds = array<i64: 640, 50>}, {pipeline_mode = #tpu.pipeline_mode<synchronous>, transform_indices = @transform_2, window_bounds = array<i64: 1, 50>}, {pipeline_mode = #tpu.pipeline_mode<synchronous>, transform_indices = @transform_3, window_bounds = array<i64: 50, 10>}, {pipeline_mode = #tpu.pipeline_mode<synchronous>, transform_indices = @transform_4, window_bounds = array<i64: 1, 10>}, {transform_indices = @transform_5, window_bounds = array<i64: 8, 10>}]} {
    %c0 = arith.constant 0 : index
    %c0_0 = arith.constant 0 : index
    %0 = vector.load %arg1[%c0, %c0_0] : memref<8x640xf32, #tpu.memory_space<vmem>>, vector<8x640xf32>
    %c0_1 = arith.constant 0 : index
    %c0_2 = arith.constant 0 : index
    %1 = vector.load %arg2[%c0_1, %c0_2] : memref<640x50xf32, #tpu.memory_space<vmem>>, vector<640x50xf32>
    %cst = arith.constant dense<0.000000e+00> : vector<8x50xf32>
    %2 = tpu.matmul %0, %1, %cst {dimension_numbers = #tpu.dot_dimension_numbers<[1], [0], [0], [1], [0, 0, 1, 1], [], []>} : vector<8x640xf32>, vector<640x50xf32>, vector<8x50xf32> -> vector<8x50xf32>
    %c0_3 = arith.constant 0 : index
    %c0_4 = arith.constant 0 : index
    %3 = vector.load %arg3[%c0_3, %c0_4] : memref<1x50xf32, #tpu.memory_space<vmem>>, vector<1x50xf32>
    %4 = vector.broadcast %3 : vector<1x50xf32> to vector<8x50xf32>
    %5 = arith.addf %2, %4 : vector<8x50xf32>
    %cst_5 = arith.constant 0.000000e+00 : f32
    %6 = vector.broadcast %cst_5 : f32 to vector<8x50xf32>
    %7 = arith.maximumf %5, %6 : vector<8x50xf32>
    %c0_6 = arith.constant 0 : index
    %c0_7 = arith.constant 0 : index
    %8 = vector.load %arg4[%c0_6, %c0_7] : memref<50x10xf32, #tpu.memory_space<vmem>>, vector<50x10xf32>
    %cst_8 = arith.constant dense<0.000000e+00> : vector<8x10xf32>
    %9 = tpu.matmul %7, %8, %cst_8 {dimension_numbers = #tpu.dot_dimension_numbers<[1], [0], [0], [1], [0, 0, 1, 1], [], []>} : vector<8x50xf32>, vector<50x10xf32>, vector<8x10xf32> -> vector<8x10xf32>
    %c0_9 = arith.constant 0 : index
    %c0_10 = arith.constant 0 : index
    %10 = vector.load %arg5[%c0_9, %c0_10] : memref<1x10xf32, #tpu.memory_space<vmem>>, vector<1x10xf32>
    %11 = vector.broadcast %10 : vector<1x10xf32> to vector<8x10xf32>
    %12 = arith.addf %9, %11 : vector<8x10xf32>
    %cst_11 = arith.constant dense<0xFF800000> : vector<8xf32>
    %13 = vector.multi_reduction <maximumf>, %12, %cst_11 [1] : vector<8x10xf32> to vector<8xf32>
    %14 = vector.shape_cast %13 : vector<8xf32> to vector<8x1xf32>
    %15 = vector.broadcast %14 : vector<8x1xf32> to vector<8x10xf32>
    %16 = arith.subf %12, %15 : vector<8x10xf32>
    %17 = math.exp %16 : vector<8x10xf32>
    %cst_12 = arith.constant dense<0.000000e+00> : vector<8xf32>
    %18 = vector.multi_reduction <add>, %17, %cst_12 [1] : vector<8x10xf32> to vector<8xf32>
    %19 = vector.shape_cast %18 : vector<8xf32> to vector<8x1xf32>
    %20 = math.log %19 : vector<8x1xf32>
    %21 = vector.broadcast %20 : vector<8x1xf32> to vector<8x10xf32>
    %22 = arith.subf %16, %21 : vector<8x10xf32>
    %c0_13 = arith.constant 0 : index
    %c0_14 = arith.constant 0 : index
    %23 = vector.load %arg6[%c0_13, %c0_14] : memref<8x10xf32, #tpu.memory_space<vmem>>, vector<8x10xf32>
    tpu.vector_store %arg6[%c0_13, %c0_14], %22 {strides = array<i32>} : memref<8x10xf32, #tpu.memory_space<vmem>>, vector<8x10xf32>,
    return
  }
  func.func @transform_0(%arg0: i32) -> (i32, i32) {
    %c0_i32 = arith.constant 0 : i32
    %c0_i32_0 = arith.constant 0 : i32
    return %arg0, %c0_i32 : i32, i32
  }
  func.func @transform_1(%arg0: i32) -> (i32, i32) {
    %c0_i32 = arith.constant 0 : i32
    %c0_i32_0 = arith.constant 0 : i32
    %c0_i32_1 = arith.constant 0 : i32
    return %c0_i32, %c0_i32_0 : i32, i32
  }
  func.func @transform_2(%arg0: i32) -> (i32, i32) {
    %c0_i32 = arith.constant 0 : i32
    %c0_i32_0 = arith.constant 0 : i32
    %c0_i32_1 = arith.constant 0 : i32
    return %c0_i32, %c0_i32_0 : i32, i32
  }
  func.func @transform_3(%arg0: i32) -> (i32, i32) {
    %c0_i32 = arith.constant 0 : i32
    %c0_i32_0 = arith.constant 0 : i32
    %c0_i32_1 = arith.constant 0 : i32
    return %c0_i32, %c0_i32_0 : i32, i32
  }
  func.func @transform_4(%arg0: i32) -> (i32, i32) {
    %c0_i32 = arith.constant 0 : i32
    %c0_i32_0 = arith.constant 0 : i32
    %c0_i32_1 = arith.constant 0 : i32
    return %c0_i32, %c0_i32_0 : i32, i32
  }
  func.func @transform_5(%arg0: i32) -> (i32, i32) {
    %c0_i32 = arith.constant 0 : i32
    %c0_i32_0 = arith.constant 0 : i32
    return %arg0, %c0_i32 : i32, i32
  }
}

</mosaic_0001>

<llo_original>
// kernel: svhn_classifier_forward.3
$region0: #{svhn_classifier_forward.3}
  #allocation0 [shape = 'u32[]', space=smem, size = 0x4, offset = 0x4, fixed_abs, tag = 'smem constant byte address 0x4 - core index']
  #allocation1 [shape = 'u32[72,128]{1,0:T(1,128)}', space=vmem, size = 0x9000, scoped, tag = 'internal scratch']
  %s0 = inlined_call_operand.vmem [shape: f32[6400,128], index: 0, kind: input, shape index: {}]
  %s1 = inlined_call_operand.vmem [shape: f32[128,10], index: 1, kind: input, shape index: {}]
  %s2 = inlined_call_operand.vmem [shape: f32[1,10], index: 2, kind: input, shape index: {}]
  %s3 = inlined_call_operand.vmem [shape: f32[8,200,10], index: 3, kind: output, shape index: {}]
  %s4 = sld [smem:[#allocation0]]
  $region22: #{svhn_classifier_forward.3} parent=0
    _
  %s6 = ssub.s32 1, %s4
  %s7 = scalar_select 0, %s6, %s4
  // Predicated region
  $region2: #{svhn_classifier_forward.3} parent=0 // pred_check
    _
  $region3: #{svhn_classifier_forward.3} parent=0 // pred_check_branch
    %9 = sbr.rel (0) target = $region5
  $region4: #{svhn_classifier_forward.3} parent=0 // pred_region
    _
  $region5: #{svhn_classifier_forward.3} parent=0 // pred_fallthru
    _
  // Predicated region
  $region6: #{svhn_classifier_forward.3} parent=0 // pred_check
    _
  $region7: #{svhn_classifier_forward.3} parent=0 // pred_check_branch
    %11 = sbr.rel (0) target = $region9
  $region8: #{svhn_classifier_forward.3} parent=0 // pred_region
    _
  $region9: #{svhn_classifier_forward.3} parent=0 // pred_fallthru
    _
  // Predicated region
  $region10: #{svhn_classifier_forward.3} parent=0 // pred_check
    _
  $region11: #{svhn_classifier_forward.3} parent=0 // pred_check_branch
    %13 = sbr.rel (0) target = $region13
  $region12: #{svhn_classifier_forward.3} parent=0 // pred_region
    _
  $region13: #{svhn_classifier_forward.3} parent=0 // pred_fallthru
    _
  %v14 = vld [vmem:[%s0] sm:$0xff]
  %v15 = vld [vmem:[%s0 + $0x8] sm:$0xff]
  %v16 = vld [vmem:[%s0 + $0x10] sm:$0xff]
  %v17 = vld [vmem:[%s0 + $0x18] sm:$0xff]
  %v18 = vld [vmem:[%s0 + $0x20] sm:$0xff]
  %v19 = vld [vmem:[%s0 + $0x28] sm:$0xff]
  %v20 = vld [vmem:[%s0 + $0x30] sm:$0xff]
  %v21 = vld [vmem:[%s0 + $0x38] sm:$0xff]
  %v22 = vld [vmem:[%s0 + $0x40] sm:$0xff]
  %v23 = vld [vmem:[%s0 + $0x48] sm:$0xff]
  %v24 = vld [vmem:[%s0 + $0x50] sm:$0xff]
  %v25 = vld [vmem:[%s0 + $0x58] sm:$0xff]
  %v26 = vld [vmem:[%s0 + $0x60] sm:$0xff]
  %v27 = vld [vmem:[%s0 + $0x68] sm:$0xff]
  %v28 = vld [vmem:[%s0 + $0x70] sm:$0xff]
  %v29 = vld [vmem:[%s0 + $0x78] sm:$0xff]
  %v30 = vld [vmem:[%s0 + $0x80] sm:$0xff]
  %v31 = vld [vmem:[%s0 + $0x88] sm:$0xff]
  %v32 = vld [vmem:[%s0 + $0x90] sm:$0xff]
  %v33 = vld [vmem:[%s0 + $0x98] sm:$0xff]
  %v34 = vld [vmem:[%s0 + $0xa0] sm:$0xff]
  %v35 = vld [vmem:[%s0 + $0xa8] sm:$0xff]
  %v36 = vld [vmem:[%s0 + $0xb0] sm:$0xff]
  %v37 = vld [vmem:[%s0 + $0xb8] sm:$0xff]
  %v38 = vld [vmem:[%s0 + $0xc0] sm:$0xff]
  %v39 = vld [vmem:[%s0 + $0xc8] sm:$0xff]
  %v40 = vld [vmem:[%s0 + $0xd0] sm:$0xff]
  %v41 = vld [vmem:[%s0 + $0xd8] sm:$0xff]
  %v42 = vld [vmem:[%s0 + $0xe0] sm:$0xff]
  %v43 = vld [vmem:[%s0 + $0xe8] sm:$0xff]
  %v44 = vld [vmem:[%s0 + $0xf0] sm:$0xff]
  %v45 = vld [vmem:[%s0 + $0xf8] sm:$0xff]
  %v46 = vld [vmem:[%s0 + $0x100] sm:$0xff]
  %v47 = vld [vmem:[%s0 + $0x108] sm:$0xff]
  %v48 = vld [vmem:[%s0 + $0x110] sm:$0xff]
  %v49 = vld [vmem:[%s0 + $0x118] sm:$0xff]
  %v50 = vld [vmem:[%s0 + $0x120] sm:$0xff]
  %v51 = vld [vmem:[%s0 + $0x128] sm:$0xff]
  %v52 = vld [vmem:[%s0 + $0x130] sm:$0xff]
  %v53 = vld [vmem:[%s0 + $0x138] sm:$0xff]
  %v54 = vld [vmem:[%s0 + $0x140] sm:$0xff]
  %v55 = vld [vmem:[%s0 + $0x148] sm:$0xff]
  %v56 = vld [vmem:[%s0 + $0x150] sm:$0xff]
  %v57 = vld [vmem:[%s0 + $0x158] sm:$0xff]
  %v58 = vld [vmem:[%s0 + $0x160] sm:$0xff]
  %v59 = vld [vmem:[%s0 + $0x168] sm:$0xff]
  %v60 = vld [vmem:[%s0 + $0x170] sm:$0xff]
  %v61 = vld [vmem:[%s0 + $0x178] sm:$0xff]
  %v62 = vld [vmem:[%s0 + $0x180] sm:$0xff]
  %v63 = vld [vmem:[%s0 + $0x188] sm:$0xff]
  %v64 = vld [vmem:[%s0 + $0x190] sm:$0xff]
  %v65 = vld [vmem:[%s0 + $0x198] sm:$0xff]
  %v66 = vld [vmem:[%s0 + $0x1a0] sm:$0xff]
  %v67 = vld [vmem:[%s0 + $0x1a8] sm:$0xff]
  %v68 = vld [vmem:[%s0 + $0x1b0] sm:$0xff]
  %v69 = vld [vmem:[%s0 + $0x1b8] sm:$0xff]
  %v70 = vld [vmem:[%s0 + $0x1c0] sm:$0xff]
  %v71 = vld [vmem:[%s0 + $0x1c8] sm:$0xff]
  %v72 = vld [vmem:[%s0 + $0x1d0] sm:$0xff]
  %v73 = vld [vmem:[%s0 + $0x1d8] sm:$0xff]
  %v74 = vld [vmem:[%s0 + $0x1e0] sm:$0xff]
  %v75 = vld [vmem:[%s0 + $0x1e8] sm:$0xff]
  %v76 = vld [vmem:[%s0 + $0x1f0] sm:$0xff]
  %v77 = vld [vmem:[%s0 + $0x1f8] sm:$0xff]
  %v78 = vld [vmem:[%s0 + $0x200] sm:$0xff]
  %v79 = vld [vmem:[%s0 + $0x208] sm:$0xff]
  %v80 = vld [vmem:[%s0 + $0x210] sm:$0xff]
  %v81 = vld [vmem:[%s0 + $0x218] sm:$0xff]
  %v82 = vld [vmem:[%s0 + $0x220] sm:$0xff]
  %v83 = vld [vmem:[%s0 + $0x228] sm:$0xff]
  %v84 = vld [vmem:[%s0 + $0x230] sm:$0xff]
  %v85 = vld [vmem:[%s0 + $0x238] sm:$0xff]
  %v86 = vld [vmem:[%s0 + $0x240] sm:$0xff]
  %v87 = vld [vmem:[%s0 + $0x248] sm:$0xff]
  %v88 = vld [vmem:[%s0 + $0x250] sm:$0xff]
  %v89 = vld [vmem:[%s0 + $0x258] sm:$0xff]
  %v90 = vld [vmem:[%s0 + $0x260] sm:$0xff]
  %v91 = vld [vmem:[%s0 + $0x268] sm:$0xff]
  %v92 = vld [vmem:[%s0 + $0x270] sm:$0xff]
  %v93 = vld [vmem:[%s0 + $0x278] sm:$0xff]
  %v94 = vld [vmem:[%s0 + $0x280] sm:$0xff]
  %v95 = vld [vmem:[%s0 + $0x288] sm:$0xff]
  %v96 = vld [vmem:[%s0 + $0x290] sm:$0xff]
  %v97 = vld [vmem:[%s0 + $0x298] sm:$0xff]
  %v98 = vld [vmem:[%s0 + $0x2a0] sm:$0xff]
  %v99 = vld [vmem:[%s0 + $0x2a8] sm:$0xff]
  %v100 = vld [vmem:[%s0 + $0x2b0] sm:$0xff]
  %v101 = vld [vmem:[%s0 + $0x2b8] sm:$0xff]
  %v102 = vld [vmem:[%s0 + $0x2c0] sm:$0xff]
  %v103 = vld [vmem:[%s0 + $0x2c8] sm:$0xff]
  %v104 = vld [vmem:[%s0 + $0x2d0] sm:$0xff]
  %v105 = vld [vmem:[%s0 + $0x2d8] sm:$0xff]
  %v106 = vld [vmem:[%s0 + $0x2e0] sm:$0xff]
  %v107 = vld [vmem:[%s0 + $0x2e8] sm:$0xff]
  %v108 = vld [vmem:[%s0 + $0x2f0] sm:$0xff]
  %v109 = vld [vmem:[%s0 + $0x2f8] sm:$0xff]
  %v110 = vld [vmem:[%s0 + $0x300] sm:$0xff]
  %v111 = vld [vmem:[%s0 + $0x308] sm:$0xff]
  %v112 = vld [vmem:[%s0 + $0x310] sm:$0xff]
  %v113 = vld [vmem:[%s0 + $0x318] sm:$0xff]
  %v114 = vld [vmem:[%s0 + $0x320] sm:$0xff]
  %v115 = vld [vmem:[%s0 + $0x328] sm:$0xff]
  %v116 = vld [vmem:[%s0 + $0x330] sm:$0xff]
  %v117 = vld [vmem:[%s0 + $0x338] sm:$0xff]
  %v118 = vld [vmem:[%s0 + $0x340] sm:$0xff]
  %v119 = vld [vmem:[%s0 + $0x348] sm:$0xff]
  %v120 = vld [vmem:[%s0 + $0x350] sm:$0xff]
  %v121 = vld [vmem:[%s0 + $0x358] sm:$0xff]
  %v122 = vld [vmem:[%s0 + $0x360] sm:$0xff]
  %v123 = vld [vmem:[%s0 + $0x368] sm:$0xff]
  %v124 = vld [vmem:[%s0 + $0x370] sm:$0xff]
  %v125 = vld [vmem:[%s0 + $0x378] sm:$0xff]
  %v126 = vld [vmem:[%s0 + $0x380] sm:$0xff]
  %v127 = vld [vmem:[%s0 + $0x388] sm:$0xff]
  %v128 = vld [vmem:[%s0 + $0x390] sm:$0xff]
  %v129 = vld [vmem:[%s0 + $0x398] sm:$0xff]
  %v130 = vld [vmem:[%s0 + $0x3a0] sm:$0xff]
  %v131 = vld [vmem:[%s0 + $0x3a8] sm:$0xff]
  %v132 = vld [vmem:[%s0 + $0x3b0] sm:$0xff]
  %v133 = vld [vmem:[%s0 + $0x3b8] sm:$0xff]
  %v134 = vld [vmem:[%s0 + $0x3c0] sm:$0xff]
  %v135 = vld [vmem:[%s0 + $0x3c8] sm:$0xff]
  %v136 = vld [vmem:[%s0 + $0x3d0] sm:$0xff]
  %v137 = vld [vmem:[%s0 + $0x3d8] sm:$0xff]
  %v138 = vld [vmem:[%s0 + $0x3e0] sm:$0xff]
  %v139 = vld [vmem:[%s0 + $0x3e8] sm:$0xff]
  %v140 = vld [vmem:[%s0 + $0x3f0] sm:$0xff]
  %v141 = vld [vmem:[%s0 + $0x3f8] sm:$0xff]
  %v142 = vld [vmem:[%s0 + $0x400] sm:$0xff]
  %v143 = vld [vmem:[%s0 + $0x408] sm:$0xff]
  %v144 = vld [vmem:[%s0 + $0x410] sm:$0xff]
  %v145 = vld [vmem:[%s0 + $0x418] sm:$0xff]
  %v146 = vld [vmem:[%s0 + $0x420] sm:$0xff]
  %v147 = vld [vmem:[%s0 + $0x428] sm:$0xff]
  %v148 = vld [vmem:[%s0 + $0x430] sm:$0xff]
  %v149 = vld [vmem:[%s0 + $0x438] sm:$0xff]
  %v150 = vld [vmem:[%s0 + $0x440] sm:$0xff]
  %v151 = vld [vmem:[%s0 + $0x448] sm:$0xff]
  %v152 = vld [vmem:[%s0 + $0x450] sm:$0xff]
  %v153 = vld [vmem:[%s0 + $0x458] sm:$0xff]
  %v154 = vld [vmem:[%s0 + $0x460] sm:$0xff]
  %v155 = vld [vmem:[%s0 + $0x468] sm:$0xff]
  %v156 = vld [vmem:[%s0 + $0x470] sm:$0xff]
  %v157 = vld [vmem:[%s0 + $0x478] sm:$0xff]
  %v158 = vld [vmem:[%s0 + $0x480] sm:$0xff]
  %v159 = vld [vmem:[%s0 + $0x488] sm:$0xff]
  %v160 = vld [vmem:[%s0 + $0x490] sm:$0xff]
  %v161 = vld [vmem:[%s0 + $0x498] sm:$0xff]
  %v162 = vld [vmem:[%s0 + $0x4a0] sm:$0xff]
  %v163 = vld [vmem:[%s0 + $0x4a8] sm:$0xff]
  %v164 = vld [vmem:[%s0 + $0x4b0] sm:$0xff]
  %v165 = vld [vmem:[%s0 + $0x4b8] sm:$0xff]
  %v166 = vld [vmem:[%s0 + $0x4c0] sm:$0xff]
  %v167 = vld [vmem:[%s0 + $0x4c8] sm:$0xff]
  %v168 = vld [vmem:[%s0 + $0x4d0] sm:$0xff]
  %v169 = vld [vmem:[%s0 + $0x4d8] sm:$0xff]
  %v170 = vld [vmem:[%s0 + $0x4e0] sm:$0xff]
  %v171 = vld [vmem:[%s0 + $0x4e8] sm:$0xff]
  %v172 = vld [vmem:[%s0 + $0x4f0] sm:$0xff]
  %v173 = vld [vmem:[%s0 + $0x4f8] sm:$0xff]
  %v174 = vld [vmem:[%s0 + $0x500] sm:$0xff]
  %v175 = vld [vmem:[%s0 + $0x508] sm:$0xff]
  %v176 = vld [vmem:[%s0 + $0x510] sm:$0xff]
  %v177 = vld [vmem:[%s0 + $0x518] sm:$0xff]
  %v178 = vld [vmem:[%s0 + $0x520] sm:$0xff]
  %v179 = vld [vmem:[%s0 + $0x528] sm:$0xff]
  %v180 = vld [vmem:[%s0 + $0x530] sm:$0xff]
  %v181 = vld [vmem:[%s0 + $0x538] sm:$0xff]
  %v182 = vld [vmem:[%s0 + $0x540] sm:$0xff]
  %v183 = vld [vmem:[%s0 + $0x548] sm:$0xff]
  %v184 = vld [vmem:[%s0 + $0x550] sm:$0xff]
  %v185 = vld [vmem:[%s0 + $0x558] sm:$0xff]
  %v186 = vld [vmem:[%s0 + $0x560] sm:$0xff]
  %v187 = vld [vmem:[%s0 + $0x568] sm:$0xff]
  %v188 = vld [vmem:[%s0 + $0x570] sm:$0xff]
  %v189 = vld [vmem:[%s0 + $0x578] sm:$0xff]
  %v190 = vld [vmem:[%s0 + $0x580] sm:$0xff]
  %v191 = vld [vmem:[%s0 + $0x588] sm:$0xff]
  %v192 = vld [vmem:[%s0 + $0x590] sm:$0xff]
  %v193 = vld [vmem:[%s0 + $0x598] sm:$0xff]
  %v194 = vld [vmem:[%s0 + $0x5a0] sm:$0xff]
  %v195 = vld [vmem:[%s0 + $0x5a8] sm:$0xff]
  %v196 = vld [vmem:[%s0 + $0x5b0] sm:$0xff]
  %v197 = vld [vmem:[%s0 + $0x5b8] sm:$0xff]
  %v198 = vld [vmem:[%s0 + $0x5c0] sm:$0xff]
  %v199 = vld [vmem:[%s0 + $0x5c8] sm:$0xff]
  %v200 = vld [vmem:[%s0 + $0x5d0] sm:$0xff]
  %v201 = vld [vmem:[%s0 + $0x5d8] sm:$0xff]
  %v202 = vld [vmem:[%s0 + $0x5e0] sm:$0xff]
  %v203 = vld [vmem:[%s0 + $0x5e8] sm:$0xff]
  %v204 = vld [vmem:[%s0 + $0x5f0] sm:$0xff]
  %v205 = vld [vmem:[%s0 + $0x5f8] sm:$0xff]
  %v206 = vld [vmem:[%s0 + $0x600] sm:$0xff]
  %v207 = vld [vmem:[%s0 + $0x608] sm:$0xff]
  %v208 = vld [vmem:[%s0 + $0x610] sm:$0xff]
  %v209 = vld [vmem:[%s0 + $0x618] sm:$0xff]
  %v210 = vld [vmem:[%s0 + $0x620] sm:$0xff]
  %v211 = vld [vmem:[%s0 + $0x628] sm:$0xff]
  %v212 = vld [vmem:[%s0 + $0x630] sm:$0xff]
  %v213 = vld [vmem:[%s0 + $0x638] sm:$0xff]
  %v214 = vld [vmem:[%s0 + $0x640] sm:$0xff]
  %v215 = vld [vmem:[%s0 + $0x648] sm:$0xff]
  %v216 = vld [vmem:[%s0 + $0x650] sm:$0xff]
  %v217 = vld [vmem:[%s0 + $0x658] sm:$0xff]
  %v218 = vld [vmem:[%s0 + $0x660] sm:$0xff]
  %v219 = vld [vmem:[%s0 + $0x668] sm:$0xff]
  %v220 = vld [vmem:[%s0 + $0x670] sm:$0xff]
  %v221 = vld [vmem:[%s0 + $0x678] sm:$0xff]
  %v222 = vld [vmem:[%s0 + $0x680] sm:$0xff]
  %v223 = vld [vmem:[%s0 + $0x688] sm:$0xff]
  %v224 = vld [vmem:[%s0 + $0x690] sm:$0xff]
  %v225 = vld [vmem:[%s0 + $0x698] sm:$0xff]
  %v226 = vld [vmem:[%s0 + $0x6a0] sm:$0xff]
  %v227 = vld [vmem:[%s0 + $0x6a8] sm:$0xff]
  %v228 = vld [vmem:[%s0 + $0x6b0] sm:$0xff]
  %v229 = vld [vmem:[%s0 + $0x6b8] sm:$0xff]
  %v230 = vld [vmem:[%s0 + $0x6c0] sm:$0xff]
  %v231 = vld [vmem:[%s0 + $0x6c8] sm:$0xff]
  %v232 = vld [vmem:[%s0 + $0x6d0] sm:$0xff]
  %v233 = vld [vmem:[%s0 + $0x6d8] sm:$0xff]
  %v234 = vld [vmem:[%s0 + $0x6e0] sm:$0xff]
  %v235 = vld [vmem:[%s0 + $0x6e8] sm:$0xff]
  %v236 = vld [vmem:[%s0 + $0x6f0] sm:$0xff]
  %v237 = vld [vmem:[%s0 + $0x6f8] sm:$0xff]
  %v238 = vld [vmem:[%s0 + $0x700] sm:$0xff]
  %v239 = vld [vmem:[%s0 + $0x708] sm:$0xff]
  %v240 = vld [vmem:[%s0 + $0x710] sm:$0xff]
  %v241 = vld [vmem:[%s0 + $0x718] sm:$0xff]
  %v242 = vld [vmem:[%s0 + $0x720] sm:$0xff]
  %v243 = vld [vmem:[%s0 + $0x728] sm:$0xff]
  %v244 = vld [vmem:[%s0 + $0x730] sm:$0xff]
  %v245 = vld [vmem:[%s0 + $0x738] sm:$0xff]
  %v246 = vld [vmem:[%s0 + $0x740] sm:$0xff]
  %v247 = vld [vmem:[%s0 + $0x748] sm:$0xff]
  %v248 = vld [vmem:[%s0 + $0x750] sm:$0xff]
  %v249 = vld [vmem:[%s0 + $0x758] sm:$0xff]
  %v250 = vld [vmem:[%s0 + $0x760] sm:$0xff]
  %v251 = vld [vmem:[%s0 + $0x768] sm:$0xff]
  %v252 = vld [vmem:[%s0 + $0x770] sm:$0xff]
  %v253 = vld [vmem:[%s0 + $0x778] sm:$0xff]
  %v254 = vld [vmem:[%s0 + $0x780] sm:$0xff]
  %v255 = vld [vmem:[%s0 + $0x788] sm:$0xff]
  %v256 = vld [vmem:[%s0 + $0x790] sm:$0xff]
  %v257 = vld [vmem:[%s0 + $0x798] sm:$0xff]
  %v258 = vld [vmem:[%s0 + $0x7a0] sm:$0xff]
  %v259 = vld [vmem:[%s0 + $0x7a8] sm:$0xff]
  %v260 = vld [vmem:[%s0 + $0x7b0] sm:$0xff]
  %v261 = vld [vmem:[%s0 + $0x7b8] sm:$0xff]
  %v262 = vld [vmem:[%s0 + $0x7c0] sm:$0xff]
  %v263 = vld [vmem:[%s0 + $0x7c8] sm:$0xff]
  %v264 = vld [vmem:[%s0 + $0x7d0] sm:$0xff]
  %v265 = vld [vmem:[%s0 + $0x7d8] sm:$0xff]
  %v266 = vld [vmem:[%s0 + $0x7e0] sm:$0xff]
  %v267 = vld [vmem:[%s0 + $0x7e8] sm:$0xff]
  %v268 = vld [vmem:[%s0 + $0x7f0] sm:$0xff]
  %v269 = vld [vmem:[%s0 + $0x7f8] sm:$0xff]
  %v270 = vld [vmem:[%s0 + $0x800] sm:$0xff]
  %v271 = vld [vmem:[%s0 + $0x808] sm:$0xff]
  %v272 = vld [vmem:[%s0 + $0x810] sm:$0xff]
  %v273 = vld [vmem:[%s0 + $0x818] sm:$0xff]
  %v274 = vld [vmem:[%s0 + $0x820] sm:$0xff]
  %v275 = vld [vmem:[%s0 + $0x828] sm:$0xff]
  %v276 = vld [vmem:[%s0 + $0x830] sm:$0xff]
  %v277 = vld [vmem:[%s0 + $0x838] sm:$0xff]
  %v278 = vld [vmem:[%s0 + $0x840] sm:$0xff]
  %v279 = vld [vmem:[%s0 + $0x848] sm:$0xff]
  %v280 = vld [vmem:[%s0 + $0x850] sm:$0xff]
  %v281 = vld [vmem:[%s0 + $0x858] sm:$0xff]
  %v282 = vld [vmem:[%s0 + $0x860] sm:$0xff]
  %v283 = vld [vmem:[%s0 + $0x868] sm:$0xff]
  %v284 = vld [vmem:[%s0 + $0x870] sm:$0xff]
  %v285 = vld [vmem:[%s0 + $0x878] sm:$0xff]
  %v286 = vld [vmem:[%s0 + $0x880] sm:$0xff]
  %v287 = vld [vmem:[%s0 + $0x888] sm:$0xff]
  %v288 = vld [vmem:[%s0 + $0x890] sm:$0xff]
  %v289 = vld [vmem:[%s0 + $0x898] sm:$0xff]
  %v290 = vld [vmem:[%s0 + $0x8a0] sm:$0xff]
  %v291 = vld [vmem:[%s0 + $0x8a8] sm:$0xff]
  %v292 = vld [vmem:[%s0 + $0x8b0] sm:$0xff]
  %v293 = vld [vmem:[%s0 + $0x8b8] sm:$0xff]
  %v294 = vld [vmem:[%s0 + $0x8c0] sm:$0xff]
  %v295 = vld [vmem:[%s0 + $0x8c8] sm:$0xff]
  %v296 = vld [vmem:[%s0 + $0x8d0] sm:$0xff]
  %v297 = vld [vmem:[%s0 + $0x8d8] sm:$0xff]
  %v298 = vld [vmem:[%s0 + $0x8e0] sm:$0xff]
  %v299 = vld [vmem:[%s0 + $0x8e8] sm:$0xff]
  %v300 = vld [vmem:[%s0 + $0x8f0] sm:$0xff]
  %v301 = vld [vmem:[%s0 + $0x8f8] sm:$0xff]
  %v302 = vld [vmem:[%s0 + $0x900] sm:$0xff]
  %v303 = vld [vmem:[%s0 + $0x908] sm:$0xff]
  %v304 = vld [vmem:[%s0 + $0x910] sm:$0xff]
  %v305 = vld [vmem:[%s0 + $0x918] sm:$0xff]
  %v306 = vld [vmem:[%s0 + $0x920] sm:$0xff]
  %v307 = vld [vmem:[%s0 + $0x928] sm:$0xff]
  %v308 = vld [vmem:[%s0 + $0x930] sm:$0xff]
  %v309 = vld [vmem:[%s0 + $0x938] sm:$0xff]
  %v310 = vld [vmem:[%s0 + $0x940] sm:$0xff]
  %v311 = vld [vmem:[%s0 + $0x948] sm:$0xff]
  %v312 = vld [vmem:[%s0 + $0x950] sm:$0xff]
  %v313 = vld [vmem:[%s0 + $0x958] sm:$0xff]
  %v314 = vld [vmem:[%s0 + $0x960] sm:$0xff]
  %v315 = vld [vmem:[%s0 + $0x968] sm:$0xff]
  %v316 = vld [vmem:[%s0 + $0x970] sm:$0xff]
  %v317 = vld [vmem:[%s0 + $0x978] sm:$0xff]
  %v318 = vld [vmem:[%s0 + $0x980] sm:$0xff]
  %v319 = vld [vmem:[%s0 + $0x988] sm:$0xff]
  %v320 = vld [vmem:[%s0 + $0x990] sm:$0xff]
  %v321 = vld [vmem:[%s0 + $0x998] sm:$0xff]
  %v322 = vld [vmem:[%s0 + $0x9a0] sm:$0xff]
  %v323 = vld [vmem:[%s0 + $0x9a8] sm:$0xff]
  %v324 = vld [vmem:[%s0 + $0x9b0] sm:$0xff]
  %v325 = vld [vmem:[%s0 + $0x9b8] sm:$0xff]
  %v326 = vld [vmem:[%s0 + $0x9c0] sm:$0xff]
  %v327 = vld [vmem:[%s0 + $0x9c8] sm:$0xff]
  %v328 = vld [vmem:[%s0 + $0x9d0] sm:$0xff]
  %v329 = vld [vmem:[%s0 + $0x9d8] sm:$0xff]
  %v330 = vld [vmem:[%s0 + $0x9e0] sm:$0xff]
  %v331 = vld [vmem:[%s0 + $0x9e8] sm:$0xff]
  %v332 = vld [vmem:[%s0 + $0x9f0] sm:$0xff]
  %v333 = vld [vmem:[%s0 + $0x9f8] sm:$0xff]
  %v334 = vld [vmem:[%s0 + $0xa00] sm:$0xff]
  %v335 = vld [vmem:[%s0 + $0xa08] sm:$0xff]
  %v336 = vld [vmem:[%s0 + $0xa10] sm:$0xff]
  %v337 = vld [vmem:[%s0 + $0xa18] sm:$0xff]
  %v338 = vld [vmem:[%s0 + $0xa20] sm:$0xff]
  %v339 = vld [vmem:[%s0 + $0xa28] sm:$0xff]
  %v340 = vld [vmem:[%s0 + $0xa30] sm:$0xff]
  %v341 = vld [vmem:[%s0 + $0xa38] sm:$0xff]
  %v342 = vld [vmem:[%s0 + $0xa40] sm:$0xff]
  %v343 = vld [vmem:[%s0 + $0xa48] sm:$0xff]
  %v344 = vld [vmem:[%s0 + $0xa50] sm:$0xff]
  %v345 = vld [vmem:[%s0 + $0xa58] sm:$0xff]
  %v346 = vld [vmem:[%s0 + $0xa60] sm:$0xff]
  %v347 = vld [vmem:[%s0 + $0xa68] sm:$0xff]
  %v348 = vld [vmem:[%s0 + $0xa70] sm:$0xff]
  %v349 = vld [vmem:[%s0 + $0xa78] sm:$0xff]
  %v350 = vld [vmem:[%s0 + $0xa80] sm:$0xff]
  %v351 = vld [vmem:[%s0 + $0xa88] sm:$0xff]
  %v352 = vld [vmem:[%s0 + $0xa90] sm:$0xff]
  %v353 = vld [vmem:[%s0 + $0xa98] sm:$0xff]
  %v354 = vld [vmem:[%s0 + $0xaa0] sm:$0xff]
  %v355 = vld [vmem:[%s0 + $0xaa8] sm:$0xff]
  %v356 = vld [vmem:[%s0 + $0xab0] sm:$0xff]
  %v357 = vld [vmem:[%s0 + $0xab8] sm:$0xff]
  %v358 = vld [vmem:[%s0 + $0xac0] sm:$0xff]
  %v359 = vld [vmem:[%s0 + $0xac8] sm:$0xff]
  %v360 = vld [vmem:[%s0 + $0xad0] sm:$0xff]
  %v361 = vld [vmem:[%s0 + $0xad8] sm:$0xff]
  %v362 = vld [vmem:[%s0 + $0xae0] sm:$0xff]
  %v363 = vld [vmem:[%s0 + $0xae8] sm:$0xff]
  %v364 = vld [vmem:[%s0 + $0xaf0] sm:$0xff]
  %v365 = vld [vmem:[%s0 + $0xaf8] sm:$0xff]
  %v366 = vld [vmem:[%s0 + $0xb00] sm:$0xff]
  %v367 = vld [vmem:[%s0 + $0xb08] sm:$0xff]
  %v368 = vld [vmem:[%s0 + $0xb10] sm:$0xff]
  %v369 = vld [vmem:[%s0 + $0xb18] sm:$0xff]
  %v370 = vld [vmem:[%s0 + $0xb20] sm:$0xff]
  %v371 = vld [vmem:[%s0 + $0xb28] sm:$0xff]
  %v372 = vld [vmem:[%s0 + $0xb30] sm:$0xff]
  %v373 = vld [vmem:[%s0 + $0xb38] sm:$0xff]
  %v374 = vld [vmem:[%s0 + $0xb40] sm:$0xff]
  %v375 = vld [vmem:[%s0 + $0xb48] sm:$0xff]
  %v376 = vld [vmem:[%s0 + $0xb50] sm:$0xff]
  %v377 = vld [vmem:[%s0 + $0xb58] sm:$0xff]
  %v378 = vld [vmem:[%s0 + $0xb60] sm:$0xff]
  %v379 = vld [vmem:[%s0 + $0xb68] sm:$0xff]
  %v380 = vld [vmem:[%s0 + $0xb70] sm:$0xff]
  %v381 = vld [vmem:[%s0 + $0xb78] sm:$0xff]
  %v382 = vld [vmem:[%s0 + $0xb80] sm:$0xff]
  %v383 = vld [vmem:[%s0 + $0xb88] sm:$0xff]
  %v384 = vld [vmem:[%s0 + $0xb90] sm:$0xff]
  %v385 = vld [vmem:[%s0 + $0xb98] sm:$0xff]
  %v386 = vld [vmem:[%s0 + $0xba0] sm:$0xff]
  %v387 = vld [vmem:[%s0 + $0xba8] sm:$0xff]
  %v388 = vld [vmem:[%s0 + $0xbb0] sm:$0xff]
  %v389 = vld [vmem:[%s0 + $0xbb8] sm:$0xff]
  %v390 = vld [vmem:[%s0 + $0xbc0] sm:$0xff]
  %v391 = vld [vmem:[%s0 + $0xbc8] sm:$0xff]
  %v392 = vld [vmem:[%s0 + $0xbd0] sm:$0xff]
  %v393 = vld [vmem:[%s0 + $0xbd8] sm:$0xff]
  %v394 = vld [vmem:[%s0 + $0xbe0] sm:$0xff]
  %v395 = vld [vmem:[%s0 + $0xbe8] sm:$0xff]
  %v396 = vld [vmem:[%s0 + $0xbf0] sm:$0xff]
  %v397 = vld [vmem:[%s0 + $0xbf8] sm:$0xff]
  %v398 = vld [vmem:[%s0 + $0xc00] sm:$0xff]
  %v399 = vld [vmem:[%s0 + $0xc08] sm:$0xff]
  %v400 = vld [vmem:[%s0 + $0xc10] sm:$0xff]
  %v401 = vld [vmem:[%s0 + $0xc18] sm:$0xff]
  %v402 = vld [vmem:[%s0 + $0xc20] sm:$0xff]
  %v403 = vld [vmem:[%s0 + $0xc28] sm:$0xff]
  %v404 = vld [vmem:[%s0 + $0xc30] sm:$0xff]
  %v405 = vld [vmem:[%s0 + $0xc38] sm:$0xff]
  %v406 = vld [vmem:[%s0 + $0xc40] sm:$0xff]
  %v407 = vld [vmem:[%s0 + $0xc48] sm:$0xff]
  %v408 = vld [vmem:[%s0 + $0xc50] sm:$0xff]
  %v409 = vld [vmem:[%s0 + $0xc58] sm:$0xff]
  %v410 = vld [vmem:[%s0 + $0xc60] sm:$0xff]
  %v411 = vld [vmem:[%s0 + $0xc68] sm:$0xff]
  %v412 = vld [vmem:[%s0 + $0xc70] sm:$0xff]
  %v413 = vld [vmem:[%s0 + $0xc78] sm:$0xff]
  %v414 = vld [vmem:[%s0 + $0xc80] sm:$0xff]
  %v415 = vld [vmem:[%s0 + $0xc88] sm:$0xff]
  %v416 = vld [vmem:[%s0 + $0xc90] sm:$0xff]
  %v417 = vld [vmem:[%s0 + $0xc98] sm:$0xff]
  %v418 = vld [vmem:[%s0 + $0xca0] sm:$0xff]
  %v419 = vld [vmem:[%s0 + $0xca8] sm:$0xff]
  %v420 = vld [vmem:[%s0 + $0xcb0] sm:$0xff]
  %v421 = vld [vmem:[%s0 + $0xcb8] sm:$0xff]
  %v422 = vld [vmem:[%s0 + $0xcc0] sm:$0xff]
  %v423 = vld [vmem:[%s0 + $0xcc8] sm:$0xff]
  %v424 = vld [vmem:[%s0 + $0xcd0] sm:$0xff]
  %v425 = vld [vmem:[%s0 + $0xcd8] sm:$0xff]
  %v426 = vld [vmem:[%s0 + $0xce0] sm:$0xff]
  %v427 = vld [vmem:[%s0 + $0xce8] sm:$0xff]
  %v428 = vld [vmem:[%s0 + $0xcf0] sm:$0xff]
  %v429 = vld [vmem:[%s0 + $0xcf8] sm:$0xff]
  %v430 = vld [vmem:[%s0 + $0xd00] sm:$0xff]
  %v431 = vld [vmem:[%s0 + $0xd08] sm:$0xff]
  %v432 = vld [vmem:[%s0 + $0xd10] sm:$0xff]
  %v433 = vld [vmem:[%s0 + $0xd18] sm:$0xff]
  %v434 = vld [vmem:[%s0 + $0xd20] sm:$0xff]
  %v435 = vld [vmem:[%s0 + $0xd28] sm:$0xff]
  %v436 = vld [vmem:[%s0 + $0xd30] sm:$0xff]
  %v437 = vld [vmem:[%s0 + $0xd38] sm:$0xff]
  %v438 = vld [vmem:[%s0 + $0xd40] sm:$0xff]
  %v439 = vld [vmem:[%s0 + $0xd48] sm:$0xff]
  %v440 = vld [vmem:[%s0 + $0xd50] sm:$0xff]
  %v441 = vld [vmem:[%s0 + $0xd58] sm:$0xff]
  %v442 = vld [vmem:[%s0 + $0xd60] sm:$0xff]
  %v443 = vld [vmem:[%s0 + $0xd68] sm:$0xff]
  %v444 = vld [vmem:[%s0 + $0xd70] sm:$0xff]
  %v445 = vld [vmem:[%s0 + $0xd78] sm:$0xff]
  %v446 = vld [vmem:[%s0 + $0xd80] sm:$0xff]
  %v447 = vld [vmem:[%s0 + $0xd88] sm:$0xff]
  %v448 = vld [vmem:[%s0 + $0xd90] sm:$0xff]
  %v449 = vld [vmem:[%s0 + $0xd98] sm:$0xff]
  %v450 = vld [vmem:[%s0 + $0xda0] sm:$0xff]
  %v451 = vld [vmem:[%s0 + $0xda8] sm:$0xff]
  %v452 = vld [vmem:[%s0 + $0xdb0] sm:$0xff]
  %v453 = vld [vmem:[%s0 + $0xdb8] sm:$0xff]
  %v454 = vld [vmem:[%s0 + $0xdc0] sm:$0xff]
  %v455 = vld [vmem:[%s0 + $0xdc8] sm:$0xff]
  %v456 = vld [vmem:[%s0 + $0xdd0] sm:$0xff]
  %v457 = vld [vmem:[%s0 + $0xdd8] sm:$0xff]
  %v458 = vld [vmem:[%s0 + $0xde0] sm:$0xff]
  %v459 = vld [vmem:[%s0 + $0xde8] sm:$0xff]
  %v460 = vld [vmem:[%s0 + $0xdf0] sm:$0xff]
  %v461 = vld [vmem:[%s0 + $0xdf8] sm:$0xff]
  %v462 = vld [vmem:[%s0 + $0xe00] sm:$0xff]
  %v463 = vld [vmem:[%s0 + $0xe08] sm:$0xff]
  %v464 = vld [vmem:[%s0 + $0xe10] sm:$0xff]
  %v465 = vld [vmem:[%s0 + $0xe18] sm:$0xff]
  %v466 = vld [vmem:[%s0 + $0xe20] sm:$0xff]
  %v467 = vld [vmem:[%s0 + $0xe28] sm:$0xff]
  %v468 = vld [vmem:[%s0 + $0xe30] sm:$0xff]
  %v469 = vld [vmem:[%s0 + $0xe38] sm:$0xff]
  %v470 = vld [vmem:[%s0 + $0xe40] sm:$0xff]
  %v471 = vld [vmem:[%s0 + $0xe48] sm:$0xff]
  %v472 = vld [vmem:[%s0 + $0xe50] sm:$0xff]
  %v473 = vld [vmem:[%s0 + $0xe58] sm:$0xff]
  %v474 = vld [vmem:[%s0 + $0xe60] sm:$0xff]
  %v475 = vld [vmem:[%s0 + $0xe68] sm:$0xff]
  %v476 = vld [vmem:[%s0 + $0xe70] sm:$0xff]
  %v477 = vld [vmem:[%s0 + $0xe78] sm:$0xff]
  %v478 = vld [vmem:[%s0 + $0xe80] sm:$0xff]
  %v479 = vld [vmem:[%s0 + $0xe88] sm:$0xff]
  %v480 = vld [vmem:[%s0 + $0xe90] sm:$0xff]
  %v481 = vld [vmem:[%s0 + $0xe98] sm:$0xff]
  %v482 = vld [vmem:[%s0 + $0xea0] sm:$0xff]
  %v483 = vld [vmem:[%s0 + $0xea8] sm:$0xff]
  %v484 = vld [vmem:[%s0 + $0xeb0] sm:$0xff]
  %v485 = vld [vmem:[%s0 + $0xeb8] sm:$0xff]
  %v486 = vld [vmem:[%s0 + $0xec0] sm:$0xff]
  %v487 = vld [vmem:[%s0 + $0xec8] sm:$0xff]
  %v488 = vld [vmem:[%s0 + $0xed0] sm:$0xff]
  %v489 = vld [vmem:[%s0 + $0xed8] sm:$0xff]
  %v490 = vld [vmem:[%s0 + $0xee0] sm:$0xff]
  %v491 = vld [vmem:[%s0 + $0xee8] sm:$0xff]
  %v492 = vld [vmem:[%s0 + $0xef0] sm:$0xff]
  %v493 = vld [vmem:[%s0 + $0xef8] sm:$0xff]
  %v494 = vld [vmem:[%s0 + $0xf00] sm:$0xff]
  %v495 = vld [vmem:[%s0 + $0xf08] sm:$0xff]
  %v496 = vld [vmem:[%s0 + $0xf10] sm:$0xff]
  %v497 = vld [vmem:[%s0 + $0xf18] sm:$0xff]
  %v498 = vld [vmem:[%s0 + $0xf20] sm:$0xff]
  %v499 = vld [vmem:[%s0 + $0xf28] sm:$0xff]
  %v500 = vld [vmem:[%s0 + $0xf30] sm:$0xff]
  %v501 = vld [vmem:[%s0 + $0xf38] sm:$0xff]
  %v502 = vld [vmem:[%s0 + $0xf40] sm:$0xff]
  %v503 = vld [vmem:[%s0 + $0xf48] sm:$0xff]
  %v504 = vld [vmem:[%s0 + $0xf50] sm:$0xff]
  %v505 = vld [vmem:[%s0 + $0xf58] sm:$0xff]
  %v506 = vld [vmem:[%s0 + $0xf60] sm:$0xff]
  %v507 = vld [vmem:[%s0 + $0xf68] sm:$0xff]
  %v508 = vld [vmem:[%s0 + $0xf70] sm:$0xff]
  %v509 = vld [vmem:[%s0 + $0xf78] sm:$0xff]
  %v510 = vld [vmem:[%s0 + $0xf80] sm:$0xff]
  %v511 = vld [vmem:[%s0 + $0xf88] sm:$0xff]
  %v512 = vld [vmem:[%s0 + $0xf90] sm:$0xff]
  %v513 = vld [vmem:[%s0 + $0xf98] sm:$0xff]
  %v514 = vld [vmem:[%s0 + $0xfa0] sm:$0xff]
  %v515 = vld [vmem:[%s0 + $0xfa8] sm:$0xff]
  %v516 = vld [vmem:[%s0 + $0xfb0] sm:$0xff]
  %v517 = vld [vmem:[%s0 + $0xfb8] sm:$0xff]
  %v518 = vld [vmem:[%s0 + $0xfc0] sm:$0xff]
  %v519 = vld [vmem:[%s0 + $0xfc8] sm:$0xff]
  %v520 = vld [vmem:[%s0 + $0xfd0] sm:$0xff]
  %v521 = vld [vmem:[%s0 + $0xfd8] sm:$0xff]
  %v522 = vld [vmem:[%s0 + $0xfe0] sm:$0xff]
  %v523 = vld [vmem:[%s0 + $0xfe8] sm:$0xff]
  %v524 = vld [vmem:[%s0 + $0xff0] sm:$0xff]
  %v525 = vld [vmem:[%s0 + $0xff8] sm:$0xff]
  %v526 = vld [vmem:[%s0 + $0x1000] sm:$0xff]
  %v527 = vld [vmem:[%s0 + $0x1008] sm:$0xff]
  %v528 = vld [vmem:[%s0 + $0x1010] sm:$0xff]
  %v529 = vld [vmem:[%s0 + $0x1018] sm:$0xff]
  %v530 = vld [vmem:[%s0 + $0x1020] sm:$0xff]
  %v531 = vld [vmem:[%s0 + $0x1028] sm:$0xff]
  %v532 = vld [vmem:[%s0 + $0x1030] sm:$0xff]
  %v533 = vld [vmem:[%s0 + $0x1038] sm:$0xff]
  %v534 = vld [vmem:[%s0 + $0x1040] sm:$0xff]
  %v535 = vld [vmem:[%s0 + $0x1048] sm:$0xff]
  %v536 = vld [vmem:[%s0 + $0x1050] sm:$0xff]
  %v537 = vld [vmem:[%s0 + $0x1058] sm:$0xff]
  %v538 = vld [vmem:[%s0 + $0x1060] sm:$0xff]
  %v539 = vld [vmem:[%s0 + $0x1068] sm:$0xff]
  %v540 = vld [vmem:[%s0 + $0x1070] sm:$0xff]
  %v541 = vld [vmem:[%s0 + $0x1078] sm:$0xff]
  %v542 = vld [vmem:[%s0 + $0x1080] sm:$0xff]
  %v543 = vld [vmem:[%s0 + $0x1088] sm:$0xff]
  %v544 = vld [vmem:[%s0 + $0x1090] sm:$0xff]
  %v545 = vld [vmem:[%s0 + $0x1098] sm:$0xff]
  %v546 = vld [vmem:[%s0 + $0x10a0] sm:$0xff]
  %v547 = vld [vmem:[%s0 + $0x10a8] sm:$0xff]
  %v548 = vld [vmem:[%s0 + $0x10b0] sm:$0xff]
  %v549 = vld [vmem:[%s0 + $0x10b8] sm:$0xff]
  %v550 = vld [vmem:[%s0 + $0x10c0] sm:$0xff]
  %v551 = vld [vmem:[%s0 + $0x10c8] sm:$0xff]
  %v552 = vld [vmem:[%s0 + $0x10d0] sm:$0xff]
  %v553 = vld [vmem:[%s0 + $0x10d8] sm:$0xff]
  %v554 = vld [vmem:[%s0 + $0x10e0] sm:$0xff]
  %v555 = vld [vmem:[%s0 + $0x10e8] sm:$0xff]
  %v556 = vld [vmem:[%s0 + $0x10f0] sm:$0xff]
  %v557 = vld [vmem:[%s0 + $0x10f8] sm:$0xff]
  %v558 = vld [vmem:[%s0 + $0x1100] sm:$0xff]
  %v559 = vld [vmem:[%s0 + $0x1108] sm:$0xff]
  %v560 = vld [vmem:[%s0 + $0x1110] sm:$0xff]
  %v561 = vld [vmem:[%s0 + $0x1118] sm:$0xff]
  %v562 = vld [vmem:[%s0 + $0x1120] sm:$0xff]
  %v563 = vld [vmem:[%s0 + $0x1128] sm:$0xff]
  %v564 = vld [vmem:[%s0 + $0x1130] sm:$0xff]
  %v565 = vld [vmem:[%s0 + $0x1138] sm:$0xff]
  %v566 = vld [vmem:[%s0 + $0x1140] sm:$0xff]
  %v567 = vld [vmem:[%s0 + $0x1148] sm:$0xff]
  %v568 = vld [vmem:[%s0 + $0x1150] sm:$0xff]
  %v569 = vld [vmem:[%s0 + $0x1158] sm:$0xff]
  %v570 = vld [vmem:[%s0 + $0x1160] sm:$0xff]
  %v571 = vld [vmem:[%s0 + $0x1168] sm:$0xff]
  %v572 = vld [vmem:[%s0 + $0x1170] sm:$0xff]
  %v573 = vld [vmem:[%s0 + $0x1178] sm:$0xff]
  %v574 = vld [vmem:[%s0 + $0x1180] sm:$0xff]
  %v575 = vld [vmem:[%s0 + $0x1188] sm:$0xff]
  %v576 = vld [vmem:[%s0 + $0x1190] sm:$0xff]
  %v577 = vld [vmem:[%s0 + $0x1198] sm:$0xff]
  %v578 = vld [vmem:[%s0 + $0x11a0] sm:$0xff]
  %v579 = vld [vmem:[%s0 + $0x11a8] sm:$0xff]
  %v580 = vld [vmem:[%s0 + $0x11b0] sm:$0xff]
  %v581 = vld [vmem:[%s0 + $0x11b8] sm:$0xff]
  %v582 = vld [vmem:[%s0 + $0x11c0] sm:$0xff]
  %v583 = vld [vmem:[%s0 + $0x11c8] sm:$0xff]
  %v584 = vld [vmem:[%s0 + $0x11d0] sm:$0xff]
  %v585 = vld [vmem:[%s0 + $0x11d8] sm:$0xff]
  %v586 = vld [vmem:[%s0 + $0x11e0] sm:$0xff]
  %v587 = vld [vmem:[%s0 + $0x11e8] sm:$0xff]
  %v588 = vld [vmem:[%s0 + $0x11f0] sm:$0xff]
  %v589 = vld [vmem:[%s0 + $0x11f8] sm:$0xff]
  %v590 = vld [vmem:[%s0 + $0x1200] sm:$0xff]
  %v591 = vld [vmem:[%s0 + $0x1208] sm:$0xff]
  %v592 = vld [vmem:[%s0 + $0x1210] sm:$0xff]
  %v593 = vld [vmem:[%s0 + $0x1218] sm:$0xff]
  %v594 = vld [vmem:[%s0 + $0x1220] sm:$0xff]
  %v595 = vld [vmem:[%s0 + $0x1228] sm:$0xff]
  %v596 = vld [vmem:[%s0 + $0x1230] sm:$0xff]
  %v597 = vld [vmem:[%s0 + $0x1238] sm:$0xff]
  %v598 = vld [vmem:[%s0 + $0x1240] sm:$0xff]
  %v599 = vld [vmem:[%s0 + $0x1248] sm:$0xff]
  %v600 = vld [vmem:[%s0 + $0x1250] sm:$0xff]
  %v601 = vld [vmem:[%s0 + $0x1258] sm:$0xff]
  %v602 = vld [vmem:[%s0 + $0x1260] sm:$0xff]
  %v603 = vld [vmem:[%s0 + $0x1268] sm:$0xff]
  %v604 = vld [vmem:[%s0 + $0x1270] sm:$0xff]
  %v605 = vld [vmem:[%s0 + $0x1278] sm:$0xff]
  %v606 = vld [vmem:[%s0 + $0x1280] sm:$0xff]
  %v607 = vld [vmem:[%s0 + $0x1288] sm:$0xff]
  %v608 = vld [vmem:[%s0 + $0x1290] sm:$0xff]
  %v609 = vld [vmem:[%s0 + $0x1298] sm:$0xff]
  %v610 = vld [vmem:[%s0 + $0x12a0] sm:$0xff]
  %v611 = vld [vmem:[%s0 + $0x12a8] sm:$0xff]
  %v612 = vld [vmem:[%s0 + $0x12b0] sm:$0xff]
  %v613 = vld [vmem:[%s0 + $0x12b8] sm:$0xff]
  %v614 = vld [vmem:[%s0 + $0x12c0] sm:$0xff]
  %v615 = vld [vmem:[%s0 + $0x12c8] sm:$0xff]
  %v616 = vld [vmem:[%s0 + $0x12d0] sm:$0xff]
  %v617 = vld [vmem:[%s0 + $0x12d8] sm:$0xff]
  %v618 = vld [vmem:[%s0 + $0x12e0] sm:$0xff]
  %v619 = vld [vmem:[%s0 + $0x12e8] sm:$0xff]
  %v620 = vld [vmem:[%s0 + $0x12f0] sm:$0xff]
  %v621 = vld [vmem:[%s0 + $0x12f8] sm:$0xff]
  %v622 = vld [vmem:[%s0 + $0x1300] sm:$0xff]
  %v623 = vld [vmem:[%s0 + $0x1308] sm:$0xff]
  %v624 = vld [vmem:[%s0 + $0x1310] sm:$0xff]
  %v625 = vld [vmem:[%s0 + $0x1318] sm:$0xff]
  %v626 = vld [vmem:[%s0 + $0x1320] sm:$0xff]
  %v627 = vld [vmem:[%s0 + $0x1328] sm:$0xff]
  %v628 = vld [vmem:[%s0 + $0x1330] sm:$0xff]
  %v629 = vld [vmem:[%s0 + $0x1338] sm:$0xff]
  %v630 = vld [vmem:[%s0 + $0x1340] sm:$0xff]
  %v631 = vld [vmem:[%s0 + $0x1348] sm:$0xff]
  %v632 = vld [vmem:[%s0 + $0x1350] sm:$0xff]
  %v633 = vld [vmem:[%s0 + $0x1358] sm:$0xff]
  %v634 = vld [vmem:[%s0 + $0x1360] sm:$0xff]
  %v635 = vld [vmem:[%s0 + $0x1368] sm:$0xff]
  %v636 = vld [vmem:[%s0 + $0x1370] sm:$0xff]
  %v637 = vld [vmem:[%s0 + $0x1378] sm:$0xff]
  %v638 = vld [vmem:[%s0 + $0x1380] sm:$0xff]
  %v639 = vld [vmem:[%s0 + $0x1388] sm:$0xff]
  %v640 = vld [vmem:[%s0 + $0x1390] sm:$0xff]
  %v641 = vld [vmem:[%s0 + $0x1398] sm:$0xff]
  %v642 = vld [vmem:[%s0 + $0x13a0] sm:$0xff]
  %v643 = vld [vmem:[%s0 + $0x13a8] sm:$0xff]
  %v644 = vld [vmem:[%s0 + $0x13b0] sm:$0xff]
  %v645 = vld [vmem:[%s0 + $0x13b8] sm:$0xff]
  %v646 = vld [vmem:[%s0 + $0x13c0] sm:$0xff]
  %v647 = vld [vmem:[%s0 + $0x13c8] sm:$0xff]
  %v648 = vld [vmem:[%s0 + $0x13d0] sm:$0xff]
  %v649 = vld [vmem:[%s0 + $0x13d8] sm:$0xff]
  %v650 = vld [vmem:[%s0 + $0x13e0] sm:$0xff]
  %v651 = vld [vmem:[%s0 + $0x13e8] sm:$0xff]
  %v652 = vld [vmem:[%s0 + $0x13f0] sm:$0xff]
  %v653 = vld [vmem:[%s0 + $0x13f8] sm:$0xff]
  %v654 = vld [vmem:[%s0 + $0x1400] sm:$0xff]
  %v655 = vld [vmem:[%s0 + $0x1408] sm:$0xff]
  %v656 = vld [vmem:[%s0 + $0x1410] sm:$0xff]
  %v657 = vld [vmem:[%s0 + $0x1418] sm:$0xff]
  %v658 = vld [vmem:[%s0 + $0x1420] sm:$0xff]
  %v659 = vld [vmem:[%s0 + $0x1428] sm:$0xff]
  %v660 = vld [vmem:[%s0 + $0x1430] sm:$0xff]
  %v661 = vld [vmem:[%s0 + $0x1438] sm:$0xff]
  %v662 = vld [vmem:[%s0 + $0x1440] sm:$0xff]
  %v663 = vld [vmem:[%s0 + $0x1448] sm:$0xff]
  %v664 = vld [vmem:[%s0 + $0x1450] sm:$0xff]
  %v665 = vld [vmem:[%s0 + $0x1458] sm:$0xff]
  %v666 = vld [vmem:[%s0 + $0x1460] sm:$0xff]
  %v667 = vld [vmem:[%s0 + $0x1468] sm:$0xff]
  %v668 = vld [vmem:[%s0 + $0x1470] sm:$0xff]
  %v669 = vld [vmem:[%s0 + $0x1478] sm:$0xff]
  %v670 = vld [vmem:[%s0 + $0x1480] sm:$0xff]
  %v671 = vld [vmem:[%s0 + $0x1488] sm:$0xff]
  %v672 = vld [vmem:[%s0 + $0x1490] sm:$0xff]
  %v673 = vld [vmem:[%s0 + $0x1498] sm:$0xff]
  %v674 = vld [vmem:[%s0 + $0x14a0] sm:$0xff]
  %v675 = vld [vmem:[%s0 + $0x14a8] sm:$0xff]
  %v676 = vld [vmem:[%s0 + $0x14b0] sm:$0xff]
  %v677 = vld [vmem:[%s0 + $0x14b8] sm:$0xff]
  %v678 = vld [vmem:[%s0 + $0x14c0] sm:$0xff]
  %v679 = vld [vmem:[%s0 + $0x14c8] sm:$0xff]
  %v680 = vld [vmem:[%s0 + $0x14d0] sm:$0xff]
  %v681 = vld [vmem:[%s0 + $0x14d8] sm:$0xff]
  %v682 = vld [vmem:[%s0 + $0x14e0] sm:$0xff]
  %v683 = vld [vmem:[%s0 + $0x14e8] sm:$0xff]
  %v684 = vld [vmem:[%s0 + $0x14f0] sm:$0xff]
  %v685 = vld [vmem:[%s0 + $0x14f8] sm:$0xff]
  %v686 = vld [vmem:[%s0 + $0x1500] sm:$0xff]
  %v687 = vld [vmem:[%s0 + $0x1508] sm:$0xff]
  %v688 = vld [vmem:[%s0 + $0x1510] sm:$0xff]
  %v689 = vld [vmem:[%s0 + $0x1518] sm:$0xff]
  %v690 = vld [vmem:[%s0 + $0x1520] sm:$0xff]
  %v691 = vld [vmem:[%s0 + $0x1528] sm:$0xff]
  %v692 = vld [vmem:[%s0 + $0x1530] sm:$0xff]
  %v693 = vld [vmem:[%s0 + $0x1538] sm:$0xff]
  %v694 = vld [vmem:[%s0 + $0x1540] sm:$0xff]
  %v695 = vld [vmem:[%s0 + $0x1548] sm:$0xff]
  %v696 = vld [vmem:[%s0 + $0x1550] sm:$0xff]
  %v697 = vld [vmem:[%s0 + $0x1558] sm:$0xff]
  %v698 = vld [vmem:[%s0 + $0x1560] sm:$0xff]
  %v699 = vld [vmem:[%s0 + $0x1568] sm:$0xff]
  %v700 = vld [vmem:[%s0 + $0x1570] sm:$0xff]
  %v701 = vld [vmem:[%s0 + $0x1578] sm:$0xff]
  %v702 = vld [vmem:[%s0 + $0x1580] sm:$0xff]
  %v703 = vld [vmem:[%s0 + $0x1588] sm:$0xff]
  %v704 = vld [vmem:[%s0 + $0x1590] sm:$0xff]
  %v705 = vld [vmem:[%s0 + $0x1598] sm:$0xff]
  %v706 = vld [vmem:[%s0 + $0x15a0] sm:$0xff]
  %v707 = vld [vmem:[%s0 + $0x15a8] sm:$0xff]
  %v708 = vld [vmem:[%s0 + $0x15b0] sm:$0xff]
  %v709 = vld [vmem:[%s0 + $0x15b8] sm:$0xff]
  %v710 = vld [vmem:[%s0 + $0x15c0] sm:$0xff]
  %v711 = vld [vmem:[%s0 + $0x15c8] sm:$0xff]
  %v712 = vld [vmem:[%s0 + $0x15d0] sm:$0xff]
  %v713 = vld [vmem:[%s0 + $0x15d8] sm:$0xff]
  %v714 = vld [vmem:[%s0 + $0x15e0] sm:$0xff]
  %v715 = vld [vmem:[%s0 + $0x15e8] sm:$0xff]
  %v716 = vld [vmem:[%s0 + $0x15f0] sm:$0xff]
  %v717 = vld [vmem:[%s0 + $0x15f8] sm:$0xff]
  %v718 = vld [vmem:[%s0 + $0x1600] sm:$0xff]
  %v719 = vld [vmem:[%s0 + $0x1608] sm:$0xff]
  %v720 = vld [vmem:[%s0 + $0x1610] sm:$0xff]
  %v721 = vld [vmem:[%s0 + $0x1618] sm:$0xff]
  %v722 = vld [vmem:[%s0 + $0x1620] sm:$0xff]
  %v723 = vld [vmem:[%s0 + $0x1628] sm:$0xff]
  %v724 = vld [vmem:[%s0 + $0x1630] sm:$0xff]
  %v725 = vld [vmem:[%s0 + $0x1638] sm:$0xff]
  %v726 = vld [vmem:[%s0 + $0x1640] sm:$0xff]
  %v727 = vld [vmem:[%s0 + $0x1648] sm:$0xff]
  %v728 = vld [vmem:[%s0 + $0x1650] sm:$0xff]
  %v729 = vld [vmem:[%s0 + $0x1658] sm:$0xff]
  %v730 = vld [vmem:[%s0 + $0x1660] sm:$0xff]
  %v731 = vld [vmem:[%s0 + $0x1668] sm:$0xff]
  %v732 = vld [vmem:[%s0 + $0x1670] sm:$0xff]
  %v733 = vld [vmem:[%s0 + $0x1678] sm:$0xff]
  %v734 = vld [vmem:[%s0 + $0x1680] sm:$0xff]
  %v735 = vld [vmem:[%s0 + $0x1688] sm:$0xff]
  %v736 = vld [vmem:[%s0 + $0x1690] sm:$0xff]
  %v737 = vld [vmem:[%s0 + $0x1698] sm:$0xff]
  %v738 = vld [vmem:[%s0 + $0x16a0] sm:$0xff]
  %v739 = vld [vmem:[%s0 + $0x16a8] sm:$0xff]
  %v740 = vld [vmem:[%s0 + $0x16b0] sm:$0xff]
  %v741 = vld [vmem:[%s0 + $0x16b8] sm:$0xff]
  %v742 = vld [vmem:[%s0 + $0x16c0] sm:$0xff]
  %v743 = vld [vmem:[%s0 + $0x16c8] sm:$0xff]
  %v744 = vld [vmem:[%s0 + $0x16d0] sm:$0xff]
  %v745 = vld [vmem:[%s0 + $0x16d8] sm:$0xff]
  %v746 = vld [vmem:[%s0 + $0x16e0] sm:$0xff]
  %v747 = vld [vmem:[%s0 + $0x16e8] sm:$0xff]
  %v748 = vld [vmem:[%s0 + $0x16f0] sm:$0xff]
  %v749 = vld [vmem:[%s0 + $0x16f8] sm:$0xff]
  %v750 = vld [vmem:[%s0 + $0x1700] sm:$0xff]
  %v751 = vld [vmem:[%s0 + $0x1708] sm:$0xff]
  %v752 = vld [vmem:[%s0 + $0x1710] sm:$0xff]
  %v753 = vld [vmem:[%s0 + $0x1718] sm:$0xff]
  %v754 = vld [vmem:[%s0 + $0x1720] sm:$0xff]
  %v755 = vld [vmem:[%s0 + $0x1728] sm:$0xff]
  %v756 = vld [vmem:[%s0 + $0x1730] sm:$0xff]
  %v757 = vld [vmem:[%s0 + $0x1738] sm:$0xff]
  %v758 = vld [vmem:[%s0 + $0x1740] sm:$0xff]
  %v759 = vld [vmem:[%s0 + $0x1748] sm:$0xff]
  %v760 = vld [vmem:[%s0 + $0x1750] sm:$0xff]
  %v761 = vld [vmem:[%s0 + $0x1758] sm:$0xff]
  %v762 = vld [vmem:[%s0 + $0x1760] sm:$0xff]
  %v763 = vld [vmem:[%s0 + $0x1768] sm:$0xff]
  %v764 = vld [vmem:[%s0 + $0x1770] sm:$0xff]
  %v765 = vld [vmem:[%s0 + $0x1778] sm:$0xff]
  %v766 = vld [vmem:[%s0 + $0x1780] sm:$0xff]
  %v767 = vld [vmem:[%s0 + $0x1788] sm:$0xff]
  %v768 = vld [vmem:[%s0 + $0x1790] sm:$0xff]
  %v769 = vld [vmem:[%s0 + $0x1798] sm:$0xff]
  %v770 = vld [vmem:[%s0 + $0x17a0] sm:$0xff]
  %v771 = vld [vmem:[%s0 + $0x17a8] sm:$0xff]
  %v772 = vld [vmem:[%s0 + $0x17b0] sm:$0xff]
  %v773 = vld [vmem:[%s0 + $0x17b8] sm:$0xff]
  %v774 = vld [vmem:[%s0 + $0x17c0] sm:$0xff]
  %v775 = vld [vmem:[%s0 + $0x17c8] sm:$0xff]
  %v776 = vld [vmem:[%s0 + $0x17d0] sm:$0xff]
  %v777 = vld [vmem:[%s0 + $0x17d8] sm:$0xff]
  %v778 = vld [vmem:[%s0 + $0x17e0] sm:$0xff]
  %v779 = vld [vmem:[%s0 + $0x17e8] sm:$0xff]
  %v780 = vld [vmem:[%s0 + $0x17f0] sm:$0xff]
  %v781 = vld [vmem:[%s0 + $0x17f8] sm:$0xff]
  %v782 = vld [vmem:[%s0 + $0x1800] sm:$0xff]
  %v783 = vld [vmem:[%s0 + $0x1808] sm:$0xff]
  %v784 = vld [vmem:[%s0 + $0x1810] sm:$0xff]
  %v785 = vld [vmem:[%s0 + $0x1818] sm:$0xff]
  %v786 = vld [vmem:[%s0 + $0x1820] sm:$0xff]
  %v787 = vld [vmem:[%s0 + $0x1828] sm:$0xff]
  %v788 = vld [vmem:[%s0 + $0x1830] sm:$0xff]
  %v789 = vld [vmem:[%s0 + $0x1838] sm:$0xff]
  %v790 = vld [vmem:[%s0 + $0x1840] sm:$0xff]
  %v791 = vld [vmem:[%s0 + $0x1848] sm:$0xff]
  %v792 = vld [vmem:[%s0 + $0x1850] sm:$0xff]
  %v793 = vld [vmem:[%s0 + $0x1858] sm:$0xff]
  %v794 = vld [vmem:[%s0 + $0x1860] sm:$0xff]
  %v795 = vld [vmem:[%s0 + $0x1868] sm:$0xff]
  %v796 = vld [vmem:[%s0 + $0x1870] sm:$0xff]
  %v797 = vld [vmem:[%s0 + $0x1878] sm:$0xff]
  %v798 = vld [vmem:[%s0 + $0x1880] sm:$0xff]
  %v799 = vld [vmem:[%s0 + $0x1888] sm:$0xff]
  %v800 = vld [vmem:[%s0 + $0x1890] sm:$0xff]
  %v801 = vld [vmem:[%s0 + $0x1898] sm:$0xff]
  %v802 = vld [vmem:[%s0 + $0x18a0] sm:$0xff]
  %v803 = vld [vmem:[%s0 + $0x18a8] sm:$0xff]
  %v804 = vld [vmem:[%s0 + $0x18b0] sm:$0xff]
  %v805 = vld [vmem:[%s0 + $0x18b8] sm:$0xff]
  %v806 = vld [vmem:[%s0 + $0x18c0] sm:$0xff]
  %v807 = vld [vmem:[%s0 + $0x18c8] sm:$0xff]
  %v808 = vld [vmem:[%s0 + $0x18d0] sm:$0xff]
  %v809 = vld [vmem:[%s0 + $0x18d8] sm:$0xff]
  %v810 = vld [vmem:[%s0 + $0x18e0] sm:$0xff]
  %v811 = vld [vmem:[%s0 + $0x18e8] sm:$0xff]
  %v812 = vld [vmem:[%s0 + $0x18f0] sm:$0xff]
  %v813 = vld [vmem:[%s0 + $0x18f8] sm:$0xff]
  %v814 = vld [vmem:[%s1] sm:$0xff]
  %v815 = vld [vmem:[%s1 + $0x8] sm:$0xff]
  %v816 = vld [vmem:[%s1 + $0x10] sm:$0xff]
  %v817 = vld [vmem:[%s1 + $0x18] sm:$0xff]
  %v818 = vld [vmem:[%s1 + $0x20] sm:$0xff]
  %v819 = vld [vmem:[%s1 + $0x28] sm:$0xff]
  %v820 = vld [vmem:[%s1 + $0x30] sm:$0xff]
  %v821 = vld [vmem:[%s1 + $0x38] sm:$0xff]
  %v822 = vld [vmem:[%s1 + $0x40] sm:$0xff]
  %v823 = vld [vmem:[%s1 + $0x48] sm:$0xff]
  %v824 = vld [vmem:[%s1 + $0x50] sm:$0xff]
  %v825 = vld [vmem:[%s1 + $0x58] sm:$0xff]
  %v826 = vld [vmem:[%s1 + $0x60] sm:$0xff]
  %v827 = vld [vmem:[%s1 + $0x68] sm:$0xff]
  %v828 = vld [vmem:[%s1 + $0x70] sm:$0xff]
  %v829 = vld [vmem:[%s1 + $0x78] sm:$0xff]
  %830 = vmatpush.msra.mxu0 %v829
  %831 = vmatpush.msra.mxu0 %v828
  %832 = vmatpush.msra.mxu0 %v827
  %833 = vmatpush.msra.mxu0 %v826
  %834 = vmatpush.msra.mxu0 %v825
  %835 = vmatpush.msra.mxu0 %v824
  %836 = vmatpush.msra.mxu0 %v823
  %837 = vmatpush.msra.mxu0 %v822
  %838 = vmatpush.msra.mxu0 %v821
  %839 = vmatpush.msra.mxu0 %v820
  %840 = vmatpush.msra.mxu0 %v819
  %841 = vmatpush.msra.mxu0 %v818
  %842 = vmatpush.msra.mxu0 %v817
  %843 = vmatpush.msra.mxu0 %v816
  %844 = vmatpush.msra.mxu0 %v815
  %845 = vmatpush.msra.mxu0 %v814
  %846 = vmatmul.f32.gmra.mxu0 %v14
  %v847 = vpop.f32.mrf.mxu0
  %v848 = vadd.f32 0.0, %v847
  %849 = vmatmul.f32.gmra.mxu0 %v15
  %v850 = vpop.f32.mrf.mxu0
  %v851 = vadd.f32 0.0, %v850
  %852 = vmatmul.f32.gmra.mxu0 %v16
  %v853 = vpop.f32.mrf.mxu0
  %v854 = vadd.f32 0.0, %v853
  %855 = vmatmul.f32.gmra.mxu0 %v17
  %v856 = vpop.f32.mrf.mxu0
  %v857 = vadd.f32 0.0, %v856
  %858 = vmatmul.f32.gmra.mxu0 %v18
  %v859 = vpop.f32.mrf.mxu0
  %v860 = vadd.f32 0.0, %v859
  %861 = vmatmul.f32.gmra.mxu0 %v19
  %v862 = vpop.f32.mrf.mxu0
  %v863 = vadd.f32 0.0, %v862
  %864 = vmatmul.f32.gmra.mxu0 %v20
  %v865 = vpop.f32.mrf.mxu0
  %v866 = vadd.f32 0.0, %v865
  %867 = vmatmul.f32.gmra.mxu0 %v21
  %v868 = vpop.f32.mrf.mxu0
  %v869 = vadd.f32 0.0, %v868
  %870 = vmatmul.f32.gmra.mxu0 %v22
  %v871 = vpop.f32.mrf.mxu0
  %v872 = vadd.f32 0.0, %v871
  %873 = vmatmul.f32.gmra.mxu0 %v23
  %v874 = vpop.f32.mrf.mxu0
  %v875 = vadd.f32 0.0, %v874
  %876 = vmatmul.f32.gmra.mxu0 %v24
  %v877 = vpop.f32.mrf.mxu0
  %v878 = vadd.f32 0.0, %v877
  %879 = vmatmul.f32.gmra.mxu0 %v25
  %v880 = vpop.f32.mrf.mxu0
  %v881 = vadd.f32 0.0, %v880
  %882 = vmatmul.f32.gmra.mxu0 %v26
  %v883 = vpop.f32.mrf.mxu0
  %v884 = vadd.f32 0.0, %v883
  %885 = vmatmul.f32.gmra.mxu0 %v27
  %v886 = vpop.f32.mrf.mxu0
  %v887 = vadd.f32 0.0, %v886
  %888 = vmatmul.f32.gmra.mxu0 %v28
  %v889 = vpop.f32.mrf.mxu0
  %v890 = vadd.f32 0.0, %v889
  %891 = vmatmul.f32.gmra.mxu0 %v29
  %v892 = vpop.f32.mrf.mxu0
  %v893 = vadd.f32 0.0, %v892
  %894 = vmatmul.f32.gmra.mxu0 %v30
  %v895 = vpop.f32.mrf.mxu0
  %v896 = vadd.f32 0.0, %v895
  %897 = vmatmul.f32.gmra.mxu0 %v31
  %v898 = vpop.f32.mrf.mxu0
  %v899 = vadd.f32 0.0, %v898
  %900 = vmatmul.f32.gmra.mxu0 %v32
  %v901 = vpop.f32.mrf.mxu0
  %v902 = vadd.f32 0.0, %v901
  %903 = vmatmul.f32.gmra.mxu0 %v33
  %v904 = vpop.f32.mrf.mxu0
  %v905 = vadd.f32 0.0, %v904
  %906 = vmatmul.f32.gmra.mxu0 %v34
  %v907 = vpop.f32.mrf.mxu0
  %v908 = vadd.f32 0.0, %v907
  %909 = vmatmul.f32.gmra.mxu0 %v35
  %v910 = vpop.f32.mrf.mxu0
  %v911 = vadd.f32 0.0, %v910
  %912 = vmatmul.f32.gmra.mxu0 %v36
  %v913 = vpop.f32.mrf.mxu0
  %v914 = vadd.f32 0.0, %v913
  %915 = vmatmul.f32.gmra.mxu0 %v37
  %v916 = vpop.f32.mrf.mxu0
  %v917 = vadd.f32 0.0, %v916
  %918 = vmatmul.f32.gmra.mxu0 %v38
  %v919 = vpop.f32.mrf.mxu0
  %v920 = vadd.f32 0.0, %v919
  %921 = vmatmul.f32.gmra.mxu0 %v39
  %v922 = vpop.f32.mrf.mxu0
  %v923 = vadd.f32 0.0, %v922
  %924 = vmatmul.f32.gmra.mxu0 %v40
  %v925 = vpop.f32.mrf.mxu0
  %v926 = vadd.f32 0.0, %v925
  %927 = vmatmul.f32.gmra.mxu0 %v41
  %v928 = vpop.f32.mrf.mxu0
  %v929 = vadd.f32 0.0, %v928
  %930 = vmatmul.f32.gmra.mxu0 %v42
  %v931 = vpop.f32.mrf.mxu0
  %v932 = vadd.f32 0.0, %v931
  %933 = vmatmul.f32.gmra.mxu0 %v43
  %v934 = vpop.f32.mrf.mxu0
  %v935 = vadd.f32 0.0, %v934
  %936 = vmatmul.f32.gmra.mxu0 %v44
  %v937 = vpop.f32.mrf.mxu0
  %v938 = vadd.f32 0.0, %v937
  %939 = vmatmul.f32.gmra.mxu0 %v45
  %v940 = vpop.f32.mrf.mxu0
  %v941 = vadd.f32 0.0, %v940
  %942 = vmatmul.f32.gmra.mxu0 %v46
  %v943 = vpop.f32.mrf.mxu0
  %v944 = vadd.f32 0.0, %v943
  %945 = vmatmul.f32.gmra.mxu0 %v47
  %v946 = vpop.f32.mrf.mxu0
  %v947 = vadd.f32 0.0, %v946
  %948 = vmatmul.f32.gmra.mxu0 %v48
  %v949 = vpop.f32.mrf.mxu0
  %v950 = vadd.f32 0.0, %v949
  %951 = vmatmul.f32.gmra.mxu0 %v49
  %v952 = vpop.f32.mrf.mxu0
  %v953 = vadd.f32 0.0, %v952
  %954 = vmatmul.f32.gmra.mxu0 %v50
  %v955 = vpop.f32.mrf.mxu0
  %v956 = vadd.f32 0.0, %v955
  %957 = vmatmul.f32.gmra.mxu0 %v51
  %v958 = vpop.f32.mrf.mxu0
  %v959 = vadd.f32 0.0, %v958
  %960 = vmatmul.f32.gmra.mxu0 %v52
  %v961 = vpop.f32.mrf.mxu0
  %v962 = vadd.f32 0.0, %v961
  %963 = vmatmul.f32.gmra.mxu0 %v53
  %v964 = vpop.f32.mrf.mxu0
  %v965 = vadd.f32 0.0, %v964
  %966 = vmatmul.f32.gmra.mxu0 %v54
  %v967 = vpop.f32.mrf.mxu0
  %v968 = vadd.f32 0.0, %v967
  %969 = vmatmul.f32.gmra.mxu0 %v55
  %v970 = vpop.f32.mrf.mxu0
  %v971 = vadd.f32 0.0, %v970
  %972 = vmatmul.f32.gmra.mxu0 %v56
  %v973 = vpop.f32.mrf.mxu0
  %v974 = vadd.f32 0.0, %v973
  %975 = vmatmul.f32.gmra.mxu0 %v57
  %v976 = vpop.f32.mrf.mxu0
  %v977 = vadd.f32 0.0, %v976
  %978 = vmatmul.f32.gmra.mxu0 %v58
  %v979 = vpop.f32.mrf.mxu0
  %v980 = vadd.f32 0.0, %v979
  %981 = vmatmul.f32.gmra.mxu0 %v59
  %v982 = vpop.f32.mrf.mxu0
  %v983 = vadd.f32 0.0, %v982
  %984 = vmatmul.f32.gmra.mxu0 %v60
  %v985 = vpop.f32.mrf.mxu0
  %v986 = vadd.f32 0.0, %v985
  %987 = vmatmul.f32.gmra.mxu0 %v61
  %v988 = vpop.f32.mrf.mxu0
  %v989 = vadd.f32 0.0, %v988
  %990 = vmatmul.f32.gmra.mxu0 %v62
  %v991 = vpop.f32.mrf.mxu0
  %v992 = vadd.f32 0.0, %v991
  %993 = vmatmul.f32.gmra.mxu0 %v63
  %v994 = vpop.f32.mrf.mxu0
  %v995 = vadd.f32 0.0, %v994
  %996 = vmatmul.f32.gmra.mxu0 %v64
  %v997 = vpop.f32.mrf.mxu0
  %v998 = vadd.f32 0.0, %v997
  %999 = vmatmul.f32.gmra.mxu0 %v65
  %v1000 = vpop.f32.mrf.mxu0
  %v1001 = vadd.f32 0.0, %v1000
  %1002 = vmatmul.f32.gmra.mxu0 %v66
  %v1003 = vpop.f32.mrf.mxu0
  %v1004 = vadd.f32 0.0, %v1003
  %1005 = vmatmul.f32.gmra.mxu0 %v67
  %v1006 = vpop.f32.mrf.mxu0
  %v1007 = vadd.f32 0.0, %v1006
  %1008 = vmatmul.f32.gmra.mxu0 %v68
  %v1009 = vpop.f32.mrf.mxu0
  %v1010 = vadd.f32 0.0, %v1009
  %1011 = vmatmul.f32.gmra.mxu0 %v69
  %v1012 = vpop.f32.mrf.mxu0
  %v1013 = vadd.f32 0.0, %v1012
  %1014 = vmatmul.f32.gmra.mxu0 %v70
  %v1015 = vpop.f32.mrf.mxu0
  %v1016 = vadd.f32 0.0, %v1015
  %1017 = vmatmul.f32.gmra.mxu0 %v71
  %v1018 = vpop.f32.mrf.mxu0
  %v1019 = vadd.f32 0.0, %v1018
  %1020 = vmatmul.f32.gmra.mxu0 %v72
  %v1021 = vpop.f32.mrf.mxu0
  %v1022 = vadd.f32 0.0, %v1021
  %1023 = vmatmul.f32.gmra.mxu0 %v73
  %v1024 = vpop.f32.mrf.mxu0
  %v1025 = vadd.f32 0.0, %v1024
  %1026 = vmatmul.f32.gmra.mxu0 %v74
  %v1027 = vpop.f32.mrf.mxu0
  %v1028 = vadd.f32 0.0, %v1027
  %1029 = vmatmul.f32.gmra.mxu0 %v75
  %v1030 = vpop.f32.mrf.mxu0
  %v1031 = vadd.f32 0.0, %v1030
  %1032 = vmatmul.f32.gmra.mxu0 %v76
  %v1033 = vpop.f32.mrf.mxu0
  %v1034 = vadd.f32 0.0, %v1033
  %1035 = vmatmul.f32.gmra.mxu0 %v77
  %v1036 = vpop.f32.mrf.mxu0
  %v1037 = vadd.f32 0.0, %v1036
  %1038 = vmatmul.f32.gmra.mxu0 %v78
  %v1039 = vpop.f32.mrf.mxu0
  %v1040 = vadd.f32 0.0, %v1039
  %1041 = vmatmul.f32.gmra.mxu0 %v79
  %v1042 = vpop.f32.mrf.mxu0
  %v1043 = vadd.f32 0.0, %v1042
  %1044 = vmatmul.f32.gmra.mxu0 %v80
  %v1045 = vpop.f32.mrf.mxu0
  %v1046 = vadd.f32 0.0, %v1045
  %1047 = vmatmul.f32.gmra.mxu0 %v81
  %v1048 = vpop.f32.mrf.mxu0
  %v1049 = vadd.f32 0.0, %v1048
  %1050 = vmatmul.f32.gmra.mxu0 %v82
  %v1051 = vpop.f32.mrf.mxu0
  %v1052 = vadd.f32 0.0, %v1051
  %1053 = vmatmul.f32.gmra.mxu0 %v83
  %v1054 = vpop.f32.mrf.mxu0
  %v1055 = vadd.f32 0.0, %v1054
  %1056 = vmatmul.f32.gmra.mxu0 %v84
  %v1057 = vpop.f32.mrf.mxu0
  %v1058 = vadd.f32 0.0, %v1057
  %1059 = vmatmul.f32.gmra.mxu0 %v85
  %v1060 = vpop.f32.mrf.mxu0
  %v1061 = vadd.f32 0.0, %v1060
  %1062 = vmatmul.f32.gmra.mxu0 %v86
  %v1063 = vpop.f32.mrf.mxu0
  %v1064 = vadd.f32 0.0, %v1063
  %1065 = vmatmul.f32.gmra.mxu0 %v87
  %v1066 = vpop.f32.mrf.mxu0
  %v1067 = vadd.f32 0.0, %v1066
  %1068 = vmatmul.f32.gmra.mxu0 %v88
  %v1069 = vpop.f32.mrf.mxu0
  %v1070 = vadd.f32 0.0, %v1069
  %1071 = vmatmul.f32.gmra.mxu0 %v89
  %v1072 = vpop.f32.mrf.mxu0
  %v1073 = vadd.f32 0.0, %v1072
  %1074 = vmatmul.f32.gmra.mxu0 %v90
  %v1075 = vpop.f32.mrf.mxu0
  %v1076 = vadd.f32 0.0, %v1075
  %1077 = vmatmul.f32.gmra.mxu0 %v91
  %v1078 = vpop.f32.mrf.mxu0
  %v1079 = vadd.f32 0.0, %v1078
  %1080 = vmatmul.f32.gmra.mxu0 %v92
  %v1081 = vpop.f32.mrf.mxu0
  %v1082 = vadd.f32 0.0, %v1081
  %1083 = vmatmul.f32.gmra.mxu0 %v93
  %v1084 = vpop.f32.mrf.mxu0
  %v1085 = vadd.f32 0.0, %v1084
  %1086 = vmatmul.f32.gmra.mxu0 %v94
  %v1087 = vpop.f32.mrf.mxu0
  %v1088 = vadd.f32 0.0, %v1087
  %1089 = vmatmul.f32.gmra.mxu0 %v95
  %v1090 = vpop.f32.mrf.mxu0
  %v1091 = vadd.f32 0.0, %v1090
  %1092 = vmatmul.f32.gmra.mxu0 %v96
  %v1093 = vpop.f32.mrf.mxu0
  %v1094 = vadd.f32 0.0, %v1093
  %1095 = vmatmul.f32.gmra.mxu0 %v97
  %v1096 = vpop.f32.mrf.mxu0
  %v1097 = vadd.f32 0.0, %v1096
  %1098 = vmatmul.f32.gmra.mxu0 %v98
  %v1099 = vpop.f32.mrf.mxu0
  %v1100 = vadd.f32 0.0, %v1099
  %1101 = vmatmul.f32.gmra.mxu0 %v99
  %v1102 = vpop.f32.mrf.mxu0
  %v1103 = vadd.f32 0.0, %v1102
  %1104 = vmatmul.f32.gmra.mxu0 %v100
  %v1105 = vpop.f32.mrf.mxu0
  %v1106 = vadd.f32 0.0, %v1105
  %1107 = vmatmul.f32.gmra.mxu0 %v101
  %v1108 = vpop.f32.mrf.mxu0
  %v1109 = vadd.f32 0.0, %v1108
  %1110 = vmatmul.f32.gmra.mxu0 %v102
  %v1111 = vpop.f32.mrf.mxu0
  %v1112 = vadd.f32 0.0, %v1111
  %1113 = vmatmul.f32.gmra.mxu0 %v103
  %v1114 = vpop.f32.mrf.mxu0
  %v1115 = vadd.f32 0.0, %v1114
  %1116 = vmatmul.f32.gmra.mxu0 %v104
  %v1117 = vpop.f32.mrf.mxu0
  %v1118 = vadd.f32 0.0, %v1117
  %1119 = vmatmul.f32.gmra.mxu0 %v105
  %v1120 = vpop.f32.mrf.mxu0
  %v1121 = vadd.f32 0.0, %v1120
  %1122 = vmatmul.f32.gmra.mxu0 %v106
  %v1123 = vpop.f32.mrf.mxu0
  %v1124 = vadd.f32 0.0, %v1123
  %1125 = vmatmul.f32.gmra.mxu0 %v107
  %v1126 = vpop.f32.mrf.mxu0
  %v1127 = vadd.f32 0.0, %v1126
  %1128 = vmatmul.f32.gmra.mxu0 %v108
  %v1129 = vpop.f32.mrf.mxu0
  %v1130 = vadd.f32 0.0, %v1129
  %1131 = vmatmul.f32.gmra.mxu0 %v109
  %v1132 = vpop.f32.mrf.mxu0
  %v1133 = vadd.f32 0.0, %v1132
  %1134 = vmatmul.f32.gmra.mxu0 %v110
  %v1135 = vpop.f32.mrf.mxu0
  %v1136 = vadd.f32 0.0, %v1135
  %1137 = vmatmul.f32.gmra.mxu0 %v111
  %v1138 = vpop.f32.mrf.mxu0
  %v1139 = vadd.f32 0.0, %v1138
  %1140 = vmatmul.f32.gmra.mxu0 %v112
  %v1141 = vpop.f32.mrf.mxu0
  %v1142 = vadd.f32 0.0, %v1141
  %1143 = vmatmul.f32.gmra.mxu0 %v113
  %v1144 = vpop.f32.mrf.mxu0
  %v1145 = vadd.f32 0.0, %v1144
  %1146 = vmatmul.f32.gmra.mxu0 %v114
  %v1147 = vpop.f32.mrf.mxu0
  %v1148 = vadd.f32 0.0, %v1147
  %1149 = vmatmul.f32.gmra.mxu0 %v115
  %v1150 = vpop.f32.mrf.mxu0
  %v1151 = vadd.f32 0.0, %v1150
  %1152 = vmatmul.f32.gmra.mxu0 %v116
  %v1153 = vpop.f32.mrf.mxu0
  %v1154 = vadd.f32 0.0, %v1153
  %1155 = vmatmul.f32.gmra.mxu0 %v117
  %v1156 = vpop.f32.mrf.mxu0
  %v1157 = vadd.f32 0.0, %v1156
  %1158 = vmatmul.f32.gmra.mxu0 %v118
  %v1159 = vpop.f32.mrf.mxu0
  %v1160 = vadd.f32 0.0, %v1159
  %1161 = vmatmul.f32.gmra.mxu0 %v119
  %v1162 = vpop.f32.mrf.mxu0
  %v1163 = vadd.f32 0.0, %v1162
  %1164 = vmatmul.f32.gmra.mxu0 %v120
  %v1165 = vpop.f32.mrf.mxu0
  %v1166 = vadd.f32 0.0, %v1165
  %1167 = vmatmul.f32.gmra.mxu0 %v121
  %v1168 = vpop.f32.mrf.mxu0
  %v1169 = vadd.f32 0.0, %v1168
  %1170 = vmatmul.f32.gmra.mxu0 %v122
  %v1171 = vpop.f32.mrf.mxu0
  %v1172 = vadd.f32 0.0, %v1171
  %1173 = vmatmul.f32.gmra.mxu0 %v123
  %v1174 = vpop.f32.mrf.mxu0
  %v1175 = vadd.f32 0.0, %v1174
  %1176 = vmatmul.f32.gmra.mxu0 %v124
  %v1177 = vpop.f32.mrf.mxu0
  %v1178 = vadd.f32 0.0, %v1177
  %1179 = vmatmul.f32.gmra.mxu0 %v125
  %v1180 = vpop.f32.mrf.mxu0
  %v1181 = vadd.f32 0.0, %v1180
  %1182 = vmatmul.f32.gmra.mxu0 %v126
  %v1183 = vpop.f32.mrf.mxu0
  %v1184 = vadd.f32 0.0, %v1183
  %1185 = vmatmul.f32.gmra.mxu0 %v127
  %v1186 = vpop.f32.mrf.mxu0
  %v1187 = vadd.f32 0.0, %v1186
  %1188 = vmatmul.f32.gmra.mxu0 %v128
  %v1189 = vpop.f32.mrf.mxu0
  %v1190 = vadd.f32 0.0, %v1189
  %1191 = vmatmul.f32.gmra.mxu0 %v129
  %v1192 = vpop.f32.mrf.mxu0
  %v1193 = vadd.f32 0.0, %v1192
  %1194 = vmatmul.f32.gmra.mxu0 %v130
  %v1195 = vpop.f32.mrf.mxu0
  %v1196 = vadd.f32 0.0, %v1195
  %1197 = vmatmul.f32.gmra.mxu0 %v131
  %v1198 = vpop.f32.mrf.mxu0
  %v1199 = vadd.f32 0.0, %v1198
  %1200 = vmatmul.f32.gmra.mxu0 %v132
  %v1201 = vpop.f32.mrf.mxu0
  %v1202 = vadd.f32 0.0, %v1201
  %1203 = vmatmul.f32.gmra.mxu0 %v133
  %v1204 = vpop.f32.mrf.mxu0
  %v1205 = vadd.f32 0.0, %v1204
  %1206 = vmatmul.f32.gmra.mxu0 %v134
  %v1207 = vpop.f32.mrf.mxu0
  %v1208 = vadd.f32 0.0, %v1207
  %1209 = vmatmul.f32.gmra.mxu0 %v135
  %v1210 = vpop.f32.mrf.mxu0
  %v1211 = vadd.f32 0.0, %v1210
  %1212 = vmatmul.f32.gmra.mxu0 %v136
  %v1213 = vpop.f32.mrf.mxu0
  %v1214 = vadd.f32 0.0, %v1213
  %1215 = vmatmul.f32.gmra.mxu0 %v137
  %v1216 = vpop.f32.mrf.mxu0
  %v1217 = vadd.f32 0.0, %v1216
  %1218 = vmatmul.f32.gmra.mxu0 %v138
  %v1219 = vpop.f32.mrf.mxu0
  %v1220 = vadd.f32 0.0, %v1219
  %1221 = vmatmul.f32.gmra.mxu0 %v139
  %v1222 = vpop.f32.mrf.mxu0
  %v1223 = vadd.f32 0.0, %v1222
  %1224 = vmatmul.f32.gmra.mxu0 %v140
  %v1225 = vpop.f32.mrf.mxu0
  %v1226 = vadd.f32 0.0, %v1225
  %1227 = vmatmul.f32.gmra.mxu0 %v141
  %v1228 = vpop.f32.mrf.mxu0
  %v1229 = vadd.f32 0.0, %v1228
  %1230 = vmatmul.f32.gmra.mxu0 %v142
  %v1231 = vpop.f32.mrf.mxu0
  %v1232 = vadd.f32 0.0, %v1231
  %1233 = vmatmul.f32.gmra.mxu0 %v143
  %v1234 = vpop.f32.mrf.mxu0
  %v1235 = vadd.f32 0.0, %v1234
  %1236 = vmatmul.f32.gmra.mxu0 %v144
  %v1237 = vpop.f32.mrf.mxu0
  %v1238 = vadd.f32 0.0, %v1237
  %1239 = vmatmul.f32.gmra.mxu0 %v145
  %v1240 = vpop.f32.mrf.mxu0
  %v1241 = vadd.f32 0.0, %v1240
  %1242 = vmatmul.f32.gmra.mxu0 %v146
  %v1243 = vpop.f32.mrf.mxu0
  %v1244 = vadd.f32 0.0, %v1243
  %1245 = vmatmul.f32.gmra.mxu0 %v147
  %v1246 = vpop.f32.mrf.mxu0
  %v1247 = vadd.f32 0.0, %v1246
  %1248 = vmatmul.f32.gmra.mxu0 %v148
  %v1249 = vpop.f32.mrf.mxu0
  %v1250 = vadd.f32 0.0, %v1249
  %1251 = vmatmul.f32.gmra.mxu0 %v149
  %v1252 = vpop.f32.mrf.mxu0
  %v1253 = vadd.f32 0.0, %v1252
  %1254 = vmatmul.f32.gmra.mxu0 %v150
  %v1255 = vpop.f32.mrf.mxu0
  %v1256 = vadd.f32 0.0, %v1255
  %1257 = vmatmul.f32.gmra.mxu0 %v151
  %v1258 = vpop.f32.mrf.mxu0
  %v1259 = vadd.f32 0.0, %v1258
  %1260 = vmatmul.f32.gmra.mxu0 %v152
  %v1261 = vpop.f32.mrf.mxu0
  %v1262 = vadd.f32 0.0, %v1261
  %1263 = vmatmul.f32.gmra.mxu0 %v153
  %v1264 = vpop.f32.mrf.mxu0
  %v1265 = vadd.f32 0.0, %v1264
  %1266 = vmatmul.f32.gmra.mxu0 %v154
  %v1267 = vpop.f32.mrf.mxu0
  %v1268 = vadd.f32 0.0, %v1267
  %1269 = vmatmul.f32.gmra.mxu0 %v155
  %v1270 = vpop.f32.mrf.mxu0
  %v1271 = vadd.f32 0.0, %v1270
  %1272 = vmatmul.f32.gmra.mxu0 %v156
  %v1273 = vpop.f32.mrf.mxu0
  %v1274 = vadd.f32 0.0, %v1273
  %1275 = vmatmul.f32.gmra.mxu0 %v157
  %v1276 = vpop.f32.mrf.mxu0
  %v1277 = vadd.f32 0.0, %v1276
  %1278 = vmatmul.f32.gmra.mxu0 %v158
  %v1279 = vpop.f32.mrf.mxu0
  %v1280 = vadd.f32 0.0, %v1279
  %1281 = vmatmul.f32.gmra.mxu0 %v159
  %v1282 = vpop.f32.mrf.mxu0
  %v1283 = vadd.f32 0.0, %v1282
  %1284 = vmatmul.f32.gmra.mxu0 %v160
  %v1285 = vpop.f32.mrf.mxu0
  %v1286 = vadd.f32 0.0, %v1285
  %1287 = vmatmul.f32.gmra.mxu0 %v161
  %v1288 = vpop.f32.mrf.mxu0
  %v1289 = vadd.f32 0.0, %v1288
  %1290 = vmatmul.f32.gmra.mxu0 %v162
  %v1291 = vpop.f32.mrf.mxu0
  %v1292 = vadd.f32 0.0, %v1291
  %1293 = vmatmul.f32.gmra.mxu0 %v163
  %v1294 = vpop.f32.mrf.mxu0
  %v1295 = vadd.f32 0.0, %v1294
  %1296 = vmatmul.f32.gmra.mxu0 %v164
  %v1297 = vpop.f32.mrf.mxu0
  %v1298 = vadd.f32 0.0, %v1297
  %1299 = vmatmul.f32.gmra.mxu0 %v165
  %v1300 = vpop.f32.mrf.mxu0
  %v1301 = vadd.f32 0.0, %v1300
  %1302 = vmatmul.f32.gmra.mxu0 %v166
  %v1303 = vpop.f32.mrf.mxu0
  %v1304 = vadd.f32 0.0, %v1303
  %1305 = vmatmul.f32.gmra.mxu0 %v167
  %v1306 = vpop.f32.mrf.mxu0
  %v1307 = vadd.f32 0.0, %v1306
  %1308 = vmatmul.f32.gmra.mxu0 %v168
  %v1309 = vpop.f32.mrf.mxu0
  %v1310 = vadd.f32 0.0, %v1309
  %1311 = vmatmul.f32.gmra.mxu0 %v169
  %v1312 = vpop.f32.mrf.mxu0
  %v1313 = vadd.f32 0.0, %v1312
  %1314 = vmatmul.f32.gmra.mxu0 %v170
  %v1315 = vpop.f32.mrf.mxu0
  %v1316 = vadd.f32 0.0, %v1315
  %1317 = vmatmul.f32.gmra.mxu0 %v171
  %v1318 = vpop.f32.mrf.mxu0
  %v1319 = vadd.f32 0.0, %v1318
  %1320 = vmatmul.f32.gmra.mxu0 %v172
  %v1321 = vpop.f32.mrf.mxu0
  %v1322 = vadd.f32 0.0, %v1321
  %1323 = vmatmul.f32.gmra.mxu0 %v173
  %v1324 = vpop.f32.mrf.mxu0
  %v1325 = vadd.f32 0.0, %v1324
  %1326 = vmatmul.f32.gmra.mxu0 %v174
  %v1327 = vpop.f32.mrf.mxu0
  %v1328 = vadd.f32 0.0, %v1327
  %1329 = vmatmul.f32.gmra.mxu0 %v175
  %v1330 = vpop.f32.mrf.mxu0
  %v1331 = vadd.f32 0.0, %v1330
  %1332 = vmatmul.f32.gmra.mxu0 %v176
  %v1333 = vpop.f32.mrf.mxu0
  %v1334 = vadd.f32 0.0, %v1333
  %1335 = vmatmul.f32.gmra.mxu0 %v177
  %v1336 = vpop.f32.mrf.mxu0
  %v1337 = vadd.f32 0.0, %v1336
  %1338 = vmatmul.f32.gmra.mxu0 %v178
  %v1339 = vpop.f32.mrf.mxu0
  %v1340 = vadd.f32 0.0, %v1339
  %1341 = vmatmul.f32.gmra.mxu0 %v179
  %v1342 = vpop.f32.mrf.mxu0
  %v1343 = vadd.f32 0.0, %v1342
  %1344 = vmatmul.f32.gmra.mxu0 %v180
  %v1345 = vpop.f32.mrf.mxu0
  %v1346 = vadd.f32 0.0, %v1345
  %1347 = vmatmul.f32.gmra.mxu0 %v181
  %v1348 = vpop.f32.mrf.mxu0
  %v1349 = vadd.f32 0.0, %v1348
  %1350 = vmatmul.f32.gmra.mxu0 %v182
  %v1351 = vpop.f32.mrf.mxu0
  %v1352 = vadd.f32 0.0, %v1351
  %1353 = vmatmul.f32.gmra.mxu0 %v183
  %v1354 = vpop.f32.mrf.mxu0
  %v1355 = vadd.f32 0.0, %v1354
  %1356 = vmatmul.f32.gmra.mxu0 %v184
  %v1357 = vpop.f32.mrf.mxu0
  %v1358 = vadd.f32 0.0, %v1357
  %1359 = vmatmul.f32.gmra.mxu0 %v185
  %v1360 = vpop.f32.mrf.mxu0
  %v1361 = vadd.f32 0.0, %v1360
  %1362 = vmatmul.f32.gmra.mxu0 %v186
  %v1363 = vpop.f32.mrf.mxu0
  %v1364 = vadd.f32 0.0, %v1363
  %1365 = vmatmul.f32.gmra.mxu0 %v187
  %v1366 = vpop.f32.mrf.mxu0
  %v1367 = vadd.f32 0.0, %v1366
  %1368 = vmatmul.f32.gmra.mxu0 %v188
  %v1369 = vpop.f32.mrf.mxu0
  %v1370 = vadd.f32 0.0, %v1369
  %1371 = vmatmul.f32.gmra.mxu0 %v189
  %v1372 = vpop.f32.mrf.mxu0
  %v1373 = vadd.f32 0.0, %v1372
  %1374 = vmatmul.f32.gmra.mxu0 %v190
  %v1375 = vpop.f32.mrf.mxu0
  %v1376 = vadd.f32 0.0, %v1375
  %1377 = vmatmul.f32.gmra.mxu0 %v191
  %v1378 = vpop.f32.mrf.mxu0
  %v1379 = vadd.f32 0.0, %v1378
  %1380 = vmatmul.f32.gmra.mxu0 %v192
  %v1381 = vpop.f32.mrf.mxu0
  %v1382 = vadd.f32 0.0, %v1381
  %1383 = vmatmul.f32.gmra.mxu0 %v193
  %v1384 = vpop.f32.mrf.mxu0
  %v1385 = vadd.f32 0.0, %v1384
  %1386 = vmatmul.f32.gmra.mxu0 %v194
  %v1387 = vpop.f32.mrf.mxu0
  %v1388 = vadd.f32 0.0, %v1387
  %1389 = vmatmul.f32.gmra.mxu0 %v195
  %v1390 = vpop.f32.mrf.mxu0
  %v1391 = vadd.f32 0.0, %v1390
  %1392 = vmatmul.f32.gmra.mxu0 %v196
  %v1393 = vpop.f32.mrf.mxu0
  %v1394 = vadd.f32 0.0, %v1393
  %1395 = vmatmul.f32.gmra.mxu0 %v197
  %v1396 = vpop.f32.mrf.mxu0
  %v1397 = vadd.f32 0.0, %v1396
  %1398 = vmatmul.f32.gmra.mxu0 %v198
  %v1399 = vpop.f32.mrf.mxu0
  %v1400 = vadd.f32 0.0, %v1399
  %1401 = vmatmul.f32.gmra.mxu0 %v199
  %v1402 = vpop.f32.mrf.mxu0
  %v1403 = vadd.f32 0.0, %v1402
  %1404 = vmatmul.f32.gmra.mxu0 %v200
  %v1405 = vpop.f32.mrf.mxu0
  %v1406 = vadd.f32 0.0, %v1405
  %1407 = vmatmul.f32.gmra.mxu0 %v201
  %v1408 = vpop.f32.mrf.mxu0
  %v1409 = vadd.f32 0.0, %v1408
  %1410 = vmatmul.f32.gmra.mxu0 %v202
  %v1411 = vpop.f32.mrf.mxu0
  %v1412 = vadd.f32 0.0, %v1411
  %1413 = vmatmul.f32.gmra.mxu0 %v203
  %v1414 = vpop.f32.mrf.mxu0
  %v1415 = vadd.f32 0.0, %v1414
  %1416 = vmatmul.f32.gmra.mxu0 %v204
  %v1417 = vpop.f32.mrf.mxu0
  %v1418 = vadd.f32 0.0, %v1417
  %1419 = vmatmul.f32.gmra.mxu0 %v205
  %v1420 = vpop.f32.mrf.mxu0
  %v1421 = vadd.f32 0.0, %v1420
  %1422 = vmatmul.f32.gmra.mxu0 %v206
  %v1423 = vpop.f32.mrf.mxu0
  %v1424 = vadd.f32 0.0, %v1423
  %1425 = vmatmul.f32.gmra.mxu0 %v207
  %v1426 = vpop.f32.mrf.mxu0
  %v1427 = vadd.f32 0.0, %v1426
  %1428 = vmatmul.f32.gmra.mxu0 %v208
  %v1429 = vpop.f32.mrf.mxu0
  %v1430 = vadd.f32 0.0, %v1429
  %1431 = vmatmul.f32.gmra.mxu0 %v209
  %v1432 = vpop.f32.mrf.mxu0
  %v1433 = vadd.f32 0.0, %v1432
  %1434 = vmatmul.f32.gmra.mxu0 %v210
  %v1435 = vpop.f32.mrf.mxu0
  %v1436 = vadd.f32 0.0, %v1435
  %1437 = vmatmul.f32.gmra.mxu0 %v211
  %v1438 = vpop.f32.mrf.mxu0
  %v1439 = vadd.f32 0.0, %v1438
  %1440 = vmatmul.f32.gmra.mxu0 %v212
  %v1441 = vpop.f32.mrf.mxu0
  %v1442 = vadd.f32 0.0, %v1441
  %1443 = vmatmul.f32.gmra.mxu0 %v213
  %v1444 = vpop.f32.mrf.mxu0
  %v1445 = vadd.f32 0.0, %v1444
  %1446 = vmatmul.f32.gmra.mxu0 %v214
  %v1447 = vpop.f32.mrf.mxu0
  %v1448 = vadd.f32 0.0, %v1447
  %1449 = vmatmul.f32.gmra.mxu0 %v215
  %v1450 = vpop.f32.mrf.mxu0
  %v1451 = vadd.f32 0.0, %v1450
  %1452 = vmatmul.f32.gmra.mxu0 %v216
  %v1453 = vpop.f32.mrf.mxu0
  %v1454 = vadd.f32 0.0, %v1453
  %1455 = vmatmul.f32.gmra.mxu0 %v217
  %v1456 = vpop.f32.mrf.mxu0
  %v1457 = vadd.f32 0.0, %v1456
  %1458 = vmatmul.f32.gmra.mxu0 %v218
  %v1459 = vpop.f32.mrf.mxu0
  %v1460 = vadd.f32 0.0, %v1459
  %1461 = vmatmul.f32.gmra.mxu0 %v219
  %v1462 = vpop.f32.mrf.mxu0
  %v1463 = vadd.f32 0.0, %v1462
  %1464 = vmatmul.f32.gmra.mxu0 %v220
  %v1465 = vpop.f32.mrf.mxu0
  %v1466 = vadd.f32 0.0, %v1465
  %1467 = vmatmul.f32.gmra.mxu0 %v221
  %v1468 = vpop.f32.mrf.mxu0
  %v1469 = vadd.f32 0.0, %v1468
  %1470 = vmatmul.f32.gmra.mxu0 %v222
  %v1471 = vpop.f32.mrf.mxu0
  %v1472 = vadd.f32 0.0, %v1471
  %1473 = vmatmul.f32.gmra.mxu0 %v223
  %v1474 = vpop.f32.mrf.mxu0
  %v1475 = vadd.f32 0.0, %v1474
  %1476 = vmatmul.f32.gmra.mxu0 %v224
  %v1477 = vpop.f32.mrf.mxu0
  %v1478 = vadd.f32 0.0, %v1477
  %1479 = vmatmul.f32.gmra.mxu0 %v225
  %v1480 = vpop.f32.mrf.mxu0
  %v1481 = vadd.f32 0.0, %v1480
  %1482 = vmatmul.f32.gmra.mxu0 %v226
  %v1483 = vpop.f32.mrf.mxu0
  %v1484 = vadd.f32 0.0, %v1483
  %1485 = vmatmul.f32.gmra.mxu0 %v227
  %v1486 = vpop.f32.mrf.mxu0
  %v1487 = vadd.f32 0.0, %v1486
  %1488 = vmatmul.f32.gmra.mxu0 %v228
  %v1489 = vpop.f32.mrf.mxu0
  %v1490 = vadd.f32 0.0, %v1489
  %1491 = vmatmul.f32.gmra.mxu0 %v229
  %v1492 = vpop.f32.mrf.mxu0
  %v1493 = vadd.f32 0.0, %v1492
  %1494 = vmatmul.f32.gmra.mxu0 %v230
  %v1495 = vpop.f32.mrf.mxu0
  %v1496 = vadd.f32 0.0, %v1495
  %1497 = vmatmul.f32.gmra.mxu0 %v231
  %v1498 = vpop.f32.mrf.mxu0
  %v1499 = vadd.f32 0.0, %v1498
  %1500 = vmatmul.f32.gmra.mxu0 %v232
  %v1501 = vpop.f32.mrf.mxu0
  %v1502 = vadd.f32 0.0, %v1501
  %1503 = vmatmul.f32.gmra.mxu0 %v233
  %v1504 = vpop.f32.mrf.mxu0
  %v1505 = vadd.f32 0.0, %v1504
  %1506 = vmatmul.f32.gmra.mxu0 %v234
  %v1507 = vpop.f32.mrf.mxu0
  %v1508 = vadd.f32 0.0, %v1507
  %1509 = vmatmul.f32.gmra.mxu0 %v235
  %v1510 = vpop.f32.mrf.mxu0
  %v1511 = vadd.f32 0.0, %v1510
  %1512 = vmatmul.f32.gmra.mxu0 %v236
  %v1513 = vpop.f32.mrf.mxu0
  %v1514 = vadd.f32 0.0, %v1513
  %1515 = vmatmul.f32.gmra.mxu0 %v237
  %v1516 = vpop.f32.mrf.mxu0
  %v1517 = vadd.f32 0.0, %v1516
  %1518 = vmatmul.f32.gmra.mxu0 %v238
  %v1519 = vpop.f32.mrf.mxu0
  %v1520 = vadd.f32 0.0, %v1519
  %1521 = vmatmul.f32.gmra.mxu0 %v239
  %v1522 = vpop.f32.mrf.mxu0
  %v1523 = vadd.f32 0.0, %v1522
  %1524 = vmatmul.f32.gmra.mxu0 %v240
  %v1525 = vpop.f32.mrf.mxu0
  %v1526 = vadd.f32 0.0, %v1525
  %1527 = vmatmul.f32.gmra.mxu0 %v241
  %v1528 = vpop.f32.mrf.mxu0
  %v1529 = vadd.f32 0.0, %v1528
  %1530 = vmatmul.f32.gmra.mxu0 %v242
  %v1531 = vpop.f32.mrf.mxu0
  %v1532 = vadd.f32 0.0, %v1531
  %1533 = vmatmul.f32.gmra.mxu0 %v243
  %v1534 = vpop.f32.mrf.mxu0
  %v1535 = vadd.f32 0.0, %v1534
  %1536 = vmatmul.f32.gmra.mxu0 %v244
  %v1537 = vpop.f32.mrf.mxu0
  %v1538 = vadd.f32 0.0, %v1537
  %1539 = vmatmul.f32.gmra.mxu0 %v245
  %v1540 = vpop.f32.mrf.mxu0
  %v1541 = vadd.f32 0.0, %v1540
  %1542 = vmatmul.f32.gmra.mxu0 %v246
  %v1543 = vpop.f32.mrf.mxu0
  %v1544 = vadd.f32 0.0, %v1543
  %1545 = vmatmul.f32.gmra.mxu0 %v247
  %v1546 = vpop.f32.mrf.mxu0
  %v1547 = vadd.f32 0.0, %v1546
  %1548 = vmatmul.f32.gmra.mxu0 %v248
  %v1549 = vpop.f32.mrf.mxu0
  %v1550 = vadd.f32 0.0, %v1549
  %1551 = vmatmul.f32.gmra.mxu0 %v249
  %v1552 = vpop.f32.mrf.mxu0
  %v1553 = vadd.f32 0.0, %v1552
  %1554 = vmatmul.f32.gmra.mxu0 %v250
  %v1555 = vpop.f32.mrf.mxu0
  %v1556 = vadd.f32 0.0, %v1555
  %1557 = vmatmul.f32.gmra.mxu0 %v251
  %v1558 = vpop.f32.mrf.mxu0
  %v1559 = vadd.f32 0.0, %v1558
  %1560 = vmatmul.f32.gmra.mxu0 %v252
  %v1561 = vpop.f32.mrf.mxu0
  %v1562 = vadd.f32 0.0, %v1561
  %1563 = vmatmul.f32.gmra.mxu0 %v253
  %v1564 = vpop.f32.mrf.mxu0
  %v1565 = vadd.f32 0.0, %v1564
  %1566 = vmatmul.f32.gmra.mxu0 %v254
  %v1567 = vpop.f32.mrf.mxu0
  %v1568 = vadd.f32 0.0, %v1567
  %1569 = vmatmul.f32.gmra.mxu0 %v255
  %v1570 = vpop.f32.mrf.mxu0
  %v1571 = vadd.f32 0.0, %v1570
  %1572 = vmatmul.f32.gmra.mxu0 %v256
  %v1573 = vpop.f32.mrf.mxu0
  %v1574 = vadd.f32 0.0, %v1573
  %1575 = vmatmul.f32.gmra.mxu0 %v257
  %v1576 = vpop.f32.mrf.mxu0
  %v1577 = vadd.f32 0.0, %v1576
  %1578 = vmatmul.f32.gmra.mxu0 %v258
  %v1579 = vpop.f32.mrf.mxu0
  %v1580 = vadd.f32 0.0, %v1579
  %1581 = vmatmul.f32.gmra.mxu0 %v259
  %v1582 = vpop.f32.mrf.mxu0
  %v1583 = vadd.f32 0.0, %v1582
  %1584 = vmatmul.f32.gmra.mxu0 %v260
  %v1585 = vpop.f32.mrf.mxu0
  %v1586 = vadd.f32 0.0, %v1585
  %1587 = vmatmul.f32.gmra.mxu0 %v261
  %v1588 = vpop.f32.mrf.mxu0
  %v1589 = vadd.f32 0.0, %v1588
  %1590 = vmatmul.f32.gmra.mxu0 %v262
  %v1591 = vpop.f32.mrf.mxu0
  %v1592 = vadd.f32 0.0, %v1591
  %1593 = vmatmul.f32.gmra.mxu0 %v263
  %v1594 = vpop.f32.mrf.mxu0
  %v1595 = vadd.f32 0.0, %v1594
  %1596 = vmatmul.f32.gmra.mxu0 %v264
  %v1597 = vpop.f32.mrf.mxu0
  %v1598 = vadd.f32 0.0, %v1597
  %1599 = vmatmul.f32.gmra.mxu0 %v265
  %v1600 = vpop.f32.mrf.mxu0
  %v1601 = vadd.f32 0.0, %v1600
  %1602 = vmatmul.f32.gmra.mxu0 %v266
  %v1603 = vpop.f32.mrf.mxu0
  %v1604 = vadd.f32 0.0, %v1603
  %1605 = vmatmul.f32.gmra.mxu0 %v267
  %v1606 = vpop.f32.mrf.mxu0
  %v1607 = vadd.f32 0.0, %v1606
  %1608 = vmatmul.f32.gmra.mxu0 %v268
  %v1609 = vpop.f32.mrf.mxu0
  %v1610 = vadd.f32 0.0, %v1609
  %1611 = vmatmul.f32.gmra.mxu0 %v269
  %v1612 = vpop.f32.mrf.mxu0
  %v1613 = vadd.f32 0.0, %v1612
  %1614 = vmatmul.f32.gmra.mxu0 %v270
  %v1615 = vpop.f32.mrf.mxu0
  %v1616 = vadd.f32 0.0, %v1615
  %1617 = vmatmul.f32.gmra.mxu0 %v271
  %v1618 = vpop.f32.mrf.mxu0
  %v1619 = vadd.f32 0.0, %v1618
  %1620 = vmatmul.f32.gmra.mxu0 %v272
  %v1621 = vpop.f32.mrf.mxu0
  %v1622 = vadd.f32 0.0, %v1621
  %1623 = vmatmul.f32.gmra.mxu0 %v273
  %v1624 = vpop.f32.mrf.mxu0
  %v1625 = vadd.f32 0.0, %v1624
  %1626 = vmatmul.f32.gmra.mxu0 %v274
  %v1627 = vpop.f32.mrf.mxu0
  %v1628 = vadd.f32 0.0, %v1627
  %1629 = vmatmul.f32.gmra.mxu0 %v275
  %v1630 = vpop.f32.mrf.mxu0
  %v1631 = vadd.f32 0.0, %v1630
  %1632 = vmatmul.f32.gmra.mxu0 %v276
  %v1633 = vpop.f32.mrf.mxu0
  %v1634 = vadd.f32 0.0, %v1633
  %1635 = vmatmul.f32.gmra.mxu0 %v277
  %v1636 = vpop.f32.mrf.mxu0
  %v1637 = vadd.f32 0.0, %v1636
  %1638 = vmatmul.f32.gmra.mxu0 %v278
  %v1639 = vpop.f32.mrf.mxu0
  %v1640 = vadd.f32 0.0, %v1639
  %1641 = vmatmul.f32.gmra.mxu0 %v279
  %v1642 = vpop.f32.mrf.mxu0
  %v1643 = vadd.f32 0.0, %v1642
  %1644 = vmatmul.f32.gmra.mxu0 %v280
  %v1645 = vpop.f32.mrf.mxu0
  %v1646 = vadd.f32 0.0, %v1645
  %1647 = vmatmul.f32.gmra.mxu0 %v281
  %v1648 = vpop.f32.mrf.mxu0
  %v1649 = vadd.f32 0.0, %v1648
  %1650 = vmatmul.f32.gmra.mxu0 %v282
  %v1651 = vpop.f32.mrf.mxu0
  %v1652 = vadd.f32 0.0, %v1651
  %1653 = vmatmul.f32.gmra.mxu0 %v283
  %v1654 = vpop.f32.mrf.mxu0
  %v1655 = vadd.f32 0.0, %v1654
  %1656 = vmatmul.f32.gmra.mxu0 %v284
  %v1657 = vpop.f32.mrf.mxu0
  %v1658 = vadd.f32 0.0, %v1657
  %1659 = vmatmul.f32.gmra.mxu0 %v285
  %v1660 = vpop.f32.mrf.mxu0
  %v1661 = vadd.f32 0.0, %v1660
  %1662 = vmatmul.f32.gmra.mxu0 %v286
  %v1663 = vpop.f32.mrf.mxu0
  %v1664 = vadd.f32 0.0, %v1663
  %1665 = vmatmul.f32.gmra.mxu0 %v287
  %v1666 = vpop.f32.mrf.mxu0
  %v1667 = vadd.f32 0.0, %v1666
  %1668 = vmatmul.f32.gmra.mxu0 %v288
  %v1669 = vpop.f32.mrf.mxu0
  %v1670 = vadd.f32 0.0, %v1669
  %1671 = vmatmul.f32.gmra.mxu0 %v289
  %v1672 = vpop.f32.mrf.mxu0
  %v1673 = vadd.f32 0.0, %v1672
  %1674 = vmatmul.f32.gmra.mxu0 %v290
  %v1675 = vpop.f32.mrf.mxu0
  %v1676 = vadd.f32 0.0, %v1675
  %1677 = vmatmul.f32.gmra.mxu0 %v291
  %v1678 = vpop.f32.mrf.mxu0
  %v1679 = vadd.f32 0.0, %v1678
  %1680 = vmatmul.f32.gmra.mxu0 %v292
  %v1681 = vpop.f32.mrf.mxu0
  %v1682 = vadd.f32 0.0, %v1681
  %1683 = vmatmul.f32.gmra.mxu0 %v293
  %v1684 = vpop.f32.mrf.mxu0
  %v1685 = vadd.f32 0.0, %v1684
  %1686 = vmatmul.f32.gmra.mxu0 %v294
  %v1687 = vpop.f32.mrf.mxu0
  %v1688 = vadd.f32 0.0, %v1687
  %1689 = vmatmul.f32.gmra.mxu0 %v295
  %v1690 = vpop.f32.mrf.mxu0
  %v1691 = vadd.f32 0.0, %v1690
  %1692 = vmatmul.f32.gmra.mxu0 %v296
  %v1693 = vpop.f32.mrf.mxu0
  %v1694 = vadd.f32 0.0, %v1693
  %1695 = vmatmul.f32.gmra.mxu0 %v297
  %v1696 = vpop.f32.mrf.mxu0
  %v1697 = vadd.f32 0.0, %v1696
  %1698 = vmatmul.f32.gmra.mxu0 %v298
  %v1699 = vpop.f32.mrf.mxu0
  %v1700 = vadd.f32 0.0, %v1699
  %1701 = vmatmul.f32.gmra.mxu0 %v299
  %v1702 = vpop.f32.mrf.mxu0
  %v1703 = vadd.f32 0.0, %v1702
  %1704 = vmatmul.f32.gmra.mxu0 %v300
  %v1705 = vpop.f32.mrf.mxu0
  %v1706 = vadd.f32 0.0, %v1705
  %1707 = vmatmul.f32.gmra.mxu0 %v301
  %v1708 = vpop.f32.mrf.mxu0
  %v1709 = vadd.f32 0.0, %v1708
  %1710 = vmatmul.f32.gmra.mxu0 %v302
  %v1711 = vpop.f32.mrf.mxu0
  %v1712 = vadd.f32 0.0, %v1711
  %1713 = vmatmul.f32.gmra.mxu0 %v303
  %v1714 = vpop.f32.mrf.mxu0
  %v1715 = vadd.f32 0.0, %v1714
  %1716 = vmatmul.f32.gmra.mxu0 %v304
  %v1717 = vpop.f32.mrf.mxu0
  %v1718 = vadd.f32 0.0, %v1717
  %1719 = vmatmul.f32.gmra.mxu0 %v305
  %v1720 = vpop.f32.mrf.mxu0
  %v1721 = vadd.f32 0.0, %v1720
  %1722 = vmatmul.f32.gmra.mxu0 %v306
  %v1723 = vpop.f32.mrf.mxu0
  %v1724 = vadd.f32 0.0, %v1723
  %1725 = vmatmul.f32.gmra.mxu0 %v307
  %v1726 = vpop.f32.mrf.mxu0
  %v1727 = vadd.f32 0.0, %v1726
  %1728 = vmatmul.f32.gmra.mxu0 %v308
  %v1729 = vpop.f32.mrf.mxu0
  %v1730 = vadd.f32 0.0, %v1729
  %1731 = vmatmul.f32.gmra.mxu0 %v309
  %v1732 = vpop.f32.mrf.mxu0
  %v1733 = vadd.f32 0.0, %v1732
  %1734 = vmatmul.f32.gmra.mxu0 %v310
  %v1735 = vpop.f32.mrf.mxu0
  %v1736 = vadd.f32 0.0, %v1735
  %1737 = vmatmul.f32.gmra.mxu0 %v311
  %v1738 = vpop.f32.mrf.mxu0
  %v1739 = vadd.f32 0.0, %v1738
  %1740 = vmatmul.f32.gmra.mxu0 %v312
  %v1741 = vpop.f32.mrf.mxu0
  %v1742 = vadd.f32 0.0, %v1741
  %1743 = vmatmul.f32.gmra.mxu0 %v313
  %v1744 = vpop.f32.mrf.mxu0
  %v1745 = vadd.f32 0.0, %v1744
  %1746 = vmatmul.f32.gmra.mxu0 %v314
  %v1747 = vpop.f32.mrf.mxu0
  %v1748 = vadd.f32 0.0, %v1747
  %1749 = vmatmul.f32.gmra.mxu0 %v315
  %v1750 = vpop.f32.mrf.mxu0
  %v1751 = vadd.f32 0.0, %v1750
  %1752 = vmatmul.f32.gmra.mxu0 %v316
  %v1753 = vpop.f32.mrf.mxu0
  %v1754 = vadd.f32 0.0, %v1753
  %1755 = vmatmul.f32.gmra.mxu0 %v317
  %v1756 = vpop.f32.mrf.mxu0
  %v1757 = vadd.f32 0.0, %v1756
  %1758 = vmatmul.f32.gmra.mxu0 %v318
  %v1759 = vpop.f32.mrf.mxu0
  %v1760 = vadd.f32 0.0, %v1759
  %1761 = vmatmul.f32.gmra.mxu0 %v319
  %v1762 = vpop.f32.mrf.mxu0
  %v1763 = vadd.f32 0.0, %v1762
  %1764 = vmatmul.f32.gmra.mxu0 %v320
  %v1765 = vpop.f32.mrf.mxu0
  %v1766 = vadd.f32 0.0, %v1765
  %1767 = vmatmul.f32.gmra.mxu0 %v321
  %v1768 = vpop.f32.mrf.mxu0
  %v1769 = vadd.f32 0.0, %v1768
  %1770 = vmatmul.f32.gmra.mxu0 %v322
  %v1771 = vpop.f32.mrf.mxu0
  %v1772 = vadd.f32 0.0, %v1771
  %1773 = vmatmul.f32.gmra.mxu0 %v323
  %v1774 = vpop.f32.mrf.mxu0
  %v1775 = vadd.f32 0.0, %v1774
  %1776 = vmatmul.f32.gmra.mxu0 %v324
  %v1777 = vpop.f32.mrf.mxu0
  %v1778 = vadd.f32 0.0, %v1777
  %1779 = vmatmul.f32.gmra.mxu0 %v325
  %v1780 = vpop.f32.mrf.mxu0
  %v1781 = vadd.f32 0.0, %v1780
  %1782 = vmatmul.f32.gmra.mxu0 %v326
  %v1783 = vpop.f32.mrf.mxu0
  %v1784 = vadd.f32 0.0, %v1783
  %1785 = vmatmul.f32.gmra.mxu0 %v327
  %v1786 = vpop.f32.mrf.mxu0
  %v1787 = vadd.f32 0.0, %v1786
  %1788 = vmatmul.f32.gmra.mxu0 %v328
  %v1789 = vpop.f32.mrf.mxu0
  %v1790 = vadd.f32 0.0, %v1789
  %1791 = vmatmul.f32.gmra.mxu0 %v329
  %v1792 = vpop.f32.mrf.mxu0
  %v1793 = vadd.f32 0.0, %v1792
  %1794 = vmatmul.f32.gmra.mxu0 %v330
  %v1795 = vpop.f32.mrf.mxu0
  %v1796 = vadd.f32 0.0, %v1795
  %1797 = vmatmul.f32.gmra.mxu0 %v331
  %v1798 = vpop.f32.mrf.mxu0
  %v1799 = vadd.f32 0.0, %v1798
  %1800 = vmatmul.f32.gmra.mxu0 %v332
  %v1801 = vpop.f32.mrf.mxu0
  %v1802 = vadd.f32 0.0, %v1801
  %1803 = vmatmul.f32.gmra.mxu0 %v333
  %v1804 = vpop.f32.mrf.mxu0
  %v1805 = vadd.f32 0.0, %v1804
  %1806 = vmatmul.f32.gmra.mxu0 %v334
  %v1807 = vpop.f32.mrf.mxu0
  %v1808 = vadd.f32 0.0, %v1807
  %1809 = vmatmul.f32.gmra.mxu0 %v335
  %v1810 = vpop.f32.mrf.mxu0
  %v1811 = vadd.f32 0.0, %v1810
  %1812 = vmatmul.f32.gmra.mxu0 %v336
  %v1813 = vpop.f32.mrf.mxu0
  %v1814 = vadd.f32 0.0, %v1813
  %1815 = vmatmul.f32.gmra.mxu0 %v337
  %v1816 = vpop.f32.mrf.mxu0
  %v1817 = vadd.f32 0.0, %v1816
  %1818 = vmatmul.f32.gmra.mxu0 %v338
  %v1819 = vpop.f32.mrf.mxu0
  %v1820 = vadd.f32 0.0, %v1819
  %1821 = vmatmul.f32.gmra.mxu0 %v339
  %v1822 = vpop.f32.mrf.mxu0
  %v1823 = vadd.f32 0.0, %v1822
  %1824 = vmatmul.f32.gmra.mxu0 %v340
  %v1825 = vpop.f32.mrf.mxu0
  %v1826 = vadd.f32 0.0, %v1825
  %1827 = vmatmul.f32.gmra.mxu0 %v341
  %v1828 = vpop.f32.mrf.mxu0
  %v1829 = vadd.f32 0.0, %v1828
  %1830 = vmatmul.f32.gmra.mxu0 %v342
  %v1831 = vpop.f32.mrf.mxu0
  %v1832 = vadd.f32 0.0, %v1831
  %1833 = vmatmul.f32.gmra.mxu0 %v343
  %v1834 = vpop.f32.mrf.mxu0
  %v1835 = vadd.f32 0.0, %v1834
  %1836 = vmatmul.f32.gmra.mxu0 %v344
  %v1837 = vpop.f32.mrf.mxu0
  %v1838 = vadd.f32 0.0, %v1837
  %1839 = vmatmul.f32.gmra.mxu0 %v345
  %v1840 = vpop.f32.mrf.mxu0
  %v1841 = vadd.f32 0.0, %v1840
  %1842 = vmatmul.f32.gmra.mxu0 %v346
  %v1843 = vpop.f32.mrf.mxu0
  %v1844 = vadd.f32 0.0, %v1843
  %1845 = vmatmul.f32.gmra.mxu0 %v347
  %v1846 = vpop.f32.mrf.mxu0
  %v1847 = vadd.f32 0.0, %v1846
  %1848 = vmatmul.f32.gmra.mxu0 %v348
  %v1849 = vpop.f32.mrf.mxu0
  %v1850 = vadd.f32 0.0, %v1849
  %1851 = vmatmul.f32.gmra.mxu0 %v349
  %v1852 = vpop.f32.mrf.mxu0
  %v1853 = vadd.f32 0.0, %v1852
  %1854 = vmatmul.f32.gmra.mxu0 %v350
  %v1855 = vpop.f32.mrf.mxu0
  %v1856 = vadd.f32 0.0, %v1855
  %1857 = vmatmul.f32.gmra.mxu0 %v351
  %v1858 = vpop.f32.mrf.mxu0
  %v1859 = vadd.f32 0.0, %v1858
  %1860 = vmatmul.f32.gmra.mxu0 %v352
  %v1861 = vpop.f32.mrf.mxu0
  %v1862 = vadd.f32 0.0, %v1861
  %1863 = vmatmul.f32.gmra.mxu0 %v353
  %v1864 = vpop.f32.mrf.mxu0
  %v1865 = vadd.f32 0.0, %v1864
  %1866 = vmatmul.f32.gmra.mxu0 %v354
  %v1867 = vpop.f32.mrf.mxu0
  %v1868 = vadd.f32 0.0, %v1867
  %1869 = vmatmul.f32.gmra.mxu0 %v355
  %v1870 = vpop.f32.mrf.mxu0
  %v1871 = vadd.f32 0.0, %v1870
  %1872 = vmatmul.f32.gmra.mxu0 %v356
  %v1873 = vpop.f32.mrf.mxu0
  %v1874 = vadd.f32 0.0, %v1873
  %1875 = vmatmul.f32.gmra.mxu0 %v357
  %v1876 = vpop.f32.mrf.mxu0
  %v1877 = vadd.f32 0.0, %v1876
  %1878 = vmatmul.f32.gmra.mxu0 %v358
  %v1879 = vpop.f32.mrf.mxu0
  %v1880 = vadd.f32 0.0, %v1879
  %1881 = vmatmul.f32.gmra.mxu0 %v359
  %v1882 = vpop.f32.mrf.mxu0
  %v1883 = vadd.f32 0.0, %v1882
  %1884 = vmatmul.f32.gmra.mxu0 %v360
  %v1885 = vpop.f32.mrf.mxu0
  %v1886 = vadd.f32 0.0, %v1885
  %1887 = vmatmul.f32.gmra.mxu0 %v361
  %v1888 = vpop.f32.mrf.mxu0
  %v1889 = vadd.f32 0.0, %v1888
  %1890 = vmatmul.f32.gmra.mxu0 %v362
  %v1891 = vpop.f32.mrf.mxu0
  %v1892 = vadd.f32 0.0, %v1891
  %1893 = vmatmul.f32.gmra.mxu0 %v363
  %v1894 = vpop.f32.mrf.mxu0
  %v1895 = vadd.f32 0.0, %v1894
  %1896 = vmatmul.f32.gmra.mxu0 %v364
  %v1897 = vpop.f32.mrf.mxu0
  %v1898 = vadd.f32 0.0, %v1897
  %1899 = vmatmul.f32.gmra.mxu0 %v365
  %v1900 = vpop.f32.mrf.mxu0
  %v1901 = vadd.f32 0.0, %v1900
  %1902 = vmatmul.f32.gmra.mxu0 %v366
  %v1903 = vpop.f32.mrf.mxu0
  %v1904 = vadd.f32 0.0, %v1903
  %1905 = vmatmul.f32.gmra.mxu0 %v367
  %v1906 = vpop.f32.mrf.mxu0
  %v1907 = vadd.f32 0.0, %v1906
  %1908 = vmatmul.f32.gmra.mxu0 %v368
  %v1909 = vpop.f32.mrf.mxu0
  %v1910 = vadd.f32 0.0, %v1909
  %1911 = vmatmul.f32.gmra.mxu0 %v369
  %v1912 = vpop.f32.mrf.mxu0
  %v1913 = vadd.f32 0.0, %v1912
  %1914 = vmatmul.f32.gmra.mxu0 %v370
  %v1915 = vpop.f32.mrf.mxu0
  %v1916 = vadd.f32 0.0, %v1915
  %1917 = vmatmul.f32.gmra.mxu0 %v371
  %v1918 = vpop.f32.mrf.mxu0
  %v1919 = vadd.f32 0.0, %v1918
  %1920 = vmatmul.f32.gmra.mxu0 %v372
  %v1921 = vpop.f32.mrf.mxu0
  %v1922 = vadd.f32 0.0, %v1921
  %1923 = vmatmul.f32.gmra.mxu0 %v373
  %v1924 = vpop.f32.mrf.mxu0
  %v1925 = vadd.f32 0.0, %v1924
  %1926 = vmatmul.f32.gmra.mxu0 %v374
  %v1927 = vpop.f32.mrf.mxu0
  %v1928 = vadd.f32 0.0, %v1927
  %1929 = vmatmul.f32.gmra.mxu0 %v375
  %v1930 = vpop.f32.mrf.mxu0
  %v1931 = vadd.f32 0.0, %v1930
  %1932 = vmatmul.f32.gmra.mxu0 %v376
  %v1933 = vpop.f32.mrf.mxu0
  %v1934 = vadd.f32 0.0, %v1933
  %1935 = vmatmul.f32.gmra.mxu0 %v377
  %v1936 = vpop.f32.mrf.mxu0
  %v1937 = vadd.f32 0.0, %v1936
  %1938 = vmatmul.f32.gmra.mxu0 %v378
  %v1939 = vpop.f32.mrf.mxu0
  %v1940 = vadd.f32 0.0, %v1939
  %1941 = vmatmul.f32.gmra.mxu0 %v379
  %v1942 = vpop.f32.mrf.mxu0
  %v1943 = vadd.f32 0.0, %v1942
  %1944 = vmatmul.f32.gmra.mxu0 %v380
  %v1945 = vpop.f32.mrf.mxu0
  %v1946 = vadd.f32 0.0, %v1945
  %1947 = vmatmul.f32.gmra.mxu0 %v381
  %v1948 = vpop.f32.mrf.mxu0
  %v1949 = vadd.f32 0.0, %v1948
  %1950 = vmatmul.f32.gmra.mxu0 %v382
  %v1951 = vpop.f32.mrf.mxu0
  %v1952 = vadd.f32 0.0, %v1951
  %1953 = vmatmul.f32.gmra.mxu0 %v383
  %v1954 = vpop.f32.mrf.mxu0
  %v1955 = vadd.f32 0.0, %v1954
  %1956 = vmatmul.f32.gmra.mxu0 %v384
  %v1957 = vpop.f32.mrf.mxu0
  %v1958 = vadd.f32 0.0, %v1957
  %1959 = vmatmul.f32.gmra.mxu0 %v385
  %v1960 = vpop.f32.mrf.mxu0
  %v1961 = vadd.f32 0.0, %v1960
  %1962 = vmatmul.f32.gmra.mxu0 %v386
  %v1963 = vpop.f32.mrf.mxu0
  %v1964 = vadd.f32 0.0, %v1963
  %1965 = vmatmul.f32.gmra.mxu0 %v387
  %v1966 = vpop.f32.mrf.mxu0
  %v1967 = vadd.f32 0.0, %v1966
  %1968 = vmatmul.f32.gmra.mxu0 %v388
  %v1969 = vpop.f32.mrf.mxu0
  %v1970 = vadd.f32 0.0, %v1969
  %1971 = vmatmul.f32.gmra.mxu0 %v389
  %v1972 = vpop.f32.mrf.mxu0
  %v1973 = vadd.f32 0.0, %v1972
  %1974 = vmatmul.f32.gmra.mxu0 %v390
  %v1975 = vpop.f32.mrf.mxu0
  %v1976 = vadd.f32 0.0, %v1975
  %1977 = vmatmul.f32.gmra.mxu0 %v391
  %v1978 = vpop.f32.mrf.mxu0
  %v1979 = vadd.f32 0.0, %v1978
  %1980 = vmatmul.f32.gmra.mxu0 %v392
  %v1981 = vpop.f32.mrf.mxu0
  %v1982 = vadd.f32 0.0, %v1981
  %1983 = vmatmul.f32.gmra.mxu0 %v393
  %v1984 = vpop.f32.mrf.mxu0
  %v1985 = vadd.f32 0.0, %v1984
  %1986 = vmatmul.f32.gmra.mxu0 %v394
  %v1987 = vpop.f32.mrf.mxu0
  %v1988 = vadd.f32 0.0, %v1987
  %1989 = vmatmul.f32.gmra.mxu0 %v395
  %v1990 = vpop.f32.mrf.mxu0
  %v1991 = vadd.f32 0.0, %v1990
  %1992 = vmatmul.f32.gmra.mxu0 %v396
  %v1993 = vpop.f32.mrf.mxu0
  %v1994 = vadd.f32 0.0, %v1993
  %1995 = vmatmul.f32.gmra.mxu0 %v397
  %v1996 = vpop.f32.mrf.mxu0
  %v1997 = vadd.f32 0.0, %v1996
  %1998 = vmatmul.f32.gmra.mxu0 %v398
  %v1999 = vpop.f32.mrf.mxu0
  %v2000 = vadd.f32 0.0, %v1999
  %2001 = vmatmul.f32.gmra.mxu0 %v399
  %v2002 = vpop.f32.mrf.mxu0
  %v2003 = vadd.f32 0.0, %v2002
  %2004 = vmatmul.f32.gmra.mxu0 %v400
  %v2005 = vpop.f32.mrf.mxu0
  %v2006 = vadd.f32 0.0, %v2005
  %2007 = vmatmul.f32.gmra.mxu0 %v401
  %v2008 = vpop.f32.mrf.mxu0
  %v2009 = vadd.f32 0.0, %v2008
  %2010 = vmatmul.f32.gmra.mxu0 %v402
  %v2011 = vpop.f32.mrf.mxu0
  %v2012 = vadd.f32 0.0, %v2011
  %2013 = vmatmul.f32.gmra.mxu0 %v403
  %v2014 = vpop.f32.mrf.mxu0
  %v2015 = vadd.f32 0.0, %v2014
  %2016 = vmatmul.f32.gmra.mxu0 %v404
  %v2017 = vpop.f32.mrf.mxu0
  %v2018 = vadd.f32 0.0, %v2017
  %2019 = vmatmul.f32.gmra.mxu0 %v405
  %v2020 = vpop.f32.mrf.mxu0
  %v2021 = vadd.f32 0.0, %v2020
  %2022 = vmatmul.f32.gmra.mxu0 %v406
  %v2023 = vpop.f32.mrf.mxu0
  %v2024 = vadd.f32 0.0, %v2023
  %2025 = vmatmul.f32.gmra.mxu0 %v407
  %v2026 = vpop.f32.mrf.mxu0
  %v2027 = vadd.f32 0.0, %v2026
  %2028 = vmatmul.f32.gmra.mxu0 %v408
  %v2029 = vpop.f32.mrf.mxu0
  %v2030 = vadd.f32 0.0, %v2029
  %2031 = vmatmul.f32.gmra.mxu0 %v409
  %v2032 = vpop.f32.mrf.mxu0
  %v2033 = vadd.f32 0.0, %v2032
  %2034 = vmatmul.f32.gmra.mxu0 %v410
  %v2035 = vpop.f32.mrf.mxu0
  %v2036 = vadd.f32 0.0, %v2035
  %2037 = vmatmul.f32.gmra.mxu0 %v411
  %v2038 = vpop.f32.mrf.mxu0
  %v2039 = vadd.f32 0.0, %v2038
  %2040 = vmatmul.f32.gmra.mxu0 %v412
  %v2041 = vpop.f32.mrf.mxu0
  %v2042 = vadd.f32 0.0, %v2041
  %2043 = vmatmul.f32.gmra.mxu0 %v413
  %v2044 = vpop.f32.mrf.mxu0
  %v2045 = vadd.f32 0.0, %v2044
  %2046 = vmatmul.f32.gmra.mxu0 %v414
  %v2047 = vpop.f32.mrf.mxu0
  %v2048 = vadd.f32 0.0, %v2047
  %2049 = vmatmul.f32.gmra.mxu0 %v415
  %v2050 = vpop.f32.mrf.mxu0
  %v2051 = vadd.f32 0.0, %v2050
  %2052 = vmatmul.f32.gmra.mxu0 %v416
  %v2053 = vpop.f32.mrf.mxu0
  %v2054 = vadd.f32 0.0, %v2053
  %2055 = vmatmul.f32.gmra.mxu0 %v417
  %v2056 = vpop.f32.mrf.mxu0
  %v2057 = vadd.f32 0.0, %v2056
  %2058 = vmatmul.f32.gmra.mxu0 %v418
  %v2059 = vpop.f32.mrf.mxu0
  %v2060 = vadd.f32 0.0, %v2059
  %2061 = vmatmul.f32.gmra.mxu0 %v419
  %v2062 = vpop.f32.mrf.mxu0
  %v2063 = vadd.f32 0.0, %v2062
  %2064 = vmatmul.f32.gmra.mxu0 %v420
  %v2065 = vpop.f32.mrf.mxu0
  %v2066 = vadd.f32 0.0, %v2065
  %2067 = vmatmul.f32.gmra.mxu0 %v421
  %v2068 = vpop.f32.mrf.mxu0
  %v2069 = vadd.f32 0.0, %v2068
  %2070 = vmatmul.f32.gmra.mxu0 %v422
  %v2071 = vpop.f32.mrf.mxu0
  %v2072 = vadd.f32 0.0, %v2071
  %2073 = vmatmul.f32.gmra.mxu0 %v423
  %v2074 = vpop.f32.mrf.mxu0
  %v2075 = vadd.f32 0.0, %v2074
  %2076 = vmatmul.f32.gmra.mxu0 %v424
  %v2077 = vpop.f32.mrf.mxu0
  %v2078 = vadd.f32 0.0, %v2077
  %2079 = vmatmul.f32.gmra.mxu0 %v425
  %v2080 = vpop.f32.mrf.mxu0
  %v2081 = vadd.f32 0.0, %v2080
  %2082 = vmatmul.f32.gmra.mxu0 %v426
  %v2083 = vpop.f32.mrf.mxu0
  %v2084 = vadd.f32 0.0, %v2083
  %2085 = vmatmul.f32.gmra.mxu0 %v427
  %v2086 = vpop.f32.mrf.mxu0
  %v2087 = vadd.f32 0.0, %v2086
  %2088 = vmatmul.f32.gmra.mxu0 %v428
  %v2089 = vpop.f32.mrf.mxu0
  %v2090 = vadd.f32 0.0, %v2089
  %2091 = vmatmul.f32.gmra.mxu0 %v429
  %v2092 = vpop.f32.mrf.mxu0
  %v2093 = vadd.f32 0.0, %v2092
  %2094 = vmatmul.f32.gmra.mxu0 %v430
  %v2095 = vpop.f32.mrf.mxu0
  %v2096 = vadd.f32 0.0, %v2095
  %2097 = vmatmul.f32.gmra.mxu0 %v431
  %v2098 = vpop.f32.mrf.mxu0
  %v2099 = vadd.f32 0.0, %v2098
  %2100 = vmatmul.f32.gmra.mxu0 %v432
  %v2101 = vpop.f32.mrf.mxu0
  %v2102 = vadd.f32 0.0, %v2101
  %2103 = vmatmul.f32.gmra.mxu0 %v433
  %v2104 = vpop.f32.mrf.mxu0
  %v2105 = vadd.f32 0.0, %v2104
  %2106 = vmatmul.f32.gmra.mxu0 %v434
  %v2107 = vpop.f32.mrf.mxu0
  %v2108 = vadd.f32 0.0, %v2107
  %2109 = vmatmul.f32.gmra.mxu0 %v435
  %v2110 = vpop.f32.mrf.mxu0
  %v2111 = vadd.f32 0.0, %v2110
  %2112 = vmatmul.f32.gmra.mxu0 %v436
  %v2113 = vpop.f32.mrf.mxu0
  %v2114 = vadd.f32 0.0, %v2113
  %2115 = vmatmul.f32.gmra.mxu0 %v437
  %v2116 = vpop.f32.mrf.mxu0
  %v2117 = vadd.f32 0.0, %v2116
  %2118 = vmatmul.f32.gmra.mxu0 %v438
  %v2119 = vpop.f32.mrf.mxu0
  %v2120 = vadd.f32 0.0, %v2119
  %2121 = vmatmul.f32.gmra.mxu0 %v439
  %v2122 = vpop.f32.mrf.mxu0
  %v2123 = vadd.f32 0.0, %v2122
  %2124 = vmatmul.f32.gmra.mxu0 %v440
  %v2125 = vpop.f32.mrf.mxu0
  %v2126 = vadd.f32 0.0, %v2125
  %2127 = vmatmul.f32.gmra.mxu0 %v441
  %v2128 = vpop.f32.mrf.mxu0
  %v2129 = vadd.f32 0.0, %v2128
  %2130 = vmatmul.f32.gmra.mxu0 %v442
  %v2131 = vpop.f32.mrf.mxu0
  %v2132 = vadd.f32 0.0, %v2131
  %2133 = vmatmul.f32.gmra.mxu0 %v443
  %v2134 = vpop.f32.mrf.mxu0
  %v2135 = vadd.f32 0.0, %v2134
  %2136 = vmatmul.f32.gmra.mxu0 %v444
  %v2137 = vpop.f32.mrf.mxu0
  %v2138 = vadd.f32 0.0, %v2137
  %2139 = vmatmul.f32.gmra.mxu0 %v445
  %v2140 = vpop.f32.mrf.mxu0
  %v2141 = vadd.f32 0.0, %v2140
  %2142 = vmatmul.f32.gmra.mxu0 %v446
  %v2143 = vpop.f32.mrf.mxu0
  %v2144 = vadd.f32 0.0, %v2143
  %2145 = vmatmul.f32.gmra.mxu0 %v447
  %v2146 = vpop.f32.mrf.mxu0
  %v2147 = vadd.f32 0.0, %v2146
  %2148 = vmatmul.f32.gmra.mxu0 %v448
  %v2149 = vpop.f32.mrf.mxu0
  %v2150 = vadd.f32 0.0, %v2149
  %2151 = vmatmul.f32.gmra.mxu0 %v449
  %v2152 = vpop.f32.mrf.mxu0
  %v2153 = vadd.f32 0.0, %v2152
  %2154 = vmatmul.f32.gmra.mxu0 %v450
  %v2155 = vpop.f32.mrf.mxu0
  %v2156 = vadd.f32 0.0, %v2155
  %2157 = vmatmul.f32.gmra.mxu0 %v451
  %v2158 = vpop.f32.mrf.mxu0
  %v2159 = vadd.f32 0.0, %v2158
  %2160 = vmatmul.f32.gmra.mxu0 %v452
  %v2161 = vpop.f32.mrf.mxu0
  %v2162 = vadd.f32 0.0, %v2161
  %2163 = vmatmul.f32.gmra.mxu0 %v453
  %v2164 = vpop.f32.mrf.mxu0
  %v2165 = vadd.f32 0.0, %v2164
  %2166 = vmatmul.f32.gmra.mxu0 %v454
  %v2167 = vpop.f32.mrf.mxu0
  %v2168 = vadd.f32 0.0, %v2167
  %2169 = vmatmul.f32.gmra.mxu0 %v455
  %v2170 = vpop.f32.mrf.mxu0
  %v2171 = vadd.f32 0.0, %v2170
  %2172 = vmatmul.f32.gmra.mxu0 %v456
  %v2173 = vpop.f32.mrf.mxu0
  %v2174 = vadd.f32 0.0, %v2173
  %2175 = vmatmul.f32.gmra.mxu0 %v457
  %v2176 = vpop.f32.mrf.mxu0
  %v2177 = vadd.f32 0.0, %v2176
  %2178 = vmatmul.f32.gmra.mxu0 %v458
  %v2179 = vpop.f32.mrf.mxu0
  %v2180 = vadd.f32 0.0, %v2179
  %2181 = vmatmul.f32.gmra.mxu0 %v459
  %v2182 = vpop.f32.mrf.mxu0
  %v2183 = vadd.f32 0.0, %v2182
  %2184 = vmatmul.f32.gmra.mxu0 %v460
  %v2185 = vpop.f32.mrf.mxu0
  %v2186 = vadd.f32 0.0, %v2185
  %2187 = vmatmul.f32.gmra.mxu0 %v461
  %v2188 = vpop.f32.mrf.mxu0
  %v2189 = vadd.f32 0.0, %v2188
  %2190 = vmatmul.f32.gmra.mxu0 %v462
  %v2191 = vpop.f32.mrf.mxu0
  %v2192 = vadd.f32 0.0, %v2191
  %2193 = vmatmul.f32.gmra.mxu0 %v463
  %v2194 = vpop.f32.mrf.mxu0
  %v2195 = vadd.f32 0.0, %v2194
  %2196 = vmatmul.f32.gmra.mxu0 %v464
  %v2197 = vpop.f32.mrf.mxu0
  %v2198 = vadd.f32 0.0, %v2197
  %2199 = vmatmul.f32.gmra.mxu0 %v465
  %v2200 = vpop.f32.mrf.mxu0
  %v2201 = vadd.f32 0.0, %v2200
  %2202 = vmatmul.f32.gmra.mxu0 %v466
  %v2203 = vpop.f32.mrf.mxu0
  %v2204 = vadd.f32 0.0, %v2203
  %2205 = vmatmul.f32.gmra.mxu0 %v467
  %v2206 = vpop.f32.mrf.mxu0
  %v2207 = vadd.f32 0.0, %v2206
  %2208 = vmatmul.f32.gmra.mxu0 %v468
  %v2209 = vpop.f32.mrf.mxu0
  %v2210 = vadd.f32 0.0, %v2209
  %2211 = vmatmul.f32.gmra.mxu0 %v469
  %v2212 = vpop.f32.mrf.mxu0
  %v2213 = vadd.f32 0.0, %v2212
  %2214 = vmatmul.f32.gmra.mxu0 %v470
  %v2215 = vpop.f32.mrf.mxu0
  %v2216 = vadd.f32 0.0, %v2215
  %2217 = vmatmul.f32.gmra.mxu0 %v471
  %v2218 = vpop.f32.mrf.mxu0
  %v2219 = vadd.f32 0.0, %v2218
  %2220 = vmatmul.f32.gmra.mxu0 %v472
  %v2221 = vpop.f32.mrf.mxu0
  %v2222 = vadd.f32 0.0, %v2221
  %2223 = vmatmul.f32.gmra.mxu0 %v473
  %v2224 = vpop.f32.mrf.mxu0
  %v2225 = vadd.f32 0.0, %v2224
  %2226 = vmatmul.f32.gmra.mxu0 %v474
  %v2227 = vpop.f32.mrf.mxu0
  %v2228 = vadd.f32 0.0, %v2227
  %2229 = vmatmul.f32.gmra.mxu0 %v475
  %v2230 = vpop.f32.mrf.mxu0
  %v2231 = vadd.f32 0.0, %v2230
  %2232 = vmatmul.f32.gmra.mxu0 %v476
  %v2233 = vpop.f32.mrf.mxu0
  %v2234 = vadd.f32 0.0, %v2233
  %2235 = vmatmul.f32.gmra.mxu0 %v477
  %v2236 = vpop.f32.mrf.mxu0
  %v2237 = vadd.f32 0.0, %v2236
  %2238 = vmatmul.f32.gmra.mxu0 %v478
  %v2239 = vpop.f32.mrf.mxu0
  %v2240 = vadd.f32 0.0, %v2239
  %2241 = vmatmul.f32.gmra.mxu0 %v479
  %v2242 = vpop.f32.mrf.mxu0
  %v2243 = vadd.f32 0.0, %v2242
  %2244 = vmatmul.f32.gmra.mxu0 %v480
  %v2245 = vpop.f32.mrf.mxu0
  %v2246 = vadd.f32 0.0, %v2245
  %2247 = vmatmul.f32.gmra.mxu0 %v481
  %v2248 = vpop.f32.mrf.mxu0
  %v2249 = vadd.f32 0.0, %v2248
  %2250 = vmatmul.f32.gmra.mxu0 %v482
  %v2251 = vpop.f32.mrf.mxu0
  %v2252 = vadd.f32 0.0, %v2251
  %2253 = vmatmul.f32.gmra.mxu0 %v483
  %v2254 = vpop.f32.mrf.mxu0
  %v2255 = vadd.f32 0.0, %v2254
  %2256 = vmatmul.f32.gmra.mxu0 %v484
  %v2257 = vpop.f32.mrf.mxu0
  %v2258 = vadd.f32 0.0, %v2257
  %2259 = vmatmul.f32.gmra.mxu0 %v485
  %v2260 = vpop.f32.mrf.mxu0
  %v2261 = vadd.f32 0.0, %v2260
  %2262 = vmatmul.f32.gmra.mxu0 %v486
  %v2263 = vpop.f32.mrf.mxu0
  %v2264 = vadd.f32 0.0, %v2263
  %2265 = vmatmul.f32.gmra.mxu0 %v487
  %v2266 = vpop.f32.mrf.mxu0
  %v2267 = vadd.f32 0.0, %v2266
  %2268 = vmatmul.f32.gmra.mxu0 %v488
  %v2269 = vpop.f32.mrf.mxu0
  %v2270 = vadd.f32 0.0, %v2269
  %2271 = vmatmul.f32.gmra.mxu0 %v489
  %v2272 = vpop.f32.mrf.mxu0
  %v2273 = vadd.f32 0.0, %v2272
  %2274 = vmatmul.f32.gmra.mxu0 %v490
  %v2275 = vpop.f32.mrf.mxu0
  %v2276 = vadd.f32 0.0, %v2275
  %2277 = vmatmul.f32.gmra.mxu0 %v491
  %v2278 = vpop.f32.mrf.mxu0
  %v2279 = vadd.f32 0.0, %v2278
  %2280 = vmatmul.f32.gmra.mxu0 %v492
  %v2281 = vpop.f32.mrf.mxu0
  %v2282 = vadd.f32 0.0, %v2281
  %2283 = vmatmul.f32.gmra.mxu0 %v493
  %v2284 = vpop.f32.mrf.mxu0
  %v2285 = vadd.f32 0.0, %v2284
  %2286 = vmatmul.f32.gmra.mxu0 %v494
  %v2287 = vpop.f32.mrf.mxu0
  %v2288 = vadd.f32 0.0, %v2287
  %2289 = vmatmul.f32.gmra.mxu0 %v495
  %v2290 = vpop.f32.mrf.mxu0
  %v2291 = vadd.f32 0.0, %v2290
  %2292 = vmatmul.f32.gmra.mxu0 %v496
  %v2293 = vpop.f32.mrf.mxu0
  %v2294 = vadd.f32 0.0, %v2293
  %2295 = vmatmul.f32.gmra.mxu0 %v497
  %v2296 = vpop.f32.mrf.mxu0
  %v2297 = vadd.f32 0.0, %v2296
  %2298 = vmatmul.f32.gmra.mxu0 %v498
  %v2299 = vpop.f32.mrf.mxu0
  %v2300 = vadd.f32 0.0, %v2299
  %2301 = vmatmul.f32.gmra.mxu0 %v499
  %v2302 = vpop.f32.mrf.mxu0
  %v2303 = vadd.f32 0.0, %v2302
  %2304 = vmatmul.f32.gmra.mxu0 %v500
  %v2305 = vpop.f32.mrf.mxu0
  %v2306 = vadd.f32 0.0, %v2305
  %2307 = vmatmul.f32.gmra.mxu0 %v501
  %v2308 = vpop.f32.mrf.mxu0
  %v2309 = vadd.f32 0.0, %v2308
  %2310 = vmatmul.f32.gmra.mxu0 %v502
  %v2311 = vpop.f32.mrf.mxu0
  %v2312 = vadd.f32 0.0, %v2311
  %2313 = vmatmul.f32.gmra.mxu0 %v503
  %v2314 = vpop.f32.mrf.mxu0
  %v2315 = vadd.f32 0.0, %v2314
  %2316 = vmatmul.f32.gmra.mxu0 %v504
  %v2317 = vpop.f32.mrf.mxu0
  %v2318 = vadd.f32 0.0, %v2317
  %2319 = vmatmul.f32.gmra.mxu0 %v505
  %v2320 = vpop.f32.mrf.mxu0
  %v2321 = vadd.f32 0.0, %v2320
  %2322 = vmatmul.f32.gmra.mxu0 %v506
  %v2323 = vpop.f32.mrf.mxu0
  %v2324 = vadd.f32 0.0, %v2323
  %2325 = vmatmul.f32.gmra.mxu0 %v507
  %v2326 = vpop.f32.mrf.mxu0
  %v2327 = vadd.f32 0.0, %v2326
  %2328 = vmatmul.f32.gmra.mxu0 %v508
  %v2329 = vpop.f32.mrf.mxu0
  %v2330 = vadd.f32 0.0, %v2329
  %2331 = vmatmul.f32.gmra.mxu0 %v509
  %v2332 = vpop.f32.mrf.mxu0
  %v2333 = vadd.f32 0.0, %v2332
  %2334 = vmatmul.f32.gmra.mxu0 %v510
  %v2335 = vpop.f32.mrf.mxu0
  %v2336 = vadd.f32 0.0, %v2335
  %2337 = vmatmul.f32.gmra.mxu0 %v511
  %v2338 = vpop.f32.mrf.mxu0
  %v2339 = vadd.f32 0.0, %v2338
  %2340 = vmatmul.f32.gmra.mxu0 %v512
  %v2341 = vpop.f32.mrf.mxu0
  %v2342 = vadd.f32 0.0, %v2341
  %2343 = vmatmul.f32.gmra.mxu0 %v513
  %v2344 = vpop.f32.mrf.mxu0
  %v2345 = vadd.f32 0.0, %v2344
  %2346 = vmatmul.f32.gmra.mxu0 %v514
  %v2347 = vpop.f32.mrf.mxu0
  %v2348 = vadd.f32 0.0, %v2347
  %2349 = vmatmul.f32.gmra.mxu0 %v515
  %v2350 = vpop.f32.mrf.mxu0
  %v2351 = vadd.f32 0.0, %v2350
  %2352 = vmatmul.f32.gmra.mxu0 %v516
  %v2353 = vpop.f32.mrf.mxu0
  %v2354 = vadd.f32 0.0, %v2353
  %2355 = vmatmul.f32.gmra.mxu0 %v517
  %v2356 = vpop.f32.mrf.mxu0
  %v2357 = vadd.f32 0.0, %v2356
  %2358 = vmatmul.f32.gmra.mxu0 %v518
  %v2359 = vpop.f32.mrf.mxu0
  %v2360 = vadd.f32 0.0, %v2359
  %2361 = vmatmul.f32.gmra.mxu0 %v519
  %v2362 = vpop.f32.mrf.mxu0
  %v2363 = vadd.f32 0.0, %v2362
  %2364 = vmatmul.f32.gmra.mxu0 %v520
  %v2365 = vpop.f32.mrf.mxu0
  %v2366 = vadd.f32 0.0, %v2365
  %2367 = vmatmul.f32.gmra.mxu0 %v521
  %v2368 = vpop.f32.mrf.mxu0
  %v2369 = vadd.f32 0.0, %v2368
  %2370 = vmatmul.f32.gmra.mxu0 %v522
  %v2371 = vpop.f32.mrf.mxu0
  %v2372 = vadd.f32 0.0, %v2371
  %2373 = vmatmul.f32.gmra.mxu0 %v523
  %v2374 = vpop.f32.mrf.mxu0
  %v2375 = vadd.f32 0.0, %v2374
  %2376 = vmatmul.f32.gmra.mxu0 %v524
  %v2377 = vpop.f32.mrf.mxu0
  %v2378 = vadd.f32 0.0, %v2377
  %2379 = vmatmul.f32.gmra.mxu0 %v525
  %v2380 = vpop.f32.mrf.mxu0
  %v2381 = vadd.f32 0.0, %v2380
  %2382 = vmatmul.f32.gmra.mxu0 %v526
  %v2383 = vpop.f32.mrf.mxu0
  %v2384 = vadd.f32 0.0, %v2383
  %2385 = vmatmul.f32.gmra.mxu0 %v527
  %v2386 = vpop.f32.mrf.mxu0
  %v2387 = vadd.f32 0.0, %v2386
  %2388 = vmatmul.f32.gmra.mxu0 %v528
  %v2389 = vpop.f32.mrf.mxu0
  %v2390 = vadd.f32 0.0, %v2389
  %2391 = vmatmul.f32.gmra.mxu0 %v529
  %v2392 = vpop.f32.mrf.mxu0
  %v2393 = vadd.f32 0.0, %v2392
  %2394 = vmatmul.f32.gmra.mxu0 %v530
  %v2395 = vpop.f32.mrf.mxu0
  %v2396 = vadd.f32 0.0, %v2395
  %2397 = vmatmul.f32.gmra.mxu0 %v531
  %v2398 = vpop.f32.mrf.mxu0
  %v2399 = vadd.f32 0.0, %v2398
  %2400 = vmatmul.f32.gmra.mxu0 %v532
  %v2401 = vpop.f32.mrf.mxu0
  %v2402 = vadd.f32 0.0, %v2401
  %2403 = vmatmul.f32.gmra.mxu0 %v533
  %v2404 = vpop.f32.mrf.mxu0
  %v2405 = vadd.f32 0.0, %v2404
  %2406 = vmatmul.f32.gmra.mxu0 %v534
  %v2407 = vpop.f32.mrf.mxu0
  %v2408 = vadd.f32 0.0, %v2407
  %2409 = vmatmul.f32.gmra.mxu0 %v535
  %v2410 = vpop.f32.mrf.mxu0
  %v2411 = vadd.f32 0.0, %v2410
  %2412 = vmatmul.f32.gmra.mxu0 %v536
  %v2413 = vpop.f32.mrf.mxu0
  %v2414 = vadd.f32 0.0, %v2413
  %2415 = vmatmul.f32.gmra.mxu0 %v537
  %v2416 = vpop.f32.mrf.mxu0
  %v2417 = vadd.f32 0.0, %v2416
  %2418 = vmatmul.f32.gmra.mxu0 %v538
  %v2419 = vpop.f32.mrf.mxu0
  %v2420 = vadd.f32 0.0, %v2419
  %2421 = vmatmul.f32.gmra.mxu0 %v539
  %v2422 = vpop.f32.mrf.mxu0
  %v2423 = vadd.f32 0.0, %v2422
  %2424 = vmatmul.f32.gmra.mxu0 %v540
  %v2425 = vpop.f32.mrf.mxu0
  %v2426 = vadd.f32 0.0, %v2425
  %2427 = vmatmul.f32.gmra.mxu0 %v541
  %v2428 = vpop.f32.mrf.mxu0
  %v2429 = vadd.f32 0.0, %v2428
  %2430 = vmatmul.f32.gmra.mxu0 %v542
  %v2431 = vpop.f32.mrf.mxu0
  %v2432 = vadd.f32 0.0, %v2431
  %2433 = vmatmul.f32.gmra.mxu0 %v543
  %v2434 = vpop.f32.mrf.mxu0
  %v2435 = vadd.f32 0.0, %v2434
  %2436 = vmatmul.f32.gmra.mxu0 %v544
  %v2437 = vpop.f32.mrf.mxu0
  %v2438 = vadd.f32 0.0, %v2437
  %2439 = vmatmul.f32.gmra.mxu0 %v545
  %v2440 = vpop.f32.mrf.mxu0
  %v2441 = vadd.f32 0.0, %v2440
  %2442 = vmatmul.f32.gmra.mxu0 %v546
  %v2443 = vpop.f32.mrf.mxu0
  %v2444 = vadd.f32 0.0, %v2443
  %2445 = vmatmul.f32.gmra.mxu0 %v547
  %v2446 = vpop.f32.mrf.mxu0
  %v2447 = vadd.f32 0.0, %v2446
  %2448 = vmatmul.f32.gmra.mxu0 %v548
  %v2449 = vpop.f32.mrf.mxu0
  %v2450 = vadd.f32 0.0, %v2449
  %2451 = vmatmul.f32.gmra.mxu0 %v549
  %v2452 = vpop.f32.mrf.mxu0
  %v2453 = vadd.f32 0.0, %v2452
  %2454 = vmatmul.f32.gmra.mxu0 %v550
  %v2455 = vpop.f32.mrf.mxu0
  %v2456 = vadd.f32 0.0, %v2455
  %2457 = vmatmul.f32.gmra.mxu0 %v551
  %v2458 = vpop.f32.mrf.mxu0
  %v2459 = vadd.f32 0.0, %v2458
  %2460 = vmatmul.f32.gmra.mxu0 %v552
  %v2461 = vpop.f32.mrf.mxu0
  %v2462 = vadd.f32 0.0, %v2461
  %2463 = vmatmul.f32.gmra.mxu0 %v553
  %v2464 = vpop.f32.mrf.mxu0
  %v2465 = vadd.f32 0.0, %v2464
  %2466 = vmatmul.f32.gmra.mxu0 %v554
  %v2467 = vpop.f32.mrf.mxu0
  %v2468 = vadd.f32 0.0, %v2467
  %2469 = vmatmul.f32.gmra.mxu0 %v555
  %v2470 = vpop.f32.mrf.mxu0
  %v2471 = vadd.f32 0.0, %v2470
  %2472 = vmatmul.f32.gmra.mxu0 %v556
  %v2473 = vpop.f32.mrf.mxu0
  %v2474 = vadd.f32 0.0, %v2473
  %2475 = vmatmul.f32.gmra.mxu0 %v557
  %v2476 = vpop.f32.mrf.mxu0
  %v2477 = vadd.f32 0.0, %v2476
  %2478 = vmatmul.f32.gmra.mxu0 %v558
  %v2479 = vpop.f32.mrf.mxu0
  %v2480 = vadd.f32 0.0, %v2479
  %2481 = vmatmul.f32.gmra.mxu0 %v559
  %v2482 = vpop.f32.mrf.mxu0
  %v2483 = vadd.f32 0.0, %v2482
  %2484 = vmatmul.f32.gmra.mxu0 %v560
  %v2485 = vpop.f32.mrf.mxu0
  %v2486 = vadd.f32 0.0, %v2485
  %2487 = vmatmul.f32.gmra.mxu0 %v561
  %v2488 = vpop.f32.mrf.mxu0
  %v2489 = vadd.f32 0.0, %v2488
  %2490 = vmatmul.f32.gmra.mxu0 %v562
  %v2491 = vpop.f32.mrf.mxu0
  %v2492 = vadd.f32 0.0, %v2491
  %2493 = vmatmul.f32.gmra.mxu0 %v563
  %v2494 = vpop.f32.mrf.mxu0
  %v2495 = vadd.f32 0.0, %v2494
  %2496 = vmatmul.f32.gmra.mxu0 %v564
  %v2497 = vpop.f32.mrf.mxu0
  %v2498 = vadd.f32 0.0, %v2497
  %2499 = vmatmul.f32.gmra.mxu0 %v565
  %v2500 = vpop.f32.mrf.mxu0
  %v2501 = vadd.f32 0.0, %v2500
  %2502 = vmatmul.f32.gmra.mxu0 %v566
  %v2503 = vpop.f32.mrf.mxu0
  %v2504 = vadd.f32 0.0, %v2503
  %2505 = vmatmul.f32.gmra.mxu0 %v567
  %v2506 = vpop.f32.mrf.mxu0
  %v2507 = vadd.f32 0.0, %v2506
  %2508 = vmatmul.f32.gmra.mxu0 %v568
  %v2509 = vpop.f32.mrf.mxu0
  %v2510 = vadd.f32 0.0, %v2509
  %2511 = vmatmul.f32.gmra.mxu0 %v569
  %v2512 = vpop.f32.mrf.mxu0
  %v2513 = vadd.f32 0.0, %v2512
  %2514 = vmatmul.f32.gmra.mxu0 %v570
  %v2515 = vpop.f32.mrf.mxu0
  %v2516 = vadd.f32 0.0, %v2515
  %2517 = vmatmul.f32.gmra.mxu0 %v571
  %v2518 = vpop.f32.mrf.mxu0
  %v2519 = vadd.f32 0.0, %v2518
  %2520 = vmatmul.f32.gmra.mxu0 %v572
  %v2521 = vpop.f32.mrf.mxu0
  %v2522 = vadd.f32 0.0, %v2521
  %2523 = vmatmul.f32.gmra.mxu0 %v573
  %v2524 = vpop.f32.mrf.mxu0
  %v2525 = vadd.f32 0.0, %v2524
  %2526 = vmatmul.f32.gmra.mxu0 %v574
  %v2527 = vpop.f32.mrf.mxu0
  %v2528 = vadd.f32 0.0, %v2527
  %2529 = vmatmul.f32.gmra.mxu0 %v575
  %v2530 = vpop.f32.mrf.mxu0
  %v2531 = vadd.f32 0.0, %v2530
  %2532 = vmatmul.f32.gmra.mxu0 %v576
  %v2533 = vpop.f32.mrf.mxu0
  %v2534 = vadd.f32 0.0, %v2533
  %2535 = vmatmul.f32.gmra.mxu0 %v577
  %v2536 = vpop.f32.mrf.mxu0
  %v2537 = vadd.f32 0.0, %v2536
  %2538 = vmatmul.f32.gmra.mxu0 %v578
  %v2539 = vpop.f32.mrf.mxu0
  %v2540 = vadd.f32 0.0, %v2539
  %2541 = vmatmul.f32.gmra.mxu0 %v579
  %v2542 = vpop.f32.mrf.mxu0
  %v2543 = vadd.f32 0.0, %v2542
  %2544 = vmatmul.f32.gmra.mxu0 %v580
  %v2545 = vpop.f32.mrf.mxu0
  %v2546 = vadd.f32 0.0, %v2545
  %2547 = vmatmul.f32.gmra.mxu0 %v581
  %v2548 = vpop.f32.mrf.mxu0
  %v2549 = vadd.f32 0.0, %v2548
  %2550 = vmatmul.f32.gmra.mxu0 %v582
  %v2551 = vpop.f32.mrf.mxu0
  %v2552 = vadd.f32 0.0, %v2551
  %2553 = vmatmul.f32.gmra.mxu0 %v583
  %v2554 = vpop.f32.mrf.mxu0
  %v2555 = vadd.f32 0.0, %v2554
  %2556 = vmatmul.f32.gmra.mxu0 %v584
  %v2557 = vpop.f32.mrf.mxu0
  %v2558 = vadd.f32 0.0, %v2557
  %2559 = vmatmul.f32.gmra.mxu0 %v585
  %v2560 = vpop.f32.mrf.mxu0
  %v2561 = vadd.f32 0.0, %v2560
  %2562 = vmatmul.f32.gmra.mxu0 %v586
  %v2563 = vpop.f32.mrf.mxu0
  %v2564 = vadd.f32 0.0, %v2563
  %2565 = vmatmul.f32.gmra.mxu0 %v587
  %v2566 = vpop.f32.mrf.mxu0
  %v2567 = vadd.f32 0.0, %v2566
  %2568 = vmatmul.f32.gmra.mxu0 %v588
  %v2569 = vpop.f32.mrf.mxu0
  %v2570 = vadd.f32 0.0, %v2569
  %2571 = vmatmul.f32.gmra.mxu0 %v589
  %v2572 = vpop.f32.mrf.mxu0
  %v2573 = vadd.f32 0.0, %v2572
  %2574 = vmatmul.f32.gmra.mxu0 %v590
  %v2575 = vpop.f32.mrf.mxu0
  %v2576 = vadd.f32 0.0, %v2575
  %2577 = vmatmul.f32.gmra.mxu0 %v591
  %v2578 = vpop.f32.mrf.mxu0
  %v2579 = vadd.f32 0.0, %v2578
  %2580 = vmatmul.f32.gmra.mxu0 %v592
  %v2581 = vpop.f32.mrf.mxu0
  %v2582 = vadd.f32 0.0, %v2581
  %2583 = vmatmul.f32.gmra.mxu0 %v593
  %v2584 = vpop.f32.mrf.mxu0
  %v2585 = vadd.f32 0.0, %v2584
  %2586 = vmatmul.f32.gmra.mxu0 %v594
  %v2587 = vpop.f32.mrf.mxu0
  %v2588 = vadd.f32 0.0, %v2587
  %2589 = vmatmul.f32.gmra.mxu0 %v595
  %v2590 = vpop.f32.mrf.mxu0
  %v2591 = vadd.f32 0.0, %v2590
  %2592 = vmatmul.f32.gmra.mxu0 %v596
  %v2593 = vpop.f32.mrf.mxu0
  %v2594 = vadd.f32 0.0, %v2593
  %2595 = vmatmul.f32.gmra.mxu0 %v597
  %v2596 = vpop.f32.mrf.mxu0
  %v2597 = vadd.f32 0.0, %v2596
  %2598 = vmatmul.f32.gmra.mxu0 %v598
  %v2599 = vpop.f32.mrf.mxu0
  %v2600 = vadd.f32 0.0, %v2599
  %2601 = vmatmul.f32.gmra.mxu0 %v599
  %v2602 = vpop.f32.mrf.mxu0
  %v2603 = vadd.f32 0.0, %v2602
  %2604 = vmatmul.f32.gmra.mxu0 %v600
  %v2605 = vpop.f32.mrf.mxu0
  %v2606 = vadd.f32 0.0, %v2605
  %2607 = vmatmul.f32.gmra.mxu0 %v601
  %v2608 = vpop.f32.mrf.mxu0
  %v2609 = vadd.f32 0.0, %v2608
  %2610 = vmatmul.f32.gmra.mxu0 %v602
  %v2611 = vpop.f32.mrf.mxu0
  %v2612 = vadd.f32 0.0, %v2611
  %2613 = vmatmul.f32.gmra.mxu0 %v603
  %v2614 = vpop.f32.mrf.mxu0
  %v2615 = vadd.f32 0.0, %v2614
  %2616 = vmatmul.f32.gmra.mxu0 %v604
  %v2617 = vpop.f32.mrf.mxu0
  %v2618 = vadd.f32 0.0, %v2617
  %2619 = vmatmul.f32.gmra.mxu0 %v605
  %v2620 = vpop.f32.mrf.mxu0
  %v2621 = vadd.f32 0.0, %v2620
  %2622 = vmatmul.f32.gmra.mxu0 %v606
  %v2623 = vpop.f32.mrf.mxu0
  %v2624 = vadd.f32 0.0, %v2623
  %2625 = vmatmul.f32.gmra.mxu0 %v607
  %v2626 = vpop.f32.mrf.mxu0
  %v2627 = vadd.f32 0.0, %v2626
  %2628 = vmatmul.f32.gmra.mxu0 %v608
  %v2629 = vpop.f32.mrf.mxu0
  %v2630 = vadd.f32 0.0, %v2629
  %2631 = vmatmul.f32.gmra.mxu0 %v609
  %v2632 = vpop.f32.mrf.mxu0
  %v2633 = vadd.f32 0.0, %v2632
  %2634 = vmatmul.f32.gmra.mxu0 %v610
  %v2635 = vpop.f32.mrf.mxu0
  %v2636 = vadd.f32 0.0, %v2635
  %2637 = vmatmul.f32.gmra.mxu0 %v611
  %v2638 = vpop.f32.mrf.mxu0
  %v2639 = vadd.f32 0.0, %v2638
  %2640 = vmatmul.f32.gmra.mxu0 %v612
  %v2641 = vpop.f32.mrf.mxu0
  %v2642 = vadd.f32 0.0, %v2641
  %2643 = vmatmul.f32.gmra.mxu0 %v613
  %v2644 = vpop.f32.mrf.mxu0
  %v2645 = vadd.f32 0.0, %v2644
  %2646 = vmatmul.f32.gmra.mxu0 %v614
  %v2647 = vpop.f32.mrf.mxu0
  %v2648 = vadd.f32 0.0, %v2647
  %2649 = vmatmul.f32.gmra.mxu0 %v615
  %v2650 = vpop.f32.mrf.mxu0
  %v2651 = vadd.f32 0.0, %v2650
  %2652 = vmatmul.f32.gmra.mxu0 %v616
  %v2653 = vpop.f32.mrf.mxu0
  %v2654 = vadd.f32 0.0, %v2653
  %2655 = vmatmul.f32.gmra.mxu0 %v617
  %v2656 = vpop.f32.mrf.mxu0
  %v2657 = vadd.f32 0.0, %v2656
  %2658 = vmatmul.f32.gmra.mxu0 %v618
  %v2659 = vpop.f32.mrf.mxu0
  %v2660 = vadd.f32 0.0, %v2659
  %2661 = vmatmul.f32.gmra.mxu0 %v619
  %v2662 = vpop.f32.mrf.mxu0
  %v2663 = vadd.f32 0.0, %v2662
  %2664 = vmatmul.f32.gmra.mxu0 %v620
  %v2665 = vpop.f32.mrf.mxu0
  %v2666 = vadd.f32 0.0, %v2665
  %2667 = vmatmul.f32.gmra.mxu0 %v621
  %v2668 = vpop.f32.mrf.mxu0
  %v2669 = vadd.f32 0.0, %v2668
  %2670 = vmatmul.f32.gmra.mxu0 %v622
  %v2671 = vpop.f32.mrf.mxu0
  %v2672 = vadd.f32 0.0, %v2671
  %2673 = vmatmul.f32.gmra.mxu0 %v623
  %v2674 = vpop.f32.mrf.mxu0
  %v2675 = vadd.f32 0.0, %v2674
  %2676 = vmatmul.f32.gmra.mxu0 %v624
  %v2677 = vpop.f32.mrf.mxu0
  %v2678 = vadd.f32 0.0, %v2677
  %2679 = vmatmul.f32.gmra.mxu0 %v625
  %v2680 = vpop.f32.mrf.mxu0
  %v2681 = vadd.f32 0.0, %v2680
  %2682 = vmatmul.f32.gmra.mxu0 %v626
  %v2683 = vpop.f32.mrf.mxu0
  %v2684 = vadd.f32 0.0, %v2683
  %2685 = vmatmul.f32.gmra.mxu0 %v627
  %v2686 = vpop.f32.mrf.mxu0
  %v2687 = vadd.f32 0.0, %v2686
  %2688 = vmatmul.f32.gmra.mxu0 %v628
  %v2689 = vpop.f32.mrf.mxu0
  %v2690 = vadd.f32 0.0, %v2689
  %2691 = vmatmul.f32.gmra.mxu0 %v629
  %v2692 = vpop.f32.mrf.mxu0
  %v2693 = vadd.f32 0.0, %v2692
  %2694 = vmatmul.f32.gmra.mxu0 %v630
  %v2695 = vpop.f32.mrf.mxu0
  %v2696 = vadd.f32 0.0, %v2695
  %2697 = vmatmul.f32.gmra.mxu0 %v631
  %v2698 = vpop.f32.mrf.mxu0
  %v2699 = vadd.f32 0.0, %v2698
  %2700 = vmatmul.f32.gmra.mxu0 %v632
  %v2701 = vpop.f32.mrf.mxu0
  %v2702 = vadd.f32 0.0, %v2701
  %2703 = vmatmul.f32.gmra.mxu0 %v633
  %v2704 = vpop.f32.mrf.mxu0
  %v2705 = vadd.f32 0.0, %v2704
  %2706 = vmatmul.f32.gmra.mxu0 %v634
  %v2707 = vpop.f32.mrf.mxu0
  %v2708 = vadd.f32 0.0, %v2707
  %2709 = vmatmul.f32.gmra.mxu0 %v635
  %v2710 = vpop.f32.mrf.mxu0
  %v2711 = vadd.f32 0.0, %v2710
  %2712 = vmatmul.f32.gmra.mxu0 %v636
  %v2713 = vpop.f32.mrf.mxu0
  %v2714 = vadd.f32 0.0, %v2713
  %2715 = vmatmul.f32.gmra.mxu0 %v637
  %v2716 = vpop.f32.mrf.mxu0
  %v2717 = vadd.f32 0.0, %v2716
  %2718 = vmatmul.f32.gmra.mxu0 %v638
  %v2719 = vpop.f32.mrf.mxu0
  %v2720 = vadd.f32 0.0, %v2719
  %2721 = vmatmul.f32.gmra.mxu0 %v639
  %v2722 = vpop.f32.mrf.mxu0
  %v2723 = vadd.f32 0.0, %v2722
  %2724 = vmatmul.f32.gmra.mxu0 %v640
  %v2725 = vpop.f32.mrf.mxu0
  %v2726 = vadd.f32 0.0, %v2725
  %2727 = vmatmul.f32.gmra.mxu0 %v641
  %v2728 = vpop.f32.mrf.mxu0
  %v2729 = vadd.f32 0.0, %v2728
  %2730 = vmatmul.f32.gmra.mxu0 %v642
  %v2731 = vpop.f32.mrf.mxu0
  %v2732 = vadd.f32 0.0, %v2731
  %2733 = vmatmul.f32.gmra.mxu0 %v643
  %v2734 = vpop.f32.mrf.mxu0
  %v2735 = vadd.f32 0.0, %v2734
  %2736 = vmatmul.f32.gmra.mxu0 %v644
  %v2737 = vpop.f32.mrf.mxu0
  %v2738 = vadd.f32 0.0, %v2737
  %2739 = vmatmul.f32.gmra.mxu0 %v645
  %v2740 = vpop.f32.mrf.mxu0
  %v2741 = vadd.f32 0.0, %v2740
  %2742 = vmatmul.f32.gmra.mxu0 %v646
  %v2743 = vpop.f32.mrf.mxu0
  %v2744 = vadd.f32 0.0, %v2743
  %2745 = vmatmul.f32.gmra.mxu0 %v647
  %v2746 = vpop.f32.mrf.mxu0
  %v2747 = vadd.f32 0.0, %v2746
  %2748 = vmatmul.f32.gmra.mxu0 %v648
  %v2749 = vpop.f32.mrf.mxu0
  %v2750 = vadd.f32 0.0, %v2749
  %2751 = vmatmul.f32.gmra.mxu0 %v649
  %v2752 = vpop.f32.mrf.mxu0
  %v2753 = vadd.f32 0.0, %v2752
  %2754 = vmatmul.f32.gmra.mxu0 %v650
  %v2755 = vpop.f32.mrf.mxu0
  %v2756 = vadd.f32 0.0, %v2755
  %2757 = vmatmul.f32.gmra.mxu0 %v651
  %v2758 = vpop.f32.mrf.mxu0
  %v2759 = vadd.f32 0.0, %v2758
  %2760 = vmatmul.f32.gmra.mxu0 %v652
  %v2761 = vpop.f32.mrf.mxu0
  %v2762 = vadd.f32 0.0, %v2761
  %2763 = vmatmul.f32.gmra.mxu0 %v653
  %v2764 = vpop.f32.mrf.mxu0
  %v2765 = vadd.f32 0.0, %v2764
  %2766 = vmatmul.f32.gmra.mxu0 %v654
  %v2767 = vpop.f32.mrf.mxu0
  %v2768 = vadd.f32 0.0, %v2767
  %2769 = vmatmul.f32.gmra.mxu0 %v655
  %v2770 = vpop.f32.mrf.mxu0
  %v2771 = vadd.f32 0.0, %v2770
  %2772 = vmatmul.f32.gmra.mxu0 %v656
  %v2773 = vpop.f32.mrf.mxu0
  %v2774 = vadd.f32 0.0, %v2773
  %2775 = vmatmul.f32.gmra.mxu0 %v657
  %v2776 = vpop.f32.mrf.mxu0
  %v2777 = vadd.f32 0.0, %v2776
  %2778 = vmatmul.f32.gmra.mxu0 %v658
  %v2779 = vpop.f32.mrf.mxu0
  %v2780 = vadd.f32 0.0, %v2779
  %2781 = vmatmul.f32.gmra.mxu0 %v659
  %v2782 = vpop.f32.mrf.mxu0
  %v2783 = vadd.f32 0.0, %v2782
  %2784 = vmatmul.f32.gmra.mxu0 %v660
  %v2785 = vpop.f32.mrf.mxu0
  %v2786 = vadd.f32 0.0, %v2785
  %2787 = vmatmul.f32.gmra.mxu0 %v661
  %v2788 = vpop.f32.mrf.mxu0
  %v2789 = vadd.f32 0.0, %v2788
  %2790 = vmatmul.f32.gmra.mxu0 %v662
  %v2791 = vpop.f32.mrf.mxu0
  %v2792 = vadd.f32 0.0, %v2791
  %2793 = vmatmul.f32.gmra.mxu0 %v663
  %v2794 = vpop.f32.mrf.mxu0
  %v2795 = vadd.f32 0.0, %v2794
  %2796 = vmatmul.f32.gmra.mxu0 %v664
  %v2797 = vpop.f32.mrf.mxu0
  %v2798 = vadd.f32 0.0, %v2797
  %2799 = vmatmul.f32.gmra.mxu0 %v665
  %v2800 = vpop.f32.mrf.mxu0
  %v2801 = vadd.f32 0.0, %v2800
  %2802 = vmatmul.f32.gmra.mxu0 %v666
  %v2803 = vpop.f32.mrf.mxu0
  %v2804 = vadd.f32 0.0, %v2803
  %2805 = vmatmul.f32.gmra.mxu0 %v667
  %v2806 = vpop.f32.mrf.mxu0
  %v2807 = vadd.f32 0.0, %v2806
  %2808 = vmatmul.f32.gmra.mxu0 %v668
  %v2809 = vpop.f32.mrf.mxu0
  %v2810 = vadd.f32 0.0, %v2809
  %2811 = vmatmul.f32.gmra.mxu0 %v669
  %v2812 = vpop.f32.mrf.mxu0
  %v2813 = vadd.f32 0.0, %v2812
  %2814 = vmatmul.f32.gmra.mxu0 %v670
  %v2815 = vpop.f32.mrf.mxu0
  %v2816 = vadd.f32 0.0, %v2815
  %2817 = vmatmul.f32.gmra.mxu0 %v671
  %v2818 = vpop.f32.mrf.mxu0
  %v2819 = vadd.f32 0.0, %v2818
  %2820 = vmatmul.f32.gmra.mxu0 %v672
  %v2821 = vpop.f32.mrf.mxu0
  %v2822 = vadd.f32 0.0, %v2821
  %2823 = vmatmul.f32.gmra.mxu0 %v673
  %v2824 = vpop.f32.mrf.mxu0
  %v2825 = vadd.f32 0.0, %v2824
  %2826 = vmatmul.f32.gmra.mxu0 %v674
  %v2827 = vpop.f32.mrf.mxu0
  %v2828 = vadd.f32 0.0, %v2827
  %2829 = vmatmul.f32.gmra.mxu0 %v675
  %v2830 = vpop.f32.mrf.mxu0
  %v2831 = vadd.f32 0.0, %v2830
  %2832 = vmatmul.f32.gmra.mxu0 %v676
  %v2833 = vpop.f32.mrf.mxu0
  %v2834 = vadd.f32 0.0, %v2833
  %2835 = vmatmul.f32.gmra.mxu0 %v677
  %v2836 = vpop.f32.mrf.mxu0
  %v2837 = vadd.f32 0.0, %v2836
  %2838 = vmatmul.f32.gmra.mxu0 %v678
  %v2839 = vpop.f32.mrf.mxu0
  %v2840 = vadd.f32 0.0, %v2839
  %2841 = vmatmul.f32.gmra.mxu0 %v679
  %v2842 = vpop.f32.mrf.mxu0
  %v2843 = vadd.f32 0.0, %v2842
  %2844 = vmatmul.f32.gmra.mxu0 %v680
  %v2845 = vpop.f32.mrf.mxu0
  %v2846 = vadd.f32 0.0, %v2845
  %2847 = vmatmul.f32.gmra.mxu0 %v681
  %v2848 = vpop.f32.mrf.mxu0
  %v2849 = vadd.f32 0.0, %v2848
  %2850 = vmatmul.f32.gmra.mxu0 %v682
  %v2851 = vpop.f32.mrf.mxu0
  %v2852 = vadd.f32 0.0, %v2851
  %2853 = vmatmul.f32.gmra.mxu0 %v683
  %v2854 = vpop.f32.mrf.mxu0
  %v2855 = vadd.f32 0.0, %v2854
  %2856 = vmatmul.f32.gmra.mxu0 %v684
  %v2857 = vpop.f32.mrf.mxu0
  %v2858 = vadd.f32 0.0, %v2857
  %2859 = vmatmul.f32.gmra.mxu0 %v685
  %v2860 = vpop.f32.mrf.mxu0
  %v2861 = vadd.f32 0.0, %v2860
  %2862 = vmatmul.f32.gmra.mxu0 %v686
  %v2863 = vpop.f32.mrf.mxu0
  %v2864 = vadd.f32 0.0, %v2863
  %2865 = vmatmul.f32.gmra.mxu0 %v687
  %v2866 = vpop.f32.mrf.mxu0
  %v2867 = vadd.f32 0.0, %v2866
  %2868 = vmatmul.f32.gmra.mxu0 %v688
  %v2869 = vpop.f32.mrf.mxu0
  %v2870 = vadd.f32 0.0, %v2869
  %2871 = vmatmul.f32.gmra.mxu0 %v689
  %v2872 = vpop.f32.mrf.mxu0
  %v2873 = vadd.f32 0.0, %v2872
  %2874 = vmatmul.f32.gmra.mxu0 %v690
  %v2875 = vpop.f32.mrf.mxu0
  %v2876 = vadd.f32 0.0, %v2875
  %2877 = vmatmul.f32.gmra.mxu0 %v691
  %v2878 = vpop.f32.mrf.mxu0
  %v2879 = vadd.f32 0.0, %v2878
  %2880 = vmatmul.f32.gmra.mxu0 %v692
  %v2881 = vpop.f32.mrf.mxu0
  %v2882 = vadd.f32 0.0, %v2881
  %2883 = vmatmul.f32.gmra.mxu0 %v693
  %v2884 = vpop.f32.mrf.mxu0
  %v2885 = vadd.f32 0.0, %v2884
  %2886 = vmatmul.f32.gmra.mxu0 %v694
  %v2887 = vpop.f32.mrf.mxu0
  %v2888 = vadd.f32 0.0, %v2887
  %2889 = vmatmul.f32.gmra.mxu0 %v695
  %v2890 = vpop.f32.mrf.mxu0
  %v2891 = vadd.f32 0.0, %v2890
  %2892 = vmatmul.f32.gmra.mxu0 %v696
  %v2893 = vpop.f32.mrf.mxu0
  %v2894 = vadd.f32 0.0, %v2893
  %2895 = vmatmul.f32.gmra.mxu0 %v697
  %v2896 = vpop.f32.mrf.mxu0
  %v2897 = vadd.f32 0.0, %v2896
  %2898 = vmatmul.f32.gmra.mxu0 %v698
  %v2899 = vpop.f32.mrf.mxu0
  %v2900 = vadd.f32 0.0, %v2899
  %2901 = vmatmul.f32.gmra.mxu0 %v699
  %v2902 = vpop.f32.mrf.mxu0
  %v2903 = vadd.f32 0.0, %v2902
  %2904 = vmatmul.f32.gmra.mxu0 %v700
  %v2905 = vpop.f32.mrf.mxu0
  %v2906 = vadd.f32 0.0, %v2905
  %2907 = vmatmul.f32.gmra.mxu0 %v701
  %v2908 = vpop.f32.mrf.mxu0
  %v2909 = vadd.f32 0.0, %v2908
  %2910 = vmatmul.f32.gmra.mxu0 %v702
  %v2911 = vpop.f32.mrf.mxu0
  %v2912 = vadd.f32 0.0, %v2911
  %2913 = vmatmul.f32.gmra.mxu0 %v703
  %v2914 = vpop.f32.mrf.mxu0
  %v2915 = vadd.f32 0.0, %v2914
  %2916 = vmatmul.f32.gmra.mxu0 %v704
  %v2917 = vpop.f32.mrf.mxu0
  %v2918 = vadd.f32 0.0, %v2917
  %2919 = vmatmul.f32.gmra.mxu0 %v705
  %v2920 = vpop.f32.mrf.mxu0
  %v2921 = vadd.f32 0.0, %v2920
  %2922 = vmatmul.f32.gmra.mxu0 %v706
  %v2923 = vpop.f32.mrf.mxu0
  %v2924 = vadd.f32 0.0, %v2923
  %2925 = vmatmul.f32.gmra.mxu0 %v707
  %v2926 = vpop.f32.mrf.mxu0
  %v2927 = vadd.f32 0.0, %v2926
  %2928 = vmatmul.f32.gmra.mxu0 %v708
  %v2929 = vpop.f32.mrf.mxu0
  %v2930 = vadd.f32 0.0, %v2929
  %2931 = vmatmul.f32.gmra.mxu0 %v709
  %v2932 = vpop.f32.mrf.mxu0
  %v2933 = vadd.f32 0.0, %v2932
  %2934 = vmatmul.f32.gmra.mxu0 %v710
  %v2935 = vpop.f32.mrf.mxu0
  %v2936 = vadd.f32 0.0, %v2935
  %2937 = vmatmul.f32.gmra.mxu0 %v711
  %v2938 = vpop.f32.mrf.mxu0
  %v2939 = vadd.f32 0.0, %v2938
  %2940 = vmatmul.f32.gmra.mxu0 %v712
  %v2941 = vpop.f32.mrf.mxu0
  %v2942 = vadd.f32 0.0, %v2941
  %2943 = vmatmul.f32.gmra.mxu0 %v713
  %v2944 = vpop.f32.mrf.mxu0
  %v2945 = vadd.f32 0.0, %v2944
  %2946 = vmatmul.f32.gmra.mxu0 %v714
  %v2947 = vpop.f32.mrf.mxu0
  %v2948 = vadd.f32 0.0, %v2947
  %2949 = vmatmul.f32.gmra.mxu0 %v715
  %v2950 = vpop.f32.mrf.mxu0
  %v2951 = vadd.f32 0.0, %v2950
  %2952 = vmatmul.f32.gmra.mxu0 %v716
  %v2953 = vpop.f32.mrf.mxu0
  %v2954 = vadd.f32 0.0, %v2953
  %2955 = vmatmul.f32.gmra.mxu0 %v717
  %v2956 = vpop.f32.mrf.mxu0
  %v2957 = vadd.f32 0.0, %v2956
  %2958 = vmatmul.f32.gmra.mxu0 %v718
  %v2959 = vpop.f32.mrf.mxu0
  %v2960 = vadd.f32 0.0, %v2959
  %2961 = vmatmul.f32.gmra.mxu0 %v719
  %v2962 = vpop.f32.mrf.mxu0
  %v2963 = vadd.f32 0.0, %v2962
  %2964 = vmatmul.f32.gmra.mxu0 %v720
  %v2965 = vpop.f32.mrf.mxu0
  %v2966 = vadd.f32 0.0, %v2965
  %2967 = vmatmul.f32.gmra.mxu0 %v721
  %v2968 = vpop.f32.mrf.mxu0
  %v2969 = vadd.f32 0.0, %v2968
  %2970 = vmatmul.f32.gmra.mxu0 %v722
  %v2971 = vpop.f32.mrf.mxu0
  %v2972 = vadd.f32 0.0, %v2971
  %2973 = vmatmul.f32.gmra.mxu0 %v723
  %v2974 = vpop.f32.mrf.mxu0
  %v2975 = vadd.f32 0.0, %v2974
  %2976 = vmatmul.f32.gmra.mxu0 %v724
  %v2977 = vpop.f32.mrf.mxu0
  %v2978 = vadd.f32 0.0, %v2977
  %2979 = vmatmul.f32.gmra.mxu0 %v725
  %v2980 = vpop.f32.mrf.mxu0
  %v2981 = vadd.f32 0.0, %v2980
  %2982 = vmatmul.f32.gmra.mxu0 %v726
  %v2983 = vpop.f32.mrf.mxu0
  %v2984 = vadd.f32 0.0, %v2983
  %2985 = vmatmul.f32.gmra.mxu0 %v727
  %v2986 = vpop.f32.mrf.mxu0
  %v2987 = vadd.f32 0.0, %v2986
  %2988 = vmatmul.f32.gmra.mxu0 %v728
  %v2989 = vpop.f32.mrf.mxu0
  %v2990 = vadd.f32 0.0, %v2989
  %2991 = vmatmul.f32.gmra.mxu0 %v729
  %v2992 = vpop.f32.mrf.mxu0
  %v2993 = vadd.f32 0.0, %v2992
  %2994 = vmatmul.f32.gmra.mxu0 %v730
  %v2995 = vpop.f32.mrf.mxu0
  %v2996 = vadd.f32 0.0, %v2995
  %2997 = vmatmul.f32.gmra.mxu0 %v731
  %v2998 = vpop.f32.mrf.mxu0
  %v2999 = vadd.f32 0.0, %v2998
  %3000 = vmatmul.f32.gmra.mxu0 %v732
  %v3001 = vpop.f32.mrf.mxu0
  %v3002 = vadd.f32 0.0, %v3001
  %3003 = vmatmul.f32.gmra.mxu0 %v733
  %v3004 = vpop.f32.mrf.mxu0
  %v3005 = vadd.f32 0.0, %v3004
  %3006 = vmatmul.f32.gmra.mxu0 %v734
  %v3007 = vpop.f32.mrf.mxu0
  %v3008 = vadd.f32 0.0, %v3007
  %3009 = vmatmul.f32.gmra.mxu0 %v735
  %v3010 = vpop.f32.mrf.mxu0
  %v3011 = vadd.f32 0.0, %v3010
  %3012 = vmatmul.f32.gmra.mxu0 %v736
  %v3013 = vpop.f32.mrf.mxu0
  %v3014 = vadd.f32 0.0, %v3013
  %3015 = vmatmul.f32.gmra.mxu0 %v737
  %v3016 = vpop.f32.mrf.mxu0
  %v3017 = vadd.f32 0.0, %v3016
  %3018 = vmatmul.f32.gmra.mxu0 %v738
  %v3019 = vpop.f32.mrf.mxu0
  %v3020 = vadd.f32 0.0, %v3019
  %3021 = vmatmul.f32.gmra.mxu0 %v739
  %v3022 = vpop.f32.mrf.mxu0
  %v3023 = vadd.f32 0.0, %v3022
  %3024 = vmatmul.f32.gmra.mxu0 %v740
  %v3025 = vpop.f32.mrf.mxu0
  %v3026 = vadd.f32 0.0, %v3025
  %3027 = vmatmul.f32.gmra.mxu0 %v741
  %v3028 = vpop.f32.mrf.mxu0
  %v3029 = vadd.f32 0.0, %v3028
  %3030 = vmatmul.f32.gmra.mxu0 %v742
  %v3031 = vpop.f32.mrf.mxu0
  %v3032 = vadd.f32 0.0, %v3031
  %3033 = vmatmul.f32.gmra.mxu0 %v743
  %v3034 = vpop.f32.mrf.mxu0
  %v3035 = vadd.f32 0.0, %v3034
  %3036 = vmatmul.f32.gmra.mxu0 %v744
  %v3037 = vpop.f32.mrf.mxu0
  %v3038 = vadd.f32 0.0, %v3037
  %3039 = vmatmul.f32.gmra.mxu0 %v745
  %v3040 = vpop.f32.mrf.mxu0
  %v3041 = vadd.f32 0.0, %v3040
  %3042 = vmatmul.f32.gmra.mxu0 %v746
  %v3043 = vpop.f32.mrf.mxu0
  %v3044 = vadd.f32 0.0, %v3043
  %3045 = vmatmul.f32.gmra.mxu0 %v747
  %v3046 = vpop.f32.mrf.mxu0
  %v3047 = vadd.f32 0.0, %v3046
  %3048 = vmatmul.f32.gmra.mxu0 %v748
  %v3049 = vpop.f32.mrf.mxu0
  %v3050 = vadd.f32 0.0, %v3049
  %3051 = vmatmul.f32.gmra.mxu0 %v749
  %v3052 = vpop.f32.mrf.mxu0
  %v3053 = vadd.f32 0.0, %v3052
  %3054 = vmatmul.f32.gmra.mxu0 %v750
  %v3055 = vpop.f32.mrf.mxu0
  %v3056 = vadd.f32 0.0, %v3055
  %3057 = vmatmul.f32.gmra.mxu0 %v751
  %v3058 = vpop.f32.mrf.mxu0
  %v3059 = vadd.f32 0.0, %v3058
  %3060 = vmatmul.f32.gmra.mxu0 %v752
  %v3061 = vpop.f32.mrf.mxu0
  %v3062 = vadd.f32 0.0, %v3061
  %3063 = vmatmul.f32.gmra.mxu0 %v753
  %v3064 = vpop.f32.mrf.mxu0
  %v3065 = vadd.f32 0.0, %v3064
  %3066 = vmatmul.f32.gmra.mxu0 %v754
  %v3067 = vpop.f32.mrf.mxu0
  %v3068 = vadd.f32 0.0, %v3067
  %3069 = vmatmul.f32.gmra.mxu0 %v755
  %v3070 = vpop.f32.mrf.mxu0
  %v3071 = vadd.f32 0.0, %v3070
  %3072 = vmatmul.f32.gmra.mxu0 %v756
  %v3073 = vpop.f32.mrf.mxu0
  %v3074 = vadd.f32 0.0, %v3073
  %3075 = vmatmul.f32.gmra.mxu0 %v757
  %v3076 = vpop.f32.mrf.mxu0
  %v3077 = vadd.f32 0.0, %v3076
  %3078 = vmatmul.f32.gmra.mxu0 %v758
  %v3079 = vpop.f32.mrf.mxu0
  %v3080 = vadd.f32 0.0, %v3079
  %3081 = vmatmul.f32.gmra.mxu0 %v759
  %v3082 = vpop.f32.mrf.mxu0
  %v3083 = vadd.f32 0.0, %v3082
  %3084 = vmatmul.f32.gmra.mxu0 %v760
  %v3085 = vpop.f32.mrf.mxu0
  %v3086 = vadd.f32 0.0, %v3085
  %3087 = vmatmul.f32.gmra.mxu0 %v761
  %v3088 = vpop.f32.mrf.mxu0
  %v3089 = vadd.f32 0.0, %v3088
  %3090 = vmatmul.f32.gmra.mxu0 %v762
  %v3091 = vpop.f32.mrf.mxu0
  %v3092 = vadd.f32 0.0, %v3091
  %3093 = vmatmul.f32.gmra.mxu0 %v763
  %v3094 = vpop.f32.mrf.mxu0
  %v3095 = vadd.f32 0.0, %v3094
  %3096 = vmatmul.f32.gmra.mxu0 %v764
  %v3097 = vpop.f32.mrf.mxu0
  %v3098 = vadd.f32 0.0, %v3097
  %3099 = vmatmul.f32.gmra.mxu0 %v765
  %v3100 = vpop.f32.mrf.mxu0
  %v3101 = vadd.f32 0.0, %v3100
  %3102 = vmatmul.f32.gmra.mxu0 %v766
  %v3103 = vpop.f32.mrf.mxu0
  %v3104 = vadd.f32 0.0, %v3103
  %3105 = vmatmul.f32.gmra.mxu0 %v767
  %v3106 = vpop.f32.mrf.mxu0
  %v3107 = vadd.f32 0.0, %v3106
  %3108 = vmatmul.f32.gmra.mxu0 %v768
  %v3109 = vpop.f32.mrf.mxu0
  %v3110 = vadd.f32 0.0, %v3109
  %3111 = vmatmul.f32.gmra.mxu0 %v769
  %v3112 = vpop.f32.mrf.mxu0
  %v3113 = vadd.f32 0.0, %v3112
  %3114 = vmatmul.f32.gmra.mxu0 %v770
  %v3115 = vpop.f32.mrf.mxu0
  %v3116 = vadd.f32 0.0, %v3115
  %3117 = vmatmul.f32.gmra.mxu0 %v771
  %v3118 = vpop.f32.mrf.mxu0
  %v3119 = vadd.f32 0.0, %v3118
  %3120 = vmatmul.f32.gmra.mxu0 %v772
  %v3121 = vpop.f32.mrf.mxu0
  %v3122 = vadd.f32 0.0, %v3121
  %3123 = vmatmul.f32.gmra.mxu0 %v773
  %v3124 = vpop.f32.mrf.mxu0
  %v3125 = vadd.f32 0.0, %v3124
  %3126 = vmatmul.f32.gmra.mxu0 %v774
  %v3127 = vpop.f32.mrf.mxu0
  %v3128 = vadd.f32 0.0, %v3127
  %3129 = vmatmul.f32.gmra.mxu0 %v775
  %v3130 = vpop.f32.mrf.mxu0
  %v3131 = vadd.f32 0.0, %v3130
  %3132 = vmatmul.f32.gmra.mxu0 %v776
  %v3133 = vpop.f32.mrf.mxu0
  %v3134 = vadd.f32 0.0, %v3133
  %3135 = vmatmul.f32.gmra.mxu0 %v777
  %v3136 = vpop.f32.mrf.mxu0
  %v3137 = vadd.f32 0.0, %v3136
  %3138 = vmatmul.f32.gmra.mxu0 %v778
  %v3139 = vpop.f32.mrf.mxu0
  %v3140 = vadd.f32 0.0, %v3139
  %3141 = vmatmul.f32.gmra.mxu0 %v779
  %v3142 = vpop.f32.mrf.mxu0
  %v3143 = vadd.f32 0.0, %v3142
  %3144 = vmatmul.f32.gmra.mxu0 %v780
  %v3145 = vpop.f32.mrf.mxu0
  %v3146 = vadd.f32 0.0, %v3145
  %3147 = vmatmul.f32.gmra.mxu0 %v781
  %v3148 = vpop.f32.mrf.mxu0
  %v3149 = vadd.f32 0.0, %v3148
  %3150 = vmatmul.f32.gmra.mxu0 %v782
  %v3151 = vpop.f32.mrf.mxu0
  %v3152 = vadd.f32 0.0, %v3151
  %3153 = vmatmul.f32.gmra.mxu0 %v783
  %v3154 = vpop.f32.mrf.mxu0
  %v3155 = vadd.f32 0.0, %v3154
  %3156 = vmatmul.f32.gmra.mxu0 %v784
  %v3157 = vpop.f32.mrf.mxu0
  %v3158 = vadd.f32 0.0, %v3157
  %3159 = vmatmul.f32.gmra.mxu0 %v785
  %v3160 = vpop.f32.mrf.mxu0
  %v3161 = vadd.f32 0.0, %v3160
  %3162 = vmatmul.f32.gmra.mxu0 %v786
  %v3163 = vpop.f32.mrf.mxu0
  %v3164 = vadd.f32 0.0, %v3163
  %3165 = vmatmul.f32.gmra.mxu0 %v787
  %v3166 = vpop.f32.mrf.mxu0
  %v3167 = vadd.f32 0.0, %v3166
  %3168 = vmatmul.f32.gmra.mxu0 %v788
  %v3169 = vpop.f32.mrf.mxu0
  %v3170 = vadd.f32 0.0, %v3169
  %3171 = vmatmul.f32.gmra.mxu0 %v789
  %v3172 = vpop.f32.mrf.mxu0
  %v3173 = vadd.f32 0.0, %v3172
  %3174 = vmatmul.f32.gmra.mxu0 %v790
  %v3175 = vpop.f32.mrf.mxu0
  %v3176 = vadd.f32 0.0, %v3175
  %3177 = vmatmul.f32.gmra.mxu0 %v791
  %v3178 = vpop.f32.mrf.mxu0
  %v3179 = vadd.f32 0.0, %v3178
  %3180 = vmatmul.f32.gmra.mxu0 %v792
  %v3181 = vpop.f32.mrf.mxu0
  %v3182 = vadd.f32 0.0, %v3181
  %3183 = vmatmul.f32.gmra.mxu0 %v793
  %v3184 = vpop.f32.mrf.mxu0
  %v3185 = vadd.f32 0.0, %v3184
  %3186 = vmatmul.f32.gmra.mxu0 %v794
  %v3187 = vpop.f32.mrf.mxu0
  %v3188 = vadd.f32 0.0, %v3187
  %3189 = vmatmul.f32.gmra.mxu0 %v795
  %v3190 = vpop.f32.mrf.mxu0
  %v3191 = vadd.f32 0.0, %v3190
  %3192 = vmatmul.f32.gmra.mxu0 %v796
  %v3193 = vpop.f32.mrf.mxu0
  %v3194 = vadd.f32 0.0, %v3193
  %3195 = vmatmul.f32.gmra.mxu0 %v797
  %v3196 = vpop.f32.mrf.mxu0
  %v3197 = vadd.f32 0.0, %v3196
  %3198 = vmatmul.f32.gmra.mxu0 %v798
  %v3199 = vpop.f32.mrf.mxu0
  %v3200 = vadd.f32 0.0, %v3199
  %3201 = vmatmul.f32.gmra.mxu0 %v799
  %v3202 = vpop.f32.mrf.mxu0
  %v3203 = vadd.f32 0.0, %v3202
  %3204 = vmatmul.f32.gmra.mxu0 %v800
  %v3205 = vpop.f32.mrf.mxu0
  %v3206 = vadd.f32 0.0, %v3205
  %3207 = vmatmul.f32.gmra.mxu0 %v801
  %v3208 = vpop.f32.mrf.mxu0
  %v3209 = vadd.f32 0.0, %v3208
  %3210 = vmatmul.f32.gmra.mxu0 %v802
  %v3211 = vpop.f32.mrf.mxu0
  %v3212 = vadd.f32 0.0, %v3211
  %3213 = vmatmul.f32.gmra.mxu0 %v803
  %v3214 = vpop.f32.mrf.mxu0
  %v3215 = vadd.f32 0.0, %v3214
  %3216 = vmatmul.f32.gmra.mxu0 %v804
  %v3217 = vpop.f32.mrf.mxu0
  %v3218 = vadd.f32 0.0, %v3217
  %3219 = vmatmul.f32.gmra.mxu0 %v805
  %v3220 = vpop.f32.mrf.mxu0
  %v3221 = vadd.f32 0.0, %v3220
  %3222 = vmatmul.f32.gmra.mxu0 %v806
  %v3223 = vpop.f32.mrf.mxu0
  %v3224 = vadd.f32 0.0, %v3223
  %3225 = vmatmul.f32.gmra.mxu0 %v807
  %v3226 = vpop.f32.mrf.mxu0
  %v3227 = vadd.f32 0.0, %v3226
  %3228 = vmatmul.f32.gmra.mxu0 %v808
  %v3229 = vpop.f32.mrf.mxu0
  %v3230 = vadd.f32 0.0, %v3229
  %3231 = vmatmul.f32.gmra.mxu0 %v809
  %v3232 = vpop.f32.mrf.mxu0
  %v3233 = vadd.f32 0.0, %v3232
  %3234 = vmatmul.f32.gmra.mxu0 %v810
  %v3235 = vpop.f32.mrf.mxu0
  %v3236 = vadd.f32 0.0, %v3235
  %3237 = vmatmul.f32.gmra.mxu0 %v811
  %v3238 = vpop.f32.mrf.mxu0
  %v3239 = vadd.f32 0.0, %v3238
  %3240 = vmatmul.f32.gmra.mxu0 %v812
  %v3241 = vpop.f32.mrf.mxu0
  %v3242 = vadd.f32 0.0, %v3241
  %3243 = vmatmul.f32.gmra.mxu0 %v813
  %v3244 = vpop.f32.mrf.mxu0
  %v3245 = vadd.f32 0.0, %v3244
  %3246 = vdwg.mxu0
  %vm3247 = vcmask 80896
  %v3248 = vsel %vm3247, %v848, -inf
  %v3249 = vsel %vm3247, %v923, -inf
  %v3250 = vmax.f32 %v3248, %v3249
  %v3251 = vsel %vm3247, %v998, -inf
  %v3252 = vmax.f32 %v3250, %v3251
  %v3253 = vsel %vm3247, %v1073, -inf
  %v3254 = vmax.f32 %v3252, %v3253
  %v3255 = vsel %vm3247, %v851, -inf
  %v3256 = vsel %vm3247, %v926, -inf
  %v3257 = vmax.f32 %v3255, %v3256
  %v3258 = vsel %vm3247, %v1001, -inf
  %v3259 = vmax.f32 %v3257, %v3258
  %v3260 = vsel %vm3247, %v1076, -inf
  %v3261 = vmax.f32 %v3259, %v3260
  %v3262 = vsel %vm3247, %v854, -inf
  %v3263 = vsel %vm3247, %v929, -inf
  %v3264 = vmax.f32 %v3262, %v3263
  %v3265 = vsel %vm3247, %v1004, -inf
  %v3266 = vmax.f32 %v3264, %v3265
  %v3267 = vsel %vm3247, %v1079, -inf
  %v3268 = vmax.f32 %v3266, %v3267
  %v3269 = vsel %vm3247, %v857, -inf
  %v3270 = vsel %vm3247, %v932, -inf
  %v3271 = vmax.f32 %v3269, %v3270
  %v3272 = vsel %vm3247, %v1007, -inf
  %v3273 = vmax.f32 %v3271, %v3272
  %v3274 = vsel %vm3247, %v1082, -inf
  %v3275 = vmax.f32 %v3273, %v3274
  %v3276 = vsel %vm3247, %v860, -inf
  %v3277 = vsel %vm3247, %v935, -inf
  %v3278 = vmax.f32 %v3276, %v3277
  %v3279 = vsel %vm3247, %v1010, -inf
  %v3280 = vmax.f32 %v3278, %v3279
  %v3281 = vsel %vm3247, %v1085, -inf
  %v3282 = vmax.f32 %v3280, %v3281
  %v3283 = vsel %vm3247, %v863, -inf
  %v3284 = vsel %vm3247, %v938, -inf
  %v3285 = vmax.f32 %v3283, %v3284
  %v3286 = vsel %vm3247, %v1013, -inf
  %v3287 = vmax.f32 %v3285, %v3286
  %v3288 = vsel %vm3247, %v1088, -inf
  %v3289 = vmax.f32 %v3287, %v3288
  %v3290 = vsel %vm3247, %v866, -inf
  %v3291 = vsel %vm3247, %v941, -inf
  %v3292 = vmax.f32 %v3290, %v3291
  %v3293 = vsel %vm3247, %v1016, -inf
  %v3294 = vmax.f32 %v3292, %v3293
  %v3295 = vsel %vm3247, %v1091, -inf
  %v3296 = vmax.f32 %v3294, %v3295
  %v3297 = vsel %vm3247, %v869, -inf
  %v3298 = vsel %vm3247, %v944, -inf
  %v3299 = vmax.f32 %v3297, %v3298
  %v3300 = vsel %vm3247, %v1019, -inf
  %v3301 = vmax.f32 %v3299, %v3300
  %v3302 = vsel %vm3247, %v1094, -inf
  %v3303 = vmax.f32 %v3301, %v3302
  %v3304 = vsel %vm3247, %v872, -inf
  %v3305 = vsel %vm3247, %v947, -inf
  %v3306 = vmax.f32 %v3304, %v3305
  %v3307 = vsel %vm3247, %v1022, -inf
  %v3308 = vmax.f32 %v3306, %v3307
  %v3309 = vsel %vm3247, %v1097, -inf
  %v3310 = vmax.f32 %v3308, %v3309
  %v3311 = vsel %vm3247, %v875, -inf
  %v3312 = vsel %vm3247, %v950, -inf
  %v3313 = vmax.f32 %v3311, %v3312
  %v3314 = vsel %vm3247, %v1025, -inf
  %v3315 = vmax.f32 %v3313, %v3314
  %v3316 = vsel %vm3247, %v1100, -inf
  %v3317 = vmax.f32 %v3315, %v3316
  %v3318 = vsel %vm3247, %v878, -inf
  %v3319 = vsel %vm3247, %v953, -inf
  %v3320 = vmax.f32 %v3318, %v3319
  %v3321 = vsel %vm3247, %v1028, -inf
  %v3322 = vmax.f32 %v3320, %v3321
  %v3323 = vsel %vm3247, %v1103, -inf
  %v3324 = vmax.f32 %v3322, %v3323
  %v3325 = vsel %vm3247, %v881, -inf
  %v3326 = vsel %vm3247, %v956, -inf
  %v3327 = vmax.f32 %v3325, %v3326
  %v3328 = vsel %vm3247, %v1031, -inf
  %v3329 = vmax.f32 %v3327, %v3328
  %v3330 = vsel %vm3247, %v1106, -inf
  %v3331 = vmax.f32 %v3329, %v3330
  %v3332 = vsel %vm3247, %v884, -inf
  %v3333 = vsel %vm3247, %v959, -inf
  %v3334 = vmax.f32 %v3332, %v3333
  %v3335 = vsel %vm3247, %v1034, -inf
  %v3336 = vmax.f32 %v3334, %v3335
  %v3337 = vsel %vm3247, %v1109, -inf
  %v3338 = vmax.f32 %v3336, %v3337
  %v3339 = vsel %vm3247, %v887, -inf
  %v3340 = vsel %vm3247, %v962, -inf
  %v3341 = vmax.f32 %v3339, %v3340
  %v3342 = vsel %vm3247, %v1037, -inf
  %v3343 = vmax.f32 %v3341, %v3342
  %v3344 = vsel %vm3247, %v1112, -inf
  %v3345 = vmax.f32 %v3343, %v3344
  %v3346 = vsel %vm3247, %v890, -inf
  %v3347 = vsel %vm3247, %v965, -inf
  %v3348 = vmax.f32 %v3346, %v3347
  %v3349 = vsel %vm3247, %v1040, -inf
  %v3350 = vmax.f32 %v3348, %v3349
  %v3351 = vsel %vm3247, %v1115, -inf
  %v3352 = vmax.f32 %v3350, %v3351
  %v3353 = vsel %vm3247, %v893, -inf
  %v3354 = vsel %vm3247, %v968, -inf
  %v3355 = vmax.f32 %v3353, %v3354
  %v3356 = vsel %vm3247, %v1043, -inf
  %v3357 = vmax.f32 %v3355, %v3356
  %v3358 = vsel %vm3247, %v1118, -inf
  %v3359 = vmax.f32 %v3357, %v3358
  %v3360 = vsel %vm3247, %v896, -inf
  %v3361 = vsel %vm3247, %v971, -inf
  %v3362 = vmax.f32 %v3360, %v3361
  %v3363 = vsel %vm3247, %v1046, -inf
  %v3364 = vmax.f32 %v3362, %v3363
  %v3365 = vsel %vm3247, %v1121, -inf
  %v3366 = vmax.f32 %v3364, %v3365
  %v3367 = vsel %vm3247, %v899, -inf
  %v3368 = vsel %vm3247, %v974, -inf
  %v3369 = vmax.f32 %v3367, %v3368
  %v3370 = vsel %vm3247, %v1049, -inf
  %v3371 = vmax.f32 %v3369, %v3370
  %v3372 = vsel %vm3247, %v1124, -inf
  %v3373 = vmax.f32 %v3371, %v3372
  %v3374 = vsel %vm3247, %v902, -inf
  %v3375 = vsel %vm3247, %v977, -inf
  %v3376 = vmax.f32 %v3374, %v3375
  %v3377 = vsel %vm3247, %v1052, -inf
  %v3378 = vmax.f32 %v3376, %v3377
  %v3379 = vsel %vm3247, %v1127, -inf
  %v3380 = vmax.f32 %v3378, %v3379
  %v3381 = vsel %vm3247, %v905, -inf
  %v3382 = vsel %vm3247, %v980, -inf
  %v3383 = vmax.f32 %v3381, %v3382
  %v3384 = vsel %vm3247, %v1055, -inf
  %v3385 = vmax.f32 %v3383, %v3384
  %v3386 = vsel %vm3247, %v1130, -inf
  %v3387 = vmax.f32 %v3385, %v3386
  %v3388 = vsel %vm3247, %v908, -inf
  %v3389 = vsel %vm3247, %v983, -inf
  %v3390 = vmax.f32 %v3388, %v3389
  %v3391 = vsel %vm3247, %v1058, -inf
  %v3392 = vmax.f32 %v3390, %v3391
  %v3393 = vsel %vm3247, %v1133, -inf
  %v3394 = vmax.f32 %v3392, %v3393
  %v3395 = vsel %vm3247, %v911, -inf
  %v3396 = vsel %vm3247, %v986, -inf
  %v3397 = vmax.f32 %v3395, %v3396
  %v3398 = vsel %vm3247, %v1061, -inf
  %v3399 = vmax.f32 %v3397, %v3398
  %v3400 = vsel %vm3247, %v1136, -inf
  %v3401 = vmax.f32 %v3399, %v3400
  %v3402 = vsel %vm3247, %v914, -inf
  %v3403 = vsel %vm3247, %v989, -inf
  %v3404 = vmax.f32 %v3402, %v3403
  %v3405 = vsel %vm3247, %v1064, -inf
  %v3406 = vmax.f32 %v3404, %v3405
  %v3407 = vsel %vm3247, %v1139, -inf
  %v3408 = vmax.f32 %v3406, %v3407
  %v3409 = vsel %vm3247, %v917, -inf
  %v3410 = vsel %vm3247, %v992, -inf
  %v3411 = vmax.f32 %v3409, %v3410
  %v3412 = vsel %vm3247, %v1067, -inf
  %v3413 = vmax.f32 %v3411, %v3412
  %v3414 = vsel %vm3247, %v1142, -inf
  %v3415 = vmax.f32 %v3413, %v3414
  %v3416 = vsel %vm3247, %v920, -inf
  %v3417 = vsel %vm3247, %v995, -inf
  %v3418 = vmax.f32 %v3416, %v3417
  %v3419 = vsel %vm3247, %v1070, -inf
  %v3420 = vmax.f32 %v3418, %v3419
  %v3421 = vsel %vm3247, %v1145, -inf
  %v3422 = vmax.f32 %v3420, %v3421
  %v3423 = vsel %vm3247, %v1148, -inf
  %v3424 = vsel %vm3247, %v1223, -inf
  %v3425 = vmax.f32 %v3423, %v3424
  %v3426 = vsel %vm3247, %v1298, -inf
  %v3427 = vmax.f32 %v3425, %v3426
  %v3428 = vsel %vm3247, %v1373, -inf
  %v3429 = vmax.f32 %v3427, %v3428
  %v3430 = vsel %vm3247, %v1151, -inf
  %v3431 = vsel %vm3247, %v1226, -inf
  %v3432 = vmax.f32 %v3430, %v3431
  %v3433 = vsel %vm3247, %v1301, -inf
  %v3434 = vmax.f32 %v3432, %v3433
  %v3435 = vsel %vm3247, %v1376, -inf
  %v3436 = vmax.f32 %v3434, %v3435
  %v3437 = vsel %vm3247, %v1154, -inf
  %v3438 = vsel %vm3247, %v1229, -inf
  %v3439 = vmax.f32 %v3437, %v3438
  %v3440 = vsel %vm3247, %v1304, -inf
  %v3441 = vmax.f32 %v3439, %v3440
  %v3442 = vsel %vm3247, %v1379, -inf
  %v3443 = vmax.f32 %v3441, %v3442
  %v3444 = vsel %vm3247, %v1157, -inf
  %v3445 = vsel %vm3247, %v1232, -inf
  %v3446 = vmax.f32 %v3444, %v3445
  %v3447 = vsel %vm3247, %v1307, -inf
  %v3448 = vmax.f32 %v3446, %v3447
  %v3449 = vsel %vm3247, %v1382, -inf
  %v3450 = vmax.f32 %v3448, %v3449
  %v3451 = vsel %vm3247, %v1160, -inf
  %v3452 = vsel %vm3247, %v1235, -inf
  %v3453 = vmax.f32 %v3451, %v3452
  %v3454 = vsel %vm3247, %v1310, -inf
  %v3455 = vmax.f32 %v3453, %v3454
  %v3456 = vsel %vm3247, %v1385, -inf
  %v3457 = vmax.f32 %v3455, %v3456
  %v3458 = vsel %vm3247, %v1163, -inf
  %v3459 = vsel %vm3247, %v1238, -inf
  %v3460 = vmax.f32 %v3458, %v3459
  %v3461 = vsel %vm3247, %v1313, -inf
  %v3462 = vmax.f32 %v3460, %v3461
  %v3463 = vsel %vm3247, %v1388, -inf
  %v3464 = vmax.f32 %v3462, %v3463
  %v3465 = vsel %vm3247, %v1166, -inf
  %v3466 = vsel %vm3247, %v1241, -inf
  %v3467 = vmax.f32 %v3465, %v3466
  %v3468 = vsel %vm3247, %v1316, -inf
  %v3469 = vmax.f32 %v3467, %v3468
  %v3470 = vsel %vm3247, %v1391, -inf
  %v3471 = vmax.f32 %v3469, %v3470
  %v3472 = vsel %vm3247, %v1169, -inf
  %v3473 = vsel %vm3247, %v1244, -inf
  %v3474 = vmax.f32 %v3472, %v3473
  %v3475 = vsel %vm3247, %v1319, -inf
  %v3476 = vmax.f32 %v3474, %v3475
  %v3477 = vsel %vm3247, %v1394, -inf
  %v3478 = vmax.f32 %v3476, %v3477
  %v3479 = vsel %vm3247, %v1172, -inf
  %v3480 = vsel %vm3247, %v1247, -inf
  %v3481 = vmax.f32 %v3479, %v3480
  %v3482 = vsel %vm3247, %v1322, -inf
  %v3483 = vmax.f32 %v3481, %v3482
  %v3484 = vsel %vm3247, %v1397, -inf
  %v3485 = vmax.f32 %v3483, %v3484
  %v3486 = vsel %vm3247, %v1175, -inf
  %v3487 = vsel %vm3247, %v1250, -inf
  %v3488 = vmax.f32 %v3486, %v3487
  %v3489 = vsel %vm3247, %v1325, -inf
  %v3490 = vmax.f32 %v3488, %v3489
  %v3491 = vsel %vm3247, %v1400, -inf
  %v3492 = vmax.f32 %v3490, %v3491
  %v3493 = vsel %vm3247, %v1178, -inf
  %v3494 = vsel %vm3247, %v1253, -inf
  %v3495 = vmax.f32 %v3493, %v3494
  %v3496 = vsel %vm3247, %v1328, -inf
  %v3497 = vmax.f32 %v3495, %v3496
  %v3498 = vsel %vm3247, %v1403, -inf
  %v3499 = vmax.f32 %v3497, %v3498
  %v3500 = vsel %vm3247, %v1181, -inf
  %v3501 = vsel %vm3247, %v1256, -inf
  %v3502 = vmax.f32 %v3500, %v3501
  %v3503 = vsel %vm3247, %v1331, -inf
  %v3504 = vmax.f32 %v3502, %v3503
  %v3505 = vsel %vm3247, %v1406, -inf
  %v3506 = vmax.f32 %v3504, %v3505
  %v3507 = vsel %vm3247, %v1184, -inf
  %v3508 = vsel %vm3247, %v1259, -inf
  %v3509 = vmax.f32 %v3507, %v3508
  %v3510 = vsel %vm3247, %v1334, -inf
  %v3511 = vmax.f32 %v3509, %v3510
  %v3512 = vsel %vm3247, %v1409, -inf
  %v3513 = vmax.f32 %v3511, %v3512
  %v3514 = vsel %vm3247, %v1187, -inf
  %v3515 = vsel %vm3247, %v1262, -inf
  %v3516 = vmax.f32 %v3514, %v3515
  %v3517 = vsel %vm3247, %v1337, -inf
  %v3518 = vmax.f32 %v3516, %v3517
  %v3519 = vsel %vm3247, %v1412, -inf
  %v3520 = vmax.f32 %v3518, %v3519
  %v3521 = vsel %vm3247, %v1190, -inf
  %v3522 = vsel %vm3247, %v1265, -inf
  %v3523 = vmax.f32 %v3521, %v3522
  %v3524 = vsel %vm3247, %v1340, -inf
  %v3525 = vmax.f32 %v3523, %v3524
  %v3526 = vsel %vm3247, %v1415, -inf
  %v3527 = vmax.f32 %v3525, %v3526
  %v3528 = vsel %vm3247, %v1193, -inf
  %v3529 = vsel %vm3247, %v1268, -inf
  %v3530 = vmax.f32 %v3528, %v3529
  %v3531 = vsel %vm3247, %v1343, -inf
  %v3532 = vmax.f32 %v3530, %v3531
  %v3533 = vsel %vm3247, %v1418, -inf
  %v3534 = vmax.f32 %v3532, %v3533
  %v3535 = vsel %vm3247, %v1196, -inf
  %v3536 = vsel %vm3247, %v1271, -inf
  %v3537 = vmax.f32 %v3535, %v3536
  %v3538 = vsel %vm3247, %v1346, -inf
  %v3539 = vmax.f32 %v3537, %v3538
  %v3540 = vsel %vm3247, %v1421, -inf
  %v3541 = vmax.f32 %v3539, %v3540
  %v3542 = vsel %vm3247, %v1199, -inf
  %v3543 = vsel %vm3247, %v1274, -inf
  %v3544 = vmax.f32 %v3542, %v3543
  %v3545 = vsel %vm3247, %v1349, -inf
  %v3546 = vmax.f32 %v3544, %v3545
  %v3547 = vsel %vm3247, %v1424, -inf
  %v3548 = vmax.f32 %v3546, %v3547
  %v3549 = vsel %vm3247, %v1202, -inf
  %v3550 = vsel %vm3247, %v1277, -inf
  %v3551 = vmax.f32 %v3549, %v3550
  %v3552 = vsel %vm3247, %v1352, -inf
  %v3553 = vmax.f32 %v3551, %v3552
  %v3554 = vsel %vm3247, %v1427, -inf
  %v3555 = vmax.f32 %v3553, %v3554
  %v3556 = vsel %vm3247, %v1205, -inf
  %v3557 = vsel %vm3247, %v1280, -inf
  %v3558 = vmax.f32 %v3556, %v3557
  %v3559 = vsel %vm3247, %v1355, -inf
  %v3560 = vmax.f32 %v3558, %v3559
  %v3561 = vsel %vm3247, %v1430, -inf
  %v3562 = vmax.f32 %v3560, %v3561
  %v3563 = vsel %vm3247, %v1208, -inf
  %v3564 = vsel %vm3247, %v1283, -inf
  %v3565 = vmax.f32 %v3563, %v3564
  %v3566 = vsel %vm3247, %v1358, -inf
  %v3567 = vmax.f32 %v3565, %v3566
  %v3568 = vsel %vm3247, %v1433, -inf
  %v3569 = vmax.f32 %v3567, %v3568
  %v3570 = vsel %vm3247, %v1211, -inf
  %v3571 = vsel %vm3247, %v1286, -inf
  %v3572 = vmax.f32 %v3570, %v3571
  %v3573 = vsel %vm3247, %v1361, -inf
  %v3574 = vmax.f32 %v3572, %v3573
  %v3575 = vsel %vm3247, %v1436, -inf
  %v3576 = vmax.f32 %v3574, %v3575
  %v3577 = vsel %vm3247, %v1214, -inf
  %v3578 = vsel %vm3247, %v1289, -inf
  %v3579 = vmax.f32 %v3577, %v3578
  %v3580 = vsel %vm3247, %v1364, -inf
  %v3581 = vmax.f32 %v3579, %v3580
  %v3582 = vsel %vm3247, %v1439, -inf
  %v3583 = vmax.f32 %v3581, %v3582
  %v3584 = vsel %vm3247, %v1217, -inf
  %v3585 = vsel %vm3247, %v1292, -inf
  %v3586 = vmax.f32 %v3584, %v3585
  %v3587 = vsel %vm3247, %v1367, -inf
  %v3588 = vmax.f32 %v3586, %v3587
  %v3589 = vsel %vm3247, %v1442, -inf
  %v3590 = vmax.f32 %v3588, %v3589
  %v3591 = vsel %vm3247, %v1220, -inf
  %v3592 = vsel %vm3247, %v1295, -inf
  %v3593 = vmax.f32 %v3591, %v3592
  %v3594 = vsel %vm3247, %v1370, -inf
  %v3595 = vmax.f32 %v3593, %v3594
  %v3596 = vsel %vm3247, %v1445, -inf
  %v3597 = vmax.f32 %v3595, %v3596
  %v3598 = vsel %vm3247, %v1448, -inf
  %v3599 = vsel %vm3247, %v1523, -inf
  %v3600 = vmax.f32 %v3598, %v3599
  %v3601 = vsel %vm3247, %v1598, -inf
  %v3602 = vmax.f32 %v3600, %v3601
  %v3603 = vsel %vm3247, %v1673, -inf
  %v3604 = vmax.f32 %v3602, %v3603
  %v3605 = vsel %vm3247, %v1451, -inf
  %v3606 = vsel %vm3247, %v1526, -inf
  %v3607 = vmax.f32 %v3605, %v3606
  %v3608 = vsel %vm3247, %v1601, -inf
  %v3609 = vmax.f32 %v3607, %v3608
  %v3610 = vsel %vm3247, %v1676, -inf
  %v3611 = vmax.f32 %v3609, %v3610
  %v3612 = vsel %vm3247, %v1454, -inf
  %v3613 = vsel %vm3247, %v1529, -inf
  %v3614 = vmax.f32 %v3612, %v3613
  %v3615 = vsel %vm3247, %v1604, -inf
  %v3616 = vmax.f32 %v3614, %v3615
  %v3617 = vsel %vm3247, %v1679, -inf
  %v3618 = vmax.f32 %v3616, %v3617
  %v3619 = vsel %vm3247, %v1457, -inf
  %v3620 = vsel %vm3247, %v1532, -inf
  %v3621 = vmax.f32 %v3619, %v3620
  %v3622 = vsel %vm3247, %v1607, -inf
  %v3623 = vmax.f32 %v3621, %v3622
  %v3624 = vsel %vm3247, %v1682, -inf
  %v3625 = vmax.f32 %v3623, %v3624
  %v3626 = vsel %vm3247, %v1460, -inf
  %v3627 = vsel %vm3247, %v1535, -inf
  %v3628 = vmax.f32 %v3626, %v3627
  %v3629 = vsel %vm3247, %v1610, -inf
  %v3630 = vmax.f32 %v3628, %v3629
  %v3631 = vsel %vm3247, %v1685, -inf
  %v3632 = vmax.f32 %v3630, %v3631
  %v3633 = vsel %vm3247, %v1463, -inf
  %v3634 = vsel %vm3247, %v1538, -inf
  %v3635 = vmax.f32 %v3633, %v3634
  %v3636 = vsel %vm3247, %v1613, -inf
  %v3637 = vmax.f32 %v3635, %v3636
  %v3638 = vsel %vm3247, %v1688, -inf
  %v3639 = vmax.f32 %v3637, %v3638
  %v3640 = vsel %vm3247, %v1466, -inf
  %v3641 = vsel %vm3247, %v1541, -inf
  %v3642 = vmax.f32 %v3640, %v3641
  %v3643 = vsel %vm3247, %v1616, -inf
  %v3644 = vmax.f32 %v3642, %v3643
  %v3645 = vsel %vm3247, %v1691, -inf
  %v3646 = vmax.f32 %v3644, %v3645
  %v3647 = vsel %vm3247, %v1469, -inf
  %v3648 = vsel %vm3247, %v1544, -inf
  %v3649 = vmax.f32 %v3647, %v3648
  %v3650 = vsel %vm3247, %v1619, -inf
  %v3651 = vmax.f32 %v3649, %v3650
  %v3652 = vsel %vm3247, %v1694, -inf
  %v3653 = vmax.f32 %v3651, %v3652
  %v3654 = vsel %vm3247, %v1472, -inf
  %v3655 = vsel %vm3247, %v1547, -inf
  %v3656 = vmax.f32 %v3654, %v3655
  %v3657 = vsel %vm3247, %v1622, -inf
  %v3658 = vmax.f32 %v3656, %v3657
  %v3659 = vsel %vm3247, %v1697, -inf
  %v3660 = vmax.f32 %v3658, %v3659
  %v3661 = vsel %vm3247, %v1475, -inf
  %v3662 = vsel %vm3247, %v1550, -inf
  %v3663 = vmax.f32 %v3661, %v3662
  %v3664 = vsel %vm3247, %v1625, -inf
  %v3665 = vmax.f32 %v3663, %v3664
  %v3666 = vsel %vm3247, %v1700, -inf
  %v3667 = vmax.f32 %v3665, %v3666
  %v3668 = vsel %vm3247, %v1478, -inf
  %v3669 = vsel %vm3247, %v1553, -inf
  %v3670 = vmax.f32 %v3668, %v3669
  %v3671 = vsel %vm3247, %v1628, -inf
  %v3672 = vmax.f32 %v3670, %v3671
  %v3673 = vsel %vm3247, %v1703, -inf
  %v3674 = vmax.f32 %v3672, %v3673
  %v3675 = vsel %vm3247, %v1481, -inf
  %v3676 = vsel %vm3247, %v1556, -inf
  %v3677 = vmax.f32 %v3675, %v3676
  %v3678 = vsel %vm3247, %v1631, -inf
  %v3679 = vmax.f32 %v3677, %v3678
  %v3680 = vsel %vm3247, %v1706, -inf
  %v3681 = vmax.f32 %v3679, %v3680
  %v3682 = vsel %vm3247, %v1484, -inf
  %v3683 = vsel %vm3247, %v1559, -inf
  %v3684 = vmax.f32 %v3682, %v3683
  %v3685 = vsel %vm3247, %v1634, -inf
  %v3686 = vmax.f32 %v3684, %v3685
  %v3687 = vsel %vm3247, %v1709, -inf
  %v3688 = vmax.f32 %v3686, %v3687
  %v3689 = vsel %vm3247, %v1487, -inf
  %v3690 = vsel %vm3247, %v1562, -inf
  %v3691 = vmax.f32 %v3689, %v3690
  %v3692 = vsel %vm3247, %v1637, -inf
  %v3693 = vmax.f32 %v3691, %v3692
  %v3694 = vsel %vm3247, %v1712, -inf
  %v3695 = vmax.f32 %v3693, %v3694
  %v3696 = vsel %vm3247, %v1490, -inf
  %v3697 = vsel %vm3247, %v1565, -inf
  %v3698 = vmax.f32 %v3696, %v3697
  %v3699 = vsel %vm3247, %v1640, -inf
  %v3700 = vmax.f32 %v3698, %v3699
  %v3701 = vsel %vm3247, %v1715, -inf
  %v3702 = vmax.f32 %v3700, %v3701
  %v3703 = vsel %vm3247, %v1493, -inf
  %v3704 = vsel %vm3247, %v1568, -inf
  %v3705 = vmax.f32 %v3703, %v3704
  %v3706 = vsel %vm3247, %v1643, -inf
  %v3707 = vmax.f32 %v3705, %v3706
  %v3708 = vsel %vm3247, %v1718, -inf
  %v3709 = vmax.f32 %v3707, %v3708
  %v3710 = vsel %vm3247, %v1496, -inf
  %v3711 = vsel %vm3247, %v1571, -inf
  %v3712 = vmax.f32 %v3710, %v3711
  %v3713 = vsel %vm3247, %v1646, -inf
  %v3714 = vmax.f32 %v3712, %v3713
  %v3715 = vsel %vm3247, %v1721, -inf
  %v3716 = vmax.f32 %v3714, %v3715
  %v3717 = vsel %vm3247, %v1499, -inf
  %v3718 = vsel %vm3247, %v1574, -inf
  %v3719 = vmax.f32 %v3717, %v3718
  %v3720 = vsel %vm3247, %v1649, -inf
  %v3721 = vmax.f32 %v3719, %v3720
  %v3722 = vsel %vm3247, %v1724, -inf
  %v3723 = vmax.f32 %v3721, %v3722
  %v3724 = vsel %vm3247, %v1502, -inf
  %v3725 = vsel %vm3247, %v1577, -inf
  %v3726 = vmax.f32 %v3724, %v3725
  %v3727 = vsel %vm3247, %v1652, -inf
  %v3728 = vmax.f32 %v3726, %v3727
  %v3729 = vsel %vm3247, %v1727, -inf
  %v3730 = vmax.f32 %v3728, %v3729
  %v3731 = vsel %vm3247, %v1505, -inf
  %v3732 = vsel %vm3247, %v1580, -inf
  %v3733 = vmax.f32 %v3731, %v3732
  %v3734 = vsel %vm3247, %v1655, -inf
  %v3735 = vmax.f32 %v3733, %v3734
  %v3736 = vsel %vm3247, %v1730, -inf
  %v3737 = vmax.f32 %v3735, %v3736
  %v3738 = vsel %vm3247, %v1508, -inf
  %v3739 = vsel %vm3247, %v1583, -inf
  %v3740 = vmax.f32 %v3738, %v3739
  %v3741 = vsel %vm3247, %v1658, -inf
  %v3742 = vmax.f32 %v3740, %v3741
  %v3743 = vsel %vm3247, %v1733, -inf
  %v3744 = vmax.f32 %v3742, %v3743
  %v3745 = vsel %vm3247, %v1511, -inf
  %v3746 = vsel %vm3247, %v1586, -inf
  %v3747 = vmax.f32 %v3745, %v3746
  %v3748 = vsel %vm3247, %v1661, -inf
  %v3749 = vmax.f32 %v3747, %v3748
  %v3750 = vsel %vm3247, %v1736, -inf
  %v3751 = vmax.f32 %v3749, %v3750
  %v3752 = vsel %vm3247, %v1514, -inf
  %v3753 = vsel %vm3247, %v1589, -inf
  %v3754 = vmax.f32 %v3752, %v3753
  %v3755 = vsel %vm3247, %v1664, -inf
  %v3756 = vmax.f32 %v3754, %v3755
  %v3757 = vsel %vm3247, %v1739, -inf
  %v3758 = vmax.f32 %v3756, %v3757
  %v3759 = vsel %vm3247, %v1517, -inf
  %v3760 = vsel %vm3247, %v1592, -inf
  %v3761 = vmax.f32 %v3759, %v3760
  %v3762 = vsel %vm3247, %v1667, -inf
  %v3763 = vmax.f32 %v3761, %v3762
  %v3764 = vsel %vm3247, %v1742, -inf
  %v3765 = vmax.f32 %v3763, %v3764
  %v3766 = vsel %vm3247, %v1520, -inf
  %v3767 = vsel %vm3247, %v1595, -inf
  %v3768 = vmax.f32 %v3766, %v3767
  %v3769 = vsel %vm3247, %v1670, -inf
  %v3770 = vmax.f32 %v3768, %v3769
  %v3771 = vsel %vm3247, %v1745, -inf
  %v3772 = vmax.f32 %v3770, %v3771
  %v3773 = vsel %vm3247, %v1748, -inf
  %v3774 = vsel %vm3247, %v1823, -inf
  %v3775 = vmax.f32 %v3773, %v3774
  %v3776 = vsel %vm3247, %v1898, -inf
  %v3777 = vmax.f32 %v3775, %v3776
  %v3778 = vsel %vm3247, %v1973, -inf
  %v3779 = vmax.f32 %v3777, %v3778
  %v3780 = vsel %vm3247, %v1751, -inf
  %v3781 = vsel %vm3247, %v1826, -inf
  %v3782 = vmax.f32 %v3780, %v3781
  %v3783 = vsel %vm3247, %v1901, -inf
  %v3784 = vmax.f32 %v3782, %v3783
  %v3785 = vsel %vm3247, %v1976, -inf
  %v3786 = vmax.f32 %v3784, %v3785
  %v3787 = vsel %vm3247, %v1754, -inf
  %v3788 = vsel %vm3247, %v1829, -inf
  %v3789 = vmax.f32 %v3787, %v3788
  %v3790 = vsel %vm3247, %v1904, -inf
  %v3791 = vmax.f32 %v3789, %v3790
  %v3792 = vsel %vm3247, %v1979, -inf
  %v3793 = vmax.f32 %v3791, %v3792
  %v3794 = vsel %vm3247, %v1757, -inf
  %v3795 = vsel %vm3247, %v1832, -inf
  %v3796 = vmax.f32 %v3794, %v3795
  %v3797 = vsel %vm3247, %v1907, -inf
  %v3798 = vmax.f32 %v3796, %v3797
  %v3799 = vsel %vm3247, %v1982, -inf
  %v3800 = vmax.f32 %v3798, %v3799
  %v3801 = vsel %vm3247, %v1760, -inf
  %v3802 = vsel %vm3247, %v1835, -inf
  %v3803 = vmax.f32 %v3801, %v3802
  %v3804 = vsel %vm3247, %v1910, -inf
  %v3805 = vmax.f32 %v3803, %v3804
  %v3806 = vsel %vm3247, %v1985, -inf
  %v3807 = vmax.f32 %v3805, %v3806
  %v3808 = vsel %vm3247, %v1763, -inf
  %v3809 = vsel %vm3247, %v1838, -inf
  %v3810 = vmax.f32 %v3808, %v3809
  %v3811 = vsel %vm3247, %v1913, -inf
  %v3812 = vmax.f32 %v3810, %v3811
  %v3813 = vsel %vm3247, %v1988, -inf
  %v3814 = vmax.f32 %v3812, %v3813
  %v3815 = vsel %vm3247, %v1766, -inf
  %v3816 = vsel %vm3247, %v1841, -inf
  %v3817 = vmax.f32 %v3815, %v3816
  %v3818 = vsel %vm3247, %v1916, -inf
  %v3819 = vmax.f32 %v3817, %v3818
  %v3820 = vsel %vm3247, %v1991, -inf
  %v3821 = vmax.f32 %v3819, %v3820
  %v3822 = vsel %vm3247, %v1769, -inf
  %v3823 = vsel %vm3247, %v1844, -inf
  %v3824 = vmax.f32 %v3822, %v3823
  %v3825 = vsel %vm3247, %v1919, -inf
  %v3826 = vmax.f32 %v3824, %v3825
  %v3827 = vsel %vm3247, %v1994, -inf
  %v3828 = vmax.f32 %v3826, %v3827
  %v3829 = vsel %vm3247, %v1772, -inf
  %v3830 = vsel %vm3247, %v1847, -inf
  %v3831 = vmax.f32 %v3829, %v3830
  %v3832 = vsel %vm3247, %v1922, -inf
  %v3833 = vmax.f32 %v3831, %v3832
  %v3834 = vsel %vm3247, %v1997, -inf
  %v3835 = vmax.f32 %v3833, %v3834
  %v3836 = vsel %vm3247, %v1775, -inf
  %v3837 = vsel %vm3247, %v1850, -inf
  %v3838 = vmax.f32 %v3836, %v3837
  %v3839 = vsel %vm3247, %v1925, -inf
  %v3840 = vmax.f32 %v3838, %v3839
  %v3841 = vsel %vm3247, %v2000, -inf
  %v3842 = vmax.f32 %v3840, %v3841
  %v3843 = vsel %vm3247, %v1778, -inf
  %v3844 = vsel %vm3247, %v1853, -inf
  %v3845 = vmax.f32 %v3843, %v3844
  %v3846 = vsel %vm3247, %v1928, -inf
  %v3847 = vmax.f32 %v3845, %v3846
  %v3848 = vsel %vm3247, %v2003, -inf
  %v3849 = vmax.f32 %v3847, %v3848
  %v3850 = vsel %vm3247, %v1781, -inf
  %v3851 = vsel %vm3247, %v1856, -inf
  %v3852 = vmax.f32 %v3850, %v3851
  %v3853 = vsel %vm3247, %v1931, -inf
  %v3854 = vmax.f32 %v3852, %v3853
  %v3855 = vsel %vm3247, %v2006, -inf
  %v3856 = vmax.f32 %v3854, %v3855
  %v3857 = vsel %vm3247, %v1784, -inf
  %v3858 = vsel %vm3247, %v1859, -inf
  %v3859 = vmax.f32 %v3857, %v3858
  %v3860 = vsel %vm3247, %v1934, -inf
  %v3861 = vmax.f32 %v3859, %v3860
  %v3862 = vsel %vm3247, %v2009, -inf
  %v3863 = vmax.f32 %v3861, %v3862
  %v3864 = vsel %vm3247, %v1787, -inf
  %v3865 = vsel %vm3247, %v1862, -inf
  %v3866 = vmax.f32 %v3864, %v3865
  %v3867 = vsel %vm3247, %v1937, -inf
  %v3868 = vmax.f32 %v3866, %v3867
  %v3869 = vsel %vm3247, %v2012, -inf
  %v3870 = vmax.f32 %v3868, %v3869
  %v3871 = vsel %vm3247, %v1790, -inf
  %v3872 = vsel %vm3247, %v1865, -inf
  %v3873 = vmax.f32 %v3871, %v3872
  %v3874 = vsel %vm3247, %v1940, -inf
  %v3875 = vmax.f32 %v3873, %v3874
  %v3876 = vsel %vm3247, %v2015, -inf
  %v3877 = vmax.f32 %v3875, %v3876
  %v3878 = vsel %vm3247, %v1793, -inf
  %v3879 = vsel %vm3247, %v1868, -inf
  %v3880 = vmax.f32 %v3878, %v3879
  %v3881 = vsel %vm3247, %v1943, -inf
  %v3882 = vmax.f32 %v3880, %v3881
  %v3883 = vsel %vm3247, %v2018, -inf
  %v3884 = vmax.f32 %v3882, %v3883
  %v3885 = vsel %vm3247, %v1796, -inf
  %v3886 = vsel %vm3247, %v1871, -inf
  %v3887 = vmax.f32 %v3885, %v3886
  %v3888 = vsel %vm3247, %v1946, -inf
  %v3889 = vmax.f32 %v3887, %v3888
  %v3890 = vsel %vm3247, %v2021, -inf
  %v3891 = vmax.f32 %v3889, %v3890
  %v3892 = vsel %vm3247, %v1799, -inf
  %v3893 = vsel %vm3247, %v1874, -inf
  %v3894 = vmax.f32 %v3892, %v3893
  %v3895 = vsel %vm3247, %v1949, -inf
  %v3896 = vmax.f32 %v3894, %v3895
  %v3897 = vsel %vm3247, %v2024, -inf
  %v3898 = vmax.f32 %v3896, %v3897
  %v3899 = vsel %vm3247, %v1802, -inf
  %v3900 = vsel %vm3247, %v1877, -inf
  %v3901 = vmax.f32 %v3899, %v3900
  %v3902 = vsel %vm3247, %v1952, -inf
  %v3903 = vmax.f32 %v3901, %v3902
  %v3904 = vsel %vm3247, %v2027, -inf
  %v3905 = vmax.f32 %v3903, %v3904
  %v3906 = vsel %vm3247, %v1805, -inf
  %v3907 = vsel %vm3247, %v1880, -inf
  %v3908 = vmax.f32 %v3906, %v3907
  %v3909 = vsel %vm3247, %v1955, -inf
  %v3910 = vmax.f32 %v3908, %v3909
  %v3911 = vsel %vm3247, %v2030, -inf
  %v3912 = vmax.f32 %v3910, %v3911
  %v3913 = vsel %vm3247, %v1808, -inf
  %v3914 = vsel %vm3247, %v1883, -inf
  %v3915 = vmax.f32 %v3913, %v3914
  %v3916 = vsel %vm3247, %v1958, -inf
  %v3917 = vmax.f32 %v3915, %v3916
  %v3918 = vsel %vm3247, %v2033, -inf
  %v3919 = vmax.f32 %v3917, %v3918
  %v3920 = vsel %vm3247, %v1811, -inf
  %v3921 = vsel %vm3247, %v1886, -inf
  %v3922 = vmax.f32 %v3920, %v3921
  %v3923 = vsel %vm3247, %v1961, -inf
  %v3924 = vmax.f32 %v3922, %v3923
  %v3925 = vsel %vm3247, %v2036, -inf
  %v3926 = vmax.f32 %v3924, %v3925
  %v3927 = vsel %vm3247, %v1814, -inf
  %v3928 = vsel %vm3247, %v1889, -inf
  %v3929 = vmax.f32 %v3927, %v3928
  %v3930 = vsel %vm3247, %v1964, -inf
  %v3931 = vmax.f32 %v3929, %v3930
  %v3932 = vsel %vm3247, %v2039, -inf
  %v3933 = vmax.f32 %v3931, %v3932
  %v3934 = vsel %vm3247, %v1817, -inf
  %v3935 = vsel %vm3247, %v1892, -inf
  %v3936 = vmax.f32 %v3934, %v3935
  %v3937 = vsel %vm3247, %v1967, -inf
  %v3938 = vmax.f32 %v3936, %v3937
  %v3939 = vsel %vm3247, %v2042, -inf
  %v3940 = vmax.f32 %v3938, %v3939
  %v3941 = vsel %vm3247, %v1820, -inf
  %v3942 = vsel %vm3247, %v1895, -inf
  %v3943 = vmax.f32 %v3941, %v3942
  %v3944 = vsel %vm3247, %v1970, -inf
  %v3945 = vmax.f32 %v3943, %v3944
  %v3946 = vsel %vm3247, %v2045, -inf
  %v3947 = vmax.f32 %v3945, %v3946
  %v3948 = vsel %vm3247, %v2048, -inf
  %v3949 = vsel %vm3247, %v2123, -inf
  %v3950 = vmax.f32 %v3948, %v3949
  %v3951 = vsel %vm3247, %v2198, -inf
  %v3952 = vmax.f32 %v3950, %v3951
  %v3953 = vsel %vm3247, %v2273, -inf
  %v3954 = vmax.f32 %v3952, %v3953
  %v3955 = vsel %vm3247, %v2051, -inf
  %v3956 = vsel %vm3247, %v2126, -inf
  %v3957 = vmax.f32 %v3955, %v3956
  %v3958 = vsel %vm3247, %v2201, -inf
  %v3959 = vmax.f32 %v3957, %v3958
  %v3960 = vsel %vm3247, %v2276, -inf
  %v3961 = vmax.f32 %v3959, %v3960
  %v3962 = vsel %vm3247, %v2054, -inf
  %v3963 = vsel %vm3247, %v2129, -inf
  %v3964 = vmax.f32 %v3962, %v3963
  %v3965 = vsel %vm3247, %v2204, -inf
  %v3966 = vmax.f32 %v3964, %v3965
  %v3967 = vsel %vm3247, %v2279, -inf
  %v3968 = vmax.f32 %v3966, %v3967
  %v3969 = vsel %vm3247, %v2057, -inf
  %v3970 = vsel %vm3247, %v2132, -inf
  %v3971 = vmax.f32 %v3969, %v3970
  %v3972 = vsel %vm3247, %v2207, -inf
  %v3973 = vmax.f32 %v3971, %v3972
  %v3974 = vsel %vm3247, %v2282, -inf
  %v3975 = vmax.f32 %v3973, %v3974
  %v3976 = vsel %vm3247, %v2060, -inf
  %v3977 = vsel %vm3247, %v2135, -inf
  %v3978 = vmax.f32 %v3976, %v3977
  %v3979 = vsel %vm3247, %v2210, -inf
  %v3980 = vmax.f32 %v3978, %v3979
  %v3981 = vsel %vm3247, %v2285, -inf
  %v3982 = vmax.f32 %v3980, %v3981
  %v3983 = vsel %vm3247, %v2063, -inf
  %v3984 = vsel %vm3247, %v2138, -inf
  %v3985 = vmax.f32 %v3983, %v3984
  %v3986 = vsel %vm3247, %v2213, -inf
  %v3987 = vmax.f32 %v3985, %v3986
  %v3988 = vsel %vm3247, %v2288, -inf
  %v3989 = vmax.f32 %v3987, %v3988
  %v3990 = vsel %vm3247, %v2066, -inf
  %v3991 = vsel %vm3247, %v2141, -inf
  %v3992 = vmax.f32 %v3990, %v3991
  %v3993 = vsel %vm3247, %v2216, -inf
  %v3994 = vmax.f32 %v3992, %v3993
  %v3995 = vsel %vm3247, %v2291, -inf
  %v3996 = vmax.f32 %v3994, %v3995
  %v3997 = vsel %vm3247, %v2069, -inf
  %v3998 = vsel %vm3247, %v2144, -inf
  %v3999 = vmax.f32 %v3997, %v3998
  %v4000 = vsel %vm3247, %v2219, -inf
  %v4001 = vmax.f32 %v3999, %v4000
  %v4002 = vsel %vm3247, %v2294, -inf
  %v4003 = vmax.f32 %v4001, %v4002
  %v4004 = vsel %vm3247, %v2072, -inf
  %v4005 = vsel %vm3247, %v2147, -inf
  %v4006 = vmax.f32 %v4004, %v4005
  %v4007 = vsel %vm3247, %v2222, -inf
  %v4008 = vmax.f32 %v4006, %v4007
  %v4009 = vsel %vm3247, %v2297, -inf
  %v4010 = vmax.f32 %v4008, %v4009
  %v4011 = vsel %vm3247, %v2075, -inf
  %v4012 = vsel %vm3247, %v2150, -inf
  %v4013 = vmax.f32 %v4011, %v4012
  %v4014 = vsel %vm3247, %v2225, -inf
  %v4015 = vmax.f32 %v4013, %v4014
  %v4016 = vsel %vm3247, %v2300, -inf
  %v4017 = vmax.f32 %v4015, %v4016
  %v4018 = vsel %vm3247, %v2078, -inf
  %v4019 = vsel %vm3247, %v2153, -inf
  %v4020 = vmax.f32 %v4018, %v4019
  %v4021 = vsel %vm3247, %v2228, -inf
  %v4022 = vmax.f32 %v4020, %v4021
  %v4023 = vsel %vm3247, %v2303, -inf
  %v4024 = vmax.f32 %v4022, %v4023
  %v4025 = vsel %vm3247, %v2081, -inf
  %v4026 = vsel %vm3247, %v2156, -inf
  %v4027 = vmax.f32 %v4025, %v4026
  %v4028 = vsel %vm3247, %v2231, -inf
  %v4029 = vmax.f32 %v4027, %v4028
  %v4030 = vsel %vm3247, %v2306, -inf
  %v4031 = vmax.f32 %v4029, %v4030
  %v4032 = vsel %vm3247, %v2084, -inf
  %v4033 = vsel %vm3247, %v2159, -inf
  %v4034 = vmax.f32 %v4032, %v4033
  %v4035 = vsel %vm3247, %v2234, -inf
  %v4036 = vmax.f32 %v4034, %v4035
  %v4037 = vsel %vm3247, %v2309, -inf
  %v4038 = vmax.f32 %v4036, %v4037
  %v4039 = vsel %vm3247, %v2087, -inf
  %v4040 = vsel %vm3247, %v2162, -inf
  %v4041 = vmax.f32 %v4039, %v4040
  %v4042 = vsel %vm3247, %v2237, -inf
  %v4043 = vmax.f32 %v4041, %v4042
  %v4044 = vsel %vm3247, %v2312, -inf
  %v4045 = vmax.f32 %v4043, %v4044
  %v4046 = vsel %vm3247, %v2090, -inf
  %v4047 = vsel %vm3247, %v2165, -inf
  %v4048 = vmax.f32 %v4046, %v4047
  %v4049 = vsel %vm3247, %v2240, -inf
  %v4050 = vmax.f32 %v4048, %v4049
  %v4051 = vsel %vm3247, %v2315, -inf
  %v4052 = vmax.f32 %v4050, %v4051
  %v4053 = vsel %vm3247, %v2093, -inf
  %v4054 = vsel %vm3247, %v2168, -inf
  %v4055 = vmax.f32 %v4053, %v4054
  %v4056 = vsel %vm3247, %v2243, -inf
  %v4057 = vmax.f32 %v4055, %v4056
  %v4058 = vsel %vm3247, %v2318, -inf
  %v4059 = vmax.f32 %v4057, %v4058
  %v4060 = vsel %vm3247, %v2096, -inf
  %v4061 = vsel %vm3247, %v2171, -inf
  %v4062 = vmax.f32 %v4060, %v4061
  %v4063 = vsel %vm3247, %v2246, -inf
  %v4064 = vmax.f32 %v4062, %v4063
  %v4065 = vsel %vm3247, %v2321, -inf
  %v4066 = vmax.f32 %v4064, %v4065
  %v4067 = vsel %vm3247, %v2099, -inf
  %v4068 = vsel %vm3247, %v2174, -inf
  %v4069 = vmax.f32 %v4067, %v4068
  %v4070 = vsel %vm3247, %v2249, -inf
  %v4071 = vmax.f32 %v4069, %v4070
  %v4072 = vsel %vm3247, %v2324, -inf
  %v4073 = vmax.f32 %v4071, %v4072
  %v4074 = vsel %vm3247, %v2102, -inf
  %v4075 = vsel %vm3247, %v2177, -inf
  %v4076 = vmax.f32 %v4074, %v4075
  %v4077 = vsel %vm3247, %v2252, -inf
  %v4078 = vmax.f32 %v4076, %v4077
  %v4079 = vsel %vm3247, %v2327, -inf
  %v4080 = vmax.f32 %v4078, %v4079
  %v4081 = vsel %vm3247, %v2105, -inf
  %v4082 = vsel %vm3247, %v2180, -inf
  %v4083 = vmax.f32 %v4081, %v4082
  %v4084 = vsel %vm3247, %v2255, -inf
  %v4085 = vmax.f32 %v4083, %v4084
  %v4086 = vsel %vm3247, %v2330, -inf
  %v4087 = vmax.f32 %v4085, %v4086
  %v4088 = vsel %vm3247, %v2108, -inf
  %v4089 = vsel %vm3247, %v2183, -inf
  %v4090 = vmax.f32 %v4088, %v4089
  %v4091 = vsel %vm3247, %v2258, -inf
  %v4092 = vmax.f32 %v4090, %v4091
  %v4093 = vsel %vm3247, %v2333, -inf
  %v4094 = vmax.f32 %v4092, %v4093
  %v4095 = vsel %vm3247, %v2111, -inf
  %v4096 = vsel %vm3247, %v2186, -inf
  %v4097 = vmax.f32 %v4095, %v4096
  %v4098 = vsel %vm3247, %v2261, -inf
  %v4099 = vmax.f32 %v4097, %v4098
  %v4100 = vsel %vm3247, %v2336, -inf
  %v4101 = vmax.f32 %v4099, %v4100
  %v4102 = vsel %vm3247, %v2114, -inf
  %v4103 = vsel %vm3247, %v2189, -inf
  %v4104 = vmax.f32 %v4102, %v4103
  %v4105 = vsel %vm3247, %v2264, -inf
  %v4106 = vmax.f32 %v4104, %v4105
  %v4107 = vsel %vm3247, %v2339, -inf
  %v4108 = vmax.f32 %v4106, %v4107
  %v4109 = vsel %vm3247, %v2117, -inf
  %v4110 = vsel %vm3247, %v2192, -inf
  %v4111 = vmax.f32 %v4109, %v4110
  %v4112 = vsel %vm3247, %v2267, -inf
  %v4113 = vmax.f32 %v4111, %v4112
  %v4114 = vsel %vm3247, %v2342, -inf
  %v4115 = vmax.f32 %v4113, %v4114
  %v4116 = vsel %vm3247, %v2120, -inf
  %v4117 = vsel %vm3247, %v2195, -inf
  %v4118 = vmax.f32 %v4116, %v4117
  %v4119 = vsel %vm3247, %v2270, -inf
  %v4120 = vmax.f32 %v4118, %v4119
  %v4121 = vsel %vm3247, %v2345, -inf
  %v4122 = vmax.f32 %v4120, %v4121
  %v4123 = vsel %vm3247, %v2348, -inf
  %v4124 = vsel %vm3247, %v2423, -inf
  %v4125 = vmax.f32 %v4123, %v4124
  %v4126 = vsel %vm3247, %v2498, -inf
  %v4127 = vmax.f32 %v4125, %v4126
  %v4128 = vsel %vm3247, %v2573, -inf
  %v4129 = vmax.f32 %v4127, %v4128
  %v4130 = vsel %vm3247, %v2351, -inf
  %v4131 = vsel %vm3247, %v2426, -inf
  %v4132 = vmax.f32 %v4130, %v4131
  %v4133 = vsel %vm3247, %v2501, -inf
  %v4134 = vmax.f32 %v4132, %v4133
  %v4135 = vsel %vm3247, %v2576, -inf
  %v4136 = vmax.f32 %v4134, %v4135
  %v4137 = vsel %vm3247, %v2354, -inf
  %v4138 = vsel %vm3247, %v2429, -inf
  %v4139 = vmax.f32 %v4137, %v4138
  %v4140 = vsel %vm3247, %v2504, -inf
  %v4141 = vmax.f32 %v4139, %v4140
  %v4142 = vsel %vm3247, %v2579, -inf
  %v4143 = vmax.f32 %v4141, %v4142
  %v4144 = vsel %vm3247, %v2357, -inf
  %v4145 = vsel %vm3247, %v2432, -inf
  %v4146 = vmax.f32 %v4144, %v4145
  %v4147 = vsel %vm3247, %v2507, -inf
  %v4148 = vmax.f32 %v4146, %v4147
  %v4149 = vsel %vm3247, %v2582, -inf
  %v4150 = vmax.f32 %v4148, %v4149
  %v4151 = vsel %vm3247, %v2360, -inf
  %v4152 = vsel %vm3247, %v2435, -inf
  %v4153 = vmax.f32 %v4151, %v4152
  %v4154 = vsel %vm3247, %v2510, -inf
  %v4155 = vmax.f32 %v4153, %v4154
  %v4156 = vsel %vm3247, %v2585, -inf
  %v4157 = vmax.f32 %v4155, %v4156
  %v4158 = vsel %vm3247, %v2363, -inf
  %v4159 = vsel %vm3247, %v2438, -inf
  %v4160 = vmax.f32 %v4158, %v4159
  %v4161 = vsel %vm3247, %v2513, -inf
  %v4162 = vmax.f32 %v4160, %v4161
  %v4163 = vsel %vm3247, %v2588, -inf
  %v4164 = vmax.f32 %v4162, %v4163
  %v4165 = vsel %vm3247, %v2366, -inf
  %v4166 = vsel %vm3247, %v2441, -inf
  %v4167 = vmax.f32 %v4165, %v4166
  %v4168 = vsel %vm3247, %v2516, -inf
  %v4169 = vmax.f32 %v4167, %v4168
  %v4170 = vsel %vm3247, %v2591, -inf
  %v4171 = vmax.f32 %v4169, %v4170
  %v4172 = vsel %vm3247, %v2369, -inf
  %v4173 = vsel %vm3247, %v2444, -inf
  %v4174 = vmax.f32 %v4172, %v4173
  %v4175 = vsel %vm3247, %v2519, -inf
  %v4176 = vmax.f32 %v4174, %v4175
  %v4177 = vsel %vm3247, %v2594, -inf
  %v4178 = vmax.f32 %v4176, %v4177
  %v4179 = vsel %vm3247, %v2372, -inf
  %v4180 = vsel %vm3247, %v2447, -inf
  %v4181 = vmax.f32 %v4179, %v4180
  %v4182 = vsel %vm3247, %v2522, -inf
  %v4183 = vmax.f32 %v4181, %v4182
  %v4184 = vsel %vm3247, %v2597, -inf
  %v4185 = vmax.f32 %v4183, %v4184
  %v4186 = vsel %vm3247, %v2375, -inf
  %v4187 = vsel %vm3247, %v2450, -inf
  %v4188 = vmax.f32 %v4186, %v4187
  %v4189 = vsel %vm3247, %v2525, -inf
  %v4190 = vmax.f32 %v4188, %v4189
  %v4191 = vsel %vm3247, %v2600, -inf
  %v4192 = vmax.f32 %v4190, %v4191
  %v4193 = vsel %vm3247, %v2378, -inf
  %v4194 = vsel %vm3247, %v2453, -inf
  %v4195 = vmax.f32 %v4193, %v4194
  %v4196 = vsel %vm3247, %v2528, -inf
  %v4197 = vmax.f32 %v4195, %v4196
  %v4198 = vsel %vm3247, %v2603, -inf
  %v4199 = vmax.f32 %v4197, %v4198
  %v4200 = vsel %vm3247, %v2381, -inf
  %v4201 = vsel %vm3247, %v2456, -inf
  %v4202 = vmax.f32 %v4200, %v4201
  %v4203 = vsel %vm3247, %v2531, -inf
  %v4204 = vmax.f32 %v4202, %v4203
  %v4205 = vsel %vm3247, %v2606, -inf
  %v4206 = vmax.f32 %v4204, %v4205
  %v4207 = vsel %vm3247, %v2384, -inf
  %v4208 = vsel %vm3247, %v2459, -inf
  %v4209 = vmax.f32 %v4207, %v4208
  %v4210 = vsel %vm3247, %v2534, -inf
  %v4211 = vmax.f32 %v4209, %v4210
  %v4212 = vsel %vm3247, %v2609, -inf
  %v4213 = vmax.f32 %v4211, %v4212
  %v4214 = vsel %vm3247, %v2387, -inf
  %v4215 = vsel %vm3247, %v2462, -inf
  %v4216 = vmax.f32 %v4214, %v4215
  %v4217 = vsel %vm3247, %v2537, -inf
  %v4218 = vmax.f32 %v4216, %v4217
  %v4219 = vsel %vm3247, %v2612, -inf
  %v4220 = vmax.f32 %v4218, %v4219
  %v4221 = vsel %vm3247, %v2390, -inf
  %v4222 = vsel %vm3247, %v2465, -inf
  %v4223 = vmax.f32 %v4221, %v4222
  %v4224 = vsel %vm3247, %v2540, -inf
  %v4225 = vmax.f32 %v4223, %v4224
  %v4226 = vsel %vm3247, %v2615, -inf
  %v4227 = vmax.f32 %v4225, %v4226
  %v4228 = vsel %vm3247, %v2393, -inf
  %v4229 = vsel %vm3247, %v2468, -inf
  %v4230 = vmax.f32 %v4228, %v4229
  %v4231 = vsel %vm3247, %v2543, -inf
  %v4232 = vmax.f32 %v4230, %v4231
  %v4233 = vsel %vm3247, %v2618, -inf
  %v4234 = vmax.f32 %v4232, %v4233
  %v4235 = vsel %vm3247, %v2396, -inf
  %v4236 = vsel %vm3247, %v2471, -inf
  %v4237 = vmax.f32 %v4235, %v4236
  %v4238 = vsel %vm3247, %v2546, -inf
  %v4239 = vmax.f32 %v4237, %v4238
  %v4240 = vsel %vm3247, %v2621, -inf
  %v4241 = vmax.f32 %v4239, %v4240
  %v4242 = vsel %vm3247, %v2399, -inf
  %v4243 = vsel %vm3247, %v2474, -inf
  %v4244 = vmax.f32 %v4242, %v4243
  %v4245 = vsel %vm3247, %v2549, -inf
  %v4246 = vmax.f32 %v4244, %v4245
  %v4247 = vsel %vm3247, %v2624, -inf
  %v4248 = vmax.f32 %v4246, %v4247
  %v4249 = vsel %vm3247, %v2402, -inf
  %v4250 = vsel %vm3247, %v2477, -inf
  %v4251 = vmax.f32 %v4249, %v4250
  %v4252 = vsel %vm3247, %v2552, -inf
  %v4253 = vmax.f32 %v4251, %v4252
  %v4254 = vsel %vm3247, %v2627, -inf
  %v4255 = vmax.f32 %v4253, %v4254
  %v4256 = vsel %vm3247, %v2405, -inf
  %v4257 = vsel %vm3247, %v2480, -inf
  %v4258 = vmax.f32 %v4256, %v4257
  %v4259 = vsel %vm3247, %v2555, -inf
  %v4260 = vmax.f32 %v4258, %v4259
  %v4261 = vsel %vm3247, %v2630, -inf
  %v4262 = vmax.f32 %v4260, %v4261
  %v4263 = vsel %vm3247, %v2408, -inf
  %v4264 = vsel %vm3247, %v2483, -inf
  %v4265 = vmax.f32 %v4263, %v4264
  %v4266 = vsel %vm3247, %v2558, -inf
  %v4267 = vmax.f32 %v4265, %v4266
  %v4268 = vsel %vm3247, %v2633, -inf
  %v4269 = vmax.f32 %v4267, %v4268
  %v4270 = vsel %vm3247, %v2411, -inf
  %v4271 = vsel %vm3247, %v2486, -inf
  %v4272 = vmax.f32 %v4270, %v4271
  %v4273 = vsel %vm3247, %v2561, -inf
  %v4274 = vmax.f32 %v4272, %v4273
  %v4275 = vsel %vm3247, %v2636, -inf
  %v4276 = vmax.f32 %v4274, %v4275
  %v4277 = vsel %vm3247, %v2414, -inf
  %v4278 = vsel %vm3247, %v2489, -inf
  %v4279 = vmax.f32 %v4277, %v4278
  %v4280 = vsel %vm3247, %v2564, -inf
  %v4281 = vmax.f32 %v4279, %v4280
  %v4282 = vsel %vm3247, %v2639, -inf
  %v4283 = vmax.f32 %v4281, %v4282
  %v4284 = vsel %vm3247, %v2417, -inf
  %v4285 = vsel %vm3247, %v2492, -inf
  %v4286 = vmax.f32 %v4284, %v4285
  %v4287 = vsel %vm3247, %v2567, -inf
  %v4288 = vmax.f32 %v4286, %v4287
  %v4289 = vsel %vm3247, %v2642, -inf
  %v4290 = vmax.f32 %v4288, %v4289
  %v4291 = vsel %vm3247, %v2420, -inf
  %v4292 = vsel %vm3247, %v2495, -inf
  %v4293 = vmax.f32 %v4291, %v4292
  %v4294 = vsel %vm3247, %v2570, -inf
  %v4295 = vmax.f32 %v4293, %v4294
  %v4296 = vsel %vm3247, %v2645, -inf
  %v4297 = vmax.f32 %v4295, %v4296
  %v4298 = vsel %vm3247, %v2648, -inf
  %v4299 = vsel %vm3247, %v2723, -inf
  %v4300 = vmax.f32 %v4298, %v4299
  %v4301 = vsel %vm3247, %v2798, -inf
  %v4302 = vmax.f32 %v4300, %v4301
  %v4303 = vsel %vm3247, %v2873, -inf
  %v4304 = vmax.f32 %v4302, %v4303
  %v4305 = vsel %vm3247, %v2651, -inf
  %v4306 = vsel %vm3247, %v2726, -inf
  %v4307 = vmax.f32 %v4305, %v4306
  %v4308 = vsel %vm3247, %v2801, -inf
  %v4309 = vmax.f32 %v4307, %v4308
  %v4310 = vsel %vm3247, %v2876, -inf
  %v4311 = vmax.f32 %v4309, %v4310
  %v4312 = vsel %vm3247, %v2654, -inf
  %v4313 = vsel %vm3247, %v2729, -inf
  %v4314 = vmax.f32 %v4312, %v4313
  %v4315 = vsel %vm3247, %v2804, -inf
  %v4316 = vmax.f32 %v4314, %v4315
  %v4317 = vsel %vm3247, %v2879, -inf
  %v4318 = vmax.f32 %v4316, %v4317
  %v4319 = vsel %vm3247, %v2657, -inf
  %v4320 = vsel %vm3247, %v2732, -inf
  %v4321 = vmax.f32 %v4319, %v4320
  %v4322 = vsel %vm3247, %v2807, -inf
  %v4323 = vmax.f32 %v4321, %v4322
  %v4324 = vsel %vm3247, %v2882, -inf
  %v4325 = vmax.f32 %v4323, %v4324
  %v4326 = vsel %vm3247, %v2660, -inf
  %v4327 = vsel %vm3247, %v2735, -inf
  %v4328 = vmax.f32 %v4326, %v4327
  %v4329 = vsel %vm3247, %v2810, -inf
  %v4330 = vmax.f32 %v4328, %v4329
  %v4331 = vsel %vm3247, %v2885, -inf
  %v4332 = vmax.f32 %v4330, %v4331
  %v4333 = vsel %vm3247, %v2663, -inf
  %v4334 = vsel %vm3247, %v2738, -inf
  %v4335 = vmax.f32 %v4333, %v4334
  %v4336 = vsel %vm3247, %v2813, -inf
  %v4337 = vmax.f32 %v4335, %v4336
  %v4338 = vsel %vm3247, %v2888, -inf
  %v4339 = vmax.f32 %v4337, %v4338
  %v4340 = vsel %vm3247, %v2666, -inf
  %v4341 = vsel %vm3247, %v2741, -inf
  %v4342 = vmax.f32 %v4340, %v4341
  %v4343 = vsel %vm3247, %v2816, -inf
  %v4344 = vmax.f32 %v4342, %v4343
  %v4345 = vsel %vm3247, %v2891, -inf
  %v4346 = vmax.f32 %v4344, %v4345
  %v4347 = vsel %vm3247, %v2669, -inf
  %v4348 = vsel %vm3247, %v2744, -inf
  %v4349 = vmax.f32 %v4347, %v4348
  %v4350 = vsel %vm3247, %v2819, -inf
  %v4351 = vmax.f32 %v4349, %v4350
  %v4352 = vsel %vm3247, %v2894, -inf
  %v4353 = vmax.f32 %v4351, %v4352
  %v4354 = vsel %vm3247, %v2672, -inf
  %v4355 = vsel %vm3247, %v2747, -inf
  %v4356 = vmax.f32 %v4354, %v4355
  %v4357 = vsel %vm3247, %v2822, -inf
  %v4358 = vmax.f32 %v4356, %v4357
  %v4359 = vsel %vm3247, %v2897, -inf
  %v4360 = vmax.f32 %v4358, %v4359
  %v4361 = vsel %vm3247, %v2675, -inf
  %v4362 = vsel %vm3247, %v2750, -inf
  %v4363 = vmax.f32 %v4361, %v4362
  %v4364 = vsel %vm3247, %v2825, -inf
  %v4365 = vmax.f32 %v4363, %v4364
  %v4366 = vsel %vm3247, %v2900, -inf
  %v4367 = vmax.f32 %v4365, %v4366
  %v4368 = vsel %vm3247, %v2678, -inf
  %v4369 = vsel %vm3247, %v2753, -inf
  %v4370 = vmax.f32 %v4368, %v4369
  %v4371 = vsel %vm3247, %v2828, -inf
  %v4372 = vmax.f32 %v4370, %v4371
  %v4373 = vsel %vm3247, %v2903, -inf
  %v4374 = vmax.f32 %v4372, %v4373
  %v4375 = vsel %vm3247, %v2681, -inf
  %v4376 = vsel %vm3247, %v2756, -inf
  %v4377 = vmax.f32 %v4375, %v4376
  %v4378 = vsel %vm3247, %v2831, -inf
  %v4379 = vmax.f32 %v4377, %v4378
  %v4380 = vsel %vm3247, %v2906, -inf
  %v4381 = vmax.f32 %v4379, %v4380
  %v4382 = vsel %vm3247, %v2684, -inf
  %v4383 = vsel %vm3247, %v2759, -inf
  %v4384 = vmax.f32 %v4382, %v4383
  %v4385 = vsel %vm3247, %v2834, -inf
  %v4386 = vmax.f32 %v4384, %v4385
  %v4387 = vsel %vm3247, %v2909, -inf
  %v4388 = vmax.f32 %v4386, %v4387
  %v4389 = vsel %vm3247, %v2687, -inf
  %v4390 = vsel %vm3247, %v2762, -inf
  %v4391 = vmax.f32 %v4389, %v4390
  %v4392 = vsel %vm3247, %v2837, -inf
  %v4393 = vmax.f32 %v4391, %v4392
  %v4394 = vsel %vm3247, %v2912, -inf
  %v4395 = vmax.f32 %v4393, %v4394
  %v4396 = vsel %vm3247, %v2690, -inf
  %v4397 = vsel %vm3247, %v2765, -inf
  %v4398 = vmax.f32 %v4396, %v4397
  %v4399 = vsel %vm3247, %v2840, -inf
  %v4400 = vmax.f32 %v4398, %v4399
  %v4401 = vsel %vm3247, %v2915, -inf
  %v4402 = vmax.f32 %v4400, %v4401
  %v4403 = vsel %vm3247, %v2693, -inf
  %v4404 = vsel %vm3247, %v2768, -inf
  %v4405 = vmax.f32 %v4403, %v4404
  %v4406 = vsel %vm3247, %v2843, -inf
  %v4407 = vmax.f32 %v4405, %v4406
  %v4408 = vsel %vm3247, %v2918, -inf
  %v4409 = vmax.f32 %v4407, %v4408
  %v4410 = vsel %vm3247, %v2696, -inf
  %v4411 = vsel %vm3247, %v2771, -inf
  %v4412 = vmax.f32 %v4410, %v4411
  %v4413 = vsel %vm3247, %v2846, -inf
  %v4414 = vmax.f32 %v4412, %v4413
  %v4415 = vsel %vm3247, %v2921, -inf
  %v4416 = vmax.f32 %v4414, %v4415
  %v4417 = vsel %vm3247, %v2699, -inf
  %v4418 = vsel %vm3247, %v2774, -inf
  %v4419 = vmax.f32 %v4417, %v4418
  %v4420 = vsel %vm3247, %v2849, -inf
  %v4421 = vmax.f32 %v4419, %v4420
  %v4422 = vsel %vm3247, %v2924, -inf
  %v4423 = vmax.f32 %v4421, %v4422
  %v4424 = vsel %vm3247, %v2702, -inf
  %v4425 = vsel %vm3247, %v2777, -inf
  %v4426 = vmax.f32 %v4424, %v4425
  %v4427 = vsel %vm3247, %v2852, -inf
  %v4428 = vmax.f32 %v4426, %v4427
  %v4429 = vsel %vm3247, %v2927, -inf
  %v4430 = vmax.f32 %v4428, %v4429
  %v4431 = vsel %vm3247, %v2705, -inf
  %v4432 = vsel %vm3247, %v2780, -inf
  %v4433 = vmax.f32 %v4431, %v4432
  %v4434 = vsel %vm3247, %v2855, -inf
  %v4435 = vmax.f32 %v4433, %v4434
  %v4436 = vsel %vm3247, %v2930, -inf
  %v4437 = vmax.f32 %v4435, %v4436
  %v4438 = vsel %vm3247, %v2708, -inf
  %v4439 = vsel %vm3247, %v2783, -inf
  %v4440 = vmax.f32 %v4438, %v4439
  %v4441 = vsel %vm3247, %v2858, -inf
  %v4442 = vmax.f32 %v4440, %v4441
  %v4443 = vsel %vm3247, %v2933, -inf
  %v4444 = vmax.f32 %v4442, %v4443
  %v4445 = vsel %vm3247, %v2711, -inf
  %v4446 = vsel %vm3247, %v2786, -inf
  %v4447 = vmax.f32 %v4445, %v4446
  %v4448 = vsel %vm3247, %v2861, -inf
  %v4449 = vmax.f32 %v4447, %v4448
  %v4450 = vsel %vm3247, %v2936, -inf
  %v4451 = vmax.f32 %v4449, %v4450
  %v4452 = vsel %vm3247, %v2714, -inf
  %v4453 = vsel %vm3247, %v2789, -inf
  %v4454 = vmax.f32 %v4452, %v4453
  %v4455 = vsel %vm3247, %v2864, -inf
  %v4456 = vmax.f32 %v4454, %v4455
  %v4457 = vsel %vm3247, %v2939, -inf
  %v4458 = vmax.f32 %v4456, %v4457
  %v4459 = vsel %vm3247, %v2717, -inf
  %v4460 = vsel %vm3247, %v2792, -inf
  %v4461 = vmax.f32 %v4459, %v4460
  %v4462 = vsel %vm3247, %v2867, -inf
  %v4463 = vmax.f32 %v4461, %v4462
  %v4464 = vsel %vm3247, %v2942, -inf
  %v4465 = vmax.f32 %v4463, %v4464
  %v4466 = vsel %vm3247, %v2720, -inf
  %v4467 = vsel %vm3247, %v2795, -inf
  %v4468 = vmax.f32 %v4466, %v4467
  %v4469 = vsel %vm3247, %v2870, -inf
  %v4470 = vmax.f32 %v4468, %v4469
  %v4471 = vsel %vm3247, %v2945, -inf
  %v4472 = vmax.f32 %v4470, %v4471
  %v4473 = vsel %vm3247, %v2948, -inf
  %v4474 = vsel %vm3247, %v3023, -inf
  %v4475 = vmax.f32 %v4473, %v4474
  %v4476 = vsel %vm3247, %v3098, -inf
  %v4477 = vmax.f32 %v4475, %v4476
  %v4478 = vsel %vm3247, %v3173, -inf
  %v4479 = vmax.f32 %v4477, %v4478
  %v4480 = vsel %vm3247, %v2951, -inf
  %v4481 = vsel %vm3247, %v3026, -inf
  %v4482 = vmax.f32 %v4480, %v4481
  %v4483 = vsel %vm3247, %v3101, -inf
  %v4484 = vmax.f32 %v4482, %v4483
  %v4485 = vsel %vm3247, %v3176, -inf
  %v4486 = vmax.f32 %v4484, %v4485
  %v4487 = vsel %vm3247, %v2954, -inf
  %v4488 = vsel %vm3247, %v3029, -inf
  %v4489 = vmax.f32 %v4487, %v4488
  %v4490 = vsel %vm3247, %v3104, -inf
  %v4491 = vmax.f32 %v4489, %v4490
  %v4492 = vsel %vm3247, %v3179, -inf
  %v4493 = vmax.f32 %v4491, %v4492
  %v4494 = vsel %vm3247, %v2957, -inf
  %v4495 = vsel %vm3247, %v3032, -inf
  %v4496 = vmax.f32 %v4494, %v4495
  %v4497 = vsel %vm3247, %v3107, -inf
  %v4498 = vmax.f32 %v4496, %v4497
  %v4499 = vsel %vm3247, %v3182, -inf
  %v4500 = vmax.f32 %v4498, %v4499
  %v4501 = vsel %vm3247, %v2960, -inf
  %v4502 = vsel %vm3247, %v3035, -inf
  %v4503 = vmax.f32 %v4501, %v4502
  %v4504 = vsel %vm3247, %v3110, -inf
  %v4505 = vmax.f32 %v4503, %v4504
  %v4506 = vsel %vm3247, %v3185, -inf
  %v4507 = vmax.f32 %v4505, %v4506
  %v4508 = vsel %vm3247, %v2963, -inf
  %v4509 = vsel %vm3247, %v3038, -inf
  %v4510 = vmax.f32 %v4508, %v4509
  %v4511 = vsel %vm3247, %v3113, -inf
  %v4512 = vmax.f32 %v4510, %v4511
  %v4513 = vsel %vm3247, %v3188, -inf
  %v4514 = vmax.f32 %v4512, %v4513
  %v4515 = vsel %vm3247, %v2966, -inf
  %v4516 = vsel %vm3247, %v3041, -inf
  %v4517 = vmax.f32 %v4515, %v4516
  %v4518 = vsel %vm3247, %v3116, -inf
  %v4519 = vmax.f32 %v4517, %v4518
  %v4520 = vsel %vm3247, %v3191, -inf
  %v4521 = vmax.f32 %v4519, %v4520
  %v4522 = vsel %vm3247, %v2969, -inf
  %v4523 = vsel %vm3247, %v3044, -inf
  %v4524 = vmax.f32 %v4522, %v4523
  %v4525 = vsel %vm3247, %v3119, -inf
  %v4526 = vmax.f32 %v4524, %v4525
  %v4527 = vsel %vm3247, %v3194, -inf
  %v4528 = vmax.f32 %v4526, %v4527
  %v4529 = vsel %vm3247, %v2972, -inf
  %v4530 = vsel %vm3247, %v3047, -inf
  %v4531 = vmax.f32 %v4529, %v4530
  %v4532 = vsel %vm3247, %v3122, -inf
  %v4533 = vmax.f32 %v4531, %v4532
  %v4534 = vsel %vm3247, %v3197, -inf
  %v4535 = vmax.f32 %v4533, %v4534
  %v4536 = vsel %vm3247, %v2975, -inf
  %v4537 = vsel %vm3247, %v3050, -inf
  %v4538 = vmax.f32 %v4536, %v4537
  %v4539 = vsel %vm3247, %v3125, -inf
  %v4540 = vmax.f32 %v4538, %v4539
  %v4541 = vsel %vm3247, %v3200, -inf
  %v4542 = vmax.f32 %v4540, %v4541
  %v4543 = vsel %vm3247, %v2978, -inf
  %v4544 = vsel %vm3247, %v3053, -inf
  %v4545 = vmax.f32 %v4543, %v4544
  %v4546 = vsel %vm3247, %v3128, -inf
  %v4547 = vmax.f32 %v4545, %v4546
  %v4548 = vsel %vm3247, %v3203, -inf
  %v4549 = vmax.f32 %v4547, %v4548
  %v4550 = vsel %vm3247, %v2981, -inf
  %v4551 = vsel %vm3247, %v3056, -inf
  %v4552 = vmax.f32 %v4550, %v4551
  %v4553 = vsel %vm3247, %v3131, -inf
  %v4554 = vmax.f32 %v4552, %v4553
  %v4555 = vsel %vm3247, %v3206, -inf
  %v4556 = vmax.f32 %v4554, %v4555
  %v4557 = vsel %vm3247, %v2984, -inf
  %v4558 = vsel %vm3247, %v3059, -inf
  %v4559 = vmax.f32 %v4557, %v4558
  %v4560 = vsel %vm3247, %v3134, -inf
  %v4561 = vmax.f32 %v4559, %v4560
  %v4562 = vsel %vm3247, %v3209, -inf
  %v4563 = vmax.f32 %v4561, %v4562
  %v4564 = vsel %vm3247, %v2987, -inf
  %v4565 = vsel %vm3247, %v3062, -inf
  %v4566 = vmax.f32 %v4564, %v4565
  %v4567 = vsel %vm3247, %v3137, -inf
  %v4568 = vmax.f32 %v4566, %v4567
  %v4569 = vsel %vm3247, %v3212, -inf
  %v4570 = vmax.f32 %v4568, %v4569
  %v4571 = vsel %vm3247, %v2990, -inf
  %v4572 = vsel %vm3247, %v3065, -inf
  %v4573 = vmax.f32 %v4571, %v4572
  %v4574 = vsel %vm3247, %v3140, -inf
  %v4575 = vmax.f32 %v4573, %v4574
  %v4576 = vsel %vm3247, %v3215, -inf
  %v4577 = vmax.f32 %v4575, %v4576
  %v4578 = vsel %vm3247, %v2993, -inf
  %v4579 = vsel %vm3247, %v3068, -inf
  %v4580 = vmax.f32 %v4578, %v4579
  %v4581 = vsel %vm3247, %v3143, -inf
  %v4582 = vmax.f32 %v4580, %v4581
  %v4583 = vsel %vm3247, %v3218, -inf
  %v4584 = vmax.f32 %v4582, %v4583
  %v4585 = vsel %vm3247, %v2996, -inf
  %v4586 = vsel %vm3247, %v3071, -inf
  %v4587 = vmax.f32 %v4585, %v4586
  %v4588 = vsel %vm3247, %v3146, -inf
  %v4589 = vmax.f32 %v4587, %v4588
  %v4590 = vsel %vm3247, %v3221, -inf
  %v4591 = vmax.f32 %v4589, %v4590
  %v4592 = vsel %vm3247, %v2999, -inf
  %v4593 = vsel %vm3247, %v3074, -inf
  %v4594 = vmax.f32 %v4592, %v4593
  %v4595 = vsel %vm3247, %v3149, -inf
  %v4596 = vmax.f32 %v4594, %v4595
  %v4597 = vsel %vm3247, %v3224, -inf
  %v4598 = vmax.f32 %v4596, %v4597
  %v4599 = vsel %vm3247, %v3002, -inf
  %v4600 = vsel %vm3247, %v3077, -inf
  %v4601 = vmax.f32 %v4599, %v4600
  %v4602 = vsel %vm3247, %v3152, -inf
  %v4603 = vmax.f32 %v4601, %v4602
  %v4604 = vsel %vm3247, %v3227, -inf
  %v4605 = vmax.f32 %v4603, %v4604
  %v4606 = vsel %vm3247, %v3005, -inf
  %v4607 = vsel %vm3247, %v3080, -inf
  %v4608 = vmax.f32 %v4606, %v4607
  %v4609 = vsel %vm3247, %v3155, -inf
  %v4610 = vmax.f32 %v4608, %v4609
  %v4611 = vsel %vm3247, %v3230, -inf
  %v4612 = vmax.f32 %v4610, %v4611
  %v4613 = vsel %vm3247, %v3008, -inf
  %v4614 = vsel %vm3247, %v3083, -inf
  %v4615 = vmax.f32 %v4613, %v4614
  %v4616 = vsel %vm3247, %v3158, -inf
  %v4617 = vmax.f32 %v4615, %v4616
  %v4618 = vsel %vm3247, %v3233, -inf
  %v4619 = vmax.f32 %v4617, %v4618
  %v4620 = vsel %vm3247, %v3011, -inf
  %v4621 = vsel %vm3247, %v3086, -inf
  %v4622 = vmax.f32 %v4620, %v4621
  %v4623 = vsel %vm3247, %v3161, -inf
  %v4624 = vmax.f32 %v4622, %v4623
  %v4625 = vsel %vm3247, %v3236, -inf
  %v4626 = vmax.f32 %v4624, %v4625
  %v4627 = vsel %vm3247, %v3014, -inf
  %v4628 = vsel %vm3247, %v3089, -inf
  %v4629 = vmax.f32 %v4627, %v4628
  %v4630 = vsel %vm3247, %v3164, -inf
  %v4631 = vmax.f32 %v4629, %v4630
  %v4632 = vsel %vm3247, %v3239, -inf
  %v4633 = vmax.f32 %v4631, %v4632
  %v4634 = vsel %vm3247, %v3017, -inf
  %v4635 = vsel %vm3247, %v3092, -inf
  %v4636 = vmax.f32 %v4634, %v4635
  %v4637 = vsel %vm3247, %v3167, -inf
  %v4638 = vmax.f32 %v4636, %v4637
  %v4639 = vsel %vm3247, %v3242, -inf
  %v4640 = vmax.f32 %v4638, %v4639
  %v4641 = vsel %vm3247, %v3020, -inf
  %v4642 = vsel %vm3247, %v3095, -inf
  %v4643 = vmax.f32 %v4641, %v4642
  %v4644 = vsel %vm3247, %v3170, -inf
  %v4645 = vmax.f32 %v4643, %v4644
  %v4646 = vsel %vm3247, %v3245, -inf
  %v4647 = vmax.f32 %v4645, %v4646
  %v4648 = vld [vmem:[%s2] sm:$0x1]
  %v4650 = vperm.slane %v4648, 0
  %v4652 = vadd.f32 %v3254, %v4650
  %v4653 = vadd.f32 %v3261, %v4650
  %v4654 = vadd.f32 %v3268, %v4650
  %v4655 = vadd.f32 %v3275, %v4650
  %v4656 = vadd.f32 %v3282, %v4650
  %v4657 = vadd.f32 %v3289, %v4650
  %v4658 = vadd.f32 %v3296, %v4650
  %v4659 = vadd.f32 %v3303, %v4650
  %v4660 = vadd.f32 %v3310, %v4650
  %v4661 = vadd.f32 %v3317, %v4650
  %v4662 = vadd.f32 %v3324, %v4650
  %v4663 = vadd.f32 %v3331, %v4650
  %v4664 = vadd.f32 %v3338, %v4650
  %v4665 = vadd.f32 %v3345, %v4650
  %v4666 = vadd.f32 %v3352, %v4650
  %v4667 = vadd.f32 %v3359, %v4650
  %v4668 = vadd.f32 %v3366, %v4650
  %v4669 = vadd.f32 %v3373, %v4650
  %v4670 = vadd.f32 %v3380, %v4650
  %v4671 = vadd.f32 %v3387, %v4650
  %v4672 = vadd.f32 %v3394, %v4650
  %v4673 = vadd.f32 %v3401, %v4650
  %v4674 = vadd.f32 %v3408, %v4650
  %v4675 = vadd.f32 %v3415, %v4650
  %v4676 = vadd.f32 %v3422, %v4650
  %v4677 = vadd.f32 %v3429, %v4650
  %v4678 = vadd.f32 %v3436, %v4650
  %v4679 = vadd.f32 %v3443, %v4650
  %v4680 = vadd.f32 %v3450, %v4650
  %v4681 = vadd.f32 %v3457, %v4650
  %v4682 = vadd.f32 %v3464, %v4650
  %v4683 = vadd.f32 %v3471, %v4650
  %v4684 = vadd.f32 %v3478, %v4650
  %v4685 = vadd.f32 %v3485, %v4650
  %v4686 = vadd.f32 %v3492, %v4650
  %v4687 = vadd.f32 %v3499, %v4650
  %v4688 = vadd.f32 %v3506, %v4650
  %v4689 = vadd.f32 %v3513, %v4650
  %v4690 = vadd.f32 %v3520, %v4650
  %v4691 = vadd.f32 %v3527, %v4650
  %v4692 = vadd.f32 %v3534, %v4650
  %v4693 = vadd.f32 %v3541, %v4650
  %v4694 = vadd.f32 %v3548, %v4650
  %v4695 = vadd.f32 %v3555, %v4650
  %v4696 = vadd.f32 %v3562, %v4650
  %v4697 = vadd.f32 %v3569, %v4650
  %v4698 = vadd.f32 %v3576, %v4650
  %v4699 = vadd.f32 %v3583, %v4650
  %v4700 = vadd.f32 %v3590, %v4650
  %v4701 = vadd.f32 %v3597, %v4650
  %v4702 = vadd.f32 %v3604, %v4650
  %v4703 = vadd.f32 %v3611, %v4650
  %v4704 = vadd.f32 %v3618, %v4650
  %v4705 = vadd.f32 %v3625, %v4650
  %v4706 = vadd.f32 %v3632, %v4650
  %v4707 = vadd.f32 %v3639, %v4650
  %v4708 = vadd.f32 %v3646, %v4650
  %v4709 = vadd.f32 %v3653, %v4650
  %v4710 = vadd.f32 %v3660, %v4650
  %v4711 = vadd.f32 %v3667, %v4650
  %v4712 = vadd.f32 %v3674, %v4650
  %v4713 = vadd.f32 %v3681, %v4650
  %v4714 = vadd.f32 %v3688, %v4650
  %v4715 = vadd.f32 %v3695, %v4650
  %v4716 = vadd.f32 %v3702, %v4650
  %v4717 = vadd.f32 %v3709, %v4650
  %v4718 = vadd.f32 %v3716, %v4650
  %v4719 = vadd.f32 %v3723, %v4650
  %v4720 = vadd.f32 %v3730, %v4650
  %v4721 = vadd.f32 %v3737, %v4650
  %v4722 = vadd.f32 %v3744, %v4650
  %v4723 = vadd.f32 %v3751, %v4650
  %v4724 = vadd.f32 %v3758, %v4650
  %v4725 = vadd.f32 %v3765, %v4650
  %v4726 = vadd.f32 %v3772, %v4650
  %v4727 = vadd.f32 %v3779, %v4650
  %v4728 = vadd.f32 %v3786, %v4650
  %v4729 = vadd.f32 %v3793, %v4650
  %v4730 = vadd.f32 %v3800, %v4650
  %v4731 = vadd.f32 %v3807, %v4650
  %v4732 = vadd.f32 %v3814, %v4650
  %v4733 = vadd.f32 %v3821, %v4650
  %v4734 = vadd.f32 %v3828, %v4650
  %v4735 = vadd.f32 %v3835, %v4650
  %v4736 = vadd.f32 %v3842, %v4650
  %v4737 = vadd.f32 %v3849, %v4650
  %v4738 = vadd.f32 %v3856, %v4650
  %v4739 = vadd.f32 %v3863, %v4650
  %v4740 = vadd.f32 %v3870, %v4650
  %v4741 = vadd.f32 %v3877, %v4650
  %v4742 = vadd.f32 %v3884, %v4650
  %v4743 = vadd.f32 %v3891, %v4650
  %v4744 = vadd.f32 %v3898, %v4650
  %v4745 = vadd.f32 %v3905, %v4650
  %v4746 = vadd.f32 %v3912, %v4650
  %v4747 = vadd.f32 %v3919, %v4650
  %v4748 = vadd.f32 %v3926, %v4650
  %v4749 = vadd.f32 %v3933, %v4650
  %v4750 = vadd.f32 %v3940, %v4650
  %v4751 = vadd.f32 %v3947, %v4650
  %v4752 = vadd.f32 %v3954, %v4650
  %v4753 = vadd.f32 %v3961, %v4650
  %v4754 = vadd.f32 %v3968, %v4650
  %v4755 = vadd.f32 %v3975, %v4650
  %v4756 = vadd.f32 %v3982, %v4650
  %v4757 = vadd.f32 %v3989, %v4650
  %v4758 = vadd.f32 %v3996, %v4650
  %v4759 = vadd.f32 %v4003, %v4650
  %v4760 = vadd.f32 %v4010, %v4650
  %v4761 = vadd.f32 %v4017, %v4650
  %v4762 = vadd.f32 %v4024, %v4650
  %v4763 = vadd.f32 %v4031, %v4650
  %v4764 = vadd.f32 %v4038, %v4650
  %v4765 = vadd.f32 %v4045, %v4650
  %v4766 = vadd.f32 %v4052, %v4650
  %v4767 = vadd.f32 %v4059, %v4650
  %v4768 = vadd.f32 %v4066, %v4650
  %v4769 = vadd.f32 %v4073, %v4650
  %v4770 = vadd.f32 %v4080, %v4650
  %v4771 = vadd.f32 %v4087, %v4650
  %v4772 = vadd.f32 %v4094, %v4650
  %v4773 = vadd.f32 %v4101, %v4650
  %v4774 = vadd.f32 %v4108, %v4650
  %v4775 = vadd.f32 %v4115, %v4650
  %v4776 = vadd.f32 %v4122, %v4650
  %v4777 = vadd.f32 %v4129, %v4650
  %v4778 = vadd.f32 %v4136, %v4650
  %v4779 = vadd.f32 %v4143, %v4650
  %v4780 = vadd.f32 %v4150, %v4650
  %v4781 = vadd.f32 %v4157, %v4650
  %v4782 = vadd.f32 %v4164, %v4650
  %v4783 = vadd.f32 %v4171, %v4650
  %v4784 = vadd.f32 %v4178, %v4650
  %v4785 = vadd.f32 %v4185, %v4650
  %v4786 = vadd.f32 %v4192, %v4650
  %v4787 = vadd.f32 %v4199, %v4650
  %v4788 = vadd.f32 %v4206, %v4650
  %v4789 = vadd.f32 %v4213, %v4650
  %v4790 = vadd.f32 %v4220, %v4650
  %v4791 = vadd.f32 %v4227, %v4650
  %v4792 = vadd.f32 %v4234, %v4650
  %v4793 = vadd.f32 %v4241, %v4650
  %v4794 = vadd.f32 %v4248, %v4650
  %v4795 = vadd.f32 %v4255, %v4650
  %v4796 = vadd.f32 %v4262, %v4650
  %v4797 = vadd.f32 %v4269, %v4650
  %v4798 = vadd.f32 %v4276, %v4650
  %v4799 = vadd.f32 %v4283, %v4650
  %v4800 = vadd.f32 %v4290, %v4650
  %v4801 = vadd.f32 %v4297, %v4650
  %v4802 = vadd.f32 %v4304, %v4650
  %v4803 = vadd.f32 %v4311, %v4650
  %v4804 = vadd.f32 %v4318, %v4650
  %v4805 = vadd.f32 %v4325, %v4650
  %v4806 = vadd.f32 %v4332, %v4650
  %v4807 = vadd.f32 %v4339, %v4650
  %v4808 = vadd.f32 %v4346, %v4650
  %v4809 = vadd.f32 %v4353, %v4650
  %v4810 = vadd.f32 %v4360, %v4650
  %v4811 = vadd.f32 %v4367, %v4650
  %v4812 = vadd.f32 %v4374, %v4650
  %v4813 = vadd.f32 %v4381, %v4650
  %v4814 = vadd.f32 %v4388, %v4650
  %v4815 = vadd.f32 %v4395, %v4650
  %v4816 = vadd.f32 %v4402, %v4650
  %v4817 = vadd.f32 %v4409, %v4650
  %v4818 = vadd.f32 %v4416, %v4650
  %v4819 = vadd.f32 %v4423, %v4650
  %v4820 = vadd.f32 %v4430, %v4650
  %v4821 = vadd.f32 %v4437, %v4650
  %v4822 = vadd.f32 %v4444, %v4650
  %v4823 = vadd.f32 %v4451, %v4650
  %v4824 = vadd.f32 %v4458, %v4650
  %v4825 = vadd.f32 %v4465, %v4650
  %v4826 = vadd.f32 %v4472, %v4650
  %v4827 = vadd.f32 %v4479, %v4650
  %v4828 = vadd.f32 %v4486, %v4650
  %v4829 = vadd.f32 %v4493, %v4650
  %v4830 = vadd.f32 %v4500, %v4650
  %v4831 = vadd.f32 %v4507, %v4650
  %v4832 = vadd.f32 %v4514, %v4650
  %v4833 = vadd.f32 %v4521, %v4650
  %v4834 = vadd.f32 %v4528, %v4650
  %v4835 = vadd.f32 %v4535, %v4650
  %v4836 = vadd.f32 %v4542, %v4650
  %v4837 = vadd.f32 %v4549, %v4650
  %v4838 = vadd.f32 %v4556, %v4650
  %v4839 = vadd.f32 %v4563, %v4650
  %v4840 = vadd.f32 %v4570, %v4650
  %v4841 = vadd.f32 %v4577, %v4650
  %v4842 = vadd.f32 %v4584, %v4650
  %v4843 = vadd.f32 %v4591, %v4650
  %v4844 = vadd.f32 %v4598, %v4650
  %v4845 = vadd.f32 %v4605, %v4650
  %v4846 = vadd.f32 %v4612, %v4650
  %v4847 = vadd.f32 %v4619, %v4650
  %v4848 = vadd.f32 %v4626, %v4650
  %v4849 = vadd.f32 %v4633, %v4650
  %v4850 = vadd.f32 %v4640, %v4650
  %v4851 = vadd.f32 %v4647, %v4650
  %v4852 = vmax.f32 %v4652, 0.0
  %v4853 = vmax.f32 %v4653, 0.0
  %v4854 = vmax.f32 %v4654, 0.0
  %v4855 = vmax.f32 %v4655, 0.0
  %v4856 = vmax.f32 %v4656, 0.0
  %v4857 = vmax.f32 %v4657, 0.0
  %v4858 = vmax.f32 %v4658, 0.0
  %v4859 = vmax.f32 %v4659, 0.0
  %v4860 = vmax.f32 %v4660, 0.0
  %v4861 = vmax.f32 %v4661, 0.0
  %v4862 = vmax.f32 %v4662, 0.0
  %v4863 = vmax.f32 %v4663, 0.0
  %v4864 = vmax.f32 %v4664, 0.0
  %v4865 = vmax.f32 %v4665, 0.0
  %v4866 = vmax.f32 %v4666, 0.0
  %v4867 = vmax.f32 %v4667, 0.0
  %v4868 = vmax.f32 %v4668, 0.0
  %v4869 = vmax.f32 %v4669, 0.0
  %v4870 = vmax.f32 %v4670, 0.0
  %v4871 = vmax.f32 %v4671, 0.0
  %v4872 = vmax.f32 %v4672, 0.0
  %v4873 = vmax.f32 %v4673, 0.0
  %v4874 = vmax.f32 %v4674, 0.0
  %v4875 = vmax.f32 %v4675, 0.0
  %v4876 = vmax.f32 %v4676, 0.0
  %v4877 = vmax.f32 %v4677, 0.0
  %v4878 = vmax.f32 %v4678, 0.0
  %v4879 = vmax.f32 %v4679, 0.0
  %v4880 = vmax.f32 %v4680, 0.0
  %v4881 = vmax.f32 %v4681, 0.0
  %v4882 = vmax.f32 %v4682, 0.0
  %v4883 = vmax.f32 %v4683, 0.0
  %v4884 = vmax.f32 %v4684, 0.0
  %v4885 = vmax.f32 %v4685, 0.0
  %v4886 = vmax.f32 %v4686, 0.0
  %v4887 = vmax.f32 %v4687, 0.0
  %v4888 = vmax.f32 %v4688, 0.0
  %v4889 = vmax.f32 %v4689, 0.0
  %v4890 = vmax.f32 %v4690, 0.0
  %v4891 = vmax.f32 %v4691, 0.0
  %v4892 = vmax.f32 %v4692, 0.0
  %v4893 = vmax.f32 %v4693, 0.0
  %v4894 = vmax.f32 %v4694, 0.0
  %v4895 = vmax.f32 %v4695, 0.0
  %v4896 = vmax.f32 %v4696, 0.0
  %v4897 = vmax.f32 %v4697, 0.0
  %v4898 = vmax.f32 %v4698, 0.0
  %v4899 = vmax.f32 %v4699, 0.0
  %v4900 = vmax.f32 %v4700, 0.0
  %v4901 = vmax.f32 %v4701, 0.0
  %v4902 = vmax.f32 %v4702, 0.0
  %v4903 = vmax.f32 %v4703, 0.0
  %v4904 = vmax.f32 %v4704, 0.0
  %v4905 = vmax.f32 %v4705, 0.0
  %v4906 = vmax.f32 %v4706, 0.0
  %v4907 = vmax.f32 %v4707, 0.0
  %v4908 = vmax.f32 %v4708, 0.0
  %v4909 = vmax.f32 %v4709, 0.0
  %v4910 = vmax.f32 %v4710, 0.0
  %v4911 = vmax.f32 %v4711, 0.0
  %v4912 = vmax.f32 %v4712, 0.0
  %v4913 = vmax.f32 %v4713, 0.0
  %v4914 = vmax.f32 %v4714, 0.0
  %v4915 = vmax.f32 %v4715, 0.0
  %v4916 = vmax.f32 %v4716, 0.0
  %v4917 = vmax.f32 %v4717, 0.0
  %v4918 = vmax.f32 %v4718, 0.0
  %v4919 = vmax.f32 %v4719, 0.0
  %v4920 = vmax.f32 %v4720, 0.0
  %v4921 = vmax.f32 %v4721, 0.0
  %v4922 = vmax.f32 %v4722, 0.0
  %v4923 = vmax.f32 %v4723, 0.0
  %v4924 = vmax.f32 %v4724, 0.0
  %v4925 = vmax.f32 %v4725, 0.0
  %v4926 = vmax.f32 %v4726, 0.0
  %v4927 = vmax.f32 %v4727, 0.0
  %v4928 = vmax.f32 %v4728, 0.0
  %v4929 = vmax.f32 %v4729, 0.0
  %v4930 = vmax.f32 %v4730, 0.0
  %v4931 = vmax.f32 %v4731, 0.0
  %v4932 = vmax.f32 %v4732, 0.0
  %v4933 = vmax.f32 %v4733, 0.0
  %v4934 = vmax.f32 %v4734, 0.0
  %v4935 = vmax.f32 %v4735, 0.0
  %v4936 = vmax.f32 %v4736, 0.0
  %v4937 = vmax.f32 %v4737, 0.0
  %v4938 = vmax.f32 %v4738, 0.0
  %v4939 = vmax.f32 %v4739, 0.0
  %v4940 = vmax.f32 %v4740, 0.0
  %v4941 = vmax.f32 %v4741, 0.0
  %v4942 = vmax.f32 %v4742, 0.0
  %v4943 = vmax.f32 %v4743, 0.0
  %v4944 = vmax.f32 %v4744, 0.0
  %v4945 = vmax.f32 %v4745, 0.0
  %v4946 = vmax.f32 %v4746, 0.0
  %v4947 = vmax.f32 %v4747, 0.0
  %v4948 = vmax.f32 %v4748, 0.0
  %v4949 = vmax.f32 %v4749, 0.0
  %v4950 = vmax.f32 %v4750, 0.0
  %v4951 = vmax.f32 %v4751, 0.0
  %v4952 = vmax.f32 %v4752, 0.0
  %v4953 = vmax.f32 %v4753, 0.0
  %v4954 = vmax.f32 %v4754, 0.0
  %v4955 = vmax.f32 %v4755, 0.0
  %v4956 = vmax.f32 %v4756, 0.0
  %v4957 = vmax.f32 %v4757, 0.0
  %v4958 = vmax.f32 %v4758, 0.0
  %v4959 = vmax.f32 %v4759, 0.0
  %v4960 = vmax.f32 %v4760, 0.0
  %v4961 = vmax.f32 %v4761, 0.0
  %v4962 = vmax.f32 %v4762, 0.0
  %v4963 = vmax.f32 %v4763, 0.0
  %v4964 = vmax.f32 %v4764, 0.0
  %v4965 = vmax.f32 %v4765, 0.0
  %v4966 = vmax.f32 %v4766, 0.0
  %v4967 = vmax.f32 %v4767, 0.0
  %v4968 = vmax.f32 %v4768, 0.0
  %v4969 = vmax.f32 %v4769, 0.0
  %v4970 = vmax.f32 %v4770, 0.0
  %v4971 = vmax.f32 %v4771, 0.0
  %v4972 = vmax.f32 %v4772, 0.0
  %v4973 = vmax.f32 %v4773, 0.0
  %v4974 = vmax.f32 %v4774, 0.0
  %v4975 = vmax.f32 %v4775, 0.0
  %v4976 = vmax.f32 %v4776, 0.0
  %v4977 = vmax.f32 %v4777, 0.0
  %v4978 = vmax.f32 %v4778, 0.0
  %v4979 = vmax.f32 %v4779, 0.0
  %v4980 = vmax.f32 %v4780, 0.0
  %v4981 = vmax.f32 %v4781, 0.0
  %v4982 = vmax.f32 %v4782, 0.0
  %v4983 = vmax.f32 %v4783, 0.0
  %v4984 = vmax.f32 %v4784, 0.0
  %v4985 = vmax.f32 %v4785, 0.0
  %v4986 = vmax.f32 %v4786, 0.0
  %v4987 = vmax.f32 %v4787, 0.0
  %v4988 = vmax.f32 %v4788, 0.0
  %v4989 = vmax.f32 %v4789, 0.0
  %v4990 = vmax.f32 %v4790, 0.0
  %v4991 = vmax.f32 %v4791, 0.0
  %v4992 = vmax.f32 %v4792, 0.0
  %v4993 = vmax.f32 %v4793, 0.0
  %v4994 = vmax.f32 %v4794, 0.0
  %v4995 = vmax.f32 %v4795, 0.0
  %v4996 = vmax.f32 %v4796, 0.0
  %v4997 = vmax.f32 %v4797, 0.0
  %v4998 = vmax.f32 %v4798, 0.0
  %v4999 = vmax.f32 %v4799, 0.0
  %v5000 = vmax.f32 %v4800, 0.0
  %v5001 = vmax.f32 %v4801, 0.0
  %v5002 = vmax.f32 %v4802, 0.0
  %v5003 = vmax.f32 %v4803, 0.0
  %v5004 = vmax.f32 %v4804, 0.0
  %v5005 = vmax.f32 %v4805, 0.0
  %v5006 = vmax.f32 %v4806, 0.0
  %v5007 = vmax.f32 %v4807, 0.0
  %v5008 = vmax.f32 %v4808, 0.0
  %v5009 = vmax.f32 %v4809, 0.0
  %v5010 = vmax.f32 %v4810, 0.0
  %v5011 = vmax.f32 %v4811, 0.0
  %v5012 = vmax.f32 %v4812, 0.0
  %v5013 = vmax.f32 %v4813, 0.0
  %v5014 = vmax.f32 %v4814, 0.0
  %v5015 = vmax.f32 %v4815, 0.0
  %v5016 = vmax.f32 %v4816, 0.0
  %v5017 = vmax.f32 %v4817, 0.0
  %v5018 = vmax.f32 %v4818, 0.0
  %v5019 = vmax.f32 %v4819, 0.0
  %v5020 = vmax.f32 %v4820, 0.0
  %v5021 = vmax.f32 %v4821, 0.0
  %v5022 = vmax.f32 %v4822, 0.0
  %v5023 = vmax.f32 %v4823, 0.0
  %v5024 = vmax.f32 %v4824, 0.0
  %v5025 = vmax.f32 %v4825, 0.0
  %v5026 = vmax.f32 %v4826, 0.0
  %v5027 = vmax.f32 %v4827, 0.0
  %v5028 = vmax.f32 %v4828, 0.0
  %v5029 = vmax.f32 %v4829, 0.0
  %v5030 = vmax.f32 %v4830, 0.0
  %v5031 = vmax.f32 %v4831, 0.0
  %v5032 = vmax.f32 %v4832, 0.0
  %v5033 = vmax.f32 %v4833, 0.0
  %v5034 = vmax.f32 %v4834, 0.0
  %v5035 = vmax.f32 %v4835, 0.0
  %v5036 = vmax.f32 %v4836, 0.0
  %v5037 = vmax.f32 %v4837, 0.0
  %v5038 = vmax.f32 %v4838, 0.0
  %v5039 = vmax.f32 %v4839, 0.0
  %v5040 = vmax.f32 %v4840, 0.0
  %v5041 = vmax.f32 %v4841, 0.0
  %v5042 = vmax.f32 %v4842, 0.0
  %v5043 = vmax.f32 %v4843, 0.0
  %v5044 = vmax.f32 %v4844, 0.0
  %v5045 = vmax.f32 %v4845, 0.0
  %v5046 = vmax.f32 %v4846, 0.0
  %v5047 = vmax.f32 %v4847, 0.0
  %v5048 = vmax.f32 %v4848, 0.0
  %v5049 = vmax.f32 %v4849, 0.0
  %v5050 = vmax.f32 %v4850, 0.0
  %v5051 = vmax.f32 %v4851, 0.0
  %5052 = vst.msk [vmem:[%s3] sm:$0xff] %vm3247, %v4852
  %5053 = vst.msk [vmem:[%s3 + $0x8] sm:$0xff] %vm3247, %v4853
  %5054 = vst.msk [vmem:[%s3 + $0x10] sm:$0xff] %vm3247, %v4854
  %5055 = vst.msk [vmem:[%s3 + $0x18] sm:$0xff] %vm3247, %v4855
  %5056 = vst.msk [vmem:[%s3 + $0x20] sm:$0xff] %vm3247, %v4856
  %5057 = vst.msk [vmem:[%s3 + $0x28] sm:$0xff] %vm3247, %v4857
  %5058 = vst.msk [vmem:[%s3 + $0x30] sm:$0xff] %vm3247, %v4858
  %5059 = vst.msk [vmem:[%s3 + $0x38] sm:$0xff] %vm3247, %v4859
  %5060 = vst.msk [vmem:[%s3 + $0x40] sm:$0xff] %vm3247, %v4860
  %5061 = vst.msk [vmem:[%s3 + $0x48] sm:$0xff] %vm3247, %v4861
  %5062 = vst.msk [vmem:[%s3 + $0x50] sm:$0xff] %vm3247, %v4862
  %5063 = vst.msk [vmem:[%s3 + $0x58] sm:$0xff] %vm3247, %v4863
  %5064 = vst.msk [vmem:[%s3 + $0x60] sm:$0xff] %vm3247, %v4864
  %5065 = vst.msk [vmem:[%s3 + $0x68] sm:$0xff] %vm3247, %v4865
  %5066 = vst.msk [vmem:[%s3 + $0x70] sm:$0xff] %vm3247, %v4866
  %5067 = vst.msk [vmem:[%s3 + $0x78] sm:$0xff] %vm3247, %v4867
  %5068 = vst.msk [vmem:[%s3 + $0x80] sm:$0xff] %vm3247, %v4868
  %5069 = vst.msk [vmem:[%s3 + $0x88] sm:$0xff] %vm3247, %v4869
  %5070 = vst.msk [vmem:[%s3 + $0x90] sm:$0xff] %vm3247, %v4870
  %5071 = vst.msk [vmem:[%s3 + $0x98] sm:$0xff] %vm3247, %v4871
  %5072 = vst.msk [vmem:[%s3 + $0xa0] sm:$0xff] %vm3247, %v4872
  %5073 = vst.msk [vmem:[%s3 + $0xa8] sm:$0xff] %vm3247, %v4873
  %5074 = vst.msk [vmem:[%s3 + $0xb0] sm:$0xff] %vm3247, %v4874
  %5075 = vst.msk [vmem:[%s3 + $0xb8] sm:$0xff] %vm3247, %v4875
  %5076 = vst.msk [vmem:[%s3 + $0xc0] sm:$0xff] %vm3247, %v4876
  %5077 = vst.msk [vmem:[%s3 + $0xc8] sm:$0xff] %vm3247, %v4877
  %5078 = vst.msk [vmem:[%s3 + $0xd0] sm:$0xff] %vm3247, %v4878
  %5079 = vst.msk [vmem:[%s3 + $0xd8] sm:$0xff] %vm3247, %v4879
  %5080 = vst.msk [vmem:[%s3 + $0xe0] sm:$0xff] %vm3247, %v4880
  %5081 = vst.msk [vmem:[%s3 + $0xe8] sm:$0xff] %vm3247, %v4881
  %5082 = vst.msk [vmem:[%s3 + $0xf0] sm:$0xff] %vm3247, %v4882
  %5083 = vst.msk [vmem:[%s3 + $0xf8] sm:$0xff] %vm3247, %v4883
  %5084 = vst.msk [vmem:[%s3 + $0x100] sm:$0xff] %vm3247, %v4884
  %5085 = vst.msk [vmem:[%s3 + $0x108] sm:$0xff] %vm3247, %v4885
  %5086 = vst.msk [vmem:[%s3 + $0x110] sm:$0xff] %vm3247, %v4886
  %5087 = vst.msk [vmem:[%s3 + $0x118] sm:$0xff] %vm3247, %v4887
  %5088 = vst.msk [vmem:[%s3 + $0x120] sm:$0xff] %vm3247, %v4888
  %5089 = vst.msk [vmem:[%s3 + $0x128] sm:$0xff] %vm3247, %v4889
  %5090 = vst.msk [vmem:[%s3 + $0x130] sm:$0xff] %vm3247, %v4890
  %5091 = vst.msk [vmem:[%s3 + $0x138] sm:$0xff] %vm3247, %v4891
  %5092 = vst.msk [vmem:[%s3 + $0x140] sm:$0xff] %vm3247, %v4892
  %5093 = vst.msk [vmem:[%s3 + $0x148] sm:$0xff] %vm3247, %v4893
  %5094 = vst.msk [vmem:[%s3 + $0x150] sm:$0xff] %vm3247, %v4894
  %5095 = vst.msk [vmem:[%s3 + $0x158] sm:$0xff] %vm3247, %v4895
  %5096 = vst.msk [vmem:[%s3 + $0x160] sm:$0xff] %vm3247, %v4896
  %5097 = vst.msk [vmem:[%s3 + $0x168] sm:$0xff] %vm3247, %v4897
  %5098 = vst.msk [vmem:[%s3 + $0x170] sm:$0xff] %vm3247, %v4898
  %5099 = vst.msk [vmem:[%s3 + $0x178] sm:$0xff] %vm3247, %v4899
  %5100 = vst.msk [vmem:[%s3 + $0x180] sm:$0xff] %vm3247, %v4900
  %5101 = vst.msk [vmem:[%s3 + $0x188] sm:$0xff] %vm3247, %v4901
  %5102 = vst.msk [vmem:[%s3 + $0x190] sm:$0xff] %vm3247, %v4902
  %5103 = vst.msk [vmem:[%s3 + $0x198] sm:$0xff] %vm3247, %v4903
  %5104 = vst.msk [vmem:[%s3 + $0x1a0] sm:$0xff] %vm3247, %v4904
  %5105 = vst.msk [vmem:[%s3 + $0x1a8] sm:$0xff] %vm3247, %v4905
  %5106 = vst.msk [vmem:[%s3 + $0x1b0] sm:$0xff] %vm3247, %v4906
  %5107 = vst.msk [vmem:[%s3 + $0x1b8] sm:$0xff] %vm3247, %v4907
  %5108 = vst.msk [vmem:[%s3 + $0x1c0] sm:$0xff] %vm3247, %v4908
  %5109 = vst.msk [vmem:[%s3 + $0x1c8] sm:$0xff] %vm3247, %v4909
  %5110 = vst.msk [vmem:[%s3 + $0x1d0] sm:$0xff] %vm3247, %v4910
  %5111 = vst.msk [vmem:[%s3 + $0x1d8] sm:$0xff] %vm3247, %v4911
  %5112 = vst.msk [vmem:[%s3 + $0x1e0] sm:$0xff] %vm3247, %v4912
  %5113 = vst.msk [vmem:[%s3 + $0x1e8] sm:$0xff] %vm3247, %v4913
  %5114 = vst.msk [vmem:[%s3 + $0x1f0] sm:$0xff] %vm3247, %v4914
  %5115 = vst.msk [vmem:[%s3 + $0x1f8] sm:$0xff] %vm3247, %v4915
  %5116 = vst.msk [vmem:[%s3 + $0x200] sm:$0xff] %vm3247, %v4916
  %5117 = vst.msk [vmem:[%s3 + $0x208] sm:$0xff] %vm3247, %v4917
  %5118 = vst.msk [vmem:[%s3 + $0x210] sm:$0xff] %vm3247, %v4918
  %5119 = vst.msk [vmem:[%s3 + $0x218] sm:$0xff] %vm3247, %v4919
  %5120 = vst.msk [vmem:[%s3 + $0x220] sm:$0xff] %vm3247, %v4920
  %5121 = vst.msk [vmem:[%s3 + $0x228] sm:$0xff] %vm3247, %v4921
  %5122 = vst.msk [vmem:[%s3 + $0x230] sm:$0xff] %vm3247, %v4922
  %5123 = vst.msk [vmem:[%s3 + $0x238] sm:$0xff] %vm3247, %v4923
  %5124 = vst.msk [vmem:[%s3 + $0x240] sm:$0xff] %vm3247, %v4924
  %5125 = vst.msk [vmem:[%s3 + $0x248] sm:$0xff] %vm3247, %v4925
  %5126 = vst.msk [vmem:[%s3 + $0x250] sm:$0xff] %vm3247, %v4926
  %5127 = vst.msk [vmem:[%s3 + $0x258] sm:$0xff] %vm3247, %v4927
  %5128 = vst.msk [vmem:[%s3 + $0x260] sm:$0xff] %vm3247, %v4928
  %5129 = vst.msk [vmem:[%s3 + $0x268] sm:$0xff] %vm3247, %v4929
  %5130 = vst.msk [vmem:[%s3 + $0x270] sm:$0xff] %vm3247, %v4930
  %5131 = vst.msk [vmem:[%s3 + $0x278] sm:$0xff] %vm3247, %v4931
  %5132 = vst.msk [vmem:[%s3 + $0x280] sm:$0xff] %vm3247, %v4932
  %5133 = vst.msk [vmem:[%s3 + $0x288] sm:$0xff] %vm3247, %v4933
  %5134 = vst.msk [vmem:[%s3 + $0x290] sm:$0xff] %vm3247, %v4934
  %5135 = vst.msk [vmem:[%s3 + $0x298] sm:$0xff] %vm3247, %v4935
  %5136 = vst.msk [vmem:[%s3 + $0x2a0] sm:$0xff] %vm3247, %v4936
  %5137 = vst.msk [vmem:[%s3 + $0x2a8] sm:$0xff] %vm3247, %v4937
  %5138 = vst.msk [vmem:[%s3 + $0x2b0] sm:$0xff] %vm3247, %v4938
  %5139 = vst.msk [vmem:[%s3 + $0x2b8] sm:$0xff] %vm3247, %v4939
  %5140 = vst.msk [vmem:[%s3 + $0x2c0] sm:$0xff] %vm3247, %v4940
  %5141 = vst.msk [vmem:[%s3 + $0x2c8] sm:$0xff] %vm3247, %v4941
  %5142 = vst.msk [vmem:[%s3 + $0x2d0] sm:$0xff] %vm3247, %v4942
  %5143 = vst.msk [vmem:[%s3 + $0x2d8] sm:$0xff] %vm3247, %v4943
  %5144 = vst.msk [vmem:[%s3 + $0x2e0] sm:$0xff] %vm3247, %v4944
  %5145 = vst.msk [vmem:[%s3 + $0x2e8] sm:$0xff] %vm3247, %v4945
  %5146 = vst.msk [vmem:[%s3 + $0x2f0] sm:$0xff] %vm3247, %v4946
  %5147 = vst.msk [vmem:[%s3 + $0x2f8] sm:$0xff] %vm3247, %v4947
  %5148 = vst.msk [vmem:[%s3 + $0x300] sm:$0xff] %vm3247, %v4948
  %5149 = vst.msk [vmem:[%s3 + $0x308] sm:$0xff] %vm3247, %v4949
  %5150 = vst.msk [vmem:[%s3 + $0x310] sm:$0xff] %vm3247, %v4950
  %5151 = vst.msk [vmem:[%s3 + $0x318] sm:$0xff] %vm3247, %v4951
  %5152 = vst.msk [vmem:[%s3 + $0x320] sm:$0xff] %vm3247, %v4952
  %5153 = vst.msk [vmem:[%s3 + $0x328] sm:$0xff] %vm3247, %v4953
  %5154 = vst.msk [vmem:[%s3 + $0x330] sm:$0xff] %vm3247, %v4954
  %5155 = vst.msk [vmem:[%s3 + $0x338] sm:$0xff] %vm3247, %v4955
  %5156 = vst.msk [vmem:[%s3 + $0x340] sm:$0xff] %vm3247, %v4956
  %5157 = vst.msk [vmem:[%s3 + $0x348] sm:$0xff] %vm3247, %v4957
  %5158 = vst.msk [vmem:[%s3 + $0x350] sm:$0xff] %vm3247, %v4958
  %5159 = vst.msk [vmem:[%s3 + $0x358] sm:$0xff] %vm3247, %v4959
  %5160 = vst.msk [vmem:[%s3 + $0x360] sm:$0xff] %vm3247, %v4960
  %5161 = vst.msk [vmem:[%s3 + $0x368] sm:$0xff] %vm3247, %v4961
  %5162 = vst.msk [vmem:[%s3 + $0x370] sm:$0xff] %vm3247, %v4962
  %5163 = vst.msk [vmem:[%s3 + $0x378] sm:$0xff] %vm3247, %v4963
  %5164 = vst.msk [vmem:[%s3 + $0x380] sm:$0xff] %vm3247, %v4964
  %5165 = vst.msk [vmem:[%s3 + $0x388] sm:$0xff] %vm3247, %v4965
  %5166 = vst.msk [vmem:[%s3 + $0x390] sm:$0xff] %vm3247, %v4966
  %5167 = vst.msk [vmem:[%s3 + $0x398] sm:$0xff] %vm3247, %v4967
  %5168 = vst.msk [vmem:[%s3 + $0x3a0] sm:$0xff] %vm3247, %v4968
  %5169 = vst.msk [vmem:[%s3 + $0x3a8] sm:$0xff] %vm3247, %v4969
  %5170 = vst.msk [vmem:[%s3 + $0x3b0] sm:$0xff] %vm3247, %v4970
  %5171 = vst.msk [vmem:[%s3 + $0x3b8] sm:$0xff] %vm3247, %v4971
  %5172 = vst.msk [vmem:[%s3 + $0x3c0] sm:$0xff] %vm3247, %v4972
  %5173 = vst.msk [vmem:[%s3 + $0x3c8] sm:$0xff] %vm3247, %v4973
  %5174 = vst.msk [vmem:[%s3 + $0x3d0] sm:$0xff] %vm3247, %v4974
  %5175 = vst.msk [vmem:[%s3 + $0x3d8] sm:$0xff] %vm3247, %v4975
  %5176 = vst.msk [vmem:[%s3 + $0x3e0] sm:$0xff] %vm3247, %v4976
  %5177 = vst.msk [vmem:[%s3 + $0x3e8] sm:$0xff] %vm3247, %v4977
  %5178 = vst.msk [vmem:[%s3 + $0x3f0] sm:$0xff] %vm3247, %v4978
  %5179 = vst.msk [vmem:[%s3 + $0x3f8] sm:$0xff] %vm3247, %v4979
  %5180 = vst.msk [vmem:[%s3 + $0x400] sm:$0xff] %vm3247, %v4980
  %5181 = vst.msk [vmem:[%s3 + $0x408] sm:$0xff] %vm3247, %v4981
  %5182 = vst.msk [vmem:[%s3 + $0x410] sm:$0xff] %vm3247, %v4982
  %5183 = vst.msk [vmem:[%s3 + $0x418] sm:$0xff] %vm3247, %v4983
  %5184 = vst.msk [vmem:[%s3 + $0x420] sm:$0xff] %vm3247, %v4984
  %5185 = vst.msk [vmem:[%s3 + $0x428] sm:$0xff] %vm3247, %v4985
  %5186 = vst.msk [vmem:[%s3 + $0x430] sm:$0xff] %vm3247, %v4986
  %5187 = vst.msk [vmem:[%s3 + $0x438] sm:$0xff] %vm3247, %v4987
  %5188 = vst.msk [vmem:[%s3 + $0x440] sm:$0xff] %vm3247, %v4988
  %5189 = vst.msk [vmem:[%s3 + $0x448] sm:$0xff] %vm3247, %v4989
  %5190 = vst.msk [vmem:[%s3 + $0x450] sm:$0xff] %vm3247, %v4990
  %5191 = vst.msk [vmem:[%s3 + $0x458] sm:$0xff] %vm3247, %v4991
  %5192 = vst.msk [vmem:[%s3 + $0x460] sm:$0xff] %vm3247, %v4992
  %5193 = vst.msk [vmem:[%s3 + $0x468] sm:$0xff] %vm3247, %v4993
  %5194 = vst.msk [vmem:[%s3 + $0x470] sm:$0xff] %vm3247, %v4994
  %5195 = vst.msk [vmem:[%s3 + $0x478] sm:$0xff] %vm3247, %v4995
  %5196 = vst.msk [vmem:[%s3 + $0x480] sm:$0xff] %vm3247, %v4996
  %5197 = vst.msk [vmem:[%s3 + $0x488] sm:$0xff] %vm3247, %v4997
  %5198 = vst.msk [vmem:[%s3 + $0x490] sm:$0xff] %vm3247, %v4998
  %5199 = vst.msk [vmem:[%s3 + $0x498] sm:$0xff] %vm3247, %v4999
  %5200 = vst.msk [vmem:[%s3 + $0x4a0] sm:$0xff] %vm3247, %v5000
  %5201 = vst.msk [vmem:[%s3 + $0x4a8] sm:$0xff] %vm3247, %v5001
  %5202 = vst.msk [vmem:[%s3 + $0x4b0] sm:$0xff] %vm3247, %v5002
  %5203 = vst.msk [vmem:[%s3 + $0x4b8] sm:$0xff] %vm3247, %v5003
  %5204 = vst.msk [vmem:[%s3 + $0x4c0] sm:$0xff] %vm3247, %v5004
  %5205 = vst.msk [vmem:[%s3 + $0x4c8] sm:$0xff] %vm3247, %v5005
  %5206 = vst.msk [vmem:[%s3 + $0x4d0] sm:$0xff] %vm3247, %v5006
  %5207 = vst.msk [vmem:[%s3 + $0x4d8] sm:$0xff] %vm3247, %v5007
  %5208 = vst.msk [vmem:[%s3 + $0x4e0] sm:$0xff] %vm3247, %v5008
  %5209 = vst.msk [vmem:[%s3 + $0x4e8] sm:$0xff] %vm3247, %v5009
  %5210 = vst.msk [vmem:[%s3 + $0x4f0] sm:$0xff] %vm3247, %v5010
  %5211 = vst.msk [vmem:[%s3 + $0x4f8] sm:$0xff] %vm3247, %v5011
  %5212 = vst.msk [vmem:[%s3 + $0x500] sm:$0xff] %vm3247, %v5012
  %5213 = vst.msk [vmem:[%s3 + $0x508] sm:$0xff] %vm3247, %v5013
  %5214 = vst.msk [vmem:[%s3 + $0x510] sm:$0xff] %vm3247, %v5014
  %5215 = vst.msk [vmem:[%s3 + $0x518] sm:$0xff] %vm3247, %v5015
  %5216 = vst.msk [vmem:[%s3 + $0x520] sm:$0xff] %vm3247, %v5016
  %5217 = vst.msk [vmem:[%s3 + $0x528] sm:$0xff] %vm3247, %v5017
  %5218 = vst.msk [vmem:[%s3 + $0x530] sm:$0xff] %vm3247, %v5018
  %5219 = vst.msk [vmem:[%s3 + $0x538] sm:$0xff] %vm3247, %v5019
  %5220 = vst.msk [vmem:[%s3 + $0x540] sm:$0xff] %vm3247, %v5020
  %5221 = vst.msk [vmem:[%s3 + $0x548] sm:$0xff] %vm3247, %v5021
  %5222 = vst.msk [vmem:[%s3 + $0x550] sm:$0xff] %vm3247, %v5022
  %5223 = vst.msk [vmem:[%s3 + $0x558] sm:$0xff] %vm3247, %v5023
  %5224 = vst.msk [vmem:[%s3 + $0x560] sm:$0xff] %vm3247, %v5024
  %5225 = vst.msk [vmem:[%s3 + $0x568] sm:$0xff] %vm3247, %v5025
  %5226 = vst.msk [vmem:[%s3 + $0x570] sm:$0xff] %vm3247, %v5026
  %5227 = vst.msk [vmem:[%s3 + $0x578] sm:$0xff] %vm3247, %v5027
  %5228 = vst.msk [vmem:[%s3 + $0x580] sm:$0xff] %vm3247, %v5028
  %5229 = vst.msk [vmem:[%s3 + $0x588] sm:$0xff] %vm3247, %v5029
  %5230 = vst.msk [vmem:[%s3 + $0x590] sm:$0xff] %vm3247, %v5030
  %5231 = vst.msk [vmem:[%s3 + $0x598] sm:$0xff] %vm3247, %v5031
  %5232 = vst.msk [vmem:[%s3 + $0x5a0] sm:$0xff] %vm3247, %v5032
  %5233 = vst.msk [vmem:[%s3 + $0x5a8] sm:$0xff] %vm3247, %v5033
  %5234 = vst.msk [vmem:[%s3 + $0x5b0] sm:$0xff] %vm3247, %v5034
  %5235 = vst.msk [vmem:[%s3 + $0x5b8] sm:$0xff] %vm3247, %v5035
  %5236 = vst.msk [vmem:[%s3 + $0x5c0] sm:$0xff] %vm3247, %v5036
  %5237 = vst.msk [vmem:[%s3 + $0x5c8] sm:$0xff] %vm3247, %v5037
  %5238 = vst.msk [vmem:[%s3 + $0x5d0] sm:$0xff] %vm3247, %v5038
  %5239 = vst.msk [vmem:[%s3 + $0x5d8] sm:$0xff] %vm3247, %v5039
  %5240 = vst.msk [vmem:[%s3 + $0x5e0] sm:$0xff] %vm3247, %v5040
  %5241 = vst.msk [vmem:[%s3 + $0x5e8] sm:$0xff] %vm3247, %v5041
  %5242 = vst.msk [vmem:[%s3 + $0x5f0] sm:$0xff] %vm3247, %v5042
  %5243 = vst.msk [vmem:[%s3 + $0x5f8] sm:$0xff] %vm3247, %v5043
  %5244 = vst.msk [vmem:[%s3 + $0x600] sm:$0xff] %vm3247, %v5044
  %5245 = vst.msk [vmem:[%s3 + $0x608] sm:$0xff] %vm3247, %v5045
  %5246 = vst.msk [vmem:[%s3 + $0x610] sm:$0xff] %vm3247, %v5046
  %5247 = vst.msk [vmem:[%s3 + $0x618] sm:$0xff] %vm3247, %v5047
  %5248 = vst.msk [vmem:[%s3 + $0x620] sm:$0xff] %vm3247, %v5048
  %5249 = vst.msk [vmem:[%s3 + $0x628] sm:$0xff] %vm3247, %v5049
  %5250 = vst.msk [vmem:[%s3 + $0x630] sm:$0xff] %vm3247, %v5050
  %5251 = vst.msk [vmem:[%s3 + $0x638] sm:$0xff] %vm3247, %v5051
  // Predicated region
  $region14: #{svhn_classifier_forward.3} parent=0 // pred_check
    _
  $region15: #{svhn_classifier_forward.3} parent=0 // pred_check_branch
    %5253 = sbr.rel (0) target = $region17
  $region16: #{svhn_classifier_forward.3} parent=0 // pred_region
    _
  $region17: #{svhn_classifier_forward.3} parent=0 // pred_fallthru
    _
  // Predicated region
  $region18: #{svhn_classifier_forward.3} parent=0 // pred_check
    _
  $region19: #{svhn_classifier_forward.3} parent=0 // pred_check_branch
    %5255 = sbr.rel (0) target = $region21
  $region20: #{svhn_classifier_forward.3} parent=0 // pred_region
    _
  $region21: #{svhn_classifier_forward.3} parent=0 // pred_fallthru
    _

// kernel: svhn_classifier_forward.4
$region0: #{svhn_classifier_forward.4}
  #allocation0 [shape = 'u32[]', space=smem, size = 0x4, offset = 0x4, fixed_abs, tag = 'smem constant byte address 0x4 - core index']
  #allocation1 [shape = 'u32[72,128]{1,0:T(1,128)}', space=vmem, size = 0x9000, scoped, tag = 'internal scratch']
  %s0 = inlined_call_operand.vmem [shape: f32[1024,256], index: 0, kind: input, shape index: {}]
  %s1 = inlined_call_operand.vmem [shape: f32[256,20], index: 1, kind: input, shape index: {}]
  %s2 = inlined_call_operand.vmem [shape: f32[1,20], index: 2, kind: input, shape index: {}]
  %s3 = inlined_call_operand.vmem [shape: f32[8,32,20], index: 3, kind: output, shape index: {}]
  %s4 = sld [smem:[#allocation0]]
  $region22: #{svhn_classifier_forward.4} parent=0
    _
  %s6 = ssub.s32 1, %s4
  %s7 = scalar_select 0, %s6, %s4
  // Predicated region
  $region2: #{svhn_classifier_forward.4} parent=0 // pred_check
    _
  $region3: #{svhn_classifier_forward.4} parent=0 // pred_check_branch
    %9 = sbr.rel (0) target = $region5
  $region4: #{svhn_classifier_forward.4} parent=0 // pred_region
    _
  $region5: #{svhn_classifier_forward.4} parent=0 // pred_fallthru
    _
  // Predicated region
  $region6: #{svhn_classifier_forward.4} parent=0 // pred_check
    _
  $region7: #{svhn_classifier_forward.4} parent=0 // pred_check_branch
    %11 = sbr.rel (0) target = $region9
  $region8: #{svhn_classifier_forward.4} parent=0 // pred_region
    _
  $region9: #{svhn_classifier_forward.4} parent=0 // pred_fallthru
    _
  // Predicated region
  $region10: #{svhn_classifier_forward.4} parent=0 // pred_check
    _
  $region11: #{svhn_classifier_forward.4} parent=0 // pred_check_branch
    %13 = sbr.rel (0) target = $region13
  $region12: #{svhn_classifier_forward.4} parent=0 // pred_region
    _
  $region13: #{svhn_classifier_forward.4} parent=0 // pred_fallthru
    _
  %v14 = vld [vmem:[%s0] sm:$0xff]
  %v15 = vld [vmem:[%s0 + $0x8] sm:$0xff]
  %v16 = vld [vmem:[%s0 + $0x10] sm:$0xff]
  %v17 = vld [vmem:[%s0 + $0x18] sm:$0xff]
  %v18 = vld [vmem:[%s0 + $0x20] sm:$0xff]
  %v19 = vld [vmem:[%s0 + $0x28] sm:$0xff]
  %v20 = vld [vmem:[%s0 + $0x30] sm:$0xff]
  %v21 = vld [vmem:[%s0 + $0x38] sm:$0xff]
  %v22 = vld [vmem:[%s0 + $0x40] sm:$0xff]
  %v23 = vld [vmem:[%s0 + $0x48] sm:$0xff]
  %v24 = vld [vmem:[%s0 + $0x50] sm:$0xff]
  %v25 = vld [vmem:[%s0 + $0x58] sm:$0xff]
  %v26 = vld [vmem:[%s0 + $0x60] sm:$0xff]
  %v27 = vld [vmem:[%s0 + $0x68] sm:$0xff]
  %v28 = vld [vmem:[%s0 + $0x70] sm:$0xff]
  %v29 = vld [vmem:[%s0 + $0x78] sm:$0xff]
  %v30 = vld [vmem:[%s0 + $0x80] sm:$0xff]
  %v31 = vld [vmem:[%s0 + $0x88] sm:$0xff]
  %v32 = vld [vmem:[%s0 + $0x90] sm:$0xff]
  %v33 = vld [vmem:[%s0 + $0x98] sm:$0xff]
  %v34 = vld [vmem:[%s0 + $0xa0] sm:$0xff]
  %v35 = vld [vmem:[%s0 + $0xa8] sm:$0xff]
  %v36 = vld [vmem:[%s0 + $0xb0] sm:$0xff]
  %v37 = vld [vmem:[%s0 + $0xb8] sm:$0xff]
  %v38 = vld [vmem:[%s0 + $0xc0] sm:$0xff]
  %v39 = vld [vmem:[%s0 + $0xc8] sm:$0xff]
  %v40 = vld [vmem:[%s0 + $0xd0] sm:$0xff]
  %v41 = vld [vmem:[%s0 + $0xd8] sm:$0xff]
  %v42 = vld [vmem:[%s0 + $0xe0] sm:$0xff]
  %v43 = vld [vmem:[%s0 + $0xe8] sm:$0xff]
  %v44 = vld [vmem:[%s0 + $0xf0] sm:$0xff]
  %v45 = vld [vmem:[%s0 + $0xf8] sm:$0xff]
  %v46 = vld [vmem:[%s0 + $0x100] sm:$0xff]
  %v47 = vld [vmem:[%s0 + $0x108] sm:$0xff]
  %v48 = vld [vmem:[%s0 + $0x110] sm:$0xff]
  %v49 = vld [vmem:[%s0 + $0x118] sm:$0xff]
  %v50 = vld [vmem:[%s0 + $0x120] sm:$0xff]
  %v51 = vld [vmem:[%s0 + $0x128] sm:$0xff]
  %v52 = vld [vmem:[%s0 + $0x130] sm:$0xff]
  %v53 = vld [vmem:[%s0 + $0x138] sm:$0xff]
  %v54 = vld [vmem:[%s0 + $0x140] sm:$0xff]
  %v55 = vld [vmem:[%s0 + $0x148] sm:$0xff]
  %v56 = vld [vmem:[%s0 + $0x150] sm:$0xff]
  %v57 = vld [vmem:[%s0 + $0x158] sm:$0xff]
  %v58 = vld [vmem:[%s0 + $0x160] sm:$0xff]
  %v59 = vld [vmem:[%s0 + $0x168] sm:$0xff]
  %v60 = vld [vmem:[%s0 + $0x170] sm:$0xff]
  %v61 = vld [vmem:[%s0 + $0x178] sm:$0xff]
  %v62 = vld [vmem:[%s0 + $0x180] sm:$0xff]
  %v63 = vld [vmem:[%s0 + $0x188] sm:$0xff]
  %v64 = vld [vmem:[%s0 + $0x190] sm:$0xff]
  %v65 = vld [vmem:[%s0 + $0x198] sm:$0xff]
  %v66 = vld [vmem:[%s0 + $0x1a0] sm:$0xff]
  %v67 = vld [vmem:[%s0 + $0x1a8] sm:$0xff]
  %v68 = vld [vmem:[%s0 + $0x1b0] sm:$0xff]
  %v69 = vld [vmem:[%s0 + $0x1b8] sm:$0xff]
  %v70 = vld [vmem:[%s0 + $0x1c0] sm:$0xff]
  %v71 = vld [vmem:[%s0 + $0x1c8] sm:$0xff]
  %v72 = vld [vmem:[%s0 + $0x1d0] sm:$0xff]
  %v73 = vld [vmem:[%s0 + $0x1d8] sm:$0xff]
  %v74 = vld [vmem:[%s0 + $0x1e0] sm:$0xff]
  %v75 = vld [vmem:[%s0 + $0x1e8] sm:$0xff]
  %v76 = vld [vmem:[%s0 + $0x1f0] sm:$0xff]
  %v77 = vld [vmem:[%s0 + $0x1f8] sm:$0xff]
  %v78 = vld [vmem:[%s0 + $0x200] sm:$0xff]
  %v79 = vld [vmem:[%s0 + $0x208] sm:$0xff]
  %v80 = vld [vmem:[%s0 + $0x210] sm:$0xff]
  %v81 = vld [vmem:[%s0 + $0x218] sm:$0xff]
  %v82 = vld [vmem:[%s0 + $0x220] sm:$0xff]
  %v83 = vld [vmem:[%s0 + $0x228] sm:$0xff]
  %v84 = vld [vmem:[%s0 + $0x230] sm:$0xff]
  %v85 = vld [vmem:[%s0 + $0x238] sm:$0xff]
  %v86 = vld [vmem:[%s0 + $0x240] sm:$0xff]
  %v87 = vld [vmem:[%s0 + $0x248] sm:$0xff]
  %v88 = vld [vmem:[%s0 + $0x250] sm:$0xff]
  %v89 = vld [vmem:[%s0 + $0x258] sm:$0xff]
  %v90 = vld [vmem:[%s0 + $0x260] sm:$0xff]
  %v91 = vld [vmem:[%s0 + $0x268] sm:$0xff]
  %v92 = vld [vmem:[%s0 + $0x270] sm:$0xff]
  %v93 = vld [vmem:[%s0 + $0x278] sm:$0xff]
  %v94 = vld [vmem:[%s0 + $0x280] sm:$0xff]
  %v95 = vld [vmem:[%s0 + $0x288] sm:$0xff]
  %v96 = vld [vmem:[%s0 + $0x290] sm:$0xff]
  %v97 = vld [vmem:[%s0 + $0x298] sm:$0xff]
  %v98 = vld [vmem:[%s0 + $0x2a0] sm:$0xff]
  %v99 = vld [vmem:[%s0 + $0x2a8] sm:$0xff]
  %v100 = vld [vmem:[%s0 + $0x2b0] sm:$0xff]
  %v101 = vld [vmem:[%s0 + $0x2b8] sm:$0xff]
  %v102 = vld [vmem:[%s0 + $0x2c0] sm:$0xff]
  %v103 = vld [vmem:[%s0 + $0x2c8] sm:$0xff]
  %v104 = vld [vmem:[%s0 + $0x2d0] sm:$0xff]
  %v105 = vld [vmem:[%s0 + $0x2d8] sm:$0xff]
  %v106 = vld [vmem:[%s0 + $0x2e0] sm:$0xff]
  %v107 = vld [vmem:[%s0 + $0x2e8] sm:$0xff]
  %v108 = vld [vmem:[%s0 + $0x2f0] sm:$0xff]
  %v109 = vld [vmem:[%s0 + $0x2f8] sm:$0xff]
  %v110 = vld [vmem:[%s0 + $0x300] sm:$0xff]
  %v111 = vld [vmem:[%s0 + $0x308] sm:$0xff]
  %v112 = vld [vmem:[%s0 + $0x310] sm:$0xff]
  %v113 = vld [vmem:[%s0 + $0x318] sm:$0xff]
  %v114 = vld [vmem:[%s0 + $0x320] sm:$0xff]
  %v115 = vld [vmem:[%s0 + $0x328] sm:$0xff]
  %v116 = vld [vmem:[%s0 + $0x330] sm:$0xff]
  %v117 = vld [vmem:[%s0 + $0x338] sm:$0xff]
  %v118 = vld [vmem:[%s0 + $0x340] sm:$0xff]
  %v119 = vld [vmem:[%s0 + $0x348] sm:$0xff]
  %v120 = vld [vmem:[%s0 + $0x350] sm:$0xff]
  %v121 = vld [vmem:[%s0 + $0x358] sm:$0xff]
  %v122 = vld [vmem:[%s0 + $0x360] sm:$0xff]
  %v123 = vld [vmem:[%s0 + $0x368] sm:$0xff]
  %v124 = vld [vmem:[%s0 + $0x370] sm:$0xff]
  %v125 = vld [vmem:[%s0 + $0x378] sm:$0xff]
  %v126 = vld [vmem:[%s0 + $0x380] sm:$0xff]
  %v127 = vld [vmem:[%s0 + $0x388] sm:$0xff]
  %v128 = vld [vmem:[%s0 + $0x390] sm:$0xff]
  %v129 = vld [vmem:[%s0 + $0x398] sm:$0xff]
  %v130 = vld [vmem:[%s0 + $0x3a0] sm:$0xff]
  %v131 = vld [vmem:[%s0 + $0x3a8] sm:$0xff]
  %v132 = vld [vmem:[%s0 + $0x3b0] sm:$0xff]
  %v133 = vld [vmem:[%s0 + $0x3b8] sm:$0xff]
  %v134 = vld [vmem:[%s0 + $0x3c0] sm:$0xff]
  %v135 = vld [vmem:[%s0 + $0x3c8] sm:$0xff]
  %v136 = vld [vmem:[%s0 + $0x3d0] sm:$0xff]
  %v137 = vld [vmem:[%s0 + $0x3d8] sm:$0xff]
  %v138 = vld [vmem:[%s0 + $0x3e0] sm:$0xff]
  %v139 = vld [vmem:[%s0 + $0x3e8] sm:$0xff]
  %v140 = vld [vmem:[%s0 + $0x3f0] sm:$0xff]
  %v141 = vld [vmem:[%s0 + $0x3f8] sm:$0xff]
  %v142 = vld [vmem:[%s0 + $0x400] sm:$0xff]
  %v143 = vld [vmem:[%s0 + $0x408] sm:$0xff]
  %v144 = vld [vmem:[%s0 + $0x410] sm:$0xff]
  %v145 = vld [vmem:[%s0 + $0x418] sm:$0xff]
  %v146 = vld [vmem:[%s0 + $0x420] sm:$0xff]
  %v147 = vld [vmem:[%s0 + $0x428] sm:$0xff]
  %v148 = vld [vmem:[%s0 + $0x430] sm:$0xff]
  %v149 = vld [vmem:[%s0 + $0x438] sm:$0xff]
  %v150 = vld [vmem:[%s0 + $0x440] sm:$0xff]
  %v151 = vld [vmem:[%s0 + $0x448] sm:$0xff]
  %v152 = vld [vmem:[%s0 + $0x450] sm:$0xff]
  %v153 = vld [vmem:[%s0 + $0x458] sm:$0xff]
  %v154 = vld [vmem:[%s0 + $0x460] sm:$0xff]
  %v155 = vld [vmem:[%s0 + $0x468] sm:$0xff]
  %v156 = vld [vmem:[%s0 + $0x470] sm:$0xff]
  %v157 = vld [vmem:[%s0 + $0x478] sm:$0xff]
  %v158 = vld [vmem:[%s0 + $0x480] sm:$0xff]
  %v159 = vld [vmem:[%s0 + $0x488] sm:$0xff]
  %v160 = vld [vmem:[%s0 + $0x490] sm:$0xff]
  %v161 = vld [vmem:[%s0 + $0x498] sm:$0xff]
  %v162 = vld [vmem:[%s0 + $0x4a0] sm:$0xff]
  %v163 = vld [vmem:[%s0 + $0x4a8] sm:$0xff]
  %v164 = vld [vmem:[%s0 + $0x4b0] sm:$0xff]
  %v165 = vld [vmem:[%s0 + $0x4b8] sm:$0xff]
  %v166 = vld [vmem:[%s0 + $0x4c0] sm:$0xff]
  %v167 = vld [vmem:[%s0 + $0x4c8] sm:$0xff]
  %v168 = vld [vmem:[%s0 + $0x4d0] sm:$0xff]
  %v169 = vld [vmem:[%s0 + $0x4d8] sm:$0xff]
  %v170 = vld [vmem:[%s0 + $0x4e0] sm:$0xff]
  %v171 = vld [vmem:[%s0 + $0x4e8] sm:$0xff]
  %v172 = vld [vmem:[%s0 + $0x4f0] sm:$0xff]
  %v173 = vld [vmem:[%s0 + $0x4f8] sm:$0xff]
  %v174 = vld [vmem:[%s0 + $0x500] sm:$0xff]
  %v175 = vld [vmem:[%s0 + $0x508] sm:$0xff]
  %v176 = vld [vmem:[%s0 + $0x510] sm:$0xff]
  %v177 = vld [vmem:[%s0 + $0x518] sm:$0xff]
  %v178 = vld [vmem:[%s0 + $0x520] sm:$0xff]
  %v179 = vld [vmem:[%s0 + $0x528] sm:$0xff]
  %v180 = vld [vmem:[%s0 + $0x530] sm:$0xff]
  %v181 = vld [vmem:[%s0 + $0x538] sm:$0xff]
  %v182 = vld [vmem:[%s0 + $0x540] sm:$0xff]
  %v183 = vld [vmem:[%s0 + $0x548] sm:$0xff]
  %v184 = vld [vmem:[%s0 + $0x550] sm:$0xff]
  %v185 = vld [vmem:[%s0 + $0x558] sm:$0xff]
  %v186 = vld [vmem:[%s0 + $0x560] sm:$0xff]
  %v187 = vld [vmem:[%s0 + $0x568] sm:$0xff]
  %v188 = vld [vmem:[%s0 + $0x570] sm:$0xff]
  %v189 = vld [vmem:[%s0 + $0x578] sm:$0xff]
  %v190 = vld [vmem:[%s0 + $0x580] sm:$0xff]
  %v191 = vld [vmem:[%s0 + $0x588] sm:$0xff]
  %v192 = vld [vmem:[%s0 + $0x590] sm:$0xff]
  %v193 = vld [vmem:[%s0 + $0x598] sm:$0xff]
  %v194 = vld [vmem:[%s0 + $0x5a0] sm:$0xff]
  %v195 = vld [vmem:[%s0 + $0x5a8] sm:$0xff]
  %v196 = vld [vmem:[%s0 + $0x5b0] sm:$0xff]
  %v197 = vld [vmem:[%s0 + $0x5b8] sm:$0xff]
  %v198 = vld [vmem:[%s0 + $0x5c0] sm:$0xff]
  %v199 = vld [vmem:[%s0 + $0x5c8] sm:$0xff]
  %v200 = vld [vmem:[%s0 + $0x5d0] sm:$0xff]
  %v201 = vld [vmem:[%s0 + $0x5d8] sm:$0xff]
  %v202 = vld [vmem:[%s0 + $0x5e0] sm:$0xff]
  %v203 = vld [vmem:[%s0 + $0x5e8] sm:$0xff]
  %v204 = vld [vmem:[%s0 + $0x5f0] sm:$0xff]
  %v205 = vld [vmem:[%s0 + $0x5f8] sm:$0xff]
  %v206 = vld [vmem:[%s0 + $0x600] sm:$0xff]
  %v207 = vld [vmem:[%s0 + $0x608] sm:$0xff]
  %v208 = vld [vmem:[%s0 + $0x610] sm:$0xff]
  %v209 = vld [vmem:[%s0 + $0x618] sm:$0xff]
  %v210 = vld [vmem:[%s0 + $0x620] sm:$0xff]
  %v211 = vld [vmem:[%s0 + $0x628] sm:$0xff]
  %v212 = vld [vmem:[%s0 + $0x630] sm:$0xff]
  %v213 = vld [vmem:[%s0 + $0x638] sm:$0xff]
  %v214 = vld [vmem:[%s0 + $0x640] sm:$0xff]
  %v215 = vld [vmem:[%s0 + $0x648] sm:$0xff]
  %v216 = vld [vmem:[%s0 + $0x650] sm:$0xff]
  %v217 = vld [vmem:[%s0 + $0x658] sm:$0xff]
  %v218 = vld [vmem:[%s0 + $0x660] sm:$0xff]
  %v219 = vld [vmem:[%s0 + $0x668] sm:$0xff]
  %v220 = vld [vmem:[%s0 + $0x670] sm:$0xff]
  %v221 = vld [vmem:[%s0 + $0x678] sm:$0xff]
  %v222 = vld [vmem:[%s0 + $0x680] sm:$0xff]
  %v223 = vld [vmem:[%s0 + $0x688] sm:$0xff]
  %v224 = vld [vmem:[%s0 + $0x690] sm:$0xff]
  %v225 = vld [vmem:[%s0 + $0x698] sm:$0xff]
  %v226 = vld [vmem:[%s0 + $0x6a0] sm:$0xff]
  %v227 = vld [vmem:[%s0 + $0x6a8] sm:$0xff]
  %v228 = vld [vmem:[%s0 + $0x6b0] sm:$0xff]
  %v229 = vld [vmem:[%s0 + $0x6b8] sm:$0xff]
  %v230 = vld [vmem:[%s0 + $0x6c0] sm:$0xff]
  %v231 = vld [vmem:[%s0 + $0x6c8] sm:$0xff]
  %v232 = vld [vmem:[%s0 + $0x6d0] sm:$0xff]
  %v233 = vld [vmem:[%s0 + $0x6d8] sm:$0xff]
  %v234 = vld [vmem:[%s0 + $0x6e0] sm:$0xff]
  %v235 = vld [vmem:[%s0 + $0x6e8] sm:$0xff]
  %v236 = vld [vmem:[%s0 + $0x6f0] sm:$0xff]
  %v237 = vld [vmem:[%s0 + $0x6f8] sm:$0xff]
  %v238 = vld [vmem:[%s0 + $0x700] sm:$0xff]
  %v239 = vld [vmem:[%s0 + $0x708] sm:$0xff]
  %v240 = vld [vmem:[%s0 + $0x710] sm:$0xff]
  %v241 = vld [vmem:[%s0 + $0x718] sm:$0xff]
  %v242 = vld [vmem:[%s0 + $0x720] sm:$0xff]
  %v243 = vld [vmem:[%s0 + $0x728] sm:$0xff]
  %v244 = vld [vmem:[%s0 + $0x730] sm:$0xff]
  %v245 = vld [vmem:[%s0 + $0x738] sm:$0xff]
  %v246 = vld [vmem:[%s0 + $0x740] sm:$0xff]
  %v247 = vld [vmem:[%s0 + $0x748] sm:$0xff]
  %v248 = vld [vmem:[%s0 + $0x750] sm:$0xff]
  %v249 = vld [vmem:[%s0 + $0x758] sm:$0xff]
  %v250 = vld [vmem:[%s0 + $0x760] sm:$0xff]
  %v251 = vld [vmem:[%s0 + $0x768] sm:$0xff]
  %v252 = vld [vmem:[%s0 + $0x770] sm:$0xff]
  %v253 = vld [vmem:[%s0 + $0x778] sm:$0xff]
  %v254 = vld [vmem:[%s0 + $0x780] sm:$0xff]
  %v255 = vld [vmem:[%s0 + $0x788] sm:$0xff]
  %v256 = vld [vmem:[%s0 + $0x790] sm:$0xff]
  %v257 = vld [vmem:[%s0 + $0x798] sm:$0xff]
  %v258 = vld [vmem:[%s0 + $0x7a0] sm:$0xff]
  %v259 = vld [vmem:[%s0 + $0x7a8] sm:$0xff]
  %v260 = vld [vmem:[%s0 + $0x7b0] sm:$0xff]
  %v261 = vld [vmem:[%s0 + $0x7b8] sm:$0xff]
  %v262 = vld [vmem:[%s0 + $0x7c0] sm:$0xff]
  %v263 = vld [vmem:[%s0 + $0x7c8] sm:$0xff]
  %v264 = vld [vmem:[%s0 + $0x7d0] sm:$0xff]
  %v265 = vld [vmem:[%s0 + $0x7d8] sm:$0xff]
  %v266 = vld [vmem:[%s0 + $0x7e0] sm:$0xff]
  %v267 = vld [vmem:[%s0 + $0x7e8] sm:$0xff]
  %v268 = vld [vmem:[%s0 + $0x7f0] sm:$0xff]
  %v269 = vld [vmem:[%s0 + $0x7f8] sm:$0xff]
  %v270 = vld [vmem:[%s1] sm:$0xff]
  %v271 = vld [vmem:[%s1 + $0x8] sm:$0xff]
  %v272 = vld [vmem:[%s1 + $0x10] sm:$0xff]
  %v273 = vld [vmem:[%s1 + $0x18] sm:$0xff]
  %v274 = vld [vmem:[%s1 + $0x20] sm:$0xff]
  %v275 = vld [vmem:[%s1 + $0x28] sm:$0xff]
  %v276 = vld [vmem:[%s1 + $0x30] sm:$0xff]
  %v277 = vld [vmem:[%s1 + $0x38] sm:$0xff]
  %v278 = vld [vmem:[%s1 + $0x40] sm:$0xff]
  %v279 = vld [vmem:[%s1 + $0x48] sm:$0xff]
  %v280 = vld [vmem:[%s1 + $0x50] sm:$0xff]
  %v281 = vld [vmem:[%s1 + $0x58] sm:$0xff]
  %v282 = vld [vmem:[%s1 + $0x60] sm:$0xff]
  %v283 = vld [vmem:[%s1 + $0x68] sm:$0xff]
  %v284 = vld [vmem:[%s1 + $0x70] sm:$0xff]
  %v285 = vld [vmem:[%s1 + $0x78] sm:$0xff]
  %v286 = vld [vmem:[%s1 + $0x80] sm:$0xff]
  %v287 = vld [vmem:[%s1 + $0x88] sm:$0xff]
  %v288 = vld [vmem:[%s1 + $0x90] sm:$0xff]
  %v289 = vld [vmem:[%s1 + $0x98] sm:$0xff]
  %v290 = vld [vmem:[%s1 + $0xa0] sm:$0xff]
  %v291 = vld [vmem:[%s1 + $0xa8] sm:$0xff]
  %v292 = vld [vmem:[%s1 + $0xb0] sm:$0xff]
  %v293 = vld [vmem:[%s1 + $0xb8] sm:$0xff]
  %v294 = vld [vmem:[%s1 + $0xc0] sm:$0xff]
  %v295 = vld [vmem:[%s1 + $0xc8] sm:$0xff]
  %v296 = vld [vmem:[%s1 + $0xd0] sm:$0xff]
  %v297 = vld [vmem:[%s1 + $0xd8] sm:$0xff]
  %v298 = vld [vmem:[%s1 + $0xe0] sm:$0xff]
  %v299 = vld [vmem:[%s1 + $0xe8] sm:$0xff]
  %v300 = vld [vmem:[%s1 + $0xf0] sm:$0xff]
  %v301 = vld [vmem:[%s1 + $0xf8] sm:$0xff]
  %302 = vmatpush.msra.mxu0 %v285
  %303 = vmatpush.msra.mxu0 %v284
  %304 = vmatpush.msra.mxu0 %v283
  %305 = vmatpush.msra.mxu0 %v282
  %306 = vmatpush.msra.mxu0 %v281
  %307 = vmatpush.msra.mxu0 %v280
  %308 = vmatpush.msra.mxu0 %v279
  %309 = vmatpush.msra.mxu0 %v278
  %310 = vmatpush.msra.mxu0 %v277
  %311 = vmatpush.msra.mxu0 %v276
  %312 = vmatpush.msra.mxu0 %v275
  %313 = vmatpush.msra.mxu0 %v274
  %314 = vmatpush.msra.mxu0 %v273
  %315 = vmatpush.msra.mxu0 %v272
  %316 = vmatpush.msra.mxu0 %v271
  %317 = vmatpush.msra.mxu0 %v270
  %318 = vmatmul.f32.gmra.mxu0 %v14
  %v319 = vpop.f32.mrf.mxu0
  %v320 = vadd.f32 0.0, %v319
  %321 = vmatmul.f32.gmra.mxu0 %v16
  %v322 = vpop.f32.mrf.mxu0
  %v323 = vadd.f32 0.0, %v322
  %324 = vmatmul.f32.gmra.mxu0 %v18
  %v325 = vpop.f32.mrf.mxu0
  %v326 = vadd.f32 0.0, %v325
  %327 = vmatmul.f32.gmra.mxu0 %v20
  %v328 = vpop.f32.mrf.mxu0
  %v329 = vadd.f32 0.0, %v328
  %330 = vmatmul.f32.gmra.mxu0 %v22
  %v331 = vpop.f32.mrf.mxu0
  %v332 = vadd.f32 0.0, %v331
  %333 = vmatmul.f32.gmra.mxu0 %v24
  %v334 = vpop.f32.mrf.mxu0
  %v335 = vadd.f32 0.0, %v334
  %336 = vmatmul.f32.gmra.mxu0 %v26
  %v337 = vpop.f32.mrf.mxu0
  %v338 = vadd.f32 0.0, %v337
  %339 = vmatmul.f32.gmra.mxu0 %v28
  %v340 = vpop.f32.mrf.mxu0
  %v341 = vadd.f32 0.0, %v340
  %342 = vmatmul.f32.gmra.mxu0 %v30
  %v343 = vpop.f32.mrf.mxu0
  %v344 = vadd.f32 0.0, %v343
  %345 = vmatmul.f32.gmra.mxu0 %v32
  %v346 = vpop.f32.mrf.mxu0
  %v347 = vadd.f32 0.0, %v346
  %348 = vmatmul.f32.gmra.mxu0 %v34
  %v349 = vpop.f32.mrf.mxu0
  %v350 = vadd.f32 0.0, %v349
  %351 = vmatmul.f32.gmra.mxu0 %v36
  %v352 = vpop.f32.mrf.mxu0
  %v353 = vadd.f32 0.0, %v352
  %354 = vmatmul.f32.gmra.mxu0 %v38
  %v355 = vpop.f32.mrf.mxu0
  %v356 = vadd.f32 0.0, %v355
  %357 = vmatmul.f32.gmra.mxu0 %v40
  %v358 = vpop.f32.mrf.mxu0
  %v359 = vadd.f32 0.0, %v358
  %360 = vmatmul.f32.gmra.mxu0 %v42
  %v361 = vpop.f32.mrf.mxu0
  %v362 = vadd.f32 0.0, %v361
  %363 = vmatmul.f32.gmra.mxu0 %v44
  %v364 = vpop.f32.mrf.mxu0
  %v365 = vadd.f32 0.0, %v364
  %366 = vmatmul.f32.gmra.mxu0 %v46
  %v367 = vpop.f32.mrf.mxu0
  %v368 = vadd.f32 0.0, %v367
  %369 = vmatmul.f32.gmra.mxu0 %v48
  %v370 = vpop.f32.mrf.mxu0
  %v371 = vadd.f32 0.0, %v370
  %372 = vmatmul.f32.gmra.mxu0 %v50
  %v373 = vpop.f32.mrf.mxu0
  %v374 = vadd.f32 0.0, %v373
  %375 = vmatmul.f32.gmra.mxu0 %v52
  %v376 = vpop.f32.mrf.mxu0
  %v377 = vadd.f32 0.0, %v376
  %378 = vmatmul.f32.gmra.mxu0 %v54
  %v379 = vpop.f32.mrf.mxu0
  %v380 = vadd.f32 0.0, %v379
  %381 = vmatmul.f32.gmra.mxu0 %v56
  %v382 = vpop.f32.mrf.mxu0
  %v383 = vadd.f32 0.0, %v382
  %384 = vmatmul.f32.gmra.mxu0 %v58
  %v385 = vpop.f32.mrf.mxu0
  %v386 = vadd.f32 0.0, %v385
  %387 = vmatmul.f32.gmra.mxu0 %v60
  %v388 = vpop.f32.mrf.mxu0
  %v389 = vadd.f32 0.0, %v388
  %390 = vmatmul.f32.gmra.mxu0 %v62
  %v391 = vpop.f32.mrf.mxu0
  %v392 = vadd.f32 0.0, %v391
  %393 = vmatmul.f32.gmra.mxu0 %v64
  %v394 = vpop.f32.mrf.mxu0
  %v395 = vadd.f32 0.0, %v394
  %396 = vmatmul.f32.gmra.mxu0 %v66
  %v397 = vpop.f32.mrf.mxu0
  %v398 = vadd.f32 0.0, %v397
  %399 = vmatmul.f32.gmra.mxu0 %v68
  %v400 = vpop.f32.mrf.mxu0
  %v401 = vadd.f32 0.0, %v400
  %402 = vmatmul.f32.gmra.mxu0 %v70
  %v403 = vpop.f32.mrf.mxu0
  %v404 = vadd.f32 0.0, %v403
  %405 = vmatmul.f32.gmra.mxu0 %v72
  %v406 = vpop.f32.mrf.mxu0
  %v407 = vadd.f32 0.0, %v406
  %408 = vmatmul.f32.gmra.mxu0 %v74
  %v409 = vpop.f32.mrf.mxu0
  %v410 = vadd.f32 0.0, %v409
  %411 = vmatmul.f32.gmra.mxu0 %v76
  %v412 = vpop.f32.mrf.mxu0
  %v413 = vadd.f32 0.0, %v412
  %414 = vmatmul.f32.gmra.mxu0 %v78
  %v415 = vpop.f32.mrf.mxu0
  %v416 = vadd.f32 0.0, %v415
  %417 = vmatmul.f32.gmra.mxu0 %v80
  %v418 = vpop.f32.mrf.mxu0
  %v419 = vadd.f32 0.0, %v418
  %420 = vmatmul.f32.gmra.mxu0 %v82
  %v421 = vpop.f32.mrf.mxu0
  %v422 = vadd.f32 0.0, %v421
  %423 = vmatmul.f32.gmra.mxu0 %v84
  %v424 = vpop.f32.mrf.mxu0
  %v425 = vadd.f32 0.0, %v424
  %426 = vmatmul.f32.gmra.mxu0 %v86
  %v427 = vpop.f32.mrf.mxu0
  %v428 = vadd.f32 0.0, %v427
  %429 = vmatmul.f32.gmra.mxu0 %v88
  %v430 = vpop.f32.mrf.mxu0
  %v431 = vadd.f32 0.0, %v430
  %432 = vmatmul.f32.gmra.mxu0 %v90
  %v433 = vpop.f32.mrf.mxu0
  %v434 = vadd.f32 0.0, %v433
  %435 = vmatmul.f32.gmra.mxu0 %v92
  %v436 = vpop.f32.mrf.mxu0
  %v437 = vadd.f32 0.0, %v436
  %438 = vmatmul.f32.gmra.mxu0 %v94
  %v439 = vpop.f32.mrf.mxu0
  %v440 = vadd.f32 0.0, %v439
  %441 = vmatmul.f32.gmra.mxu0 %v96
  %v442 = vpop.f32.mrf.mxu0
  %v443 = vadd.f32 0.0, %v442
  %444 = vmatmul.f32.gmra.mxu0 %v98
  %v445 = vpop.f32.mrf.mxu0
  %v446 = vadd.f32 0.0, %v445
  %447 = vmatmul.f32.gmra.mxu0 %v100
  %v448 = vpop.f32.mrf.mxu0
  %v449 = vadd.f32 0.0, %v448
  %450 = vmatmul.f32.gmra.mxu0 %v102
  %v451 = vpop.f32.mrf.mxu0
  %v452 = vadd.f32 0.0, %v451
  %453 = vmatmul.f32.gmra.mxu0 %v104
  %v454 = vpop.f32.mrf.mxu0
  %v455 = vadd.f32 0.0, %v454
  %456 = vmatmul.f32.gmra.mxu0 %v106
  %v457 = vpop.f32.mrf.mxu0
  %v458 = vadd.f32 0.0, %v457
  %459 = vmatmul.f32.gmra.mxu0 %v108
  %v460 = vpop.f32.mrf.mxu0
  %v461 = vadd.f32 0.0, %v460
  %462 = vmatmul.f32.gmra.mxu0 %v110
  %v463 = vpop.f32.mrf.mxu0
  %v464 = vadd.f32 0.0, %v463
  %465 = vmatmul.f32.gmra.mxu0 %v112
  %v466 = vpop.f32.mrf.mxu0
  %v467 = vadd.f32 0.0, %v466
  %468 = vmatmul.f32.gmra.mxu0 %v114
  %v469 = vpop.f32.mrf.mxu0
  %v470 = vadd.f32 0.0, %v469
  %471 = vmatmul.f32.gmra.mxu0 %v116
  %v472 = vpop.f32.mrf.mxu0
  %v473 = vadd.f32 0.0, %v472
  %474 = vmatmul.f32.gmra.mxu0 %v118
  %v475 = vpop.f32.mrf.mxu0
  %v476 = vadd.f32 0.0, %v475
  %477 = vmatmul.f32.gmra.mxu0 %v120
  %v478 = vpop.f32.mrf.mxu0
  %v479 = vadd.f32 0.0, %v478
  %480 = vmatmul.f32.gmra.mxu0 %v122
  %v481 = vpop.f32.mrf.mxu0
  %v482 = vadd.f32 0.0, %v481
  %483 = vmatmul.f32.gmra.mxu0 %v124
  %v484 = vpop.f32.mrf.mxu0
  %v485 = vadd.f32 0.0, %v484
  %486 = vmatmul.f32.gmra.mxu0 %v126
  %v487 = vpop.f32.mrf.mxu0
  %v488 = vadd.f32 0.0, %v487
  %489 = vmatmul.f32.gmra.mxu0 %v128
  %v490 = vpop.f32.mrf.mxu0
  %v491 = vadd.f32 0.0, %v490
  %492 = vmatmul.f32.gmra.mxu0 %v130
  %v493 = vpop.f32.mrf.mxu0
  %v494 = vadd.f32 0.0, %v493
  %495 = vmatmul.f32.gmra.mxu0 %v132
  %v496 = vpop.f32.mrf.mxu0
  %v497 = vadd.f32 0.0, %v496
  %498 = vmatmul.f32.gmra.mxu0 %v134
  %v499 = vpop.f32.mrf.mxu0
  %v500 = vadd.f32 0.0, %v499
  %501 = vmatmul.f32.gmra.mxu0 %v136
  %v502 = vpop.f32.mrf.mxu0
  %v503 = vadd.f32 0.0, %v502
  %504 = vmatmul.f32.gmra.mxu0 %v138
  %v505 = vpop.f32.mrf.mxu0
  %v506 = vadd.f32 0.0, %v505
  %507 = vmatmul.f32.gmra.mxu0 %v140
  %v508 = vpop.f32.mrf.mxu0
  %v509 = vadd.f32 0.0, %v508
  %510 = vmatmul.f32.gmra.mxu0 %v142
  %v511 = vpop.f32.mrf.mxu0
  %v512 = vadd.f32 0.0, %v511
  %513 = vmatmul.f32.gmra.mxu0 %v144
  %v514 = vpop.f32.mrf.mxu0
  %v515 = vadd.f32 0.0, %v514
  %516 = vmatmul.f32.gmra.mxu0 %v146
  %v517 = vpop.f32.mrf.mxu0
  %v518 = vadd.f32 0.0, %v517
  %519 = vmatmul.f32.gmra.mxu0 %v148
  %v520 = vpop.f32.mrf.mxu0
  %v521 = vadd.f32 0.0, %v520
  %522 = vmatmul.f32.gmra.mxu0 %v150
  %v523 = vpop.f32.mrf.mxu0
  %v524 = vadd.f32 0.0, %v523
  %525 = vmatmul.f32.gmra.mxu0 %v152
  %v526 = vpop.f32.mrf.mxu0
  %v527 = vadd.f32 0.0, %v526
  %528 = vmatmul.f32.gmra.mxu0 %v154
  %v529 = vpop.f32.mrf.mxu0
  %v530 = vadd.f32 0.0, %v529
  %531 = vmatmul.f32.gmra.mxu0 %v156
  %v532 = vpop.f32.mrf.mxu0
  %v533 = vadd.f32 0.0, %v532
  %534 = vmatmul.f32.gmra.mxu0 %v158
  %v535 = vpop.f32.mrf.mxu0
  %v536 = vadd.f32 0.0, %v535
  %537 = vmatmul.f32.gmra.mxu0 %v160
  %v538 = vpop.f32.mrf.mxu0
  %v539 = vadd.f32 0.0, %v538
  %540 = vmatmul.f32.gmra.mxu0 %v162
  %v541 = vpop.f32.mrf.mxu0
  %v542 = vadd.f32 0.0, %v541
  %543 = vmatmul.f32.gmra.mxu0 %v164
  %v544 = vpop.f32.mrf.mxu0
  %v545 = vadd.f32 0.0, %v544
  %546 = vmatmul.f32.gmra.mxu0 %v166
  %v547 = vpop.f32.mrf.mxu0
  %v548 = vadd.f32 0.0, %v547
  %549 = vmatmul.f32.gmra.mxu0 %v168
  %v550 = vpop.f32.mrf.mxu0
  %v551 = vadd.f32 0.0, %v550
  %552 = vmatmul.f32.gmra.mxu0 %v170
  %v553 = vpop.f32.mrf.mxu0
  %v554 = vadd.f32 0.0, %v553
  %555 = vmatmul.f32.gmra.mxu0 %v172
  %v556 = vpop.f32.mrf.mxu0
  %v557 = vadd.f32 0.0, %v556
  %558 = vmatmul.f32.gmra.mxu0 %v174
  %v559 = vpop.f32.mrf.mxu0
  %v560 = vadd.f32 0.0, %v559
  %561 = vmatmul.f32.gmra.mxu0 %v176
  %v562 = vpop.f32.mrf.mxu0
  %v563 = vadd.f32 0.0, %v562
  %564 = vmatmul.f32.gmra.mxu0 %v178
  %v565 = vpop.f32.mrf.mxu0
  %v566 = vadd.f32 0.0, %v565
  %567 = vmatmul.f32.gmra.mxu0 %v180
  %v568 = vpop.f32.mrf.mxu0
  %v569 = vadd.f32 0.0, %v568
  %570 = vmatmul.f32.gmra.mxu0 %v182
  %v571 = vpop.f32.mrf.mxu0
  %v572 = vadd.f32 0.0, %v571
  %573 = vmatmul.f32.gmra.mxu0 %v184
  %v574 = vpop.f32.mrf.mxu0
  %v575 = vadd.f32 0.0, %v574
  %576 = vmatmul.f32.gmra.mxu0 %v186
  %v577 = vpop.f32.mrf.mxu0
  %v578 = vadd.f32 0.0, %v577
  %579 = vmatmul.f32.gmra.mxu0 %v188
  %v580 = vpop.f32.mrf.mxu0
  %v581 = vadd.f32 0.0, %v580
  %582 = vmatmul.f32.gmra.mxu0 %v190
  %v583 = vpop.f32.mrf.mxu0
  %v584 = vadd.f32 0.0, %v583
  %585 = vmatmul.f32.gmra.mxu0 %v192
  %v586 = vpop.f32.mrf.mxu0
  %v587 = vadd.f32 0.0, %v586
  %588 = vmatmul.f32.gmra.mxu0 %v194
  %v589 = vpop.f32.mrf.mxu0
  %v590 = vadd.f32 0.0, %v589
  %591 = vmatmul.f32.gmra.mxu0 %v196
  %v592 = vpop.f32.mrf.mxu0
  %v593 = vadd.f32 0.0, %v592
  %594 = vmatmul.f32.gmra.mxu0 %v198
  %v595 = vpop.f32.mrf.mxu0
  %v596 = vadd.f32 0.0, %v595
  %597 = vmatmul.f32.gmra.mxu0 %v200
  %v598 = vpop.f32.mrf.mxu0
  %v599 = vadd.f32 0.0, %v598
  %600 = vmatmul.f32.gmra.mxu0 %v202
  %v601 = vpop.f32.mrf.mxu0
  %v602 = vadd.f32 0.0, %v601
  %603 = vmatmul.f32.gmra.mxu0 %v204
  %v604 = vpop.f32.mrf.mxu0
  %v605 = vadd.f32 0.0, %v604
  %606 = vmatmul.f32.gmra.mxu0 %v206
  %v607 = vpop.f32.mrf.mxu0
  %v608 = vadd.f32 0.0, %v607
  %609 = vmatmul.f32.gmra.mxu0 %v208
  %v610 = vpop.f32.mrf.mxu0
  %v611 = vadd.f32 0.0, %v610
  %612 = vmatmul.f32.gmra.mxu0 %v210
  %v613 = vpop.f32.mrf.mxu0
  %v614 = vadd.f32 0.0, %v613
  %615 = vmatmul.f32.gmra.mxu0 %v212
  %v616 = vpop.f32.mrf.mxu0
  %v617 = vadd.f32 0.0, %v616
  %618 = vmatmul.f32.gmra.mxu0 %v214
  %v619 = vpop.f32.mrf.mxu0
  %v620 = vadd.f32 0.0, %v619
  %621 = vmatmul.f32.gmra.mxu0 %v216
  %v622 = vpop.f32.mrf.mxu0
  %v623 = vadd.f32 0.0, %v622
  %624 = vmatmul.f32.gmra.mxu0 %v218
  %v625 = vpop.f32.mrf.mxu0
  %v626 = vadd.f32 0.0, %v625
  %627 = vmatmul.f32.gmra.mxu0 %v220
  %v628 = vpop.f32.mrf.mxu0
  %v629 = vadd.f32 0.0, %v628
  %630 = vmatmul.f32.gmra.mxu0 %v222
  %v631 = vpop.f32.mrf.mxu0
  %v632 = vadd.f32 0.0, %v631
  %633 = vmatmul.f32.gmra.mxu0 %v224
  %v634 = vpop.f32.mrf.mxu0
  %v635 = vadd.f32 0.0, %v634
  %636 = vmatmul.f32.gmra.mxu0 %v226
  %v637 = vpop.f32.mrf.mxu0
  %v638 = vadd.f32 0.0, %v637
  %639 = vmatmul.f32.gmra.mxu0 %v228
  %v640 = vpop.f32.mrf.mxu0
  %v641 = vadd.f32 0.0, %v640
  %642 = vmatmul.f32.gmra.mxu0 %v230
  %v643 = vpop.f32.mrf.mxu0
  %v644 = vadd.f32 0.0, %v643
  %645 = vmatmul.f32.gmra.mxu0 %v232
  %v646 = vpop.f32.mrf.mxu0
  %v647 = vadd.f32 0.0, %v646
  %648 = vmatmul.f32.gmra.mxu0 %v234
  %v649 = vpop.f32.mrf.mxu0
  %v650 = vadd.f32 0.0, %v649
  %651 = vmatmul.f32.gmra.mxu0 %v236
  %v652 = vpop.f32.mrf.mxu0
  %v653 = vadd.f32 0.0, %v652
  %654 = vmatmul.f32.gmra.mxu0 %v238
  %v655 = vpop.f32.mrf.mxu0
  %v656 = vadd.f32 0.0, %v655
  %657 = vmatmul.f32.gmra.mxu0 %v240
  %v658 = vpop.f32.mrf.mxu0
  %v659 = vadd.f32 0.0, %v658
  %660 = vmatmul.f32.gmra.mxu0 %v242
  %v661 = vpop.f32.mrf.mxu0
  %v662 = vadd.f32 0.0, %v661
  %663 = vmatmul.f32.gmra.mxu0 %v244
  %v664 = vpop.f32.mrf.mxu0
  %v665 = vadd.f32 0.0, %v664
  %666 = vmatmul.f32.gmra.mxu0 %v246
  %v667 = vpop.f32.mrf.mxu0
  %v668 = vadd.f32 0.0, %v667
  %669 = vmatmul.f32.gmra.mxu0 %v248
  %v670 = vpop.f32.mrf.mxu0
  %v671 = vadd.f32 0.0, %v670
  %672 = vmatmul.f32.gmra.mxu0 %v250
  %v673 = vpop.f32.mrf.mxu0
  %v674 = vadd.f32 0.0, %v673
  %675 = vmatmul.f32.gmra.mxu0 %v252
  %v676 = vpop.f32.mrf.mxu0
  %v677 = vadd.f32 0.0, %v676
  %678 = vmatmul.f32.gmra.mxu0 %v254
  %v679 = vpop.f32.mrf.mxu0
  %v680 = vadd.f32 0.0, %v679
  %681 = vmatmul.f32.gmra.mxu0 %v256
  %v682 = vpop.f32.mrf.mxu0
  %v683 = vadd.f32 0.0, %v682
  %684 = vmatmul.f32.gmra.mxu0 %v258
  %v685 = vpop.f32.mrf.mxu0
  %v686 = vadd.f32 0.0, %v685
  %687 = vmatmul.f32.gmra.mxu0 %v260
  %v688 = vpop.f32.mrf.mxu0
  %v689 = vadd.f32 0.0, %v688
  %690 = vmatmul.f32.gmra.mxu0 %v262
  %v691 = vpop.f32.mrf.mxu0
  %v692 = vadd.f32 0.0, %v691
  %693 = vmatmul.f32.gmra.mxu0 %v264
  %v694 = vpop.f32.mrf.mxu0
  %v695 = vadd.f32 0.0, %v694
  %696 = vmatmul.f32.gmra.mxu0 %v266
  %v697 = vpop.f32.mrf.mxu0
  %v698 = vadd.f32 0.0, %v697
  %699 = vmatmul.f32.gmra.mxu0 %v268
  %v700 = vpop.f32.mrf.mxu0
  %v701 = vadd.f32 0.0, %v700
  %702 = vdwg.mxu0
  %703 = vmatpush.msra.mxu0 %v301
  %704 = vmatpush.msra.mxu0 %v300
  %705 = vmatpush.msra.mxu0 %v299
  %706 = vmatpush.msra.mxu0 %v298
  %707 = vmatpush.msra.mxu0 %v297
  %708 = vmatpush.msra.mxu0 %v296
  %709 = vmatpush.msra.mxu0 %v295
  %710 = vmatpush.msra.mxu0 %v294
  %711 = vmatpush.msra.mxu0 %v293
  %712 = vmatpush.msra.mxu0 %v292
  %713 = vmatpush.msra.mxu0 %v291
  %714 = vmatpush.msra.mxu0 %v290
  %715 = vmatpush.msra.mxu0 %v289
  %716 = vmatpush.msra.mxu0 %v288
  %717 = vmatpush.msra.mxu0 %v287
  %718 = vmatpush.msra.mxu0 %v286
  %719 = vmatmul.f32.gmra.mxu0 %v15
  %v720 = vpop.f32.mrf.mxu0
  %v721 = vadd.f32 %v320, %v720
  %722 = vmatmul.f32.gmra.mxu0 %v17
  %v723 = vpop.f32.mrf.mxu0
  %v724 = vadd.f32 %v323, %v723
  %725 = vmatmul.f32.gmra.mxu0 %v19
  %v726 = vpop.f32.mrf.mxu0
  %v727 = vadd.f32 %v326, %v726
  %728 = vmatmul.f32.gmra.mxu0 %v21
  %v729 = vpop.f32.mrf.mxu0
  %v730 = vadd.f32 %v329, %v729
  %731 = vmatmul.f32.gmra.mxu0 %v23
  %v732 = vpop.f32.mrf.mxu0
  %v733 = vadd.f32 %v332, %v732
  %734 = vmatmul.f32.gmra.mxu0 %v25
  %v735 = vpop.f32.mrf.mxu0
  %v736 = vadd.f32 %v335, %v735
  %737 = vmatmul.f32.gmra.mxu0 %v27
  %v738 = vpop.f32.mrf.mxu0
  %v739 = vadd.f32 %v338, %v738
  %740 = vmatmul.f32.gmra.mxu0 %v29
  %v741 = vpop.f32.mrf.mxu0
  %v742 = vadd.f32 %v341, %v741
  %743 = vmatmul.f32.gmra.mxu0 %v31
  %v744 = vpop.f32.mrf.mxu0
  %v745 = vadd.f32 %v344, %v744
  %746 = vmatmul.f32.gmra.mxu0 %v33
  %v747 = vpop.f32.mrf.mxu0
  %v748 = vadd.f32 %v347, %v747
  %749 = vmatmul.f32.gmra.mxu0 %v35
  %v750 = vpop.f32.mrf.mxu0
  %v751 = vadd.f32 %v350, %v750
  %752 = vmatmul.f32.gmra.mxu0 %v37
  %v753 = vpop.f32.mrf.mxu0
  %v754 = vadd.f32 %v353, %v753
  %755 = vmatmul.f32.gmra.mxu0 %v39
  %v756 = vpop.f32.mrf.mxu0
  %v757 = vadd.f32 %v356, %v756
  %758 = vmatmul.f32.gmra.mxu0 %v41
  %v759 = vpop.f32.mrf.mxu0
  %v760 = vadd.f32 %v359, %v759
  %761 = vmatmul.f32.gmra.mxu0 %v43
  %v762 = vpop.f32.mrf.mxu0
  %v763 = vadd.f32 %v362, %v762
  %764 = vmatmul.f32.gmra.mxu0 %v45
  %v765 = vpop.f32.mrf.mxu0
  %v766 = vadd.f32 %v365, %v765
  %767 = vmatmul.f32.gmra.mxu0 %v47
  %v768 = vpop.f32.mrf.mxu0
  %v769 = vadd.f32 %v368, %v768
  %770 = vmatmul.f32.gmra.mxu0 %v49
  %v771 = vpop.f32.mrf.mxu0
  %v772 = vadd.f32 %v371, %v771
  %773 = vmatmul.f32.gmra.mxu0 %v51
  %v774 = vpop.f32.mrf.mxu0
  %v775 = vadd.f32 %v374, %v774
  %776 = vmatmul.f32.gmra.mxu0 %v53
  %v777 = vpop.f32.mrf.mxu0
  %v778 = vadd.f32 %v377, %v777
  %779 = vmatmul.f32.gmra.mxu0 %v55
  %v780 = vpop.f32.mrf.mxu0
  %v781 = vadd.f32 %v380, %v780
  %782 = vmatmul.f32.gmra.mxu0 %v57
  %v783 = vpop.f32.mrf.mxu0
  %v784 = vadd.f32 %v383, %v783
  %785 = vmatmul.f32.gmra.mxu0 %v59
  %v786 = vpop.f32.mrf.mxu0
  %v787 = vadd.f32 %v386, %v786
  %788 = vmatmul.f32.gmra.mxu0 %v61
  %v789 = vpop.f32.mrf.mxu0
  %v790 = vadd.f32 %v389, %v789
  %791 = vmatmul.f32.gmra.mxu0 %v63
  %v792 = vpop.f32.mrf.mxu0
  %v793 = vadd.f32 %v392, %v792
  %794 = vmatmul.f32.gmra.mxu0 %v65
  %v795 = vpop.f32.mrf.mxu0
  %v796 = vadd.f32 %v395, %v795
  %797 = vmatmul.f32.gmra.mxu0 %v67
  %v798 = vpop.f32.mrf.mxu0
  %v799 = vadd.f32 %v398, %v798
  %800 = vmatmul.f32.gmra.mxu0 %v69
  %v801 = vpop.f32.mrf.mxu0
  %v802 = vadd.f32 %v401, %v801
  %803 = vmatmul.f32.gmra.mxu0 %v71
  %v804 = vpop.f32.mrf.mxu0
  %v805 = vadd.f32 %v404, %v804
  %806 = vmatmul.f32.gmra.mxu0 %v73
  %v807 = vpop.f32.mrf.mxu0
  %v808 = vadd.f32 %v407, %v807
  %809 = vmatmul.f32.gmra.mxu0 %v75
  %v810 = vpop.f32.mrf.mxu0
  %v811 = vadd.f32 %v410, %v810
  %812 = vmatmul.f32.gmra.mxu0 %v77
  %v813 = vpop.f32.mrf.mxu0
  %v814 = vadd.f32 %v413, %v813
  %815 = vmatmul.f32.gmra.mxu0 %v79
  %v816 = vpop.f32.mrf.mxu0
  %v817 = vadd.f32 %v416, %v816
  %818 = vmatmul.f32.gmra.mxu0 %v81
  %v819 = vpop.f32.mrf.mxu0
  %v820 = vadd.f32 %v419, %v819
  %821 = vmatmul.f32.gmra.mxu0 %v83
  %v822 = vpop.f32.mrf.mxu0
  %v823 = vadd.f32 %v422, %v822
  %824 = vmatmul.f32.gmra.mxu0 %v85
  %v825 = vpop.f32.mrf.mxu0
  %v826 = vadd.f32 %v425, %v825
  %827 = vmatmul.f32.gmra.mxu0 %v87
  %v828 = vpop.f32.mrf.mxu0
  %v829 = vadd.f32 %v428, %v828
  %830 = vmatmul.f32.gmra.mxu0 %v89
  %v831 = vpop.f32.mrf.mxu0
  %v832 = vadd.f32 %v431, %v831
  %833 = vmatmul.f32.gmra.mxu0 %v91
  %v834 = vpop.f32.mrf.mxu0
  %v835 = vadd.f32 %v434, %v834
  %836 = vmatmul.f32.gmra.mxu0 %v93
  %v837 = vpop.f32.mrf.mxu0
  %v838 = vadd.f32 %v437, %v837
  %839 = vmatmul.f32.gmra.mxu0 %v95
  %v840 = vpop.f32.mrf.mxu0
  %v841 = vadd.f32 %v440, %v840
  %842 = vmatmul.f32.gmra.mxu0 %v97
  %v843 = vpop.f32.mrf.mxu0
  %v844 = vadd.f32 %v443, %v843
  %845 = vmatmul.f32.gmra.mxu0 %v99
  %v846 = vpop.f32.mrf.mxu0
  %v847 = vadd.f32 %v446, %v846
  %848 = vmatmul.f32.gmra.mxu0 %v101
  %v849 = vpop.f32.mrf.mxu0
  %v850 = vadd.f32 %v449, %v849
  %851 = vmatmul.f32.gmra.mxu0 %v103
  %v852 = vpop.f32.mrf.mxu0
  %v853 = vadd.f32 %v452, %v852
  %854 = vmatmul.f32.gmra.mxu0 %v105
  %v855 = vpop.f32.mrf.mxu0
  %v856 = vadd.f32 %v455, %v855
  %857 = vmatmul.f32.gmra.mxu0 %v107
  %v858 = vpop.f32.mrf.mxu0
  %v859 = vadd.f32 %v458, %v858
  %860 = vmatmul.f32.gmra.mxu0 %v109
  %v861 = vpop.f32.mrf.mxu0
  %v862 = vadd.f32 %v461, %v861
  %863 = vmatmul.f32.gmra.mxu0 %v111
  %v864 = vpop.f32.mrf.mxu0
  %v865 = vadd.f32 %v464, %v864
  %866 = vmatmul.f32.gmra.mxu0 %v113
  %v867 = vpop.f32.mrf.mxu0
  %v868 = vadd.f32 %v467, %v867
  %869 = vmatmul.f32.gmra.mxu0 %v115
  %v870 = vpop.f32.mrf.mxu0
  %v871 = vadd.f32 %v470, %v870
  %872 = vmatmul.f32.gmra.mxu0 %v117
  %v873 = vpop.f32.mrf.mxu0
  %v874 = vadd.f32 %v473, %v873
  %875 = vmatmul.f32.gmra.mxu0 %v119
  %v876 = vpop.f32.mrf.mxu0
  %v877 = vadd.f32 %v476, %v876
  %878 = vmatmul.f32.gmra.mxu0 %v121
  %v879 = vpop.f32.mrf.mxu0
  %v880 = vadd.f32 %v479, %v879
  %881 = vmatmul.f32.gmra.mxu0 %v123
  %v882 = vpop.f32.mrf.mxu0
  %v883 = vadd.f32 %v482, %v882
  %884 = vmatmul.f32.gmra.mxu0 %v125
  %v885 = vpop.f32.mrf.mxu0
  %v886 = vadd.f32 %v485, %v885
  %887 = vmatmul.f32.gmra.mxu0 %v127
  %v888 = vpop.f32.mrf.mxu0
  %v889 = vadd.f32 %v488, %v888
  %890 = vmatmul.f32.gmra.mxu0 %v129
  %v891 = vpop.f32.mrf.mxu0
  %v892 = vadd.f32 %v491, %v891
  %893 = vmatmul.f32.gmra.mxu0 %v131
  %v894 = vpop.f32.mrf.mxu0
  %v895 = vadd.f32 %v494, %v894
  %896 = vmatmul.f32.gmra.mxu0 %v133
  %v897 = vpop.f32.mrf.mxu0
  %v898 = vadd.f32 %v497, %v897
  %899 = vmatmul.f32.gmra.mxu0 %v135
  %v900 = vpop.f32.mrf.mxu0
  %v901 = vadd.f32 %v500, %v900
  %902 = vmatmul.f32.gmra.mxu0 %v137
  %v903 = vpop.f32.mrf.mxu0
  %v904 = vadd.f32 %v503, %v903
  %905 = vmatmul.f32.gmra.mxu0 %v139
  %v906 = vpop.f32.mrf.mxu0
  %v907 = vadd.f32 %v506, %v906
  %908 = vmatmul.f32.gmra.mxu0 %v141
  %v909 = vpop.f32.mrf.mxu0
  %v910 = vadd.f32 %v509, %v909
  %911 = vmatmul.f32.gmra.mxu0 %v143
  %v912 = vpop.f32.mrf.mxu0
  %v913 = vadd.f32 %v512, %v912
  %914 = vmatmul.f32.gmra.mxu0 %v145
  %v915 = vpop.f32.mrf.mxu0
  %v916 = vadd.f32 %v515, %v915
  %917 = vmatmul.f32.gmra.mxu0 %v147
  %v918 = vpop.f32.mrf.mxu0
  %v919 = vadd.f32 %v518, %v918
  %920 = vmatmul.f32.gmra.mxu0 %v149
  %v921 = vpop.f32.mrf.mxu0
  %v922 = vadd.f32 %v521, %v921
  %923 = vmatmul.f32.gmra.mxu0 %v151
  %v924 = vpop.f32.mrf.mxu0
  %v925 = vadd.f32 %v524, %v924
  %926 = vmatmul.f32.gmra.mxu0 %v153
  %v927 = vpop.f32.mrf.mxu0
  %v928 = vadd.f32 %v527, %v927
  %929 = vmatmul.f32.gmra.mxu0 %v155
  %v930 = vpop.f32.mrf.mxu0
  %v931 = vadd.f32 %v530, %v930
  %932 = vmatmul.f32.gmra.mxu0 %v157
  %v933 = vpop.f32.mrf.mxu0
  %v934 = vadd.f32 %v533, %v933
  %935 = vmatmul.f32.gmra.mxu0 %v159
  %v936 = vpop.f32.mrf.mxu0
  %v937 = vadd.f32 %v536, %v936
  %938 = vmatmul.f32.gmra.mxu0 %v161
  %v939 = vpop.f32.mrf.mxu0
  %v940 = vadd.f32 %v539, %v939
  %941 = vmatmul.f32.gmra.mxu0 %v163
  %v942 = vpop.f32.mrf.mxu0
  %v943 = vadd.f32 %v542, %v942
  %944 = vmatmul.f32.gmra.mxu0 %v165
  %v945 = vpop.f32.mrf.mxu0
  %v946 = vadd.f32 %v545, %v945
  %947 = vmatmul.f32.gmra.mxu0 %v167
  %v948 = vpop.f32.mrf.mxu0
  %v949 = vadd.f32 %v548, %v948
  %950 = vmatmul.f32.gmra.mxu0 %v169
  %v951 = vpop.f32.mrf.mxu0
  %v952 = vadd.f32 %v551, %v951
  %953 = vmatmul.f32.gmra.mxu0 %v171
  %v954 = vpop.f32.mrf.mxu0
  %v955 = vadd.f32 %v554, %v954
  %956 = vmatmul.f32.gmra.mxu0 %v173
  %v957 = vpop.f32.mrf.mxu0
  %v958 = vadd.f32 %v557, %v957
  %959 = vmatmul.f32.gmra.mxu0 %v175
  %v960 = vpop.f32.mrf.mxu0
  %v961 = vadd.f32 %v560, %v960
  %962 = vmatmul.f32.gmra.mxu0 %v177
  %v963 = vpop.f32.mrf.mxu0
  %v964 = vadd.f32 %v563, %v963
  %965 = vmatmul.f32.gmra.mxu0 %v179
  %v966 = vpop.f32.mrf.mxu0
  %v967 = vadd.f32 %v566, %v966
  %968 = vmatmul.f32.gmra.mxu0 %v181
  %v969 = vpop.f32.mrf.mxu0
  %v970 = vadd.f32 %v569, %v969
  %971 = vmatmul.f32.gmra.mxu0 %v183
  %v972 = vpop.f32.mrf.mxu0
  %v973 = vadd.f32 %v572, %v972
  %974 = vmatmul.f32.gmra.mxu0 %v185
  %v975 = vpop.f32.mrf.mxu0
  %v976 = vadd.f32 %v575, %v975
  %977 = vmatmul.f32.gmra.mxu0 %v187
  %v978 = vpop.f32.mrf.mxu0
  %v979 = vadd.f32 %v578, %v978
  %980 = vmatmul.f32.gmra.mxu0 %v189
  %v981 = vpop.f32.mrf.mxu0
  %v982 = vadd.f32 %v581, %v981
  %983 = vmatmul.f32.gmra.mxu0 %v191
  %v984 = vpop.f32.mrf.mxu0
  %v985 = vadd.f32 %v584, %v984
  %986 = vmatmul.f32.gmra.mxu0 %v193
  %v987 = vpop.f32.mrf.mxu0
  %v988 = vadd.f32 %v587, %v987
  %989 = vmatmul.f32.gmra.mxu0 %v195
  %v990 = vpop.f32.mrf.mxu0
  %v991 = vadd.f32 %v590, %v990
  %992 = vmatmul.f32.gmra.mxu0 %v197
  %v993 = vpop.f32.mrf.mxu0
  %v994 = vadd.f32 %v593, %v993
  %995 = vmatmul.f32.gmra.mxu0 %v199
  %v996 = vpop.f32.mrf.mxu0
  %v997 = vadd.f32 %v596, %v996
  %998 = vmatmul.f32.gmra.mxu0 %v201
  %v999 = vpop.f32.mrf.mxu0
  %v1000 = vadd.f32 %v599, %v999
  %1001 = vmatmul.f32.gmra.mxu0 %v203
  %v1002 = vpop.f32.mrf.mxu0
  %v1003 = vadd.f32 %v602, %v1002
  %1004 = vmatmul.f32.gmra.mxu0 %v205
  %v1005 = vpop.f32.mrf.mxu0
  %v1006 = vadd.f32 %v605, %v1005
  %1007 = vmatmul.f32.gmra.mxu0 %v207
  %v1008 = vpop.f32.mrf.mxu0
  %v1009 = vadd.f32 %v608, %v1008
  %1010 = vmatmul.f32.gmra.mxu0 %v209
  %v1011 = vpop.f32.mrf.mxu0
  %v1012 = vadd.f32 %v611, %v1011
  %1013 = vmatmul.f32.gmra.mxu0 %v211
  %v1014 = vpop.f32.mrf.mxu0
  %v1015 = vadd.f32 %v614, %v1014
  %1016 = vmatmul.f32.gmra.mxu0 %v213
  %v1017 = vpop.f32.mrf.mxu0
  %v1018 = vadd.f32 %v617, %v1017
  %1019 = vmatmul.f32.gmra.mxu0 %v215
  %v1020 = vpop.f32.mrf.mxu0
  %v1021 = vadd.f32 %v620, %v1020
  %1022 = vmatmul.f32.gmra.mxu0 %v217
  %v1023 = vpop.f32.mrf.mxu0
  %v1024 = vadd.f32 %v623, %v1023
  %1025 = vmatmul.f32.gmra.mxu0 %v219
  %v1026 = vpop.f32.mrf.mxu0
  %v1027 = vadd.f32 %v626, %v1026
  %1028 = vmatmul.f32.gmra.mxu0 %v221
  %v1029 = vpop.f32.mrf.mxu0
  %v1030 = vadd.f32 %v629, %v1029
  %1031 = vmatmul.f32.gmra.mxu0 %v223
  %v1032 = vpop.f32.mrf.mxu0
  %v1033 = vadd.f32 %v632, %v1032
  %1034 = vmatmul.f32.gmra.mxu0 %v225
  %v1035 = vpop.f32.mrf.mxu0
  %v1036 = vadd.f32 %v635, %v1035
  %1037 = vmatmul.f32.gmra.mxu0 %v227
  %v1038 = vpop.f32.mrf.mxu0
  %v1039 = vadd.f32 %v638, %v1038
  %1040 = vmatmul.f32.gmra.mxu0 %v229
  %v1041 = vpop.f32.mrf.mxu0
  %v1042 = vadd.f32 %v641, %v1041
  %1043 = vmatmul.f32.gmra.mxu0 %v231
  %v1044 = vpop.f32.mrf.mxu0
  %v1045 = vadd.f32 %v644, %v1044
  %1046 = vmatmul.f32.gmra.mxu0 %v233
  %v1047 = vpop.f32.mrf.mxu0
  %v1048 = vadd.f32 %v647, %v1047
  %1049 = vmatmul.f32.gmra.mxu0 %v235
  %v1050 = vpop.f32.mrf.mxu0
  %v1051 = vadd.f32 %v650, %v1050
  %1052 = vmatmul.f32.gmra.mxu0 %v237
  %v1053 = vpop.f32.mrf.mxu0
  %v1054 = vadd.f32 %v653, %v1053
  %1055 = vmatmul.f32.gmra.mxu0 %v239
  %v1056 = vpop.f32.mrf.mxu0
  %v1057 = vadd.f32 %v656, %v1056
  %1058 = vmatmul.f32.gmra.mxu0 %v241
  %v1059 = vpop.f32.mrf.mxu0
  %v1060 = vadd.f32 %v659, %v1059
  %1061 = vmatmul.f32.gmra.mxu0 %v243
  %v1062 = vpop.f32.mrf.mxu0
  %v1063 = vadd.f32 %v662, %v1062
  %1064 = vmatmul.f32.gmra.mxu0 %v245
  %v1065 = vpop.f32.mrf.mxu0
  %v1066 = vadd.f32 %v665, %v1065
  %1067 = vmatmul.f32.gmra.mxu0 %v247
  %v1068 = vpop.f32.mrf.mxu0
  %v1069 = vadd.f32 %v668, %v1068
  %1070 = vmatmul.f32.gmra.mxu0 %v249
  %v1071 = vpop.f32.mrf.mxu0
  %v1072 = vadd.f32 %v671, %v1071
  %1073 = vmatmul.f32.gmra.mxu0 %v251
  %v1074 = vpop.f32.mrf.mxu0
  %v1075 = vadd.f32 %v674, %v1074
  %1076 = vmatmul.f32.gmra.mxu0 %v253
  %v1077 = vpop.f32.mrf.mxu0
  %v1078 = vadd.f32 %v677, %v1077
  %1079 = vmatmul.f32.gmra.mxu0 %v255
  %v1080 = vpop.f32.mrf.mxu0
  %v1081 = vadd.f32 %v680, %v1080
  %1082 = vmatmul.f32.gmra.mxu0 %v257
  %v1083 = vpop.f32.mrf.mxu0
  %v1084 = vadd.f32 %v683, %v1083
  %1085 = vmatmul.f32.gmra.mxu0 %v259
  %v1086 = vpop.f32.mrf.mxu0
  %v1087 = vadd.f32 %v686, %v1086
  %1088 = vmatmul.f32.gmra.mxu0 %v261
  %v1089 = vpop.f32.mrf.mxu0
  %v1090 = vadd.f32 %v689, %v1089
  %1091 = vmatmul.f32.gmra.mxu0 %v263
  %v1092 = vpop.f32.mrf.mxu0
  %v1093 = vadd.f32 %v692, %v1092
  %1094 = vmatmul.f32.gmra.mxu0 %v265
  %v1095 = vpop.f32.mrf.mxu0
  %v1096 = vadd.f32 %v695, %v1095
  %1097 = vmatmul.f32.gmra.mxu0 %v267
  %v1098 = vpop.f32.mrf.mxu0
  %v1099 = vadd.f32 %v698, %v1098
  %1100 = vmatmul.f32.gmra.mxu0 %v269
  %v1101 = vpop.f32.mrf.mxu0
  %v1102 = vadd.f32 %v701, %v1101
  %1103 = vdwg.mxu0
  %vm1104 = vcmask 162816
  %v1105 = vsel %vm1104, %v721, -inf
  %v1106 = vsel %vm1104, %v733, -inf
  %v1107 = vmax.f32 %v1105, %v1106
  %v1108 = vsel %vm1104, %v745, -inf
  %v1109 = vmax.f32 %v1107, %v1108
  %v1110 = vsel %vm1104, %v757, -inf
  %v1111 = vmax.f32 %v1109, %v1110
  %v1112 = vsel %vm1104, %v724, -inf
  %v1113 = vsel %vm1104, %v736, -inf
  %v1114 = vmax.f32 %v1112, %v1113
  %v1115 = vsel %vm1104, %v748, -inf
  %v1116 = vmax.f32 %v1114, %v1115
  %v1117 = vsel %vm1104, %v760, -inf
  %v1118 = vmax.f32 %v1116, %v1117
  %v1119 = vsel %vm1104, %v727, -inf
  %v1120 = vsel %vm1104, %v739, -inf
  %v1121 = vmax.f32 %v1119, %v1120
  %v1122 = vsel %vm1104, %v751, -inf
  %v1123 = vmax.f32 %v1121, %v1122
  %v1124 = vsel %vm1104, %v763, -inf
  %v1125 = vmax.f32 %v1123, %v1124
  %v1126 = vsel %vm1104, %v730, -inf
  %v1127 = vsel %vm1104, %v742, -inf
  %v1128 = vmax.f32 %v1126, %v1127
  %v1129 = vsel %vm1104, %v754, -inf
  %v1130 = vmax.f32 %v1128, %v1129
  %v1131 = vsel %vm1104, %v766, -inf
  %v1132 = vmax.f32 %v1130, %v1131
  %v1133 = vsel %vm1104, %v769, -inf
  %v1134 = vsel %vm1104, %v781, -inf
  %v1135 = vmax.f32 %v1133, %v1134
  %v1136 = vsel %vm1104, %v793, -inf
  %v1137 = vmax.f32 %v1135, %v1136
  %v1138 = vsel %vm1104, %v805, -inf
  %v1139 = vmax.f32 %v1137, %v1138
  %v1140 = vsel %vm1104, %v772, -inf
  %v1141 = vsel %vm1104, %v784, -inf
  %v1142 = vmax.f32 %v1140, %v1141
  %v1143 = vsel %vm1104, %v796, -inf
  %v1144 = vmax.f32 %v1142, %v1143
  %v1145 = vsel %vm1104, %v808, -inf
  %v1146 = vmax.f32 %v1144, %v1145
  %v1147 = vsel %vm1104, %v775, -inf
  %v1148 = vsel %vm1104, %v787, -inf
  %v1149 = vmax.f32 %v1147, %v1148
  %v1150 = vsel %vm1104, %v799, -inf
  %v1151 = vmax.f32 %v1149, %v1150
  %v1152 = vsel %vm1104, %v811, -inf
  %v1153 = vmax.f32 %v1151, %v1152
  %v1154 = vsel %vm1104, %v778, -inf
  %v1155 = vsel %vm1104, %v790, -inf
  %v1156 = vmax.f32 %v1154, %v1155
  %v1157 = vsel %vm1104, %v802, -inf
  %v1158 = vmax.f32 %v1156, %v1157
  %v1159 = vsel %vm1104, %v814, -inf
  %v1160 = vmax.f32 %v1158, %v1159
  %v1161 = vsel %vm1104, %v817, -inf
  %v1162 = vsel %vm1104, %v829, -inf
  %v1163 = vmax.f32 %v1161, %v1162
  %v1164 = vsel %vm1104, %v841, -inf
  %v1165 = vmax.f32 %v1163, %v1164
  %v1166 = vsel %vm1104, %v853, -inf
  %v1167 = vmax.f32 %v1165, %v1166
  %v1168 = vsel %vm1104, %v820, -inf
  %v1169 = vsel %vm1104, %v832, -inf
  %v1170 = vmax.f32 %v1168, %v1169
  %v1171 = vsel %vm1104, %v844, -inf
  %v1172 = vmax.f32 %v1170, %v1171
  %v1173 = vsel %vm1104, %v856, -inf
  %v1174 = vmax.f32 %v1172, %v1173
  %v1175 = vsel %vm1104, %v823, -inf
  %v1176 = vsel %vm1104, %v835, -inf
  %v1177 = vmax.f32 %v1175, %v1176
  %v1178 = vsel %vm1104, %v847, -inf
  %v1179 = vmax.f32 %v1177, %v1178
  %v1180 = vsel %vm1104, %v859, -inf
  %v1181 = vmax.f32 %v1179, %v1180
  %v1182 = vsel %vm1104, %v826, -inf
  %v1183 = vsel %vm1104, %v838, -inf
  %v1184 = vmax.f32 %v1182, %v1183
  %v1185 = vsel %vm1104, %v850, -inf
  %v1186 = vmax.f32 %v1184, %v1185
  %v1187 = vsel %vm1104, %v862, -inf
  %v1188 = vmax.f32 %v1186, %v1187
  %v1189 = vsel %vm1104, %v865, -inf
  %v1190 = vsel %vm1104, %v877, -inf
  %v1191 = vmax.f32 %v1189, %v1190
  %v1192 = vsel %vm1104, %v889, -inf
  %v1193 = vmax.f32 %v1191, %v1192
  %v1194 = vsel %vm1104, %v901, -inf
  %v1195 = vmax.f32 %v1193, %v1194
  %v1196 = vsel %vm1104, %v868, -inf
  %v1197 = vsel %vm1104, %v880, -inf
  %v1198 = vmax.f32 %v1196, %v1197
  %v1199 = vsel %vm1104, %v892, -inf
  %v1200 = vmax.f32 %v1198, %v1199
  %v1201 = vsel %vm1104, %v904, -inf
  %v1202 = vmax.f32 %v1200, %v1201
  %v1203 = vsel %vm1104, %v871, -inf
  %v1204 = vsel %vm1104, %v883, -inf
  %v1205 = vmax.f32 %v1203, %v1204
  %v1206 = vsel %vm1104, %v895, -inf
  %v1207 = vmax.f32 %v1205, %v1206
  %v1208 = vsel %vm1104, %v907, -inf
  %v1209 = vmax.f32 %v1207, %v1208
  %v1210 = vsel %vm1104, %v874, -inf
  %v1211 = vsel %vm1104, %v886, -inf
  %v1212 = vmax.f32 %v1210, %v1211
  %v1213 = vsel %vm1104, %v898, -inf
  %v1214 = vmax.f32 %v1212, %v1213
  %v1215 = vsel %vm1104, %v910, -inf
  %v1216 = vmax.f32 %v1214, %v1215
  %v1217 = vsel %vm1104, %v913, -inf
  %v1218 = vsel %vm1104, %v925, -inf
  %v1219 = vmax.f32 %v1217, %v1218
  %v1220 = vsel %vm1104, %v937, -inf
  %v1221 = vmax.f32 %v1219, %v1220
  %v1222 = vsel %vm1104, %v949, -inf
  %v1223 = vmax.f32 %v1221, %v1222
  %v1224 = vsel %vm1104, %v916, -inf
  %v1225 = vsel %vm1104, %v928, -inf
  %v1226 = vmax.f32 %v1224, %v1225
  %v1227 = vsel %vm1104, %v940, -inf
  %v1228 = vmax.f32 %v1226, %v1227
  %v1229 = vsel %vm1104, %v952, -inf
  %v1230 = vmax.f32 %v1228, %v1229
  %v1231 = vsel %vm1104, %v919, -inf
  %v1232 = vsel %vm1104, %v931, -inf
  %v1233 = vmax.f32 %v1231, %v1232
  %v1234 = vsel %vm1104, %v943, -inf
  %v1235 = vmax.f32 %v1233, %v1234
  %v1236 = vsel %vm1104, %v955, -inf
  %v1237 = vmax.f32 %v1235, %v1236
  %v1238 = vsel %vm1104, %v922, -inf
  %v1239 = vsel %vm1104, %v934, -inf
  %v1240 = vmax.f32 %v1238, %v1239
  %v1241 = vsel %vm1104, %v946, -inf
  %v1242 = vmax.f32 %v1240, %v1241
  %v1243 = vsel %vm1104, %v958, -inf
  %v1244 = vmax.f32 %v1242, %v1243
  %v1245 = vsel %vm1104, %v961, -inf
  %v1246 = vsel %vm1104, %v973, -inf
  %v1247 = vmax.f32 %v1245, %v1246
  %v1248 = vsel %vm1104, %v985, -inf
  %v1249 = vmax.f32 %v1247, %v1248
  %v1250 = vsel %vm1104, %v997, -inf
  %v1251 = vmax.f32 %v1249, %v1250
  %v1252 = vsel %vm1104, %v964, -inf
  %v1253 = vsel %vm1104, %v976, -inf
  %v1254 = vmax.f32 %v1252, %v1253
  %v1255 = vsel %vm1104, %v988, -inf
  %v1256 = vmax.f32 %v1254, %v1255
  %v1257 = vsel %vm1104, %v1000, -inf
  %v1258 = vmax.f32 %v1256, %v1257
  %v1259 = vsel %vm1104, %v967, -inf
  %v1260 = vsel %vm1104, %v979, -inf
  %v1261 = vmax.f32 %v1259, %v1260
  %v1262 = vsel %vm1104, %v991, -inf
  %v1263 = vmax.f32 %v1261, %v1262
  %v1264 = vsel %vm1104, %v1003, -inf
  %v1265 = vmax.f32 %v1263, %v1264
  %v1266 = vsel %vm1104, %v970, -inf
  %v1267 = vsel %vm1104, %v982, -inf
  %v1268 = vmax.f32 %v1266, %v1267
  %v1269 = vsel %vm1104, %v994, -inf
  %v1270 = vmax.f32 %v1268, %v1269
  %v1271 = vsel %vm1104, %v1006, -inf
  %v1272 = vmax.f32 %v1270, %v1271
  %v1273 = vsel %vm1104, %v1009, -inf
  %v1274 = vsel %vm1104, %v1021, -inf
  %v1275 = vmax.f32 %v1273, %v1274
  %v1276 = vsel %vm1104, %v1033, -inf
  %v1277 = vmax.f32 %v1275, %v1276
  %v1278 = vsel %vm1104, %v1045, -inf
  %v1279 = vmax.f32 %v1277, %v1278
  %v1280 = vsel %vm1104, %v1012, -inf
  %v1281 = vsel %vm1104, %v1024, -inf
  %v1282 = vmax.f32 %v1280, %v1281
  %v1283 = vsel %vm1104, %v1036, -inf
  %v1284 = vmax.f32 %v1282, %v1283
  %v1285 = vsel %vm1104, %v1048, -inf
  %v1286 = vmax.f32 %v1284, %v1285
  %v1287 = vsel %vm1104, %v1015, -inf
  %v1288 = vsel %vm1104, %v1027, -inf
  %v1289 = vmax.f32 %v1287, %v1288
  %v1290 = vsel %vm1104, %v1039, -inf
  %v1291 = vmax.f32 %v1289, %v1290
  %v1292 = vsel %vm1104, %v1051, -inf
  %v1293 = vmax.f32 %v1291, %v1292
  %v1294 = vsel %vm1104, %v1018, -inf
  %v1295 = vsel %vm1104, %v1030, -inf
  %v1296 = vmax.f32 %v1294, %v1295
  %v1297 = vsel %vm1104, %v1042, -inf
  %v1298 = vmax.f32 %v1296, %v1297
  %v1299 = vsel %vm1104, %v1054, -inf
  %v1300 = vmax.f32 %v1298, %v1299
  %v1301 = vsel %vm1104, %v1057, -inf
  %v1302 = vsel %vm1104, %v1069, -inf
  %v1303 = vmax.f32 %v1301, %v1302
  %v1304 = vsel %vm1104, %v1081, -inf
  %v1305 = vmax.f32 %v1303, %v1304
  %v1306 = vsel %vm1104, %v1093, -inf
  %v1307 = vmax.f32 %v1305, %v1306
  %v1308 = vsel %vm1104, %v1060, -inf
  %v1309 = vsel %vm1104, %v1072, -inf
  %v1310 = vmax.f32 %v1308, %v1309
  %v1311 = vsel %vm1104, %v1084, -inf
  %v1312 = vmax.f32 %v1310, %v1311
  %v1313 = vsel %vm1104, %v1096, -inf
  %v1314 = vmax.f32 %v1312, %v1313
  %v1315 = vsel %vm1104, %v1063, -inf
  %v1316 = vsel %vm1104, %v1075, -inf
  %v1317 = vmax.f32 %v1315, %v1316
  %v1318 = vsel %vm1104, %v1087, -inf
  %v1319 = vmax.f32 %v1317, %v1318
  %v1320 = vsel %vm1104, %v1099, -inf
  %v1321 = vmax.f32 %v1319, %v1320
  %v1322 = vsel %vm1104, %v1066, -inf
  %v1323 = vsel %vm1104, %v1078, -inf
  %v1324 = vmax.f32 %v1322, %v1323
  %v1325 = vsel %vm1104, %v1090, -inf
  %v1326 = vmax.f32 %v1324, %v1325
  %v1327 = vsel %vm1104, %v1102, -inf
  %v1328 = vmax.f32 %v1326, %v1327
  %v1329 = vld [vmem:[%s2] sm:$0x1]
  %v1331 = vperm.slane %v1329, 0
  %v1333 = vadd.f32 %v1111, %v1331
  %v1334 = vadd.f32 %v1118, %v1331
  %v1335 = vadd.f32 %v1125, %v1331
  %v1336 = vadd.f32 %v1132, %v1331
  %v1337 = vadd.f32 %v1139, %v1331
  %v1338 = vadd.f32 %v1146, %v1331
  %v1339 = vadd.f32 %v1153, %v1331
  %v1340 = vadd.f32 %v1160, %v1331
  %v1341 = vadd.f32 %v1167, %v1331
  %v1342 = vadd.f32 %v1174, %v1331
  %v1343 = vadd.f32 %v1181, %v1331
  %v1344 = vadd.f32 %v1188, %v1331
  %v1345 = vadd.f32 %v1195, %v1331
  %v1346 = vadd.f32 %v1202, %v1331
  %v1347 = vadd.f32 %v1209, %v1331
  %v1348 = vadd.f32 %v1216, %v1331
  %v1349 = vadd.f32 %v1223, %v1331
  %v1350 = vadd.f32 %v1230, %v1331
  %v1351 = vadd.f32 %v1237, %v1331
  %v1352 = vadd.f32 %v1244, %v1331
  %v1353 = vadd.f32 %v1251, %v1331
  %v1354 = vadd.f32 %v1258, %v1331
  %v1355 = vadd.f32 %v1265, %v1331
  %v1356 = vadd.f32 %v1272, %v1331
  %v1357 = vadd.f32 %v1279, %v1331
  %v1358 = vadd.f32 %v1286, %v1331
  %v1359 = vadd.f32 %v1293, %v1331
  %v1360 = vadd.f32 %v1300, %v1331
  %v1361 = vadd.f32 %v1307, %v1331
  %v1362 = vadd.f32 %v1314, %v1331
  %v1363 = vadd.f32 %v1321, %v1331
  %v1364 = vadd.f32 %v1328, %v1331
  %v1365 = vmax.f32 %v1333, 0.0
  %v1366 = vmax.f32 %v1334, 0.0
  %v1367 = vmax.f32 %v1335, 0.0
  %v1368 = vmax.f32 %v1336, 0.0
  %v1369 = vmax.f32 %v1337, 0.0
  %v1370 = vmax.f32 %v1338, 0.0
  %v1371 = vmax.f32 %v1339, 0.0
  %v1372 = vmax.f32 %v1340, 0.0
  %v1373 = vmax.f32 %v1341, 0.0
  %v1374 = vmax.f32 %v1342, 0.0
  %v1375 = vmax.f32 %v1343, 0.0
  %v1376 = vmax.f32 %v1344, 0.0
  %v1377 = vmax.f32 %v1345, 0.0
  %v1378 = vmax.f32 %v1346, 0.0
  %v1379 = vmax.f32 %v1347, 0.0
  %v1380 = vmax.f32 %v1348, 0.0
  %v1381 = vmax.f32 %v1349, 0.0
  %v1382 = vmax.f32 %v1350, 0.0
  %v1383 = vmax.f32 %v1351, 0.0
  %v1384 = vmax.f32 %v1352, 0.0
  %v1385 = vmax.f32 %v1353, 0.0
  %v1386 = vmax.f32 %v1354, 0.0
  %v1387 = vmax.f32 %v1355, 0.0
  %v1388 = vmax.f32 %v1356, 0.0
  %v1389 = vmax.f32 %v1357, 0.0
  %v1390 = vmax.f32 %v1358, 0.0
  %v1391 = vmax.f32 %v1359, 0.0
  %v1392 = vmax.f32 %v1360, 0.0
  %v1393 = vmax.f32 %v1361, 0.0
  %v1394 = vmax.f32 %v1362, 0.0
  %v1395 = vmax.f32 %v1363, 0.0
  %v1396 = vmax.f32 %v1364, 0.0
  %1397 = vst.msk [vmem:[%s3] sm:$0xff] %vm1104, %v1365
  %1398 = vst.msk [vmem:[%s3 + $0x8] sm:$0xff] %vm1104, %v1366
  %1399 = vst.msk [vmem:[%s3 + $0x10] sm:$0xff] %vm1104, %v1367
  %1400 = vst.msk [vmem:[%s3 + $0x18] sm:$0xff] %vm1104, %v1368
  %1401 = vst.msk [vmem:[%s3 + $0x20] sm:$0xff] %vm1104, %v1369
  %1402 = vst.msk [vmem:[%s3 + $0x28] sm:$0xff] %vm1104, %v1370
  %1403 = vst.msk [vmem:[%s3 + $0x30] sm:$0xff] %vm1104, %v1371
  %1404 = vst.msk [vmem:[%s3 + $0x38] sm:$0xff] %vm1104, %v1372
  %1405 = vst.msk [vmem:[%s3 + $0x40] sm:$0xff] %vm1104, %v1373
  %1406 = vst.msk [vmem:[%s3 + $0x48] sm:$0xff] %vm1104, %v1374
  %1407 = vst.msk [vmem:[%s3 + $0x50] sm:$0xff] %vm1104, %v1375
  %1408 = vst.msk [vmem:[%s3 + $0x58] sm:$0xff] %vm1104, %v1376
  %1409 = vst.msk [vmem:[%s3 + $0x60] sm:$0xff] %vm1104, %v1377
  %1410 = vst.msk [vmem:[%s3 + $0x68] sm:$0xff] %vm1104, %v1378
  %1411 = vst.msk [vmem:[%s3 + $0x70] sm:$0xff] %vm1104, %v1379
  %1412 = vst.msk [vmem:[%s3 + $0x78] sm:$0xff] %vm1104, %v1380
  %1413 = vst.msk [vmem:[%s3 + $0x80] sm:$0xff] %vm1104, %v1381
  %1414 = vst.msk [vmem:[%s3 + $0x88] sm:$0xff] %vm1104, %v1382
  %1415 = vst.msk [vmem:[%s3 + $0x90] sm:$0xff] %vm1104, %v1383
  %1416 = vst.msk [vmem:[%s3 + $0x98] sm:$0xff] %vm1104, %v1384
  %1417 = vst.msk [vmem:[%s3 + $0xa0] sm:$0xff] %vm1104, %v1385
  %1418 = vst.msk [vmem:[%s3 + $0xa8] sm:$0xff] %vm1104, %v1386
  %1419 = vst.msk [vmem:[%s3 + $0xb0] sm:$0xff] %vm1104, %v1387
  %1420 = vst.msk [vmem:[%s3 + $0xb8] sm:$0xff] %vm1104, %v1388
  %1421 = vst.msk [vmem:[%s3 + $0xc0] sm:$0xff] %vm1104, %v1389
  %1422 = vst.msk [vmem:[%s3 + $0xc8] sm:$0xff] %vm1104, %v1390
  %1423 = vst.msk [vmem:[%s3 + $0xd0] sm:$0xff] %vm1104, %v1391
  %1424 = vst.msk [vmem:[%s3 + $0xd8] sm:$0xff] %vm1104, %v1392
  %1425 = vst.msk [vmem:[%s3 + $0xe0] sm:$0xff] %vm1104, %v1393
  %1426 = vst.msk [vmem:[%s3 + $0xe8] sm:$0xff] %vm1104, %v1394
  %1427 = vst.msk [vmem:[%s3 + $0xf0] sm:$0xff] %vm1104, %v1395
  %1428 = vst.msk [vmem:[%s3 + $0xf8] sm:$0xff] %vm1104, %v1396
  // Predicated region
  $region14: #{svhn_classifier_forward.4} parent=0 // pred_check
    _
  $region15: #{svhn_classifier_forward.4} parent=0 // pred_check_branch
    %1430 = sbr.rel (0) target = $region17
  $region16: #{svhn_classifier_forward.4} parent=0 // pred_region
    _
  $region17: #{svhn_classifier_forward.4} parent=0 // pred_fallthru
    _
  // Predicated region
  $region18: #{svhn_classifier_forward.4} parent=0 // pred_check
    _
  $region19: #{svhn_classifier_forward.4} parent=0 // pred_check_branch
    %1432 = sbr.rel (0) target = $region21
  $region20: #{svhn_classifier_forward.4} parent=0 // pred_region
    _
  $region21: #{svhn_classifier_forward.4} parent=0 // pred_fallthru
    _

// kernel: svhn_classifier_forward.5
$region0: #{svhn_classifier_forward.5}
  #allocation0 [shape = 'u32[]', space=smem, size = 0x4, offset = 0x4, fixed_abs, tag = 'smem constant byte address 0x4 - core index']
  #allocation1 [shape = 'u32[72,128]{1,0:T(1,128)}', space=vmem, size = 0x9000, scoped, tag = 'internal scratch']
  %s0 = inlined_call_operand.vmem [shape: f32[8,640], index: 0, kind: input, shape index: {}]
  %s1 = inlined_call_operand.vmem [shape: f32[640,50], index: 1, kind: input, shape index: {}]
  %s2 = inlined_call_operand.vmem [shape: f32[1,50], index: 2, kind: input, shape index: {}]
  %s3 = inlined_call_operand.vmem [shape: f32[50,10], index: 3, kind: input, shape index: {}]
  %s4 = inlined_call_operand.vmem [shape: f32[1,10], index: 4, kind: input, shape index: {}]
  %s5 = inlined_call_operand.vmem [shape: f32[8,10], index: 5, kind: output, shape index: {}]
  %s6 = sld [smem:[#allocation0]]
  $region30: #{svhn_classifier_forward.5} parent=0
    _
  %s8 = ssub.s32 1, %s6
  %s9 = scalar_select 0, %s8, %s6
  // Predicated region
  $region2: #{svhn_classifier_forward.5} parent=0 // pred_check
    _
  $region3: #{svhn_classifier_forward.5} parent=0 // pred_check_branch
    %11 = sbr.rel (0) target = $region5
  $region4: #{svhn_classifier_forward.5} parent=0 // pred_region
    _
  $region5: #{svhn_classifier_forward.5} parent=0 // pred_fallthru
    _
  // Predicated region
  $region6: #{svhn_classifier_forward.5} parent=0 // pred_check
    _
  $region7: #{svhn_classifier_forward.5} parent=0 // pred_check_branch
    %13 = sbr.rel (0) target = $region9
  $region8: #{svhn_classifier_forward.5} parent=0 // pred_region
    _
  $region9: #{svhn_classifier_forward.5} parent=0 // pred_fallthru
    _
  // Predicated region
  $region10: #{svhn_classifier_forward.5} parent=0 // pred_check
    _
  $region11: #{svhn_classifier_forward.5} parent=0 // pred_check_branch
    %15 = sbr.rel (0) target = $region13
  $region12: #{svhn_classifier_forward.5} parent=0 // pred_region
    _
  $region13: #{svhn_classifier_forward.5} parent=0 // pred_fallthru
    _
  // Predicated region
  $region14: #{svhn_classifier_forward.5} parent=0 // pred_check
    _
  $region15: #{svhn_classifier_forward.5} parent=0 // pred_check_branch
    %17 = sbr.rel (0) target = $region17
  $region16: #{svhn_classifier_forward.5} parent=0 // pred_region
    _
  $region17: #{svhn_classifier_forward.5} parent=0 // pred_fallthru
    _
  // Predicated region
  $region18: #{svhn_classifier_forward.5} parent=0 // pred_check
    _
  $region19: #{svhn_classifier_forward.5} parent=0 // pred_check_branch
    %19 = sbr.rel (0) target = $region21
  $region20: #{svhn_classifier_forward.5} parent=0 // pred_region
    _
  $region21: #{svhn_classifier_forward.5} parent=0 // pred_fallthru
    _
  %v20 = vld [vmem:[%s0] sm:$0xff]
  %v21 = vld [vmem:[%s0 + $0x8] sm:$0xff]
  %v22 = vld [vmem:[%s0 + $0x10] sm:$0xff]
  %v23 = vld [vmem:[%s0 + $0x18] sm:$0xff]
  %v24 = vld [vmem:[%s0 + $0x20] sm:$0xff]
  %v25 = vld [vmem:[%s1] sm:$0xff]
  %v26 = vld [vmem:[%s1 + $0x8] sm:$0xff]
  %v27 = vld [vmem:[%s1 + $0x10] sm:$0xff]
  %v28 = vld [vmem:[%s1 + $0x18] sm:$0xff]
  %v29 = vld [vmem:[%s1 + $0x20] sm:$0xff]
  %v30 = vld [vmem:[%s1 + $0x28] sm:$0xff]
  %v31 = vld [vmem:[%s1 + $0x30] sm:$0xff]
  %v32 = vld [vmem:[%s1 + $0x38] sm:$0xff]
  %v33 = vld [vmem:[%s1 + $0x40] sm:$0xff]
  %v34 = vld [vmem:[%s1 + $0x48] sm:$0xff]
  %v35 = vld [vmem:[%s1 + $0x50] sm:$0xff]
  %v36 = vld [vmem:[%s1 + $0x58] sm:$0xff]
  %v37 = vld [vmem:[%s1 + $0x60] sm:$0xff]
  %v38 = vld [vmem:[%s1 + $0x68] sm:$0xff]
  %v39 = vld [vmem:[%s1 + $0x70] sm:$0xff]
  %v40 = vld [vmem:[%s1 + $0x78] sm:$0xff]
  %v41 = vld [vmem:[%s1 + $0x80] sm:$0xff]
  %v42 = vld [vmem:[%s1 + $0x88] sm:$0xff]
  %v43 = vld [vmem:[%s1 + $0x90] sm:$0xff]
  %v44 = vld [vmem:[%s1 + $0x98] sm:$0xff]
  %v45 = vld [vmem:[%s1 + $0xa0] sm:$0xff]
  %v46 = vld [vmem:[%s1 + $0xa8] sm:$0xff]
  %v47 = vld [vmem:[%s1 + $0xb0] sm:$0xff]
  %v48 = vld [vmem:[%s1 + $0xb8] sm:$0xff]
  %v49 = vld [vmem:[%s1 + $0xc0] sm:$0xff]
  %v50 = vld [vmem:[%s1 + $0xc8] sm:$0xff]
  %v51 = vld [vmem:[%s1 + $0xd0] sm:$0xff]
  %v52 = vld [vmem:[%s1 + $0xd8] sm:$0xff]
  %v53 = vld [vmem:[%s1 + $0xe0] sm:$0xff]
  %v54 = vld [vmem:[%s1 + $0xe8] sm:$0xff]
  %v55 = vld [vmem:[%s1 + $0xf0] sm:$0xff]
  %v56 = vld [vmem:[%s1 + $0xf8] sm:$0xff]
  %v57 = vld [vmem:[%s1 + $0x100] sm:$0xff]
  %v58 = vld [vmem:[%s1 + $0x108] sm:$0xff]
  %v59 = vld [vmem:[%s1 + $0x110] sm:$0xff]
  %v60 = vld [vmem:[%s1 + $0x118] sm:$0xff]
  %v61 = vld [vmem:[%s1 + $0x120] sm:$0xff]
  %v62 = vld [vmem:[%s1 + $0x128] sm:$0xff]
  %v63 = vld [vmem:[%s1 + $0x130] sm:$0xff]
  %v64 = vld [vmem:[%s1 + $0x138] sm:$0xff]
  %v65 = vld [vmem:[%s1 + $0x140] sm:$0xff]
  %v66 = vld [vmem:[%s1 + $0x148] sm:$0xff]
  %v67 = vld [vmem:[%s1 + $0x150] sm:$0xff]
  %v68 = vld [vmem:[%s1 + $0x158] sm:$0xff]
  %v69 = vld [vmem:[%s1 + $0x160] sm:$0xff]
  %v70 = vld [vmem:[%s1 + $0x168] sm:$0xff]
  %v71 = vld [vmem:[%s1 + $0x170] sm:$0xff]
  %v72 = vld [vmem:[%s1 + $0x178] sm:$0xff]
  %v73 = vld [vmem:[%s1 + $0x180] sm:$0xff]
  %v74 = vld [vmem:[%s1 + $0x188] sm:$0xff]
  %v75 = vld [vmem:[%s1 + $0x190] sm:$0xff]
  %v76 = vld [vmem:[%s1 + $0x198] sm:$0xff]
  %v77 = vld [vmem:[%s1 + $0x1a0] sm:$0xff]
  %v78 = vld [vmem:[%s1 + $0x1a8] sm:$0xff]
  %v79 = vld [vmem:[%s1 + $0x1b0] sm:$0xff]
  %v80 = vld [vmem:[%s1 + $0x1b8] sm:$0xff]
  %v81 = vld [vmem:[%s1 + $0x1c0] sm:$0xff]
  %v82 = vld [vmem:[%s1 + $0x1c8] sm:$0xff]
  %v83 = vld [vmem:[%s1 + $0x1d0] sm:$0xff]
  %v84 = vld [vmem:[%s1 + $0x1d8] sm:$0xff]
  %v85 = vld [vmem:[%s1 + $0x1e0] sm:$0xff]
  %v86 = vld [vmem:[%s1 + $0x1e8] sm:$0xff]
  %v87 = vld [vmem:[%s1 + $0x1f0] sm:$0xff]
  %v88 = vld [vmem:[%s1 + $0x1f8] sm:$0xff]
  %v89 = vld [vmem:[%s1 + $0x200] sm:$0xff]
  %v90 = vld [vmem:[%s1 + $0x208] sm:$0xff]
  %v91 = vld [vmem:[%s1 + $0x210] sm:$0xff]
  %v92 = vld [vmem:[%s1 + $0x218] sm:$0xff]
  %v93 = vld [vmem:[%s1 + $0x220] sm:$0xff]
  %v94 = vld [vmem:[%s1 + $0x228] sm:$0xff]
  %v95 = vld [vmem:[%s1 + $0x230] sm:$0xff]
  %v96 = vld [vmem:[%s1 + $0x238] sm:$0xff]
  %v97 = vld [vmem:[%s1 + $0x240] sm:$0xff]
  %v98 = vld [vmem:[%s1 + $0x248] sm:$0xff]
  %v99 = vld [vmem:[%s1 + $0x250] sm:$0xff]
  %v100 = vld [vmem:[%s1 + $0x258] sm:$0xff]
  %v101 = vld [vmem:[%s1 + $0x260] sm:$0xff]
  %v102 = vld [vmem:[%s1 + $0x268] sm:$0xff]
  %v103 = vld [vmem:[%s1 + $0x270] sm:$0xff]
  %v104 = vld [vmem:[%s1 + $0x278] sm:$0xff]
  %v105 = vld [vmem:[%s2] sm:$0x1]
  %v107 = vperm.slane %v105, 0
  %109 = vmatpush.msra.mxu0 %v40
  %110 = vmatpush.msra.mxu0 %v39
  %111 = vmatpush.msra.mxu0 %v38
  %112 = vmatpush.msra.mxu0 %v37
  %113 = vmatpush.msra.mxu0 %v36
  %114 = vmatpush.msra.mxu0 %v35
  %115 = vmatpush.msra.mxu0 %v34
  %116 = vmatpush.msra.mxu0 %v33
  %117 = vmatpush.msra.mxu0 %v32
  %118 = vmatpush.msra.mxu0 %v31
  %119 = vmatpush.msra.mxu0 %v30
  %120 = vmatpush.msra.mxu0 %v29
  %121 = vmatpush.msra.mxu0 %v28
  %122 = vmatpush.msra.mxu0 %v27
  %123 = vmatpush.msra.mxu0 %v26
  %124 = vmatpush.msra.mxu0 %v25
  %125 = vmatmul.f32.gmra.mxu0 %v20
  %v126 = vpop.f32.mrf.mxu0
  %v127 = vadd.f32 %v107, %v126
  %128 = vdwg.mxu0
  %129 = vmatpush.msra.mxu0 %v56
  %130 = vmatpush.msra.mxu0 %v55
  %131 = vmatpush.msra.mxu0 %v54
  %132 = vmatpush.msra.mxu0 %v53
  %133 = vmatpush.msra.mxu0 %v52
  %134 = vmatpush.msra.mxu0 %v51
  %135 = vmatpush.msra.mxu0 %v50
  %136 = vmatpush.msra.mxu0 %v49
  %137 = vmatpush.msra.mxu0 %v48
  %138 = vmatpush.msra.mxu0 %v47
  %139 = vmatpush.msra.mxu0 %v46
  %140 = vmatpush.msra.mxu0 %v45
  %141 = vmatpush.msra.mxu0 %v44
  %142 = vmatpush.msra.mxu0 %v43
  %143 = vmatpush.msra.mxu0 %v42
  %144 = vmatpush.msra.mxu0 %v41
  %145 = vmatmul.f32.gmra.mxu0 %v21
  %v146 = vpop.f32.mrf.mxu0
  %v147 = vadd.f32 %v127, %v146
  %148 = vdwg.mxu0
  %149 = vmatpush.msra.mxu0 %v72
  %150 = vmatpush.msra.mxu0 %v71
  %151 = vmatpush.msra.mxu0 %v70
  %152 = vmatpush.msra.mxu0 %v69
  %153 = vmatpush.msra.mxu0 %v68
  %154 = vmatpush.msra.mxu0 %v67
  %155 = vmatpush.msra.mxu0 %v66
  %156 = vmatpush.msra.mxu0 %v65
  %157 = vmatpush.msra.mxu0 %v64
  %158 = vmatpush.msra.mxu0 %v63
  %159 = vmatpush.msra.mxu0 %v62
  %160 = vmatpush.msra.mxu0 %v61
  %161 = vmatpush.msra.mxu0 %v60
  %162 = vmatpush.msra.mxu0 %v59
  %163 = vmatpush.msra.mxu0 %v58
  %164 = vmatpush.msra.mxu0 %v57
  %165 = vmatmul.f32.gmra.mxu0 %v22
  %v166 = vpop.f32.mrf.mxu0
  %v167 = vadd.f32 %v147, %v166
  %168 = vdwg.mxu0
  %169 = vmatpush.msra.mxu0 %v88
  %170 = vmatpush.msra.mxu0 %v87
  %171 = vmatpush.msra.mxu0 %v86
  %172 = vmatpush.msra.mxu0 %v85
  %173 = vmatpush.msra.mxu0 %v84
  %174 = vmatpush.msra.mxu0 %v83
  %175 = vmatpush.msra.mxu0 %v82
  %176 = vmatpush.msra.mxu0 %v81
  %177 = vmatpush.msra.mxu0 %v80
  %178 = vmatpush.msra.mxu0 %v79
  %179 = vmatpush.msra.mxu0 %v78
  %180 = vmatpush.msra.mxu0 %v77
  %181 = vmatpush.msra.mxu0 %v76
  %182 = vmatpush.msra.mxu0 %v75
  %183 = vmatpush.msra.mxu0 %v74
  %184 = vmatpush.msra.mxu0 %v73
  %185 = vmatmul.f32.gmra.mxu0 %v23
  %v186 = vpop.f32.mrf.mxu0
  %v187 = vadd.f32 %v167, %v186
  %188 = vdwg.mxu0
  %189 = vmatpush.msra.mxu0 %v104
  %190 = vmatpush.msra.mxu0 %v103
  %191 = vmatpush.msra.mxu0 %v102
  %192 = vmatpush.msra.mxu0 %v101
  %193 = vmatpush.msra.mxu0 %v100
  %194 = vmatpush.msra.mxu0 %v99
  %195 = vmatpush.msra.mxu0 %v98
  %196 = vmatpush.msra.mxu0 %v97
  %197 = vmatpush.msra.mxu0 %v96
  %198 = vmatpush.msra.mxu0 %v95
  %199 = vmatpush.msra.mxu0 %v94
  %200 = vmatpush.msra.mxu0 %v93
  %201 = vmatpush.msra.mxu0 %v92
  %202 = vmatpush.msra.mxu0 %v91
  %203 = vmatpush.msra.mxu0 %v90
  %204 = vmatpush.msra.mxu0 %v89
  %205 = vmatmul.f32.gmra.mxu0 %v24
  %v206 = vpop.f32.mrf.mxu0
  %v207 = vadd.f32 %v187, %v206
  %208 = vdwg.mxu0
  %v209 = vmax.f32 %v207, 0.0
  %v210 = vld [vmem:[%s3] sm:$0xff]
  %v211 = vld [vmem:[%s3 + $0x8] sm:$0xff]
  %v212 = vld [vmem:[%s3 + $0x10] sm:$0xff]
  %v213 = vld [vmem:[%s3 + $0x18] sm:$0xff]
  %v214 = vld [vmem:[%s3 + $0x20] sm:$0xff]
  %v215 = vld [vmem:[%s3 + $0x28] sm:$0xff]
  %v216 = vld [vmem:[%s3 + $0x30] sm:$0x3]
  %v217 = vld [vmem:[%s4] sm:$0x1]
  %v219 = vperm.slane %v217, 0
  %vm221 = vcmask 408576
  %v223 = vsel %vm221, %v209, 0
  %vm225 = vcmask 1041408
  %v227 = vsel %vm225, %v216, 0
  %229 = vmatpush.msra.mxu0 0.0
  %230 = vmatpush.msra.mxu0 0.0
  %231 = vmatpush.msra.mxu0 0.0
  %232 = vmatpush.msra.mxu0 0.0
  %233 = vmatpush.msra.mxu0 0.0
  %234 = vmatpush.msra.mxu0 0.0
  %235 = vmatpush.msra.mxu0 0.0
  %236 = vmatpush.msra.mxu0 0.0
  %237 = vmatpush.msra.mxu0 0.0
  %238 = vmatpush.msra.mxu0 %v227
  %239 = vmatpush.msra.mxu0 %v215
  %240 = vmatpush.msra.mxu0 %v214
  %241 = vmatpush.msra.mxu0 %v213
  %242 = vmatpush.msra.mxu0 %v212
  %243 = vmatpush.msra.mxu0 %v211
  %244 = vmatpush.msra.mxu0 %v210
  %245 = vmatmul.f32.gmra.mxu0 %v223
  %v246 = vpop.f32.mrf.mxu0
  %v247 = vadd.f32 %v219, %v246
  %248 = vdwg.mxu0
  %vm249 = vcmask 80896
  %v250 = vsel %vm249, %v247, -inf
  %251 = vmax.xlane.f32.xlu0 %v250
  %v252 = vpop.xlane.xlu0 %251
  %v253 = vsub.f32 %v247, %v252
  %v254 = vmul.f32 %v253, 1.442695
  %v255 = vpow.pop %v254
  %v256 = vsel %vm249, %v255, 0.0
  %257 = vadd.xlane.f32.xlu0 %v256
  %v258 = vpop.xlane.xlu0 %257
  %v259 = vlog2.pop %v258
  %v260 = vmul.f32 %v259, 0.6931472
  %v261 = vsub.f32 %v253, %v260
  %262 = vst.msk [vmem:[%s5] sm:$0xff] %vm249, %v261
  // Predicated region
  $region22: #{svhn_classifier_forward.5} parent=0 // pred_check
    _
  $region23: #{svhn_classifier_forward.5} parent=0 // pred_check_branch
    %264 = sbr.rel (0) target = $region25
  $region24: #{svhn_classifier_forward.5} parent=0 // pred_region
    _
  $region25: #{svhn_classifier_forward.5} parent=0 // pred_fallthru
    _
  // Predicated region
  $region26: #{svhn_classifier_forward.5} parent=0 // pred_check
    _
  $region27: #{svhn_classifier_forward.5} parent=0 // pred_check_branch
    %266 = sbr.rel (0) target = $region29
  $region28: #{svhn_classifier_forward.5} parent=0 // pred_region
    _
  $region29: #{svhn_classifier_forward.5} parent=0 // pred_fallthru
    _

</llo_original>
